<compile_context>
chip_gen: v7x
topology: tpu7x:2x2x1
jax: 0.10.0
libtpu: 0.0.40
codegen_flags: <defaults>
</compile_context>

<pallas_src>
import functools

import jax
import jax.numpy as jnp
import numpy as np
from jax.experimental import pallas as pl
from jax.experimental.pallas import tpu as pltpu

FEATURE_NUM = 256
S_DIM = [7, 8]
OUT_PAD = 128          # fc_logits[1] output padded to one full lane group


def _merge_compute_dtype():
    """bf16 elementwise merge math on chips with bf16 VALUs (v6e/v7x), f32 otherwise."""
    try:
        kind = jax.devices()[0].device_kind.lower()
    except Exception:
        return jnp.float32
    if "v6" in kind or "v7" in kind:
        return jnp.bfloat16
    return jnp.float32


# ----------------------------------------------------------------------------
# Pallas kernel:
#   for each 256-wide block k: (broadcast -> affine -> ReLU) and accumulate
#   blk @ wh_k into an f32 VMEM scratch; then Linear(256, OUT_PAD).
# ----------------------------------------------------------------------------
def actor_kernel(xsel_ref, wvec_ref, bvec_ref, wh_ref, bh_ref, wo_ref, bo_ref,
                 out_ref, acc_ref, *, merge_dtype):
    tm, nb = xsel_ref.shape
    F = FEATURE_NUM

    xsel = xsel_ref[...].astype(merge_dtype)          # (tm, nb) -- tiny

    # Fused merge build + split-K hidden matmul (K = 26 x 256).
    for k in range(nb):
        lo, hi = k * F, (k + 1) * F
        wv = wvec_ref[:, lo:hi].astype(merge_dtype)    # (1, F) per-block slice
        bv = bvec_ref[:, lo:hi].astype(merge_dtype)    # (1, F)
        xb = jnp.broadcast_to(xsel[:, k:k + 1], (tm, F))
        blk = jnp.maximum(xb * wv + bv, 0.0).astype(jnp.bfloat16)   # (tm, F)
        part = jnp.dot(blk, wh_ref[lo:hi, :],
                       preferred_element_type=jnp.float32)          # (tm, F)
        if k == 0:
            acc_ref[...] = part
        else:
            acc_ref[...] += part

    # fc_logits[1]: Linear(256, a1*a2) padded to 128 lanes, bf16 MXU, f32 acc.
    hidden = (acc_ref[...] + bh_ref[...]).astype(jnp.bfloat16)      # (tm, F)
    logits = jnp.dot(hidden, wo_ref[...],
                     preferred_element_type=jnp.float32) + bo_ref[...]
    out_ref[...] = logits.astype(out_ref.dtype)


# ----------------------------------------------------------------------------
# Deterministic parameter init (PyTorch layouts: Linear weight (out,in),
# Conv1d weight (out, in, k)).
# ----------------------------------------------------------------------------
def init_params(key, a1_dim, a2_dim):
    ks = jax.random.split(key, 10)

    def lin(k, out_d, in_d):
        bound = 1.0 / np.sqrt(in_d)
        kw, kb = jax.random.split(k)
        w = jax.random.uniform(kw, (out_d, in_d), jnp.float32, -bound, bound)
        b = jax.random.uniform(kb, (out_d,), jnp.float32, -bound, bound)
        return w, b

    F = FEATURE_NUM
    L = S_DIM[1]
    merge_dim = 4 * F + 2 * F * L + F * a1_dim
    assert merge_dim == 6656, "Linear(6656, ...) in the module forces a1_dim == 6"

    p = {}
    p["fc1_w"], p["fc1_b"] = lin(ks[0], F, 1)
    p["fc2_w"], p["fc2_b"] = lin(ks[1], F, 1)
    w, b = lin(ks[2], F, 1); p["c3_w"], p["c3_b"] = w.reshape(F, 1, 1), b
    w, b = lin(ks[3], F, 1); p["c4_w"], p["c4_b"] = w.reshape(F, 1, 1), b
    w, b = lin(ks[4], F, 1); p["c5_w"], p["c5_b"] = w.reshape(F, 1, 1), b
    p["fc6_w"], p["fc6_b"] = lin(ks[5], F, 1)
    p["fc7_w"], p["fc7_b"] = lin(ks[6], F, 1)
    p["wh"], p["bh"] = lin(ks[7], F, merge_dim)          # Linear(6656, 256)
    p["wo"], p["bo"] = lin(ks[8], a1_dim * a2_dim, F)    # Linear(256, a1*a2)
    return p


# ----------------------------------------------------------------------------
# One-time parameter packing (hoisted out of the per-call path).
# ----------------------------------------------------------------------------
def _merge_permutation(a1_dim):
    """perm[new_col] = old_col.

    old = PyTorch torch.cat/.view order (conv flatten is channel-major: c*L+t)
    new = 26 blocks of 256 columns, t-major within each conv branch, channel
          index running over the 256 lanes of each block.
    """
    F, L = FEATURE_NUM, S_DIM[1]
    c = np.arange(F)
    segs = [c, F + c]                               # fc1, fc2
    base = 2 * F
    for t in range(L):
        segs.append(base + c * L + t)               # conv3, block t
    base += F * L
    for t in range(L):
        segs.append(base + c * L + t)               # conv4, block t
    base += F * L
    for t in range(a1_dim):
        segs.append(base + c * a1_dim + t)          # conv5, block t
    base += F * a1_dim
    segs.append(base + c)                           # fc6
    segs.append(base + F + c)                       # fc7
    return np.concatenate(segs)


def pack_actor_params(p, a1_dim, a2_dim):
    F, L = FEATURE_NUM, S_DIM[1]
    out_dim = a1_dim * a2_dim
    assert out_dim <= OUT_PAD

    # Per-column affine weight / bias in the block-of-256 column order.
    wvec = jnp.concatenate([
        p["fc1_w"][:, 0],
        p["fc2_w"][:, 0],
        jnp.tile(p["c3_w"][:, 0, 0], L),
        jnp.tile(p["c4_w"][:, 0, 0], L),
        jnp.tile(p["c5_w"][:, 0, 0], a1_dim),
        p["fc6_w"][:, 0],
        p["fc7_w"][:, 0],
    ])[None, :].astype(jnp.float32)
    bvec = jnp.concatenate([
        p["fc1_b"],
        p["fc2_b"],
        jnp.tile(p["c3_b"], L),
        jnp.tile(p["c4_b"], L),
        jnp.tile(p["c5_b"], a1_dim),
        p["fc6_b"],
        p["fc7_b"],
    ])[None, :].astype(jnp.float32)

    perm = _merge_permutation(a1_dim)
    wh = p["wh"][:, perm].T.astype(jnp.bfloat16)          # (6656, 256) bf16
    bh = p["bh"][None, :].astype(jnp.float32)             # (1, 256)     f32
    wo = jnp.pad(p["wo"].T,
                 ((0, 0), (0, OUT_PAD - out_dim))).astype(jnp.bfloat16)
    bo = jnp.pad(p["bo"], (0, OUT_PAD - out_dim))[None, :].astype(jnp.float32)

    return {"wvec": wvec, "bvec": bvec, "wh": wh, "bh": bh, "wo": wo, "bo": bo,
            "a1_dim": a1_dim, "a2_dim": a2_dim}


def _build_xsel(x, a1_dim):
    """One scalar per 256-wide merge block: (B, 26), ~100 B per row."""
    return jnp.concatenate([
        x[:, 0, -1:], x[:, 1, -1:],
        x[:, 2, :], x[:, 3, :], x[:, 4, :a1_dim],
        x[:, 5, -1:], x[:, 6, -1:],
    ], axis=1).astype(jnp.float32)


# ----------------------------------------------------------------------------
# Per-call wrapper: tiny input selection, batch padding, one pallas_call.
# ----------------------------------------------------------------------------
def actor_forward_pallas(x, packed, *, block_m=128, merge_dtype=None):
    if merge_dtype is None:
        merge_dtype = _merge_compute_dtype()

    a1_dim, a2_dim = packed["a1_dim"], packed["a2_dim"]
    out_dim = a1_dim * a2_dim
    B = x.shape[0]
    F = FEATURE_NUM
    merge_dim = packed["wvec"].shape[1]
    nb = merge_dim // F                                    # 26 blocks

    xsel = _build_xsel(x, a1_dim)                          # (B, 26)

    # Pad batch to a sublane multiple; pick the batch tile so large batches
    # get >= 2 grid steps (lets v7x megacore shard the "parallel" axis), while
    # small batches keep a single tile (weights DMA'd once).
    b8 = max(8, -(-B // 8) * 8)
    tm = min(block_m, b8)
    if b8 >= 256 and b8 // tm < 2:
        tm = -(-(b8 // 2) // 8) * 8
    bp = -(-b8 // tm) * tm
    if bp != B:
        xsel = jnp.pad(xsel, ((0, bp - B), (0, 0)))

    grid = (bp // tm,)
    flops = 2 * bp * merge_dim * F + 2 * bp * F * OUT_PAD + 3 * bp * merge_dim
    bytes_accessed = (bp * nb * 4 + 2 * merge_dim * 4 + merge_dim * F * 2 +
                      F * 4 + F * OUT_PAD * 2 + OUT_PAD * 4 + bp * OUT_PAD * 4)

    kernel = functools.partial(actor_kernel, merge_dtype=merge_dtype)
    resident = dict(pipeline_mode=pl.Buffered(1))          # constant-index weights

    out = pl.pallas_call(
        kernel,
        out_shape=jax.ShapeDtypeStruct((bp, OUT_PAD), jnp.float32),
        grid_spec=pltpu.PrefetchScalarGridSpec(
            num_scalar_prefetch=0,
            grid=grid,
            in_specs=[
                pl.BlockSpec((tm, nb), lambda i: (i, 0)),                 # xsel (tiled)
                pl.BlockSpec((1, merge_dim), lambda i: (0, 0), **resident),  # wvec
                pl.BlockSpec((1, merge_dim), lambda i: (0, 0), **resident),  # bvec
                pl.BlockSpec((merge_dim, F), lambda i: (0, 0), **resident),  # wh (bf16)
                pl.BlockSpec((1, F), lambda i: (0, 0), **resident),          # bh
                pl.BlockSpec((F, OUT_PAD), lambda i: (0, 0), **resident),    # wo (bf16)
                pl.BlockSpec((1, OUT_PAD), lambda i: (0, 0), **resident),    # bo
            ],
            out_specs=pl.BlockSpec((tm, OUT_PAD), lambda i: (i, 0)),
            scratch_shapes=[pltpu.VMEM((tm, F), jnp.float32)],            # f32 acc
        ),
        compiler_params=pltpu.CompilerParams(
            dimension_semantics=("parallel",),
            vmem_limit_bytes=24 * 1024 * 1024,
        ),
        cost_estimate=pl.CostEstimate(flops=flops, transcendentals=0,
                                      bytes_accessed=bytes_accessed),
    )(xsel, packed["wvec"], packed["bvec"], packed["wh"], packed["bh"],
      packed["wo"], packed["bo"])

    return out[:B, :out_dim]


# ----------------------------------------------------------------------------
# References for validation.
# ----------------------------------------------------------------------------
def actor_forward_ref(x, p, a1_dim, a2_dim):
    """Pure-f32 direct port of the PyTorch forward (semantic reference)."""
    relu = lambda z: jnp.maximum(z, 0.0)

    def lin(v, w, b):                 # v (B,1), w (F,1), b (F,)
        return v @ w.T + b

    def conv(v, w, b):                # v (B,1,L), w (F,1,1), b (F,)
        out = v[:, 0][:, None, :] * w[:, 0, 0][None, :, None] + b[None, :, None]
        return out.reshape(v.shape[0], -1)     # channel-major flatten (.view)

    s1 = relu(lin(x[:, 0:1, -1], p["fc1_w"], p["fc1_b"]))
    s2 = relu(lin(x[:, 1:2, -1], p["fc2_w"], p["fc2_b"]))
    s3 = relu(conv(x[:, 2:3, :], p["c3_w"], p["c3_b"]))
    s4 = relu(conv(x[:, 3:4, :], p["c4_w"], p["c4_b"]))
    s5 = relu(conv(x[:, 4:5, :a1_dim], p["c5_w"], p["c5_b"]))
    s6 = relu(lin(x[:, 5:6, -1], p["fc6_w"], p["fc6_b"]))
    s7 = relu(lin(x[:, 6:7, -1], p["fc7_w"], p["fc7_b"]))
    merge = jnp.concatenate([s1, s2, s3, s4, s5, s6, s7], axis=1)
    hidden = merge @ p["wh"].T + p["bh"]
    return hidden @ p["wo"].T + p["bo"]


def actor_forward_matched_ref(x, packed, merge_dtype):
    """Precision-matched reference mirroring the kernel's math/dtypes."""
    a1_dim, a2_dim = packed["a1_dim"], packed["a2_dim"]
    out_dim = a1_dim * a2_dim
    F = FEATURE_NUM
    xsel = _build_xsel(x, a1_dim)                              # (B, 26)
    xm = jnp.repeat(xsel.astype(merge_dtype), F, axis=1)       # (B, 6656)
    wv = packed["wvec"].astype(merge_dtype)
    bv = packed["bvec"].astype(merge_dtype)
    merge = jnp.maximum(xm * wv + bv, 0.0).astype(jnp.bfloat16)
    hidden = jnp.dot(merge, packed["wh"],
                     preferred_element_type=jnp.float32) + packed["bh"]
    logits = jnp.dot(hidden.astype(jnp.bfloat16), packed["wo"],
                     preferred_element_type=jnp.float32) + packed["bo"]
    return logits[:, :out_dim]


if __name__ == "__main__":
    # Linear(6656, ...) in fc_logits implies a1_dim == 6; a2_dim chosen freely.
    a1_dim, a2_dim = 6, 4
    key = jax.random.PRNGKey(0)
    kp, kx = jax.random.split(key)
    params = init_params(kp, a1_dim, a2_dim)
    packed = pack_actor_params(params, a1_dim, a2_dim)   # one-time packing

    B = 2
    x = jax.random.normal(kx, (B, S_DIM[0], S_DIM[1]), dtype=jnp.float32)

    merge_dtype = _merge_compute_dtype()
    logits = actor_forward_pallas(x, packed, merge_dtype=merge_dtype)
    jax.block_until_ready(logits)
    assert logits.shape == (B, a1_dim * a2_dim)

    # Tight check vs a precision-matched (bf16 matmuls, f32 accum) reference.
    ref_matched = actor_forward_matched_ref(x, packed, merge_dtype)
    np.testing.assert_allclose(np.asarray(logits), np.asarray(ref_matched),
                               rtol=5e-3, atol=5e-3)
    # Loose check vs the full-f32 PyTorch-equivalent reference (validates the
    # column permutation / packing end-to-end).
    ref_f32 = actor_forward_ref(x, params, a1_dim, a2_dim)
    np.testing.assert_allclose(np.asarray(logits), np.asarray(ref_f32),
                               rtol=3e-2, atol=3e-2)

    # TODO(synk): get_action's Categorical sampling / log_softmax is host-side
    # policy logic and is not part of the kernelized forward pass.
    print("KERNEL_OK")
</pallas_src>

<mosaic_0001>
module attributes {stable_mosaic.version = 11 : i64} {
  func.func @actor_kernel(%arg0: i32, %arg1: memref<8x26xf32, #tpu.memory_space<vmem>>, %arg2: memref<1x6656xf32, #tpu.memory_space<vmem>>, %arg3: memref<1x6656xf32, #tpu.memory_space<vmem>>, %arg4: memref<6656x256xbf16, #tpu.memory_space<vmem>>, %arg5: memref<1x256xf32, #tpu.memory_space<vmem>>, %arg6: memref<256x128xbf16, #tpu.memory_space<vmem>>, %arg7: memref<1x128xf32, #tpu.memory_space<vmem>>, %arg8: memref<8x128xf32, #tpu.memory_space<vmem>>, %arg9: memref<8x256xf32, #tpu.memory_space<vmem>>) attributes {dimension_semantics = [#tpu.dimension_semantics<parallel>], iteration_bounds = array<i64: 1>, scalar_prefetch = 0 : i64, scratch_operands = 1 : i64, tpu.core_type = #tpu.core_type<tc>, window_params = [{transform_indices = @transform_0, window_bounds = array<i64: 8, 26>}, {pipeline_mode = #tpu.pipeline_mode<synchronous>, transform_indices = @transform_1, window_bounds = array<i64: 1, 6656>}, {pipeline_mode = #tpu.pipeline_mode<synchronous>, transform_indices = @transform_2, window_bounds = array<i64: 1, 6656>}, {pipeline_mode = #tpu.pipeline_mode<synchronous>, transform_indices = @transform_3, window_bounds = array<i64: 6656, 256>}, {pipeline_mode = #tpu.pipeline_mode<synchronous>, transform_indices = @transform_4, window_bounds = array<i64: 1, 256>}, {pipeline_mode = #tpu.pipeline_mode<synchronous>, transform_indices = @transform_5, window_bounds = array<i64: 256, 128>}, {pipeline_mode = #tpu.pipeline_mode<synchronous>, transform_indices = @transform_6, window_bounds = array<i64: 1, 128>}, {transform_indices = @transform_7, window_bounds = array<i64: 8, 128>}]} {
    %c0 = arith.constant 0 : index
    %c0_0 = arith.constant 0 : index
    %0 = vector.load %arg1[%c0, %c0_0] : memref<8x26xf32, #tpu.memory_space<vmem>>, vector<8x26xf32>
    %c0_1 = arith.constant 0 : index
    %c0_2 = arith.constant 0 : index
    %1 = vector.load %arg2[%c0_1, %c0_2] : memref<1x6656xf32, #tpu.memory_space<vmem>>, vector<1x256xf32>
    %c0_3 = arith.constant 0 : index
    %c0_4 = arith.constant 0 : index
    %2 = vector.load %arg3[%c0_3, %c0_4] : memref<1x6656xf32, #tpu.memory_space<vmem>>, vector<1x256xf32>
    %3 = vector.extract_strided_slice %0 {offsets = [0, 0], sizes = [8, 1], strides = [1, 1]} : vector<8x26xf32> to vector<8x1xf32>
    %4 = vector.shape_cast %3 : vector<8x1xf32> to vector<8x1xf32>
    %5 = vector.broadcast %4 : vector<8x1xf32> to vector<8x256xf32>
    %6 = vector.broadcast %1 : vector<1x256xf32> to vector<8x256xf32>
    %7 = arith.mulf %5, %6 : vector<8x256xf32>
    %8 = vector.broadcast %2 : vector<1x256xf32> to vector<8x256xf32>
    %9 = arith.addf %7, %8 : vector<8x256xf32>
    %cst = arith.constant 0.000000e+00 : f32
    %10 = vector.broadcast %cst : f32 to vector<8x256xf32>
    %11 = arith.maximumf %9, %10 : vector<8x256xf32>
    %12 = arith.truncf %11 : vector<8x256xf32> to vector<8x256xbf16>
    %c0_5 = arith.constant 0 : index
    %c0_6 = arith.constant 0 : index
    %13 = vector.load %arg4[%c0_5, %c0_6] : memref<6656x256xbf16, #tpu.memory_space<vmem>>, vector<256x256xbf16>
    %cst_7 = arith.constant dense<0.000000e+00> : vector<8x256xf32>
    %14 = tpu.matmul %12, %13, %cst_7 {dimension_numbers = #tpu.dot_dimension_numbers<[1], [0], [0], [1], [0, 0, 1, 1], [], []>} : vector<8x256xbf16>, vector<256x256xbf16>, vector<8x256xf32> -> vector<8x256xf32>
    %c0_8 = arith.constant 0 : index
    %c0_9 = arith.constant 0 : index
    %15 = vector.load %arg9[%c0_8, %c0_9] : memref<8x256xf32, #tpu.memory_space<vmem>>, vector<8x256xf32>
    tpu.vector_store %arg9[%c0_8, %c0_9], %14 {strides = array<i32>} : memref<8x256xf32, #tpu.memory_space<vmem>>, vector<8x256xf32>,
    %c0_10 = arith.constant 0 : index
    %c256 = arith.constant 256 : index
    %16 = vector.load %arg2[%c0_10, %c256] : memref<1x6656xf32, #tpu.memory_space<vmem>>, vector<1x256xf32>
    %c0_11 = arith.constant 0 : index
    %c256_12 = arith.constant 256 : index
    %17 = vector.load %arg3[%c0_11, %c256_12] : memref<1x6656xf32, #tpu.memory_space<vmem>>, vector<1x256xf32>
    %18 = vector.extract_strided_slice %0 {offsets = [0, 1], sizes = [8, 1], strides = [1, 1]} : vector<8x26xf32> to vector<8x1xf32>
    %19 = vector.shape_cast %18 : vector<8x1xf32> to vector<8x1xf32>
    %20 = vector.broadcast %19 : vector<8x1xf32> to vector<8x256xf32>
    %21 = vector.broadcast %16 : vector<1x256xf32> to vector<8x256xf32>
    %22 = arith.mulf %20, %21 : vector<8x256xf32>
    %23 = vector.broadcast %17 : vector<1x256xf32> to vector<8x256xf32>
    %24 = arith.addf %22, %23 : vector<8x256xf32>
    %cst_13 = arith.constant 0.000000e+00 : f32
    %25 = vector.broadcast %cst_13 : f32 to vector<8x256xf32>
    %26 = arith.maximumf %24, %25 : vector<8x256xf32>
    %27 = arith.truncf %26 : vector<8x256xf32> to vector<8x256xbf16>
    %c256_14 = arith.constant 256 : index
    %c0_15 = arith.constant 0 : index
    %28 = vector.load %arg4[%c256_14, %c0_15] : memref<6656x256xbf16, #tpu.memory_space<vmem>>, vector<256x256xbf16>
    %cst_16 = arith.constant dense<0.000000e+00> : vector<8x256xf32>
    %29 = tpu.matmul %27, %28, %cst_16 {dimension_numbers = #tpu.dot_dimension_numbers<[1], [0], [0], [1], [0, 0, 1, 1], [], []>} : vector<8x256xbf16>, vector<256x256xbf16>, vector<8x256xf32> -> vector<8x256xf32>
    %c0_17 = arith.constant 0 : index
    %c0_18 = arith.constant 0 : index
    %30 = vector.load %arg9[%c0_17, %c0_18] : memref<8x256xf32, #tpu.memory_space<vmem>>, vector<8x256xf32>
    %31 = arith.addf %30, %29 : vector<8x256xf32>
    %c0_19 = arith.constant 0 : index
    %c0_20 = arith.constant 0 : index
    %32 = vector.load %arg9[%c0_19, %c0_20] : memref<8x256xf32, #tpu.memory_space<vmem>>, vector<8x256xf32>
    tpu.vector_store %arg9[%c0_19, %c0_20], %31 {strides = array<i32>} : memref<8x256xf32, #tpu.memory_space<vmem>>, vector<8x256xf32>,
    %c0_21 = arith.constant 0 : index
    %c512 = arith.constant 512 : index
    %33 = vector.load %arg2[%c0_21, %c512] : memref<1x6656xf32, #tpu.memory_space<vmem>>, vector<1x256xf32>
    %c0_22 = arith.constant 0 : index
    %c512_23 = arith.constant 512 : index
    %34 = vector.load %arg3[%c0_22, %c512_23] : memref<1x6656xf32, #tpu.memory_space<vmem>>, vector<1x256xf32>
    %35 = vector.extract_strided_slice %0 {offsets = [0, 2], sizes = [8, 1], strides = [1, 1]} : vector<8x26xf32> to vector<8x1xf32>
    %36 = vector.shape_cast %35 : vector<8x1xf32> to vector<8x1xf32>
    %37 = vector.broadcast %36 : vector<8x1xf32> to vector<8x256xf32>
    %38 = vector.broadcast %33 : vector<1x256xf32> to vector<8x256xf32>
    %39 = arith.mulf %37, %38 : vector<8x256xf32>
    %40 = vector.broadcast %34 : vector<1x256xf32> to vector<8x256xf32>
    %41 = arith.addf %39, %40 : vector<8x256xf32>
    %cst_24 = arith.constant 0.000000e+00 : f32
    %42 = vector.broadcast %cst_24 : f32 to vector<8x256xf32>
    %43 = arith.maximumf %41, %42 : vector<8x256xf32>
    %44 = arith.truncf %43 : vector<8x256xf32> to vector<8x256xbf16>
    %c512_25 = arith.constant 512 : index
    %c0_26 = arith.constant 0 : index
    %45 = vector.load %arg4[%c512_25, %c0_26] : memref<6656x256xbf16, #tpu.memory_space<vmem>>, vector<256x256xbf16>
    %cst_27 = arith.constant dense<0.000000e+00> : vector<8x256xf32>
    %46 = tpu.matmul %44, %45, %cst_27 {dimension_numbers = #tpu.dot_dimension_numbers<[1], [0], [0], [1], [0, 0, 1, 1], [], []>} : vector<8x256xbf16>, vector<256x256xbf16>, vector<8x256xf32> -> vector<8x256xf32>
    %c0_28 = arith.constant 0 : index
    %c0_29 = arith.constant 0 : index
    %47 = vector.load %arg9[%c0_28, %c0_29] : memref<8x256xf32, #tpu.memory_space<vmem>>, vector<8x256xf32>
    %48 = arith.addf %47, %46 : vector<8x256xf32>
    %c0_30 = arith.constant 0 : index
    %c0_31 = arith.constant 0 : index
    %49 = vector.load %arg9[%c0_30, %c0_31] : memref<8x256xf32, #tpu.memory_space<vmem>>, vector<8x256xf32>
    tpu.vector_store %arg9[%c0_30, %c0_31], %48 {strides = array<i32>} : memref<8x256xf32, #tpu.memory_space<vmem>>, vector<8x256xf32>,
    %c0_32 = arith.constant 0 : index
    %c768 = arith.constant 768 : index
    %50 = vector.load %arg2[%c0_32, %c768] : memref<1x6656xf32, #tpu.memory_space<vmem>>, vector<1x256xf32>
    %c0_33 = arith.constant 0 : index
    %c768_34 = arith.constant 768 : index
    %51 = vector.load %arg3[%c0_33, %c768_34] : memref<1x6656xf32, #tpu.memory_space<vmem>>, vector<1x256xf32>
    %52 = vector.extract_strided_slice %0 {offsets = [0, 3], sizes = [8, 1], strides = [1, 1]} : vector<8x26xf32> to vector<8x1xf32>
    %53 = vector.shape_cast %52 : vector<8x1xf32> to vector<8x1xf32>
    %54 = vector.broadcast %53 : vector<8x1xf32> to vector<8x256xf32>
    %55 = vector.broadcast %50 : vector<1x256xf32> to vector<8x256xf32>
    %56 = arith.mulf %54, %55 : vector<8x256xf32>
    %57 = vector.broadcast %51 : vector<1x256xf32> to vector<8x256xf32>
    %58 = arith.addf %56, %57 : vector<8x256xf32>
    %cst_35 = arith.constant 0.000000e+00 : f32
    %59 = vector.broadcast %cst_35 : f32 to vector<8x256xf32>
    %60 = arith.maximumf %58, %59 : vector<8x256xf32>
    %61 = arith.truncf %60 : vector<8x256xf32> to vector<8x256xbf16>
    %c768_36 = arith.constant 768 : index
    %c0_37 = arith.constant 0 : index
    %62 = vector.load %arg4[%c768_36, %c0_37] : memref<6656x256xbf16, #tpu.memory_space<vmem>>, vector<256x256xbf16>
    %cst_38 = arith.constant dense<0.000000e+00> : vector<8x256xf32>
    %63 = tpu.matmul %61, %62, %cst_38 {dimension_numbers = #tpu.dot_dimension_numbers<[1], [0], [0], [1], [0, 0, 1, 1], [], []>} : vector<8x256xbf16>, vector<256x256xbf16>, vector<8x256xf32> -> vector<8x256xf32>
    %c0_39 = arith.constant 0 : index
    %c0_40 = arith.constant 0 : index
    %64 = vector.load %arg9[%c0_39, %c0_40] : memref<8x256xf32, #tpu.memory_space<vmem>>, vector<8x256xf32>
    %65 = arith.addf %64, %63 : vector<8x256xf32>
    %c0_41 = arith.constant 0 : index
    %c0_42 = arith.constant 0 : index
    %66 = vector.load %arg9[%c0_41, %c0_42] : memref<8x256xf32, #tpu.memory_space<vmem>>, vector<8x256xf32>
    tpu.vector_store %arg9[%c0_41, %c0_42], %65 {strides = array<i32>} : memref<8x256xf32, #tpu.memory_space<vmem>>, vector<8x256xf32>,
    %c0_43 = arith.constant 0 : index
    %c1024 = arith.constant 1024 : index
    %67 = vector.load %arg2[%c0_43, %c1024] : memref<1x6656xf32, #tpu.memory_space<vmem>>, vector<1x256xf32>
    %c0_44 = arith.constant 0 : index
    %c1024_45 = arith.constant 1024 : index
    %68 = vector.load %arg3[%c0_44, %c1024_45] : memref<1x6656xf32, #tpu.memory_space<vmem>>, vector<1x256xf32>
    %69 = vector.extract_strided_slice %0 {offsets = [0, 4], sizes = [8, 1], strides = [1, 1]} : vector<8x26xf32> to vector<8x1xf32>
    %70 = vector.shape_cast %69 : vector<8x1xf32> to vector<8x1xf32>
    %71 = vector.broadcast %70 : vector<8x1xf32> to vector<8x256xf32>
    %72 = vector.broadcast %67 : vector<1x256xf32> to vector<8x256xf32>
    %73 = arith.mulf %71, %72 : vector<8x256xf32>
    %74 = vector.broadcast %68 : vector<1x256xf32> to vector<8x256xf32>
    %75 = arith.addf %73, %74 : vector<8x256xf32>
    %cst_46 = arith.constant 0.000000e+00 : f32
    %76 = vector.broadcast %cst_46 : f32 to vector<8x256xf32>
    %77 = arith.maximumf %75, %76 : vector<8x256xf32>
    %78 = arith.truncf %77 : vector<8x256xf32> to vector<8x256xbf16>
    %c1024_47 = arith.constant 1024 : index
    %c0_48 = arith.constant 0 : index
    %79 = vector.load %arg4[%c1024_47, %c0_48] : memref<6656x256xbf16, #tpu.memory_space<vmem>>, vector<256x256xbf16>
    %cst_49 = arith.constant dense<0.000000e+00> : vector<8x256xf32>
    %80 = tpu.matmul %78, %79, %cst_49 {dimension_numbers = #tpu.dot_dimension_numbers<[1], [0], [0], [1], [0, 0, 1, 1], [], []>} : vector<8x256xbf16>, vector<256x256xbf16>, vector<8x256xf32> -> vector<8x256xf32>
    %c0_50 = arith.constant 0 : index
    %c0_51 = arith.constant 0 : index
    %81 = vector.load %arg9[%c0_50, %c0_51] : memref<8x256xf32, #tpu.memory_space<vmem>>, vector<8x256xf32>
    %82 = arith.addf %81, %80 : vector<8x256xf32>
    %c0_52 = arith.constant 0 : index
    %c0_53 = arith.constant 0 : index
    %83 = vector.load %arg9[%c0_52, %c0_53] : memref<8x256xf32, #tpu.memory_space<vmem>>, vector<8x256xf32>
    tpu.vector_store %arg9[%c0_52, %c0_53], %82 {strides = array<i32>} : memref<8x256xf32, #tpu.memory_space<vmem>>, vector<8x256xf32>,
    %c0_54 = arith.constant 0 : index
    %c1280 = arith.constant 1280 : index
    %84 = vector.load %arg2[%c0_54, %c1280] : memref<1x6656xf32, #tpu.memory_space<vmem>>, vector<1x256xf32>
    %c0_55 = arith.constant 0 : index
    %c1280_56 = arith.constant 1280 : index
    %85 = vector.load %arg3[%c0_55, %c1280_56] : memref<1x6656xf32, #tpu.memory_space<vmem>>, vector<1x256xf32>
    %86 = vector.extract_strided_slice %0 {offsets = [0, 5], sizes = [8, 1], strides = [1, 1]} : vector<8x26xf32> to vector<8x1xf32>
    %87 = vector.shape_cast %86 : vector<8x1xf32> to vector<8x1xf32>
    %88 = vector.broadcast %87 : vector<8x1xf32> to vector<8x256xf32>
    %89 = vector.broadcast %84 : vector<1x256xf32> to vector<8x256xf32>
    %90 = arith.mulf %88, %89 : vector<8x256xf32>
    %91 = vector.broadcast %85 : vector<1x256xf32> to vector<8x256xf32>
    %92 = arith.addf %90, %91 : vector<8x256xf32>
    %cst_57 = arith.constant 0.000000e+00 : f32
    %93 = vector.broadcast %cst_57 : f32 to vector<8x256xf32>
    %94 = arith.maximumf %92, %93 : vector<8x256xf32>
    %95 = arith.truncf %94 : vector<8x256xf32> to vector<8x256xbf16>
    %c1280_58 = arith.constant 1280 : index
    %c0_59 = arith.constant 0 : index
    %96 = vector.load %arg4[%c1280_58, %c0_59] : memref<6656x256xbf16, #tpu.memory_space<vmem>>, vector<256x256xbf16>
    %cst_60 = arith.constant dense<0.000000e+00> : vector<8x256xf32>
    %97 = tpu.matmul %95, %96, %cst_60 {dimension_numbers = #tpu.dot_dimension_numbers<[1], [0], [0], [1], [0, 0, 1, 1], [], []>} : vector<8x256xbf16>, vector<256x256xbf16>, vector<8x256xf32> -> vector<8x256xf32>
    %c0_61 = arith.constant 0 : index
    %c0_62 = arith.constant 0 : index
    %98 = vector.load %arg9[%c0_61, %c0_62] : memref<8x256xf32, #tpu.memory_space<vmem>>, vector<8x256xf32>
    %99 = arith.addf %98, %97 : vector<8x256xf32>
    %c0_63 = arith.constant 0 : index
    %c0_64 = arith.constant 0 : index
    %100 = vector.load %arg9[%c0_63, %c0_64] : memref<8x256xf32, #tpu.memory_space<vmem>>, vector<8x256xf32>
    tpu.vector_store %arg9[%c0_63, %c0_64], %99 {strides = array<i32>} : memref<8x256xf32, #tpu.memory_space<vmem>>, vector<8x256xf32>,
    %c0_65 = arith.constant 0 : index
    %c1536 = arith.constant 1536 : index
    %101 = vector.load %arg2[%c0_65, %c1536] : memref<1x6656xf32, #tpu.memory_space<vmem>>, vector<1x256xf32>
    %c0_66 = arith.constant 0 : index
    %c1536_67 = arith.constant 1536 : index
    %102 = vector.load %arg3[%c0_66, %c1536_67] : memref<1x6656xf32, #tpu.memory_space<vmem>>, vector<1x256xf32>
    %103 = vector.extract_strided_slice %0 {offsets = [0, 6], sizes = [8, 1], strides = [1, 1]} : vector<8x26xf32> to vector<8x1xf32>
    %104 = vector.shape_cast %103 : vector<8x1xf32> to vector<8x1xf32>
    %105 = vector.broadcast %104 : vector<8x1xf32> to vector<8x256xf32>
    %106 = vector.broadcast %101 : vector<1x256xf32> to vector<8x256xf32>
    %107 = arith.mulf %105, %106 : vector<8x256xf32>
    %108 = vector.broadcast %102 : vector<1x256xf32> to vector<8x256xf32>
    %109 = arith.addf %107, %108 : vector<8x256xf32>
    %cst_68 = arith.constant 0.000000e+00 : f32
    %110 = vector.broadcast %cst_68 : f32 to vector<8x256xf32>
    %111 = arith.maximumf %109, %110 : vector<8x256xf32>
    %112 = arith.truncf %111 : vector<8x256xf32> to vector<8x256xbf16>
    %c1536_69 = arith.constant 1536 : index
    %c0_70 = arith.constant 0 : index
    %113 = vector.load %arg4[%c1536_69, %c0_70] : memref<6656x256xbf16, #tpu.memory_space<vmem>>, vector<256x256xbf16>
    %cst_71 = arith.constant dense<0.000000e+00> : vector<8x256xf32>
    %114 = tpu.matmul %112, %113, %cst_71 {dimension_numbers = #tpu.dot_dimension_numbers<[1], [0], [0], [1], [0, 0, 1, 1], [], []>} : vector<8x256xbf16>, vector<256x256xbf16>, vector<8x256xf32> -> vector<8x256xf32>
    %c0_72 = arith.constant 0 : index
    %c0_73 = arith.constant 0 : index
    %115 = vector.load %arg9[%c0_72, %c0_73] : memref<8x256xf32, #tpu.memory_space<vmem>>, vector<8x256xf32>
    %116 = arith.addf %115, %114 : vector<8x256xf32>
    %c0_74 = arith.constant 0 : index
    %c0_75 = arith.constant 0 : index
    %117 = vector.load %arg9[%c0_74, %c0_75] : memref<8x256xf32, #tpu.memory_space<vmem>>, vector<8x256xf32>
    tpu.vector_store %arg9[%c0_74, %c0_75], %116 {strides = array<i32>} : memref<8x256xf32, #tpu.memory_space<vmem>>, vector<8x256xf32>,
    %c0_76 = arith.constant 0 : index
    %c1792 = arith.constant 1792 : index
    %118 = vector.load %arg2[%c0_76, %c1792] : memref<1x6656xf32, #tpu.memory_space<vmem>>, vector<1x256xf32>
    %c0_77 = arith.constant 0 : index
    %c1792_78 = arith.constant 1792 : index
    %119 = vector.load %arg3[%c0_77, %c1792_78] : memref<1x6656xf32, #tpu.memory_space<vmem>>, vector<1x256xf32>
    %120 = vector.extract_strided_slice %0 {offsets = [0, 7], sizes = [8, 1], strides = [1, 1]} : vector<8x26xf32> to vector<8x1xf32>
    %121 = vector.shape_cast %120 : vector<8x1xf32> to vector<8x1xf32>
    %122 = vector.broadcast %121 : vector<8x1xf32> to vector<8x256xf32>
    %123 = vector.broadcast %118 : vector<1x256xf32> to vector<8x256xf32>
    %124 = arith.mulf %122, %123 : vector<8x256xf32>
    %125 = vector.broadcast %119 : vector<1x256xf32> to vector<8x256xf32>
    %126 = arith.addf %124, %125 : vector<8x256xf32>
    %cst_79 = arith.constant 0.000000e+00 : f32
    %127 = vector.broadcast %cst_79 : f32 to vector<8x256xf32>
    %128 = arith.maximumf %126, %127 : vector<8x256xf32>
    %129 = arith.truncf %128 : vector<8x256xf32> to vector<8x256xbf16>
    %c1792_80 = arith.constant 1792 : index
    %c0_81 = arith.constant 0 : index
    %130 = vector.load %arg4[%c1792_80, %c0_81] : memref<6656x256xbf16, #tpu.memory_space<vmem>>, vector<256x256xbf16>
    %cst_82 = arith.constant dense<0.000000e+00> : vector<8x256xf32>
    %131 = tpu.matmul %129, %130, %cst_82 {dimension_numbers = #tpu.dot_dimension_numbers<[1], [0], [0], [1], [0, 0, 1, 1], [], []>} : vector<8x256xbf16>, vector<256x256xbf16>, vector<8x256xf32> -> vector<8x256xf32>
    %c0_83 = arith.constant 0 : index
    %c0_84 = arith.constant 0 : index
    %132 = vector.load %arg9[%c0_83, %c0_84] : memref<8x256xf32, #tpu.memory_space<vmem>>, vector<8x256xf32>
    %133 = arith.addf %132, %131 : vector<8x256xf32>
    %c0_85 = arith.constant 0 : index
    %c0_86 = arith.constant 0 : index
    %134 = vector.load %arg9[%c0_85, %c0_86] : memref<8x256xf32, #tpu.memory_space<vmem>>, vector<8x256xf32>
    tpu.vector_store %arg9[%c0_85, %c0_86], %133 {strides = array<i32>} : memref<8x256xf32, #tpu.memory_space<vmem>>, vector<8x256xf32>,
    %c0_87 = arith.constant 0 : index
    %c2048 = arith.constant 2048 : index
    %135 = vector.load %arg2[%c0_87, %c2048] : memref<1x6656xf32, #tpu.memory_space<vmem>>, vector<1x256xf32>
    %c0_88 = arith.constant 0 : index
    %c2048_89 = arith.constant 2048 : index
    %136 = vector.load %arg3[%c0_88, %c2048_89] : memref<1x6656xf32, #tpu.memory_space<vmem>>, vector<1x256xf32>
    %137 = vector.extract_strided_slice %0 {offsets = [0, 8], sizes = [8, 1], strides = [1, 1]} : vector<8x26xf32> to vector<8x1xf32>
    %138 = vector.shape_cast %137 : vector<8x1xf32> to vector<8x1xf32>
    %139 = vector.broadcast %138 : vector<8x1xf32> to vector<8x256xf32>
    %140 = vector.broadcast %135 : vector<1x256xf32> to vector<8x256xf32>
    %141 = arith.mulf %139, %140 : vector<8x256xf32>
    %142 = vector.broadcast %136 : vector<1x256xf32> to vector<8x256xf32>
    %143 = arith.addf %141, %142 : vector<8x256xf32>
    %cst_90 = arith.constant 0.000000e+00 : f32
    %144 = vector.broadcast %cst_90 : f32 to vector<8x256xf32>
    %145 = arith.maximumf %143, %144 : vector<8x256xf32>
    %146 = arith.truncf %145 : vector<8x256xf32> to vector<8x256xbf16>
    %c2048_91 = arith.constant 2048 : index
    %c0_92 = arith.constant 0 : index
    %147 = vector.load %arg4[%c2048_91, %c0_92] : memref<6656x256xbf16, #tpu.memory_space<vmem>>, vector<256x256xbf16>
    %cst_93 = arith.constant dense<0.000000e+00> : vector<8x256xf32>
    %148 = tpu.matmul %146, %147, %cst_93 {dimension_numbers = #tpu.dot_dimension_numbers<[1], [0], [0], [1], [0, 0, 1, 1], [], []>} : vector<8x256xbf16>, vector<256x256xbf16>, vector<8x256xf32> -> vector<8x256xf32>
    %c0_94 = arith.constant 0 : index
    %c0_95 = arith.constant 0 : index
    %149 = vector.load %arg9[%c0_94, %c0_95] : memref<8x256xf32, #tpu.memory_space<vmem>>, vector<8x256xf32>
    %150 = arith.addf %149, %148 : vector<8x256xf32>
    %c0_96 = arith.constant 0 : index
    %c0_97 = arith.constant 0 : index
    %151 = vector.load %arg9[%c0_96, %c0_97] : memref<8x256xf32, #tpu.memory_space<vmem>>, vector<8x256xf32>
    tpu.vector_store %arg9[%c0_96, %c0_97], %150 {strides = array<i32>} : memref<8x256xf32, #tpu.memory_space<vmem>>, vector<8x256xf32>,
    %c0_98 = arith.constant 0 : index
    %c2304 = arith.constant 2304 : index
    %152 = vector.load %arg2[%c0_98, %c2304] : memref<1x6656xf32, #tpu.memory_space<vmem>>, vector<1x256xf32>
    %c0_99 = arith.constant 0 : index
    %c2304_100 = arith.constant 2304 : index
    %153 = vector.load %arg3[%c0_99, %c2304_100] : memref<1x6656xf32, #tpu.memory_space<vmem>>, vector<1x256xf32>
    %154 = vector.extract_strided_slice %0 {offsets = [0, 9], sizes = [8, 1], strides = [1, 1]} : vector<8x26xf32> to vector<8x1xf32>
    %155 = vector.shape_cast %154 : vector<8x1xf32> to vector<8x1xf32>
    %156 = vector.broadcast %155 : vector<8x1xf32> to vector<8x256xf32>
    %157 = vector.broadcast %152 : vector<1x256xf32> to vector<8x256xf32>
    %158 = arith.mulf %156, %157 : vector<8x256xf32>
    %159 = vector.broadcast %153 : vector<1x256xf32> to vector<8x256xf32>
    %160 = arith.addf %158, %159 : vector<8x256xf32>
    %cst_101 = arith.constant 0.000000e+00 : f32
    %161 = vector.broadcast %cst_101 : f32 to vector<8x256xf32>
    %162 = arith.maximumf %160, %161 : vector<8x256xf32>
    %163 = arith.truncf %162 : vector<8x256xf32> to vector<8x256xbf16>
    %c2304_102 = arith.constant 2304 : index
    %c0_103 = arith.constant 0 : index
    %164 = vector.load %arg4[%c2304_102, %c0_103] : memref<6656x256xbf16, #tpu.memory_space<vmem>>, vector<256x256xbf16>
    %cst_104 = arith.constant dense<0.000000e+00> : vector<8x256xf32>
    %165 = tpu.matmul %163, %164, %cst_104 {dimension_numbers = #tpu.dot_dimension_numbers<[1], [0], [0], [1], [0, 0, 1, 1], [], []>} : vector<8x256xbf16>, vector<256x256xbf16>, vector<8x256xf32> -> vector<8x256xf32>
    %c0_105 = arith.constant 0 : index
    %c0_106 = arith.constant 0 : index
    %166 = vector.load %arg9[%c0_105, %c0_106] : memref<8x256xf32, #tpu.memory_space<vmem>>, vector<8x256xf32>
    %167 = arith.addf %166, %165 : vector<8x256xf32>
    %c0_107 = arith.constant 0 : index
    %c0_108 = arith.constant 0 : index
    %168 = vector.load %arg9[%c0_107, %c0_108] : memref<8x256xf32, #tpu.memory_space<vmem>>, vector<8x256xf32>
    tpu.vector_store %arg9[%c0_107, %c0_108], %167 {strides = array<i32>} : memref<8x256xf32, #tpu.memory_space<vmem>>, vector<8x256xf32>,
    %c0_109 = arith.constant 0 : index
    %c2560 = arith.constant 2560 : index
    %169 = vector.load %arg2[%c0_109, %c2560] : memref<1x6656xf32, #tpu.memory_space<vmem>>, vector<1x256xf32>
    %c0_110 = arith.constant 0 : index
    %c2560_111 = arith.constant 2560 : index
    %170 = vector.load %arg3[%c0_110, %c2560_111] : memref<1x6656xf32, #tpu.memory_space<vmem>>, vector<1x256xf32>
    %171 = vector.extract_strided_slice %0 {offsets = [0, 10], sizes = [8, 1], strides = [1, 1]} : vector<8x26xf32> to vector<8x1xf32>
    %172 = vector.shape_cast %171 : vector<8x1xf32> to vector<8x1xf32>
    %173 = vector.broadcast %172 : vector<8x1xf32> to vector<8x256xf32>
    %174 = vector.broadcast %169 : vector<1x256xf32> to vector<8x256xf32>
    %175 = arith.mulf %173, %174 : vector<8x256xf32>
    %176 = vector.broadcast %170 : vector<1x256xf32> to vector<8x256xf32>
    %177 = arith.addf %175, %176 : vector<8x256xf32>
    %cst_112 = arith.constant 0.000000e+00 : f32
    %178 = vector.broadcast %cst_112 : f32 to vector<8x256xf32>
    %179 = arith.maximumf %177, %178 : vector<8x256xf32>
    %180 = arith.truncf %179 : vector<8x256xf32> to vector<8x256xbf16>
    %c2560_113 = arith.constant 2560 : index
    %c0_114 = arith.constant 0 : index
    %181 = vector.load %arg4[%c2560_113, %c0_114] : memref<6656x256xbf16, #tpu.memory_space<vmem>>, vector<256x256xbf16>
    %cst_115 = arith.constant dense<0.000000e+00> : vector<8x256xf32>
    %182 = tpu.matmul %180, %181, %cst_115 {dimension_numbers = #tpu.dot_dimension_numbers<[1], [0], [0], [1], [0, 0, 1, 1], [], []>} : vector<8x256xbf16>, vector<256x256xbf16>, vector<8x256xf32> -> vector<8x256xf32>
    %c0_116 = arith.constant 0 : index
    %c0_117 = arith.constant 0 : index
    %183 = vector.load %arg9[%c0_116, %c0_117] : memref<8x256xf32, #tpu.memory_space<vmem>>, vector<8x256xf32>
    %184 = arith.addf %183, %182 : vector<8x256xf32>
    %c0_118 = arith.constant 0 : index
    %c0_119 = arith.constant 0 : index
    %185 = vector.load %arg9[%c0_118, %c0_119] : memref<8x256xf32, #tpu.memory_space<vmem>>, vector<8x256xf32>
    tpu.vector_store %arg9[%c0_118, %c0_119], %184 {strides = array<i32>} : memref<8x256xf32, #tpu.memory_space<vmem>>, vector<8x256xf32>,
    %c0_120 = arith.constant 0 : index
    %c2816 = arith.constant 2816 : index
    %186 = vector.load %arg2[%c0_120, %c2816] : memref<1x6656xf32, #tpu.memory_space<vmem>>, vector<1x256xf32>
    %c0_121 = arith.constant 0 : index
    %c2816_122 = arith.constant 2816 : index
    %187 = vector.load %arg3[%c0_121, %c2816_122] : memref<1x6656xf32, #tpu.memory_space<vmem>>, vector<1x256xf32>
    %188 = vector.extract_strided_slice %0 {offsets = [0, 11], sizes = [8, 1], strides = [1, 1]} : vector<8x26xf32> to vector<8x1xf32>
    %189 = vector.shape_cast %188 : vector<8x1xf32> to vector<8x1xf32>
    %190 = vector.broadcast %189 : vector<8x1xf32> to vector<8x256xf32>
    %191 = vector.broadcast %186 : vector<1x256xf32> to vector<8x256xf32>
    %192 = arith.mulf %190, %191 : vector<8x256xf32>
    %193 = vector.broadcast %187 : vector<1x256xf32> to vector<8x256xf32>
    %194 = arith.addf %192, %193 : vector<8x256xf32>
    %cst_123 = arith.constant 0.000000e+00 : f32
    %195 = vector.broadcast %cst_123 : f32 to vector<8x256xf32>
    %196 = arith.maximumf %194, %195 : vector<8x256xf32>
    %197 = arith.truncf %196 : vector<8x256xf32> to vector<8x256xbf16>
    %c2816_124 = arith.constant 2816 : index
    %c0_125 = arith.constant 0 : index
    %198 = vector.load %arg4[%c2816_124, %c0_125] : memref<6656x256xbf16, #tpu.memory_space<vmem>>, vector<256x256xbf16>
    %cst_126 = arith.constant dense<0.000000e+00> : vector<8x256xf32>
    %199 = tpu.matmul %197, %198, %cst_126 {dimension_numbers = #tpu.dot_dimension_numbers<[1], [0], [0], [1], [0, 0, 1, 1], [], []>} : vector<8x256xbf16>, vector<256x256xbf16>, vector<8x256xf32> -> vector<8x256xf32>
    %c0_127 = arith.constant 0 : index
    %c0_128 = arith.constant 0 : index
    %200 = vector.load %arg9[%c0_127, %c0_128] : memref<8x256xf32, #tpu.memory_space<vmem>>, vector<8x256xf32>
    %201 = arith.addf %200, %199 : vector<8x256xf32>
    %c0_129 = arith.constant 0 : index
    %c0_130 = arith.constant 0 : index
    %202 = vector.load %arg9[%c0_129, %c0_130] : memref<8x256xf32, #tpu.memory_space<vmem>>, vector<8x256xf32>
    tpu.vector_store %arg9[%c0_129, %c0_130], %201 {strides = array<i32>} : memref<8x256xf32, #tpu.memory_space<vmem>>, vector<8x256xf32>,
    %c0_131 = arith.constant 0 : index
    %c3072 = arith.constant 3072 : index
    %203 = vector.load %arg2[%c0_131, %c3072] : memref<1x6656xf32, #tpu.memory_space<vmem>>, vector<1x256xf32>
    %c0_132 = arith.constant 0 : index
    %c3072_133 = arith.constant 3072 : index
    %204 = vector.load %arg3[%c0_132, %c3072_133] : memref<1x6656xf32, #tpu.memory_space<vmem>>, vector<1x256xf32>
    %205 = vector.extract_strided_slice %0 {offsets = [0, 12], sizes = [8, 1], strides = [1, 1]} : vector<8x26xf32> to vector<8x1xf32>
    %206 = vector.shape_cast %205 : vector<8x1xf32> to vector<8x1xf32>
    %207 = vector.broadcast %206 : vector<8x1xf32> to vector<8x256xf32>
    %208 = vector.broadcast %203 : vector<1x256xf32> to vector<8x256xf32>
    %209 = arith.mulf %207, %208 : vector<8x256xf32>
    %210 = vector.broadcast %204 : vector<1x256xf32> to vector<8x256xf32>
    %211 = arith.addf %209, %210 : vector<8x256xf32>
    %cst_134 = arith.constant 0.000000e+00 : f32
    %212 = vector.broadcast %cst_134 : f32 to vector<8x256xf32>
    %213 = arith.maximumf %211, %212 : vector<8x256xf32>
    %214 = arith.truncf %213 : vector<8x256xf32> to vector<8x256xbf16>
    %c3072_135 = arith.constant 3072 : index
    %c0_136 = arith.constant 0 : index
    %215 = vector.load %arg4[%c3072_135, %c0_136] : memref<6656x256xbf16, #tpu.memory_space<vmem>>, vector<256x256xbf16>
    %cst_137 = arith.constant dense<0.000000e+00> : vector<8x256xf32>
    %216 = tpu.matmul %214, %215, %cst_137 {dimension_numbers = #tpu.dot_dimension_numbers<[1], [0], [0], [1], [0, 0, 1, 1], [], []>} : vector<8x256xbf16>, vector<256x256xbf16>, vector<8x256xf32> -> vector<8x256xf32>
    %c0_138 = arith.constant 0 : index
    %c0_139 = arith.constant 0 : index
    %217 = vector.load %arg9[%c0_138, %c0_139] : memref<8x256xf32, #tpu.memory_space<vmem>>, vector<8x256xf32>
    %218 = arith.addf %217, %216 : vector<8x256xf32>
    %c0_140 = arith.constant 0 : index
    %c0_141 = arith.constant 0 : index
    %219 = vector.load %arg9[%c0_140, %c0_141] : memref<8x256xf32, #tpu.memory_space<vmem>>, vector<8x256xf32>
    tpu.vector_store %arg9[%c0_140, %c0_141], %218 {strides = array<i32>} : memref<8x256xf32, #tpu.memory_space<vmem>>, vector<8x256xf32>,
    %c0_142 = arith.constant 0 : index
    %c3328 = arith.constant 3328 : index
    %220 = vector.load %arg2[%c0_142, %c3328] : memref<1x6656xf32, #tpu.memory_space<vmem>>, vector<1x256xf32>
    %c0_143 = arith.constant 0 : index
    %c3328_144 = arith.constant 3328 : index
    %221 = vector.load %arg3[%c0_143, %c3328_144] : memref<1x6656xf32, #tpu.memory_space<vmem>>, vector<1x256xf32>
    %222 = vector.extract_strided_slice %0 {offsets = [0, 13], sizes = [8, 1], strides = [1, 1]} : vector<8x26xf32> to vector<8x1xf32>
    %223 = vector.shape_cast %222 : vector<8x1xf32> to vector<8x1xf32>
    %224 = vector.broadcast %223 : vector<8x1xf32> to vector<8x256xf32>
    %225 = vector.broadcast %220 : vector<1x256xf32> to vector<8x256xf32>
    %226 = arith.mulf %224, %225 : vector<8x256xf32>
    %227 = vector.broadcast %221 : vector<1x256xf32> to vector<8x256xf32>
    %228 = arith.addf %226, %227 : vector<8x256xf32>
    %cst_145 = arith.constant 0.000000e+00 : f32
    %229 = vector.broadcast %cst_145 : f32 to vector<8x256xf32>
    %230 = arith.maximumf %228, %229 : vector<8x256xf32>
    %231 = arith.truncf %230 : vector<8x256xf32> to vector<8x256xbf16>
    %c3328_146 = arith.constant 3328 : index
    %c0_147 = arith.constant 0 : index
    %232 = vector.load %arg4[%c3328_146, %c0_147] : memref<6656x256xbf16, #tpu.memory_space<vmem>>, vector<256x256xbf16>
    %cst_148 = arith.constant dense<0.000000e+00> : vector<8x256xf32>
    %233 = tpu.matmul %231, %232, %cst_148 {dimension_numbers = #tpu.dot_dimension_numbers<[1], [0], [0], [1], [0, 0, 1, 1], [], []>} : vector<8x256xbf16>, vector<256x256xbf16>, vector<8x256xf32> -> vector<8x256xf32>
    %c0_149 = arith.constant 0 : index
    %c0_150 = arith.constant 0 : index
    %234 = vector.load %arg9[%c0_149, %c0_150] : memref<8x256xf32, #tpu.memory_space<vmem>>, vector<8x256xf32>
    %235 = arith.addf %234, %233 : vector<8x256xf32>
    %c0_151 = arith.constant 0 : index
    %c0_152 = arith.constant 0 : index
    %236 = vector.load %arg9[%c0_151, %c0_152] : memref<8x256xf32, #tpu.memory_space<vmem>>, vector<8x256xf32>
    tpu.vector_store %arg9[%c0_151, %c0_152], %235 {strides = array<i32>} : memref<8x256xf32, #tpu.memory_space<vmem>>, vector<8x256xf32>,
    %c0_153 = arith.constant 0 : index
    %c3584 = arith.constant 3584 : index
    %237 = vector.load %arg2[%c0_153, %c3584] : memref<1x6656xf32, #tpu.memory_space<vmem>>, vector<1x256xf32>
    %c0_154 = arith.constant 0 : index
    %c3584_155 = arith.constant 3584 : index
    %238 = vector.load %arg3[%c0_154, %c3584_155] : memref<1x6656xf32, #tpu.memory_space<vmem>>, vector<1x256xf32>
    %239 = vector.extract_strided_slice %0 {offsets = [0, 14], sizes = [8, 1], strides = [1, 1]} : vector<8x26xf32> to vector<8x1xf32>
    %240 = vector.shape_cast %239 : vector<8x1xf32> to vector<8x1xf32>
    %241 = vector.broadcast %240 : vector<8x1xf32> to vector<8x256xf32>
    %242 = vector.broadcast %237 : vector<1x256xf32> to vector<8x256xf32>
    %243 = arith.mulf %241, %242 : vector<8x256xf32>
    %244 = vector.broadcast %238 : vector<1x256xf32> to vector<8x256xf32>
    %245 = arith.addf %243, %244 : vector<8x256xf32>
    %cst_156 = arith.constant 0.000000e+00 : f32
    %246 = vector.broadcast %cst_156 : f32 to vector<8x256xf32>
    %247 = arith.maximumf %245, %246 : vector<8x256xf32>
    %248 = arith.truncf %247 : vector<8x256xf32> to vector<8x256xbf16>
    %c3584_157 = arith.constant 3584 : index
    %c0_158 = arith.constant 0 : index
    %249 = vector.load %arg4[%c3584_157, %c0_158] : memref<6656x256xbf16, #tpu.memory_space<vmem>>, vector<256x256xbf16>
    %cst_159 = arith.constant dense<0.000000e+00> : vector<8x256xf32>
    %250 = tpu.matmul %248, %249, %cst_159 {dimension_numbers = #tpu.dot_dimension_numbers<[1], [0], [0], [1], [0, 0, 1, 1], [], []>} : vector<8x256xbf16>, vector<256x256xbf16>, vector<8x256xf32> -> vector<8x256xf32>
    %c0_160 = arith.constant 0 : index
    %c0_161 = arith.constant 0 : index
    %251 = vector.load %arg9[%c0_160, %c0_161] : memref<8x256xf32, #tpu.memory_space<vmem>>, vector<8x256xf32>
    %252 = arith.addf %251, %250 : vector<8x256xf32>
    %c0_162 = arith.constant 0 : index
    %c0_163 = arith.constant 0 : index
    %253 = vector.load %arg9[%c0_162, %c0_163] : memref<8x256xf32, #tpu.memory_space<vmem>>, vector<8x256xf32>
    tpu.vector_store %arg9[%c0_162, %c0_163], %252 {strides = array<i32>} : memref<8x256xf32, #tpu.memory_space<vmem>>, vector<8x256xf32>,
    %c0_164 = arith.constant 0 : index
    %c3840 = arith.constant 3840 : index
    %254 = vector.load %arg2[%c0_164, %c3840] : memref<1x6656xf32, #tpu.memory_space<vmem>>, vector<1x256xf32>
    %c0_165 = arith.constant 0 : index
    %c3840_166 = arith.constant 3840 : index
    %255 = vector.load %arg3[%c0_165, %c3840_166] : memref<1x6656xf32, #tpu.memory_space<vmem>>, vector<1x256xf32>
    %256 = vector.extract_strided_slice %0 {offsets = [0, 15], sizes = [8, 1], strides = [1, 1]} : vector<8x26xf32> to vector<8x1xf32>
    %257 = vector.shape_cast %256 : vector<8x1xf32> to vector<8x1xf32>
    %258 = vector.broadcast %257 : vector<8x1xf32> to vector<8x256xf32>
    %259 = vector.broadcast %254 : vector<1x256xf32> to vector<8x256xf32>
    %260 = arith.mulf %258, %259 : vector<8x256xf32>
    %261 = vector.broadcast %255 : vector<1x256xf32> to vector<8x256xf32>
    %262 = arith.addf %260, %261 : vector<8x256xf32>
    %cst_167 = arith.constant 0.000000e+00 : f32
    %263 = vector.broadcast %cst_167 : f32 to vector<8x256xf32>
    %264 = arith.maximumf %262, %263 : vector<8x256xf32>
    %265 = arith.truncf %264 : vector<8x256xf32> to vector<8x256xbf16>
    %c3840_168 = arith.constant 3840 : index
    %c0_169 = arith.constant 0 : index
    %266 = vector.load %arg4[%c3840_168, %c0_169] : memref<6656x256xbf16, #tpu.memory_space<vmem>>, vector<256x256xbf16>
    %cst_170 = arith.constant dense<0.000000e+00> : vector<8x256xf32>
    %267 = tpu.matmul %265, %266, %cst_170 {dimension_numbers = #tpu.dot_dimension_numbers<[1], [0], [0], [1], [0, 0, 1, 1], [], []>} : vector<8x256xbf16>, vector<256x256xbf16>, vector<8x256xf32> -> vector<8x256xf32>
    %c0_171 = arith.constant 0 : index
    %c0_172 = arith.constant 0 : index
    %268 = vector.load %arg9[%c0_171, %c0_172] : memref<8x256xf32, #tpu.memory_space<vmem>>, vector<8x256xf32>
    %269 = arith.addf %268, %267 : vector<8x256xf32>
    %c0_173 = arith.constant 0 : index
    %c0_174 = arith.constant 0 : index
    %270 = vector.load %arg9[%c0_173, %c0_174] : memref<8x256xf32, #tpu.memory_space<vmem>>, vector<8x256xf32>
    tpu.vector_store %arg9[%c0_173, %c0_174], %269 {strides = array<i32>} : memref<8x256xf32, #tpu.memory_space<vmem>>, vector<8x256xf32>,
    %c0_175 = arith.constant 0 : index
    %c4096 = arith.constant 4096 : index
    %271 = vector.load %arg2[%c0_175, %c4096] : memref<1x6656xf32, #tpu.memory_space<vmem>>, vector<1x256xf32>
    %c0_176 = arith.constant 0 : index
    %c4096_177 = arith.constant 4096 : index
    %272 = vector.load %arg3[%c0_176, %c4096_177] : memref<1x6656xf32, #tpu.memory_space<vmem>>, vector<1x256xf32>
    %273 = vector.extract_strided_slice %0 {offsets = [0, 16], sizes = [8, 1], strides = [1, 1]} : vector<8x26xf32> to vector<8x1xf32>
    %274 = vector.shape_cast %273 : vector<8x1xf32> to vector<8x1xf32>
    %275 = vector.broadcast %274 : vector<8x1xf32> to vector<8x256xf32>
    %276 = vector.broadcast %271 : vector<1x256xf32> to vector<8x256xf32>
    %277 = arith.mulf %275, %276 : vector<8x256xf32>
    %278 = vector.broadcast %272 : vector<1x256xf32> to vector<8x256xf32>
    %279 = arith.addf %277, %278 : vector<8x256xf32>
    %cst_178 = arith.constant 0.000000e+00 : f32
    %280 = vector.broadcast %cst_178 : f32 to vector<8x256xf32>
    %281 = arith.maximumf %279, %280 : vector<8x256xf32>
    %282 = arith.truncf %281 : vector<8x256xf32> to vector<8x256xbf16>
    %c4096_179 = arith.constant 4096 : index
    %c0_180 = arith.constant 0 : index
    %283 = vector.load %arg4[%c4096_179, %c0_180] : memref<6656x256xbf16, #tpu.memory_space<vmem>>, vector<256x256xbf16>
    %cst_181 = arith.constant dense<0.000000e+00> : vector<8x256xf32>
    %284 = tpu.matmul %282, %283, %cst_181 {dimension_numbers = #tpu.dot_dimension_numbers<[1], [0], [0], [1], [0, 0, 1, 1], [], []>} : vector<8x256xbf16>, vector<256x256xbf16>, vector<8x256xf32> -> vector<8x256xf32>
    %c0_182 = arith.constant 0 : index
    %c0_183 = arith.constant 0 : index
    %285 = vector.load %arg9[%c0_182, %c0_183] : memref<8x256xf32, #tpu.memory_space<vmem>>, vector<8x256xf32>
    %286 = arith.addf %285, %284 : vector<8x256xf32>
    %c0_184 = arith.constant 0 : index
    %c0_185 = arith.constant 0 : index
    %287 = vector.load %arg9[%c0_184, %c0_185] : memref<8x256xf32, #tpu.memory_space<vmem>>, vector<8x256xf32>
    tpu.vector_store %arg9[%c0_184, %c0_185], %286 {strides = array<i32>} : memref<8x256xf32, #tpu.memory_space<vmem>>, vector<8x256xf32>,
    %c0_186 = arith.constant 0 : index
    %c4352 = arith.constant 4352 : index
    %288 = vector.load %arg2[%c0_186, %c4352] : memref<1x6656xf32, #tpu.memory_space<vmem>>, vector<1x256xf32>
    %c0_187 = arith.constant 0 : index
    %c4352_188 = arith.constant 4352 : index
    %289 = vector.load %arg3[%c0_187, %c4352_188] : memref<1x6656xf32, #tpu.memory_space<vmem>>, vector<1x256xf32>
    %290 = vector.extract_strided_slice %0 {offsets = [0, 17], sizes = [8, 1], strides = [1, 1]} : vector<8x26xf32> to vector<8x1xf32>
    %291 = vector.shape_cast %290 : vector<8x1xf32> to vector<8x1xf32>
    %292 = vector.broadcast %291 : vector<8x1xf32> to vector<8x256xf32>
    %293 = vector.broadcast %288 : vector<1x256xf32> to vector<8x256xf32>
    %294 = arith.mulf %292, %293 : vector<8x256xf32>
    %295 = vector.broadcast %289 : vector<1x256xf32> to vector<8x256xf32>
    %296 = arith.addf %294, %295 : vector<8x256xf32>
    %cst_189 = arith.constant 0.000000e+00 : f32
    %297 = vector.broadcast %cst_189 : f32 to vector<8x256xf32>
    %298 = arith.maximumf %296, %297 : vector<8x256xf32>
    %299 = arith.truncf %298 : vector<8x256xf32> to vector<8x256xbf16>
    %c4352_190 = arith.constant 4352 : index
    %c0_191 = arith.constant 0 : index
    %300 = vector.load %arg4[%c4352_190, %c0_191] : memref<6656x256xbf16, #tpu.memory_space<vmem>>, vector<256x256xbf16>
    %cst_192 = arith.constant dense<0.000000e+00> : vector<8x256xf32>
    %301 = tpu.matmul %299, %300, %cst_192 {dimension_numbers = #tpu.dot_dimension_numbers<[1], [0], [0], [1], [0, 0, 1, 1], [], []>} : vector<8x256xbf16>, vector<256x256xbf16>, vector<8x256xf32> -> vector<8x256xf32>
    %c0_193 = arith.constant 0 : index
    %c0_194 = arith.constant 0 : index
    %302 = vector.load %arg9[%c0_193, %c0_194] : memref<8x256xf32, #tpu.memory_space<vmem>>, vector<8x256xf32>
    %303 = arith.addf %302, %301 : vector<8x256xf32>
    %c0_195 = arith.constant 0 : index
    %c0_196 = arith.constant 0 : index
    %304 = vector.load %arg9[%c0_195, %c0_196] : memref<8x256xf32, #tpu.memory_space<vmem>>, vector<8x256xf32>
    tpu.vector_store %arg9[%c0_195, %c0_196], %303 {strides = array<i32>} : memref<8x256xf32, #tpu.memory_space<vmem>>, vector<8x256xf32>,
    %c0_197 = arith.constant 0 : index
    %c4608 = arith.constant 4608 : index
    %305 = vector.load %arg2[%c0_197, %c4608] : memref<1x6656xf32, #tpu.memory_space<vmem>>, vector<1x256xf32>
    %c0_198 = arith.constant 0 : index
    %c4608_199 = arith.constant 4608 : index
    %306 = vector.load %arg3[%c0_198, %c4608_199] : memref<1x6656xf32, #tpu.memory_space<vmem>>, vector<1x256xf32>
    %307 = vector.extract_strided_slice %0 {offsets = [0, 18], sizes = [8, 1], strides = [1, 1]} : vector<8x26xf32> to vector<8x1xf32>
    %308 = vector.shape_cast %307 : vector<8x1xf32> to vector<8x1xf32>
    %309 = vector.broadcast %308 : vector<8x1xf32> to vector<8x256xf32>
    %310 = vector.broadcast %305 : vector<1x256xf32> to vector<8x256xf32>
    %311 = arith.mulf %309, %310 : vector<8x256xf32>
    %312 = vector.broadcast %306 : vector<1x256xf32> to vector<8x256xf32>
    %313 = arith.addf %311, %312 : vector<8x256xf32>
    %cst_200 = arith.constant 0.000000e+00 : f32
    %314 = vector.broadcast %cst_200 : f32 to vector<8x256xf32>
    %315 = arith.maximumf %313, %314 : vector<8x256xf32>
    %316 = arith.truncf %315 : vector<8x256xf32> to vector<8x256xbf16>
    %c4608_201 = arith.constant 4608 : index
    %c0_202 = arith.constant 0 : index
    %317 = vector.load %arg4[%c4608_201, %c0_202] : memref<6656x256xbf16, #tpu.memory_space<vmem>>, vector<256x256xbf16>
    %cst_203 = arith.constant dense<0.000000e+00> : vector<8x256xf32>
    %318 = tpu.matmul %316, %317, %cst_203 {dimension_numbers = #tpu.dot_dimension_numbers<[1], [0], [0], [1], [0, 0, 1, 1], [], []>} : vector<8x256xbf16>, vector<256x256xbf16>, vector<8x256xf32> -> vector<8x256xf32>
    %c0_204 = arith.constant 0 : index
    %c0_205 = arith.constant 0 : index
    %319 = vector.load %arg9[%c0_204, %c0_205] : memref<8x256xf32, #tpu.memory_space<vmem>>, vector<8x256xf32>
    %320 = arith.addf %319, %318 : vector<8x256xf32>
    %c0_206 = arith.constant 0 : index
    %c0_207 = arith.constant 0 : index
    %321 = vector.load %arg9[%c0_206, %c0_207] : memref<8x256xf32, #tpu.memory_space<vmem>>, vector<8x256xf32>
    tpu.vector_store %arg9[%c0_206, %c0_207], %320 {strides = array<i32>} : memref<8x256xf32, #tpu.memory_space<vmem>>, vector<8x256xf32>,
    %c0_208 = arith.constant 0 : index
    %c4864 = arith.constant 4864 : index
    %322 = vector.load %arg2[%c0_208, %c4864] : memref<1x6656xf32, #tpu.memory_space<vmem>>, vector<1x256xf32>
    %c0_209 = arith.constant 0 : index
    %c4864_210 = arith.constant 4864 : index
    %323 = vector.load %arg3[%c0_209, %c4864_210] : memref<1x6656xf32, #tpu.memory_space<vmem>>, vector<1x256xf32>
    %324 = vector.extract_strided_slice %0 {offsets = [0, 19], sizes = [8, 1], strides = [1, 1]} : vector<8x26xf32> to vector<8x1xf32>
    %325 = vector.shape_cast %324 : vector<8x1xf32> to vector<8x1xf32>
    %326 = vector.broadcast %325 : vector<8x1xf32> to vector<8x256xf32>
    %327 = vector.broadcast %322 : vector<1x256xf32> to vector<8x256xf32>
    %328 = arith.mulf %326, %327 : vector<8x256xf32>
    %329 = vector.broadcast %323 : vector<1x256xf32> to vector<8x256xf32>
    %330 = arith.addf %328, %329 : vector<8x256xf32>
    %cst_211 = arith.constant 0.000000e+00 : f32
    %331 = vector.broadcast %cst_211 : f32 to vector<8x256xf32>
    %332 = arith.maximumf %330, %331 : vector<8x256xf32>
    %333 = arith.truncf %332 : vector<8x256xf32> to vector<8x256xbf16>
    %c4864_212 = arith.constant 4864 : index
    %c0_213 = arith.constant 0 : index
    %334 = vector.load %arg4[%c4864_212, %c0_213] : memref<6656x256xbf16, #tpu.memory_space<vmem>>, vector<256x256xbf16>
    %cst_214 = arith.constant dense<0.000000e+00> : vector<8x256xf32>
    %335 = tpu.matmul %333, %334, %cst_214 {dimension_numbers = #tpu.dot_dimension_numbers<[1], [0], [0], [1], [0, 0, 1, 1], [], []>} : vector<8x256xbf16>, vector<256x256xbf16>, vector<8x256xf32> -> vector<8x256xf32>
    %c0_215 = arith.constant 0 : index
    %c0_216 = arith.constant 0 : index
    %336 = vector.load %arg9[%c0_215, %c0_216] : memref<8x256xf32, #tpu.memory_space<vmem>>, vector<8x256xf32>
    %337 = arith.addf %336, %335 : vector<8x256xf32>
    %c0_217 = arith.constant 0 : index
    %c0_218 = arith.constant 0 : index
    %338 = vector.load %arg9[%c0_217, %c0_218] : memref<8x256xf32, #tpu.memory_space<vmem>>, vector<8x256xf32>
    tpu.vector_store %arg9[%c0_217, %c0_218], %337 {strides = array<i32>} : memref<8x256xf32, #tpu.memory_space<vmem>>, vector<8x256xf32>,
    %c0_219 = arith.constant 0 : index
    %c5120 = arith.constant 5120 : index
    %339 = vector.load %arg2[%c0_219, %c5120] : memref<1x6656xf32, #tpu.memory_space<vmem>>, vector<1x256xf32>
    %c0_220 = arith.constant 0 : index
    %c5120_221 = arith.constant 5120 : index
    %340 = vector.load %arg3[%c0_220, %c5120_221] : memref<1x6656xf32, #tpu.memory_space<vmem>>, vector<1x256xf32>
    %341 = vector.extract_strided_slice %0 {offsets = [0, 20], sizes = [8, 1], strides = [1, 1]} : vector<8x26xf32> to vector<8x1xf32>
    %342 = vector.shape_cast %341 : vector<8x1xf32> to vector<8x1xf32>
    %343 = vector.broadcast %342 : vector<8x1xf32> to vector<8x256xf32>
    %344 = vector.broadcast %339 : vector<1x256xf32> to vector<8x256xf32>
    %345 = arith.mulf %343, %344 : vector<8x256xf32>
    %346 = vector.broadcast %340 : vector<1x256xf32> to vector<8x256xf32>
    %347 = arith.addf %345, %346 : vector<8x256xf32>
    %cst_222 = arith.constant 0.000000e+00 : f32
    %348 = vector.broadcast %cst_222 : f32 to vector<8x256xf32>
    %349 = arith.maximumf %347, %348 : vector<8x256xf32>
    %350 = arith.truncf %349 : vector<8x256xf32> to vector<8x256xbf16>
    %c5120_223 = arith.constant 5120 : index
    %c0_224 = arith.constant 0 : index
    %351 = vector.load %arg4[%c5120_223, %c0_224] : memref<6656x256xbf16, #tpu.memory_space<vmem>>, vector<256x256xbf16>
    %cst_225 = arith.constant dense<0.000000e+00> : vector<8x256xf32>
    %352 = tpu.matmul %350, %351, %cst_225 {dimension_numbers = #tpu.dot_dimension_numbers<[1], [0], [0], [1], [0, 0, 1, 1], [], []>} : vector<8x256xbf16>, vector<256x256xbf16>, vector<8x256xf32> -> vector<8x256xf32>
    %c0_226 = arith.constant 0 : index
    %c0_227 = arith.constant 0 : index
    %353 = vector.load %arg9[%c0_226, %c0_227] : memref<8x256xf32, #tpu.memory_space<vmem>>, vector<8x256xf32>
    %354 = arith.addf %353, %352 : vector<8x256xf32>
    %c0_228 = arith.constant 0 : index
    %c0_229 = arith.constant 0 : index
    %355 = vector.load %arg9[%c0_228, %c0_229] : memref<8x256xf32, #tpu.memory_space<vmem>>, vector<8x256xf32>
    tpu.vector_store %arg9[%c0_228, %c0_229], %354 {strides = array<i32>} : memref<8x256xf32, #tpu.memory_space<vmem>>, vector<8x256xf32>,
    %c0_230 = arith.constant 0 : index
    %c5376 = arith.constant 5376 : index
    %356 = vector.load %arg2[%c0_230, %c5376] : memref<1x6656xf32, #tpu.memory_space<vmem>>, vector<1x256xf32>
    %c0_231 = arith.constant 0 : index
    %c5376_232 = arith.constant 5376 : index
    %357 = vector.load %arg3[%c0_231, %c5376_232] : memref<1x6656xf32, #tpu.memory_space<vmem>>, vector<1x256xf32>
    %358 = vector.extract_strided_slice %0 {offsets = [0, 21], sizes = [8, 1], strides = [1, 1]} : vector<8x26xf32> to vector<8x1xf32>
    %359 = vector.shape_cast %358 : vector<8x1xf32> to vector<8x1xf32>
    %360 = vector.broadcast %359 : vector<8x1xf32> to vector<8x256xf32>
    %361 = vector.broadcast %356 : vector<1x256xf32> to vector<8x256xf32>
    %362 = arith.mulf %360, %361 : vector<8x256xf32>
    %363 = vector.broadcast %357 : vector<1x256xf32> to vector<8x256xf32>
    %364 = arith.addf %362, %363 : vector<8x256xf32>
    %cst_233 = arith.constant 0.000000e+00 : f32
    %365 = vector.broadcast %cst_233 : f32 to vector<8x256xf32>
    %366 = arith.maximumf %364, %365 : vector<8x256xf32>
    %367 = arith.truncf %366 : vector<8x256xf32> to vector<8x256xbf16>
    %c5376_234 = arith.constant 5376 : index
    %c0_235 = arith.constant 0 : index
    %368 = vector.load %arg4[%c5376_234, %c0_235] : memref<6656x256xbf16, #tpu.memory_space<vmem>>, vector<256x256xbf16>
    %cst_236 = arith.constant dense<0.000000e+00> : vector<8x256xf32>
    %369 = tpu.matmul %367, %368, %cst_236 {dimension_numbers = #tpu.dot_dimension_numbers<[1], [0], [0], [1], [0, 0, 1, 1], [], []>} : vector<8x256xbf16>, vector<256x256xbf16>, vector<8x256xf32> -> vector<8x256xf32>
    %c0_237 = arith.constant 0 : index
    %c0_238 = arith.constant 0 : index
    %370 = vector.load %arg9[%c0_237, %c0_238] : memref<8x256xf32, #tpu.memory_space<vmem>>, vector<8x256xf32>
    %371 = arith.addf %370, %369 : vector<8x256xf32>
    %c0_239 = arith.constant 0 : index
    %c0_240 = arith.constant 0 : index
    %372 = vector.load %arg9[%c0_239, %c0_240] : memref<8x256xf32, #tpu.memory_space<vmem>>, vector<8x256xf32>
    tpu.vector_store %arg9[%c0_239, %c0_240], %371 {strides = array<i32>} : memref<8x256xf32, #tpu.memory_space<vmem>>, vector<8x256xf32>,
    %c0_241 = arith.constant 0 : index
    %c5632 = arith.constant 5632 : index
    %373 = vector.load %arg2[%c0_241, %c5632] : memref<1x6656xf32, #tpu.memory_space<vmem>>, vector<1x256xf32>
    %c0_242 = arith.constant 0 : index
    %c5632_243 = arith.constant 5632 : index
    %374 = vector.load %arg3[%c0_242, %c5632_243] : memref<1x6656xf32, #tpu.memory_space<vmem>>, vector<1x256xf32>
    %375 = vector.extract_strided_slice %0 {offsets = [0, 22], sizes = [8, 1], strides = [1, 1]} : vector<8x26xf32> to vector<8x1xf32>
    %376 = vector.shape_cast %375 : vector<8x1xf32> to vector<8x1xf32>
    %377 = vector.broadcast %376 : vector<8x1xf32> to vector<8x256xf32>
    %378 = vector.broadcast %373 : vector<1x256xf32> to vector<8x256xf32>
    %379 = arith.mulf %377, %378 : vector<8x256xf32>
    %380 = vector.broadcast %374 : vector<1x256xf32> to vector<8x256xf32>
    %381 = arith.addf %379, %380 : vector<8x256xf32>
    %cst_244 = arith.constant 0.000000e+00 : f32
    %382 = vector.broadcast %cst_244 : f32 to vector<8x256xf32>
    %383 = arith.maximumf %381, %382 : vector<8x256xf32>
    %384 = arith.truncf %383 : vector<8x256xf32> to vector<8x256xbf16>
    %c5632_245 = arith.constant 5632 : index
    %c0_246 = arith.constant 0 : index
    %385 = vector.load %arg4[%c5632_245, %c0_246] : memref<6656x256xbf16, #tpu.memory_space<vmem>>, vector<256x256xbf16>
    %cst_247 = arith.constant dense<0.000000e+00> : vector<8x256xf32>
    %386 = tpu.matmul %384, %385, %cst_247 {dimension_numbers = #tpu.dot_dimension_numbers<[1], [0], [0], [1], [0, 0, 1, 1], [], []>} : vector<8x256xbf16>, vector<256x256xbf16>, vector<8x256xf32> -> vector<8x256xf32>
    %c0_248 = arith.constant 0 : index
    %c0_249 = arith.constant 0 : index
    %387 = vector.load %arg9[%c0_248, %c0_249] : memref<8x256xf32, #tpu.memory_space<vmem>>, vector<8x256xf32>
    %388 = arith.addf %387, %386 : vector<8x256xf32>
    %c0_250 = arith.constant 0 : index
    %c0_251 = arith.constant 0 : index
    %389 = vector.load %arg9[%c0_250, %c0_251] : memref<8x256xf32, #tpu.memory_space<vmem>>, vector<8x256xf32>
    tpu.vector_store %arg9[%c0_250, %c0_251], %388 {strides = array<i32>} : memref<8x256xf32, #tpu.memory_space<vmem>>, vector<8x256xf32>,
    %c0_252 = arith.constant 0 : index
    %c5888 = arith.constant 5888 : index
    %390 = vector.load %arg2[%c0_252, %c5888] : memref<1x6656xf32, #tpu.memory_space<vmem>>, vector<1x256xf32>
    %c0_253 = arith.constant 0 : index
    %c5888_254 = arith.constant 5888 : index
    %391 = vector.load %arg3[%c0_253, %c5888_254] : memref<1x6656xf32, #tpu.memory_space<vmem>>, vector<1x256xf32>
    %392 = vector.extract_strided_slice %0 {offsets = [0, 23], sizes = [8, 1], strides = [1, 1]} : vector<8x26xf32> to vector<8x1xf32>
    %393 = vector.shape_cast %392 : vector<8x1xf32> to vector<8x1xf32>
    %394 = vector.broadcast %393 : vector<8x1xf32> to vector<8x256xf32>
    %395 = vector.broadcast %390 : vector<1x256xf32> to vector<8x256xf32>
    %396 = arith.mulf %394, %395 : vector<8x256xf32>
    %397 = vector.broadcast %391 : vector<1x256xf32> to vector<8x256xf32>
    %398 = arith.addf %396, %397 : vector<8x256xf32>
    %cst_255 = arith.constant 0.000000e+00 : f32
    %399 = vector.broadcast %cst_255 : f32 to vector<8x256xf32>
    %400 = arith.maximumf %398, %399 : vector<8x256xf32>
    %401 = arith.truncf %400 : vector<8x256xf32> to vector<8x256xbf16>
    %c5888_256 = arith.constant 5888 : index
    %c0_257 = arith.constant 0 : index
    %402 = vector.load %arg4[%c5888_256, %c0_257] : memref<6656x256xbf16, #tpu.memory_space<vmem>>, vector<256x256xbf16>
    %cst_258 = arith.constant dense<0.000000e+00> : vector<8x256xf32>
    %403 = tpu.matmul %401, %402, %cst_258 {dimension_numbers = #tpu.dot_dimension_numbers<[1], [0], [0], [1], [0, 0, 1, 1], [], []>} : vector<8x256xbf16>, vector<256x256xbf16>, vector<8x256xf32> -> vector<8x256xf32>
    %c0_259 = arith.constant 0 : index
    %c0_260 = arith.constant 0 : index
    %404 = vector.load %arg9[%c0_259, %c0_260] : memref<8x256xf32, #tpu.memory_space<vmem>>, vector<8x256xf32>
    %405 = arith.addf %404, %403 : vector<8x256xf32>
    %c0_261 = arith.constant 0 : index
    %c0_262 = arith.constant 0 : index
    %406 = vector.load %arg9[%c0_261, %c0_262] : memref<8x256xf32, #tpu.memory_space<vmem>>, vector<8x256xf32>
    tpu.vector_store %arg9[%c0_261, %c0_262], %405 {strides = array<i32>} : memref<8x256xf32, #tpu.memory_space<vmem>>, vector<8x256xf32>,
    %c0_263 = arith.constant 0 : index
    %c6144 = arith.constant 6144 : index
    %407 = vector.load %arg2[%c0_263, %c6144] : memref<1x6656xf32, #tpu.memory_space<vmem>>, vector<1x256xf32>
    %c0_264 = arith.constant 0 : index
    %c6144_265 = arith.constant 6144 : index
    %408 = vector.load %arg3[%c0_264, %c6144_265] : memref<1x6656xf32, #tpu.memory_space<vmem>>, vector<1x256xf32>
    %409 = vector.extract_strided_slice %0 {offsets = [0, 24], sizes = [8, 1], strides = [1, 1]} : vector<8x26xf32> to vector<8x1xf32>
    %410 = vector.shape_cast %409 : vector<8x1xf32> to vector<8x1xf32>
    %411 = vector.broadcast %410 : vector<8x1xf32> to vector<8x256xf32>
    %412 = vector.broadcast %407 : vector<1x256xf32> to vector<8x256xf32>
    %413 = arith.mulf %411, %412 : vector<8x256xf32>
    %414 = vector.broadcast %408 : vector<1x256xf32> to vector<8x256xf32>
    %415 = arith.addf %413, %414 : vector<8x256xf32>
    %cst_266 = arith.constant 0.000000e+00 : f32
    %416 = vector.broadcast %cst_266 : f32 to vector<8x256xf32>
    %417 = arith.maximumf %415, %416 : vector<8x256xf32>
    %418 = arith.truncf %417 : vector<8x256xf32> to vector<8x256xbf16>
    %c6144_267 = arith.constant 6144 : index
    %c0_268 = arith.constant 0 : index
    %419 = vector.load %arg4[%c6144_267, %c0_268] : memref<6656x256xbf16, #tpu.memory_space<vmem>>, vector<256x256xbf16>
    %cst_269 = arith.constant dense<0.000000e+00> : vector<8x256xf32>
    %420 = tpu.matmul %418, %419, %cst_269 {dimension_numbers = #tpu.dot_dimension_numbers<[1], [0], [0], [1], [0, 0, 1, 1], [], []>} : vector<8x256xbf16>, vector<256x256xbf16>, vector<8x256xf32> -> vector<8x256xf32>
    %c0_270 = arith.constant 0 : index
    %c0_271 = arith.constant 0 : index
    %421 = vector.load %arg9[%c0_270, %c0_271] : memref<8x256xf32, #tpu.memory_space<vmem>>, vector<8x256xf32>
    %422 = arith.addf %421, %420 : vector<8x256xf32>
    %c0_272 = arith.constant 0 : index
    %c0_273 = arith.constant 0 : index
    %423 = vector.load %arg9[%c0_272, %c0_273] : memref<8x256xf32, #tpu.memory_space<vmem>>, vector<8x256xf32>
    tpu.vector_store %arg9[%c0_272, %c0_273], %422 {strides = array<i32>} : memref<8x256xf32, #tpu.memory_space<vmem>>, vector<8x256xf32>,
    %c0_274 = arith.constant 0 : index
    %c6400 = arith.constant 6400 : index
    %424 = vector.load %arg2[%c0_274, %c6400] : memref<1x6656xf32, #tpu.memory_space<vmem>>, vector<1x256xf32>
    %c0_275 = arith.constant 0 : index
    %c6400_276 = arith.constant 6400 : index
    %425 = vector.load %arg3[%c0_275, %c6400_276] : memref<1x6656xf32, #tpu.memory_space<vmem>>, vector<1x256xf32>
    %426 = vector.extract_strided_slice %0 {offsets = [0, 25], sizes = [8, 1], strides = [1, 1]} : vector<8x26xf32> to vector<8x1xf32>
    %427 = vector.shape_cast %426 : vector<8x1xf32> to vector<8x1xf32>
    %428 = vector.broadcast %427 : vector<8x1xf32> to vector<8x256xf32>
    %429 = vector.broadcast %424 : vector<1x256xf32> to vector<8x256xf32>
    %430 = arith.mulf %428, %429 : vector<8x256xf32>
    %431 = vector.broadcast %425 : vector<1x256xf32> to vector<8x256xf32>
    %432 = arith.addf %430, %431 : vector<8x256xf32>
    %cst_277 = arith.constant 0.000000e+00 : f32
    %433 = vector.broadcast %cst_277 : f32 to vector<8x256xf32>
    %434 = arith.maximumf %432, %433 : vector<8x256xf32>
    %435 = arith.truncf %434 : vector<8x256xf32> to vector<8x256xbf16>
    %c6400_278 = arith.constant 6400 : index
    %c0_279 = arith.constant 0 : index
    %436 = vector.load %arg4[%c6400_278, %c0_279] : memref<6656x256xbf16, #tpu.memory_space<vmem>>, vector<256x256xbf16>
    %cst_280 = arith.constant dense<0.000000e+00> : vector<8x256xf32>
    %437 = tpu.matmul %435, %436, %cst_280 {dimension_numbers = #tpu.dot_dimension_numbers<[1], [0], [0], [1], [0, 0, 1, 1], [], []>} : vector<8x256xbf16>, vector<256x256xbf16>, vector<8x256xf32> -> vector<8x256xf32>
    %c0_281 = arith.constant 0 : index
    %c0_282 = arith.constant 0 : index
    %438 = vector.load %arg9[%c0_281, %c0_282] : memref<8x256xf32, #tpu.memory_space<vmem>>, vector<8x256xf32>
    %439 = arith.addf %438, %437 : vector<8x256xf32>
    %c0_283 = arith.constant 0 : index
    %c0_284 = arith.constant 0 : index
    %440 = vector.load %arg9[%c0_283, %c0_284] : memref<8x256xf32, #tpu.memory_space<vmem>>, vector<8x256xf32>
    tpu.vector_store %arg9[%c0_283, %c0_284], %439 {strides = array<i32>} : memref<8x256xf32, #tpu.memory_space<vmem>>, vector<8x256xf32>,
    %c0_285 = arith.constant 0 : index
    %c0_286 = arith.constant 0 : index
    %441 = vector.load %arg9[%c0_285, %c0_286] : memref<8x256xf32, #tpu.memory_space<vmem>>, vector<8x256xf32>
    %c0_287 = arith.constant 0 : index
    %c0_288 = arith.constant 0 : index
    %442 = vector.load %arg5[%c0_287, %c0_288] : memref<1x256xf32, #tpu.memory_space<vmem>>, vector<1x256xf32>
    %443 = vector.broadcast %442 : vector<1x256xf32> to vector<8x256xf32>
    %444 = arith.addf %441, %443 : vector<8x256xf32>
    %445 = arith.truncf %444 : vector<8x256xf32> to vector<8x256xbf16>
    %c0_289 = arith.constant 0 : index
    %c0_290 = arith.constant 0 : index
    %446 = vector.load %arg6[%c0_289, %c0_290] : memref<256x128xbf16, #tpu.memory_space<vmem>>, vector<256x128xbf16>
    %cst_291 = arith.constant dense<0.000000e+00> : vector<8x128xf32>
    %447 = tpu.matmul %445, %446, %cst_291 {dimension_numbers = #tpu.dot_dimension_numbers<[1], [0], [0], [1], [0, 0, 1, 1], [], []>} : vector<8x256xbf16>, vector<256x128xbf16>, vector<8x128xf32> -> vector<8x128xf32>
    %c0_292 = arith.constant 0 : index
    %c0_293 = arith.constant 0 : index
    %448 = vector.load %arg7[%c0_292, %c0_293] : memref<1x128xf32, #tpu.memory_space<vmem>>, vector<1x128xf32>
    %449 = vector.broadcast %448 : vector<1x128xf32> to vector<8x128xf32>
    %450 = arith.addf %447, %449 : vector<8x128xf32>
    %c0_294 = arith.constant 0 : index
    %c0_295 = arith.constant 0 : index
    %451 = vector.load %arg8[%c0_294, %c0_295] : memref<8x128xf32, #tpu.memory_space<vmem>>, vector<8x128xf32>
    tpu.vector_store %arg8[%c0_294, %c0_295], %450 {strides = array<i32>} : memref<8x128xf32, #tpu.memory_space<vmem>>, vector<8x128xf32>,
    return
  }
  func.func @transform_0(%arg0: i32) -> (i32, i32) {
    %c0_i32 = arith.constant 0 : i32
    %c0_i32_0 = arith.constant 0 : i32
    return %arg0, %c0_i32 : i32, i32
  }
  func.func @transform_1(%arg0: i32) -> (i32, i32) {
    %c0_i32 = arith.constant 0 : i32
    %c0_i32_0 = arith.constant 0 : i32
    %c0_i32_1 = arith.constant 0 : i32
    return %c0_i32, %c0_i32_0 : i32, i32
  }
  func.func @transform_2(%arg0: i32) -> (i32, i32) {
    %c0_i32 = arith.constant 0 : i32
    %c0_i32_0 = arith.constant 0 : i32
    %c0_i32_1 = arith.constant 0 : i32
    return %c0_i32, %c0_i32_0 : i32, i32
  }
  func.func @transform_3(%arg0: i32) -> (i32, i32) {
    %c0_i32 = arith.constant 0 : i32
    %c0_i32_0 = arith.constant 0 : i32
    %c0_i32_1 = arith.constant 0 : i32
    return %c0_i32, %c0_i32_0 : i32, i32
  }
  func.func @transform_4(%arg0: i32) -> (i32, i32) {
    %c0_i32 = arith.constant 0 : i32
    %c0_i32_0 = arith.constant 0 : i32
    %c0_i32_1 = arith.constant 0 : i32
    return %c0_i32, %c0_i32_0 : i32, i32
  }
  func.func @transform_5(%arg0: i32) -> (i32, i32) {
    %c0_i32 = arith.constant 0 : i32
    %c0_i32_0 = arith.constant 0 : i32
    %c0_i32_1 = arith.constant 0 : i32
    return %c0_i32, %c0_i32_0 : i32, i32
  }
  func.func @transform_6(%arg0: i32) -> (i32, i32) {
    %c0_i32 = arith.constant 0 : i32
    %c0_i32_0 = arith.constant 0 : i32
    %c0_i32_1 = arith.constant 0 : i32
    return %c0_i32, %c0_i32_0 : i32, i32
  }
  func.func @transform_7(%arg0: i32) -> (i32, i32) {
    %c0_i32 = arith.constant 0 : i32
    %c0_i32_0 = arith.constant 0 : i32
    return %arg0, %c0_i32 : i32, i32
  }
}

</mosaic_0001>

<llo_original>
// kernel: tpu_custom_call.1
$region0: #{tpu_custom_call.1}
  #allocation0 [shape = 'u32[]', space=smem, size = 0x4, offset = 0x4, fixed_abs, tag = 'smem constant byte address 0x4 - core index']
  #allocation1 [shape = 'u32[144,128]{1,0:T(1,128)}', space=vmem, size = 0x12000, scoped, tag = 'internal scratch']
  #allocation2 [shape = 'f32[8,256]{1,0:T(8,128)}', space=vmem, size = 0x2000, scoped, tag = 'scratch operand']
  %s0 = inlined_call_operand.hbm [shape: f32[8,26], index: 0, kind: input, shape index: {}]
  %s1 = inlined_call_operand.hbm [shape: f32[1,6656], index: 1, kind: input, shape index: {}]
  %s2 = inlined_call_operand.hbm [shape: f32[1,6656], index: 2, kind: input, shape index: {}]
  %s3 = inlined_call_operand.hbm [shape: bf16[6656,256], index: 3, kind: input, shape index: {}]
  %s4 = inlined_call_operand.hbm [shape: f32[1,256], index: 4, kind: input, shape index: {}]
  %s5 = inlined_call_operand.hbm [shape: bf16[256,128], index: 5, kind: input, shape index: {}]
  %s6 = inlined_call_operand.hbm [shape: f32[1,128], index: 6, kind: input, shape index: {}]
  %s7 = inlined_call_operand.hbm [shape: f32[8,128], index: 7, kind: output, shape index: {}]
  %s8 = sld [smem:[#allocation0]]
  $region66: #{tpu_custom_call.1} parent=0
    _
  %s10 = ssub.s32 1, %s8
  %s11 = scalar_select 0, %s10, %s8
  $region1: #{tpu_custom_call.1} parent=0
    #allocation3 [shape = 'u8[4096]{0}', space=vmem, size = 0x1000, scoped, tag = 'input window, operand 0, single buffered']
    #allocation4 [shape = 's32[1]{0}', space=sflag, size = 0x4, scoped, tag = 'scoped memory for tpu_custom_call.1']
    #allocation5 [shape = 's32[1]{0}', space=sflag, size = 0x4, scoped, tag = 'scoped memory for tpu_custom_call.1']
    #allocation6 [shape = 'u8[26624]{0}', space=vmem, size = 0x6800, scoped, tag = 'input window, operand 1, single buffered']
    #allocation7 [shape = 's32[1]{0}', space=sflag, size = 0x4, scoped, tag = 'scoped memory for tpu_custom_call.1']
    #allocation8 [shape = 'u8[26624]{0}', space=vmem, size = 0x6800, scoped, tag = 'input window, operand 2, single buffered']
    #allocation9 [shape = 'u8[3407872]{0}', space=vmem, size = 0x340000, scoped, tag = 'input window, operand 3, single buffered']
    #allocation10 [shape = 's32[1]{0}', space=sflag, size = 0x4, scoped, tag = 'scoped memory for tpu_custom_call.1']
    #allocation11 [shape = 'u8[1024]{0}', space=vmem, size = 0x400, scoped, tag = 'input window, operand 4, single buffered']
    #allocation12 [shape = 'u8[65536]{0}', space=vmem, size = 0x10000, scoped, tag = 'input window, operand 5, single buffered']
    #allocation13 [shape = 's32[1]{0}', space=sflag, size = 0x4, scoped, tag = 'scoped memory for tpu_custom_call.1']
    #allocation14 [shape = 'u8[512]{0}', space=vmem, size = 0x400, scoped, tag = 'input window, operand 6, single buffered']
    #allocation15 [shape = 'u8[4096]{0}', space=vmem, size = 0x1000, scoped, tag = 'output window, operand 0, single buffered']
    %12 = vsyncpa [#allocation4], 0
    %13 = vsyncpa [#allocation7], 0
    %14 = vsyncpa [#allocation10], 0
    %15 = vsyncpa [#allocation13], 0
    %16 = vsyncpa [#allocation5], 0
    // Predicated region
    $region2: #{tpu_custom_call.1} parent=1 // pred_check
      _
    $region3: #{tpu_custom_call.1} parent=1 // pred_check_branch
      %18 = sbr.rel (0) target = $region5
    $region4: #{tpu_custom_call.1} parent=1 // pred_region
      %s20 = ssub.s32 128, 128
      %21 = vsyncadd [#allocation4], %s20
      %s23 = sshll.u32 [#allocation3], 4
      %s24 = int_to_ptr.vmem [resolvable:$true] %s23
      %26 = dma.hbm_to_vmem [thread:$0]  %s0, 128, %s24, [#allocation4]
    $region5: #{tpu_custom_call.1} parent=1 // pred_fallthru
      _
    // Predicated region
    $region6: #{tpu_custom_call.1} parent=1 // pred_check
      _
    $region7: #{tpu_custom_call.1} parent=1 // pred_check_branch
      %28 = sbr.rel (0) target = $region9
    $region8: #{tpu_custom_call.1} parent=1 // pred_region
      %s30 = ssub.s32 832, 832
      %31 = vsyncadd [#allocation7], %s30
      %s33 = sshll.u32 [#allocation6], 4
      %s34 = int_to_ptr.vmem [resolvable:$true] %s33
      %36 = dma.hbm_to_vmem [thread:$0]  %s1, 832, %s34, [#allocation7]
    $region9: #{tpu_custom_call.1} parent=1 // pred_fallthru
      _
    // Predicated region
    $region10: #{tpu_custom_call.1} parent=1 // pred_check
      _
    $region11: #{tpu_custom_call.1} parent=1 // pred_check_branch
      %38 = sbr.rel (0) target = $region13
    $region12: #{tpu_custom_call.1} parent=1 // pred_region
      %s40 = ssub.s32 832, 832
      %41 = vsyncadd [#allocation7], %s40
      %s43 = sshll.u32 [#allocation8], 4
      %s44 = int_to_ptr.vmem [resolvable:$true] %s43
      %46 = dma.hbm_to_vmem [thread:$0]  %s2, 832, %s44, [#allocation7]
    $region13: #{tpu_custom_call.1} parent=1 // pred_fallthru
      _
    // Predicated region
    $region14: #{tpu_custom_call.1} parent=1 // pred_check
      _
    $region15: #{tpu_custom_call.1} parent=1 // pred_check_branch
      %48 = sbr.rel (0) target = $region17
    $region16: #{tpu_custom_call.1} parent=1 // pred_region
      %s50 = ssub.s32 106496, 106496
      %51 = vsyncadd [#allocation10], %s50
      %s52 = sshll.u32 [#allocation9], 4
      %s53 = int_to_ptr.vmem [resolvable:$true] %s52
      %58 = dma.hbm_to_vmem [thread:$0]  %s3, 106496, %s53, [#allocation10], 128, 128, 8
    $region17: #{tpu_custom_call.1} parent=1 // pred_fallthru
      _
    // Predicated region
    $region18: #{tpu_custom_call.1} parent=1 // pred_check
      _
    $region19: #{tpu_custom_call.1} parent=1 // pred_check_branch
      %60 = sbr.rel (0) target = $region21
    $region20: #{tpu_custom_call.1} parent=1 // pred_region
      %s62 = ssub.s32 32, 32
      %63 = vsyncadd [#allocation10], %s62
      %s65 = sshll.u32 [#allocation11], 4
      %s66 = int_to_ptr.vmem [resolvable:$true] %s65
      %68 = dma.hbm_to_vmem [thread:$0]  %s4, 32, %s66, [#allocation10]
    $region21: #{tpu_custom_call.1} parent=1 // pred_fallthru
      _
    // Predicated region
    $region22: #{tpu_custom_call.1} parent=1 // pred_check
      _
    $region23: #{tpu_custom_call.1} parent=1 // pred_check_branch
      %70 = sbr.rel (0) target = $region25
    $region24: #{tpu_custom_call.1} parent=1 // pred_region
      %s72 = ssub.s32 2048, 2048
      %73 = vsyncadd [#allocation13], %s72
      %s74 = sshll.u32 [#allocation12], 4
      %s75 = int_to_ptr.vmem [resolvable:$true] %s74
      %80 = dma.hbm_to_vmem [thread:$0]  %s5, 2048, %s75, [#allocation13], 64, 64, 4
    $region25: #{tpu_custom_call.1} parent=1 // pred_fallthru
      _
    // Predicated region
    $region26: #{tpu_custom_call.1} parent=1 // pred_check
      _
    $region27: #{tpu_custom_call.1} parent=1 // pred_check_branch
      %82 = sbr.rel (0) target = $region29
    $region28: #{tpu_custom_call.1} parent=1 // pred_region
      %s84 = ssub.s32 16, 16
      %85 = vsyncadd [#allocation13], %s84
      %s87 = sshll.u32 [#allocation14], 4
      %s88 = int_to_ptr.vmem [resolvable:$true] %s87
      %90 = dma.hbm_to_vmem [thread:$0]  %s6, 16, %s88, [#allocation13]
    $region29: #{tpu_custom_call.1} parent=1 // pred_fallthru
      _
    // Predicated region
    $region30: #{tpu_custom_call.1} parent=1 // pred_check
      _
    $region31: #{tpu_custom_call.1} parent=1 // pred_check_branch
      %92 = sbr.rel (0) target = $region33
    $region32: #{tpu_custom_call.1} parent=1 // pred_region
      %93 = dma.done [#allocation4], 128
    $region33: #{tpu_custom_call.1} parent=1 // pred_fallthru
      _
    // Predicated region
    $region34: #{tpu_custom_call.1} parent=1 // pred_check
      _
    $region35: #{tpu_custom_call.1} parent=1 // pred_check_branch
      %95 = sbr.rel (0) target = $region37
    $region36: #{tpu_custom_call.1} parent=1 // pred_region
      %96 = dma.done [#allocation7], 832
    $region37: #{tpu_custom_call.1} parent=1 // pred_fallthru
      _
    // Predicated region
    $region38: #{tpu_custom_call.1} parent=1 // pred_check
      _
    $region39: #{tpu_custom_call.1} parent=1 // pred_check_branch
      %98 = sbr.rel (0) target = $region41
    $region40: #{tpu_custom_call.1} parent=1 // pred_region
      %99 = dma.done [#allocation7], 832
    $region41: #{tpu_custom_call.1} parent=1 // pred_fallthru
      _
    // Predicated region
    $region42: #{tpu_custom_call.1} parent=1 // pred_check
      _
    $region43: #{tpu_custom_call.1} parent=1 // pred_check_branch
      %101 = sbr.rel (0) target = $region45
    $region44: #{tpu_custom_call.1} parent=1 // pred_region
      %102 = dma.done [#allocation10], 106496
    $region45: #{tpu_custom_call.1} parent=1 // pred_fallthru
      _
    // Predicated region
    $region46: #{tpu_custom_call.1} parent=1 // pred_check
      _
    $region47: #{tpu_custom_call.1} parent=1 // pred_check_branch
      %104 = sbr.rel (0) target = $region49
    $region48: #{tpu_custom_call.1} parent=1 // pred_region
      %105 = dma.done [#allocation10], 32
    $region49: #{tpu_custom_call.1} parent=1 // pred_fallthru
      _
    // Predicated region
    $region50: #{tpu_custom_call.1} parent=1 // pred_check
      _
    $region51: #{tpu_custom_call.1} parent=1 // pred_check_branch
      %107 = sbr.rel (0) target = $region53
    $region52: #{tpu_custom_call.1} parent=1 // pred_region
      %108 = dma.done [#allocation13], 2048
    $region53: #{tpu_custom_call.1} parent=1 // pred_fallthru
      _
    // Predicated region
    $region54: #{tpu_custom_call.1} parent=1 // pred_check
      _
    $region55: #{tpu_custom_call.1} parent=1 // pred_check_branch
      %110 = sbr.rel (0) target = $region57
    $region56: #{tpu_custom_call.1} parent=1 // pred_region
      %111 = dma.done [#allocation13], 16
    $region57: #{tpu_custom_call.1} parent=1 // pred_fallthru
      _
    %v113 = vld [vmem:[#allocation3] sm:$0xff]
    %v114 = vld [vmem:[#allocation6] sm:$0x3]
    %v115 = vld [vmem:[#allocation8] sm:$0x3]
    %117 = vset.pattern.permute.xlu0 0
    %118 = vperm.xlu0 %117, %v113
    %v119 = vpop.permute.xlu0 %118
    %v122 = vlaneseq
    %v123 = vshrl.u32 %v122, 7
    %v124 = vsub.s32 0, %v123
    %v125 = vrot.slane %v114, %v124
    %v126 = vlaneseq
    %v127 = vshrl.u32 %v126, 7
    %v128 = vsub.s32 1, %v127
    %v129 = vrot.slane %v114, %v128
    %v132 = vmul.f32 %v119, %v125
    %v133 = vmul.f32 %v119, %v129
    %v135 = vlaneseq
    %v136 = vshrl.u32 %v135, 7
    %v137 = vsub.s32 0, %v136
    %v138 = vrot.slane %v115, %v137
    %v139 = vlaneseq
    %v140 = vshrl.u32 %v139, 7
    %v141 = vsub.s32 1, %v140
    %v142 = vrot.slane %v115, %v141
    %v145 = vadd.f32 %v132, %v138
    %v146 = vadd.f32 %v133, %v142
    %v147 = vmax.f32 %v145, 0.0
    %v148 = vmax.f32 %v146, 0.0
    %v149 = vpack.c.bf16 %v147, %v147
    %v150 = vpack.c.bf16 %v148, %v148
    %v151 = vld [vmem:[#allocation9] sm:$0xff]
    %v152 = vld [vmem:[#allocation9 + $0x8] sm:$0xff]
    %v153 = vld [vmem:[#allocation9 + $0x10] sm:$0xff]
    %v154 = vld [vmem:[#allocation9 + $0x18] sm:$0xff]
    %v155 = vld [vmem:[#allocation9 + $0x20] sm:$0xff]
    %v156 = vld [vmem:[#allocation9 + $0x28] sm:$0xff]
    %v157 = vld [vmem:[#allocation9 + $0x30] sm:$0xff]
    %v158 = vld [vmem:[#allocation9 + $0x38] sm:$0xff]
    %v159 = vld [vmem:[#allocation9 + $0x40] sm:$0xff]
    %v160 = vld [vmem:[#allocation9 + $0x48] sm:$0xff]
    %v161 = vld [vmem:[#allocation9 + $0x50] sm:$0xff]
    %v162 = vld [vmem:[#allocation9 + $0x58] sm:$0xff]
    %v163 = vld [vmem:[#allocation9 + $0x60] sm:$0xff]
    %v164 = vld [vmem:[#allocation9 + $0x68] sm:$0xff]
    %v165 = vld [vmem:[#allocation9 + $0x70] sm:$0xff]
    %v166 = vld [vmem:[#allocation9 + $0x78] sm:$0xff]
    %v167 = vld [vmem:[#allocation9 + $0x80] sm:$0xff]
    %v168 = vld [vmem:[#allocation9 + $0x88] sm:$0xff]
    %v169 = vld [vmem:[#allocation9 + $0x90] sm:$0xff]
    %v170 = vld [vmem:[#allocation9 + $0x98] sm:$0xff]
    %v171 = vld [vmem:[#allocation9 + $0xa0] sm:$0xff]
    %v172 = vld [vmem:[#allocation9 + $0xa8] sm:$0xff]
    %v173 = vld [vmem:[#allocation9 + $0xb0] sm:$0xff]
    %v174 = vld [vmem:[#allocation9 + $0xb8] sm:$0xff]
    %v175 = vld [vmem:[#allocation9 + $0xc0] sm:$0xff]
    %v176 = vld [vmem:[#allocation9 + $0xc8] sm:$0xff]
    %v177 = vld [vmem:[#allocation9 + $0xd0] sm:$0xff]
    %v178 = vld [vmem:[#allocation9 + $0xd8] sm:$0xff]
    %v179 = vld [vmem:[#allocation9 + $0xe0] sm:$0xff]
    %v180 = vld [vmem:[#allocation9 + $0xe8] sm:$0xff]
    %v181 = vld [vmem:[#allocation9 + $0xf0] sm:$0xff]
    %v182 = vld [vmem:[#allocation9 + $0xf8] sm:$0xff]
    %v215 = vunpack.c.l.b16 %v151
    %v216 = vunpack.c.h.b16 %v151
    %v217 = vunpack.c.l.b16 %v152
    %v218 = vunpack.c.h.b16 %v152
    %v219 = vunpack.c.l.b16 %v153
    %v220 = vunpack.c.h.b16 %v153
    %v221 = vunpack.c.l.b16 %v154
    %v222 = vunpack.c.h.b16 %v154
    %v223 = vunpack.c.l.b16 %v155
    %v224 = vunpack.c.h.b16 %v155
    %v225 = vunpack.c.l.b16 %v156
    %v226 = vunpack.c.h.b16 %v156
    %v227 = vunpack.c.l.b16 %v157
    %v228 = vunpack.c.h.b16 %v157
    %v229 = vunpack.c.l.b16 %v158
    %v230 = vunpack.c.h.b16 %v158
    %v231 = vunpack.c.l.b16 %v159
    %v232 = vunpack.c.h.b16 %v159
    %v233 = vunpack.c.l.b16 %v160
    %v234 = vunpack.c.h.b16 %v160
    %v235 = vunpack.c.l.b16 %v161
    %v236 = vunpack.c.h.b16 %v161
    %v237 = vunpack.c.l.b16 %v162
    %v238 = vunpack.c.h.b16 %v162
    %v239 = vunpack.c.l.b16 %v163
    %v240 = vunpack.c.h.b16 %v163
    %v241 = vunpack.c.l.b16 %v164
    %v242 = vunpack.c.h.b16 %v164
    %v243 = vunpack.c.l.b16 %v165
    %v244 = vunpack.c.h.b16 %v165
    %v245 = vunpack.c.l.b16 %v166
    %v246 = vunpack.c.h.b16 %v166
    %v247 = vunpack.c.l.b16 %v167
    %v248 = vunpack.c.h.b16 %v167
    %v249 = vunpack.c.l.b16 %v168
    %v250 = vunpack.c.h.b16 %v168
    %v251 = vunpack.c.l.b16 %v169
    %v252 = vunpack.c.h.b16 %v169
    %v253 = vunpack.c.l.b16 %v170
    %v254 = vunpack.c.h.b16 %v170
    %v255 = vunpack.c.l.b16 %v171
    %v256 = vunpack.c.h.b16 %v171
    %v257 = vunpack.c.l.b16 %v172
    %v258 = vunpack.c.h.b16 %v172
    %v259 = vunpack.c.l.b16 %v173
    %v260 = vunpack.c.h.b16 %v173
    %v261 = vunpack.c.l.b16 %v174
    %v262 = vunpack.c.h.b16 %v174
    %v263 = vunpack.c.l.b16 %v175
    %v264 = vunpack.c.h.b16 %v175
    %v265 = vunpack.c.l.b16 %v176
    %v266 = vunpack.c.h.b16 %v176
    %v267 = vunpack.c.l.b16 %v177
    %v268 = vunpack.c.h.b16 %v177
    %v269 = vunpack.c.l.b16 %v178
    %v270 = vunpack.c.h.b16 %v178
    %v271 = vunpack.c.l.b16 %v179
    %v272 = vunpack.c.h.b16 %v179
    %v273 = vunpack.c.l.b16 %v180
    %v274 = vunpack.c.h.b16 %v180
    %v275 = vunpack.c.l.b16 %v181
    %v276 = vunpack.c.h.b16 %v181
    %v277 = vunpack.c.l.b16 %v182
    %v278 = vunpack.c.h.b16 %v182
    %v279 = vpack.c.b16 %v217, %v215
    %v280 = vpack.c.b16 %v218, %v216
    %v281 = vpack.c.b16 %v221, %v219
    %v282 = vpack.c.b16 %v222, %v220
    %v283 = vpack.c.b16 %v225, %v223
    %v284 = vpack.c.b16 %v226, %v224
    %v285 = vpack.c.b16 %v229, %v227
    %v286 = vpack.c.b16 %v230, %v228
    %v287 = vpack.c.b16 %v233, %v231
    %v288 = vpack.c.b16 %v234, %v232
    %v289 = vpack.c.b16 %v237, %v235
    %v290 = vpack.c.b16 %v238, %v236
    %v291 = vpack.c.b16 %v241, %v239
    %v292 = vpack.c.b16 %v242, %v240
    %v293 = vpack.c.b16 %v245, %v243
    %v294 = vpack.c.b16 %v246, %v244
    %v295 = vpack.c.b16 %v249, %v247
    %v296 = vpack.c.b16 %v250, %v248
    %v297 = vpack.c.b16 %v253, %v251
    %v298 = vpack.c.b16 %v254, %v252
    %v299 = vpack.c.b16 %v257, %v255
    %v300 = vpack.c.b16 %v258, %v256
    %v301 = vpack.c.b16 %v261, %v259
    %v302 = vpack.c.b16 %v262, %v260
    %v303 = vpack.c.b16 %v265, %v263
    %v304 = vpack.c.b16 %v266, %v264
    %v305 = vpack.c.b16 %v269, %v267
    %v306 = vpack.c.b16 %v270, %v268
    %v307 = vpack.c.b16 %v273, %v271
    %v308 = vpack.c.b16 %v274, %v272
    %v309 = vpack.c.b16 %v277, %v275
    %v310 = vpack.c.b16 %v278, %v276
    %343 = vmatprep.subr.bf16.mxu0 %v280
    %344 = vmatpush1.bf16.msra.mxu0 %v279
    %345 = vmatprep.subr.bf16.mxu0 %v282
    %346 = vmatpush1.bf16.msra.mxu0 %v281
    %347 = vmatprep.subr.bf16.mxu0 %v284
    %348 = vmatpush1.bf16.msra.mxu0 %v283
    %349 = vmatprep.subr.bf16.mxu0 %v286
    %350 = vmatpush1.bf16.msra.mxu0 %v285
    %351 = vmatprep.subr.bf16.mxu0 %v288
    %352 = vmatpush1.bf16.msra.mxu0 %v287
    %353 = vmatprep.subr.bf16.mxu0 %v290
    %354 = vmatpush1.bf16.msra.mxu0 %v289
    %355 = vmatprep.subr.bf16.mxu0 %v292
    %356 = vmatpush1.bf16.msra.mxu0 %v291
    %357 = vmatprep.subr.bf16.mxu0 %v294
    %358 = vmatpush1.bf16.msra.mxu0 %v293
    %359 = vmatprep.subr.bf16.mxu0 %v296
    %360 = vmatpush1.bf16.msra.mxu0 %v295
    %361 = vmatprep.subr.bf16.mxu0 %v298
    %362 = vmatpush1.bf16.msra.mxu0 %v297
    %363 = vmatprep.subr.bf16.mxu0 %v300
    %364 = vmatpush1.bf16.msra.mxu0 %v299
    %365 = vmatprep.subr.bf16.mxu0 %v302
    %366 = vmatpush1.bf16.msra.mxu0 %v301
    %367 = vmatprep.subr.bf16.mxu0 %v304
    %368 = vmatpush1.bf16.msra.mxu0 %v303
    %369 = vmatprep.subr.bf16.mxu0 %v306
    %370 = vmatpush1.bf16.msra.mxu0 %v305
    %371 = vmatprep.subr.bf16.mxu0 %v308
    %372 = vmatpush1.bf16.msra.mxu0 %v307
    %373 = vmatprep.subr.bf16.mxu0 %v310
    %374 = vmatpush1.bf16.msra.mxu0 %v309
    %375 = vmatprep.mubr.bf16.mxu0 %v150
    %376 = vmatmul.mubr.bf16.gmra.mrb[0].mxu0 %v149
    %v377 = vpop.f32.mrb[0].mxu0
    %v378 = vadd.f32 0.0, %v377
    %v379 = vpop.f32.mrb[0].mxu0
    %v380 = vadd.f32 0.0, %v379
    %v381 = vpop.f32.mrb[0].mxu0
    %v382 = vpop.f32.mrb[0].mxu0
    %383 = vdwg.mxu0
    %384 = vst [vmem:[#allocation2] sm:$0xff] %v378
    %385 = vst [vmem:[#allocation2 + $0x8] sm:$0xff] %v380
    %v386 = vld [vmem:[#allocation6 + $0x2] sm:$0x3]
    %v387 = vld [vmem:[#allocation8 + $0x2] sm:$0x3]
    %388 = vset.pattern.permute.xlu0 1
    %389 = vperm.xlu0 %388, %v113
    %v390 = vpop.permute.xlu0 %389
    %v393 = vlaneseq
    %v394 = vshrl.u32 %v393, 7
    %v395 = vsub.s32 0, %v394
    %v396 = vrot.slane %v386, %v395
    %v397 = vlaneseq
    %v398 = vshrl.u32 %v397, 7
    %v399 = vsub.s32 1, %v398
    %v400 = vrot.slane %v386, %v399
    %v403 = vmul.f32 %v390, %v396
    %v404 = vmul.f32 %v390, %v400
    %v406 = vlaneseq
    %v407 = vshrl.u32 %v406, 7
    %v408 = vsub.s32 0, %v407
    %v409 = vrot.slane %v387, %v408
    %v410 = vlaneseq
    %v411 = vshrl.u32 %v410, 7
    %v412 = vsub.s32 1, %v411
    %v413 = vrot.slane %v387, %v412
    %v416 = vadd.f32 %v403, %v409
    %v417 = vadd.f32 %v404, %v413
    %v418 = vmax.f32 %v416, 0.0
    %v419 = vmax.f32 %v417, 0.0
    %v420 = vpack.c.bf16 %v418, %v418
    %v421 = vpack.c.bf16 %v419, %v419
    %v422 = vld [vmem:[#allocation9 + $0x100] sm:$0xff]
    %v423 = vld [vmem:[#allocation9 + $0x108] sm:$0xff]
    %v424 = vld [vmem:[#allocation9 + $0x110] sm:$0xff]
    %v425 = vld [vmem:[#allocation9 + $0x118] sm:$0xff]
    %v426 = vld [vmem:[#allocation9 + $0x120] sm:$0xff]
    %v427 = vld [vmem:[#allocation9 + $0x128] sm:$0xff]
    %v428 = vld [vmem:[#allocation9 + $0x130] sm:$0xff]
    %v429 = vld [vmem:[#allocation9 + $0x138] sm:$0xff]
    %v430 = vld [vmem:[#allocation9 + $0x140] sm:$0xff]
    %v431 = vld [vmem:[#allocation9 + $0x148] sm:$0xff]
    %v432 = vld [vmem:[#allocation9 + $0x150] sm:$0xff]
    %v433 = vld [vmem:[#allocation9 + $0x158] sm:$0xff]
    %v434 = vld [vmem:[#allocation9 + $0x160] sm:$0xff]
    %v435 = vld [vmem:[#allocation9 + $0x168] sm:$0xff]
    %v436 = vld [vmem:[#allocation9 + $0x170] sm:$0xff]
    %v437 = vld [vmem:[#allocation9 + $0x178] sm:$0xff]
    %v438 = vld [vmem:[#allocation9 + $0x180] sm:$0xff]
    %v439 = vld [vmem:[#allocation9 + $0x188] sm:$0xff]
    %v440 = vld [vmem:[#allocation9 + $0x190] sm:$0xff]
    %v441 = vld [vmem:[#allocation9 + $0x198] sm:$0xff]
    %v442 = vld [vmem:[#allocation9 + $0x1a0] sm:$0xff]
    %v443 = vld [vmem:[#allocation9 + $0x1a8] sm:$0xff]
    %v444 = vld [vmem:[#allocation9 + $0x1b0] sm:$0xff]
    %v445 = vld [vmem:[#allocation9 + $0x1b8] sm:$0xff]
    %v446 = vld [vmem:[#allocation9 + $0x1c0] sm:$0xff]
    %v447 = vld [vmem:[#allocation9 + $0x1c8] sm:$0xff]
    %v448 = vld [vmem:[#allocation9 + $0x1d0] sm:$0xff]
    %v449 = vld [vmem:[#allocation9 + $0x1d8] sm:$0xff]
    %v450 = vld [vmem:[#allocation9 + $0x1e0] sm:$0xff]
    %v451 = vld [vmem:[#allocation9 + $0x1e8] sm:$0xff]
    %v452 = vld [vmem:[#allocation9 + $0x1f0] sm:$0xff]
    %v453 = vld [vmem:[#allocation9 + $0x1f8] sm:$0xff]
    %v486 = vunpack.c.l.b16 %v422
    %v487 = vunpack.c.h.b16 %v422
    %v488 = vunpack.c.l.b16 %v423
    %v489 = vunpack.c.h.b16 %v423
    %v490 = vunpack.c.l.b16 %v424
    %v491 = vunpack.c.h.b16 %v424
    %v492 = vunpack.c.l.b16 %v425
    %v493 = vunpack.c.h.b16 %v425
    %v494 = vunpack.c.l.b16 %v426
    %v495 = vunpack.c.h.b16 %v426
    %v496 = vunpack.c.l.b16 %v427
    %v497 = vunpack.c.h.b16 %v427
    %v498 = vunpack.c.l.b16 %v428
    %v499 = vunpack.c.h.b16 %v428
    %v500 = vunpack.c.l.b16 %v429
    %v501 = vunpack.c.h.b16 %v429
    %v502 = vunpack.c.l.b16 %v430
    %v503 = vunpack.c.h.b16 %v430
    %v504 = vunpack.c.l.b16 %v431
    %v505 = vunpack.c.h.b16 %v431
    %v506 = vunpack.c.l.b16 %v432
    %v507 = vunpack.c.h.b16 %v432
    %v508 = vunpack.c.l.b16 %v433
    %v509 = vunpack.c.h.b16 %v433
    %v510 = vunpack.c.l.b16 %v434
    %v511 = vunpack.c.h.b16 %v434
    %v512 = vunpack.c.l.b16 %v435
    %v513 = vunpack.c.h.b16 %v435
    %v514 = vunpack.c.l.b16 %v436
    %v515 = vunpack.c.h.b16 %v436
    %v516 = vunpack.c.l.b16 %v437
    %v517 = vunpack.c.h.b16 %v437
    %v518 = vunpack.c.l.b16 %v438
    %v519 = vunpack.c.h.b16 %v438
    %v520 = vunpack.c.l.b16 %v439
    %v521 = vunpack.c.h.b16 %v439
    %v522 = vunpack.c.l.b16 %v440
    %v523 = vunpack.c.h.b16 %v440
    %v524 = vunpack.c.l.b16 %v441
    %v525 = vunpack.c.h.b16 %v441
    %v526 = vunpack.c.l.b16 %v442
    %v527 = vunpack.c.h.b16 %v442
    %v528 = vunpack.c.l.b16 %v443
    %v529 = vunpack.c.h.b16 %v443
    %v530 = vunpack.c.l.b16 %v444
    %v531 = vunpack.c.h.b16 %v444
    %v532 = vunpack.c.l.b16 %v445
    %v533 = vunpack.c.h.b16 %v445
    %v534 = vunpack.c.l.b16 %v446
    %v535 = vunpack.c.h.b16 %v446
    %v536 = vunpack.c.l.b16 %v447
    %v537 = vunpack.c.h.b16 %v447
    %v538 = vunpack.c.l.b16 %v448
    %v539 = vunpack.c.h.b16 %v448
    %v540 = vunpack.c.l.b16 %v449
    %v541 = vunpack.c.h.b16 %v449
    %v542 = vunpack.c.l.b16 %v450
    %v543 = vunpack.c.h.b16 %v450
    %v544 = vunpack.c.l.b16 %v451
    %v545 = vunpack.c.h.b16 %v451
    %v546 = vunpack.c.l.b16 %v452
    %v547 = vunpack.c.h.b16 %v452
    %v548 = vunpack.c.l.b16 %v453
    %v549 = vunpack.c.h.b16 %v453
    %v550 = vpack.c.b16 %v488, %v486
    %v551 = vpack.c.b16 %v489, %v487
    %v552 = vpack.c.b16 %v492, %v490
    %v553 = vpack.c.b16 %v493, %v491
    %v554 = vpack.c.b16 %v496, %v494
    %v555 = vpack.c.b16 %v497, %v495
    %v556 = vpack.c.b16 %v500, %v498
    %v557 = vpack.c.b16 %v501, %v499
    %v558 = vpack.c.b16 %v504, %v502
    %v559 = vpack.c.b16 %v505, %v503
    %v560 = vpack.c.b16 %v508, %v506
    %v561 = vpack.c.b16 %v509, %v507
    %v562 = vpack.c.b16 %v512, %v510
    %v563 = vpack.c.b16 %v513, %v511
    %v564 = vpack.c.b16 %v516, %v514
    %v565 = vpack.c.b16 %v517, %v515
    %v566 = vpack.c.b16 %v520, %v518
    %v567 = vpack.c.b16 %v521, %v519
    %v568 = vpack.c.b16 %v524, %v522
    %v569 = vpack.c.b16 %v525, %v523
    %v570 = vpack.c.b16 %v528, %v526
    %v571 = vpack.c.b16 %v529, %v527
    %v572 = vpack.c.b16 %v532, %v530
    %v573 = vpack.c.b16 %v533, %v531
    %v574 = vpack.c.b16 %v536, %v534
    %v575 = vpack.c.b16 %v537, %v535
    %v576 = vpack.c.b16 %v540, %v538
    %v577 = vpack.c.b16 %v541, %v539
    %v578 = vpack.c.b16 %v544, %v542
    %v579 = vpack.c.b16 %v545, %v543
    %v580 = vpack.c.b16 %v548, %v546
    %v581 = vpack.c.b16 %v549, %v547
    %614 = vmatprep.subr.bf16.mxu0 %v551
    %615 = vmatpush1.bf16.msra.mxu0 %v550
    %616 = vmatprep.subr.bf16.mxu0 %v553
    %617 = vmatpush1.bf16.msra.mxu0 %v552
    %618 = vmatprep.subr.bf16.mxu0 %v555
    %619 = vmatpush1.bf16.msra.mxu0 %v554
    %620 = vmatprep.subr.bf16.mxu0 %v557
    %621 = vmatpush1.bf16.msra.mxu0 %v556
    %622 = vmatprep.subr.bf16.mxu0 %v559
    %623 = vmatpush1.bf16.msra.mxu0 %v558
    %624 = vmatprep.subr.bf16.mxu0 %v561
    %625 = vmatpush1.bf16.msra.mxu0 %v560
    %626 = vmatprep.subr.bf16.mxu0 %v563
    %627 = vmatpush1.bf16.msra.mxu0 %v562
    %628 = vmatprep.subr.bf16.mxu0 %v565
    %629 = vmatpush1.bf16.msra.mxu0 %v564
    %630 = vmatprep.subr.bf16.mxu0 %v567
    %631 = vmatpush1.bf16.msra.mxu0 %v566
    %632 = vmatprep.subr.bf16.mxu0 %v569
    %633 = vmatpush1.bf16.msra.mxu0 %v568
    %634 = vmatprep.subr.bf16.mxu0 %v571
    %635 = vmatpush1.bf16.msra.mxu0 %v570
    %636 = vmatprep.subr.bf16.mxu0 %v573
    %637 = vmatpush1.bf16.msra.mxu0 %v572
    %638 = vmatprep.subr.bf16.mxu0 %v575
    %639 = vmatpush1.bf16.msra.mxu0 %v574
    %640 = vmatprep.subr.bf16.mxu0 %v577
    %641 = vmatpush1.bf16.msra.mxu0 %v576
    %642 = vmatprep.subr.bf16.mxu0 %v579
    %643 = vmatpush1.bf16.msra.mxu0 %v578
    %644 = vmatprep.subr.bf16.mxu0 %v581
    %645 = vmatpush1.bf16.msra.mxu0 %v580
    %646 = vmatprep.mubr.bf16.mxu0 %v421
    %647 = vmatmul.mubr.bf16.gmra.mrb[0].mxu0 %v420
    %v648 = vpop.f32.mrb[0].mxu0
    %v649 = vadd.f32 0.0, %v648
    %v650 = vpop.f32.mrb[0].mxu0
    %v651 = vadd.f32 0.0, %v650
    %v652 = vpop.f32.mrb[0].mxu0
    %v653 = vpop.f32.mrb[0].mxu0
    %654 = vdwg.mxu0
    %v655 = vld [vmem:[#allocation2] sm:$0xff]
    %v656 = vld [vmem:[#allocation2 + $0x8] sm:$0xff]
    %v657 = vadd.f32 %v655, %v649
    %v658 = vadd.f32 %v656, %v651
    %659 = vst [vmem:[#allocation2] sm:$0xff] %v657
    %660 = vst [vmem:[#allocation2 + $0x8] sm:$0xff] %v658
    %v661 = vld [vmem:[#allocation6 + $0x4] sm:$0x3]
    %v662 = vld [vmem:[#allocation8 + $0x4] sm:$0x3]
    %663 = vset.pattern.permute.xlu0 2
    %664 = vperm.xlu0 %663, %v113
    %v665 = vpop.permute.xlu0 %664
    %v668 = vlaneseq
    %v669 = vshrl.u32 %v668, 7
    %v670 = vsub.s32 0, %v669
    %v671 = vrot.slane %v661, %v670
    %v672 = vlaneseq
    %v673 = vshrl.u32 %v672, 7
    %v674 = vsub.s32 1, %v673
    %v675 = vrot.slane %v661, %v674
    %v678 = vmul.f32 %v665, %v671
    %v679 = vmul.f32 %v665, %v675
    %v681 = vlaneseq
    %v682 = vshrl.u32 %v681, 7
    %v683 = vsub.s32 0, %v682
    %v684 = vrot.slane %v662, %v683
    %v685 = vlaneseq
    %v686 = vshrl.u32 %v685, 7
    %v687 = vsub.s32 1, %v686
    %v688 = vrot.slane %v662, %v687
    %v691 = vadd.f32 %v678, %v684
    %v692 = vadd.f32 %v679, %v688
    %v693 = vmax.f32 %v691, 0.0
    %v694 = vmax.f32 %v692, 0.0
    %v695 = vpack.c.bf16 %v693, %v693
    %v696 = vpack.c.bf16 %v694, %v694
    %v697 = vld [vmem:[#allocation9 + $0x200] sm:$0xff]
    %v698 = vld [vmem:[#allocation9 + $0x208] sm:$0xff]
    %v699 = vld [vmem:[#allocation9 + $0x210] sm:$0xff]
    %v700 = vld [vmem:[#allocation9 + $0x218] sm:$0xff]
    %v701 = vld [vmem:[#allocation9 + $0x220] sm:$0xff]
    %v702 = vld [vmem:[#allocation9 + $0x228] sm:$0xff]
    %v703 = vld [vmem:[#allocation9 + $0x230] sm:$0xff]
    %v704 = vld [vmem:[#allocation9 + $0x238] sm:$0xff]
    %v705 = vld [vmem:[#allocation9 + $0x240] sm:$0xff]
    %v706 = vld [vmem:[#allocation9 + $0x248] sm:$0xff]
    %v707 = vld [vmem:[#allocation9 + $0x250] sm:$0xff]
    %v708 = vld [vmem:[#allocation9 + $0x258] sm:$0xff]
    %v709 = vld [vmem:[#allocation9 + $0x260] sm:$0xff]
    %v710 = vld [vmem:[#allocation9 + $0x268] sm:$0xff]
    %v711 = vld [vmem:[#allocation9 + $0x270] sm:$0xff]
    %v712 = vld [vmem:[#allocation9 + $0x278] sm:$0xff]
    %v713 = vld [vmem:[#allocation9 + $0x280] sm:$0xff]
    %v714 = vld [vmem:[#allocation9 + $0x288] sm:$0xff]
    %v715 = vld [vmem:[#allocation9 + $0x290] sm:$0xff]
    %v716 = vld [vmem:[#allocation9 + $0x298] sm:$0xff]
    %v717 = vld [vmem:[#allocation9 + $0x2a0] sm:$0xff]
    %v718 = vld [vmem:[#allocation9 + $0x2a8] sm:$0xff]
    %v719 = vld [vmem:[#allocation9 + $0x2b0] sm:$0xff]
    %v720 = vld [vmem:[#allocation9 + $0x2b8] sm:$0xff]
    %v721 = vld [vmem:[#allocation9 + $0x2c0] sm:$0xff]
    %v722 = vld [vmem:[#allocation9 + $0x2c8] sm:$0xff]
    %v723 = vld [vmem:[#allocation9 + $0x2d0] sm:$0xff]
    %v724 = vld [vmem:[#allocation9 + $0x2d8] sm:$0xff]
    %v725 = vld [vmem:[#allocation9 + $0x2e0] sm:$0xff]
    %v726 = vld [vmem:[#allocation9 + $0x2e8] sm:$0xff]
    %v727 = vld [vmem:[#allocation9 + $0x2f0] sm:$0xff]
    %v728 = vld [vmem:[#allocation9 + $0x2f8] sm:$0xff]
    %v761 = vunpack.c.l.b16 %v697
    %v762 = vunpack.c.h.b16 %v697
    %v763 = vunpack.c.l.b16 %v698
    %v764 = vunpack.c.h.b16 %v698
    %v765 = vunpack.c.l.b16 %v699
    %v766 = vunpack.c.h.b16 %v699
    %v767 = vunpack.c.l.b16 %v700
    %v768 = vunpack.c.h.b16 %v700
    %v769 = vunpack.c.l.b16 %v701
    %v770 = vunpack.c.h.b16 %v701
    %v771 = vunpack.c.l.b16 %v702
    %v772 = vunpack.c.h.b16 %v702
    %v773 = vunpack.c.l.b16 %v703
    %v774 = vunpack.c.h.b16 %v703
    %v775 = vunpack.c.l.b16 %v704
    %v776 = vunpack.c.h.b16 %v704
    %v777 = vunpack.c.l.b16 %v705
    %v778 = vunpack.c.h.b16 %v705
    %v779 = vunpack.c.l.b16 %v706
    %v780 = vunpack.c.h.b16 %v706
    %v781 = vunpack.c.l.b16 %v707
    %v782 = vunpack.c.h.b16 %v707
    %v783 = vunpack.c.l.b16 %v708
    %v784 = vunpack.c.h.b16 %v708
    %v785 = vunpack.c.l.b16 %v709
    %v786 = vunpack.c.h.b16 %v709
    %v787 = vunpack.c.l.b16 %v710
    %v788 = vunpack.c.h.b16 %v710
    %v789 = vunpack.c.l.b16 %v711
    %v790 = vunpack.c.h.b16 %v711
    %v791 = vunpack.c.l.b16 %v712
    %v792 = vunpack.c.h.b16 %v712
    %v793 = vunpack.c.l.b16 %v713
    %v794 = vunpack.c.h.b16 %v713
    %v795 = vunpack.c.l.b16 %v714
    %v796 = vunpack.c.h.b16 %v714
    %v797 = vunpack.c.l.b16 %v715
    %v798 = vunpack.c.h.b16 %v715
    %v799 = vunpack.c.l.b16 %v716
    %v800 = vunpack.c.h.b16 %v716
    %v801 = vunpack.c.l.b16 %v717
    %v802 = vunpack.c.h.b16 %v717
    %v803 = vunpack.c.l.b16 %v718
    %v804 = vunpack.c.h.b16 %v718
    %v805 = vunpack.c.l.b16 %v719
    %v806 = vunpack.c.h.b16 %v719
    %v807 = vunpack.c.l.b16 %v720
    %v808 = vunpack.c.h.b16 %v720
    %v809 = vunpack.c.l.b16 %v721
    %v810 = vunpack.c.h.b16 %v721
    %v811 = vunpack.c.l.b16 %v722
    %v812 = vunpack.c.h.b16 %v722
    %v813 = vunpack.c.l.b16 %v723
    %v814 = vunpack.c.h.b16 %v723
    %v815 = vunpack.c.l.b16 %v724
    %v816 = vunpack.c.h.b16 %v724
    %v817 = vunpack.c.l.b16 %v725
    %v818 = vunpack.c.h.b16 %v725
    %v819 = vunpack.c.l.b16 %v726
    %v820 = vunpack.c.h.b16 %v726
    %v821 = vunpack.c.l.b16 %v727
    %v822 = vunpack.c.h.b16 %v727
    %v823 = vunpack.c.l.b16 %v728
    %v824 = vunpack.c.h.b16 %v728
    %v825 = vpack.c.b16 %v763, %v761
    %v826 = vpack.c.b16 %v764, %v762
    %v827 = vpack.c.b16 %v767, %v765
    %v828 = vpack.c.b16 %v768, %v766
    %v829 = vpack.c.b16 %v771, %v769
    %v830 = vpack.c.b16 %v772, %v770
    %v831 = vpack.c.b16 %v775, %v773
    %v832 = vpack.c.b16 %v776, %v774
    %v833 = vpack.c.b16 %v779, %v777
    %v834 = vpack.c.b16 %v780, %v778
    %v835 = vpack.c.b16 %v783, %v781
    %v836 = vpack.c.b16 %v784, %v782
    %v837 = vpack.c.b16 %v787, %v785
    %v838 = vpack.c.b16 %v788, %v786
    %v839 = vpack.c.b16 %v791, %v789
    %v840 = vpack.c.b16 %v792, %v790
    %v841 = vpack.c.b16 %v795, %v793
    %v842 = vpack.c.b16 %v796, %v794
    %v843 = vpack.c.b16 %v799, %v797
    %v844 = vpack.c.b16 %v800, %v798
    %v845 = vpack.c.b16 %v803, %v801
    %v846 = vpack.c.b16 %v804, %v802
    %v847 = vpack.c.b16 %v807, %v805
    %v848 = vpack.c.b16 %v808, %v806
    %v849 = vpack.c.b16 %v811, %v809
    %v850 = vpack.c.b16 %v812, %v810
    %v851 = vpack.c.b16 %v815, %v813
    %v852 = vpack.c.b16 %v816, %v814
    %v853 = vpack.c.b16 %v819, %v817
    %v854 = vpack.c.b16 %v820, %v818
    %v855 = vpack.c.b16 %v823, %v821
    %v856 = vpack.c.b16 %v824, %v822
    %889 = vmatprep.subr.bf16.mxu0 %v826
    %890 = vmatpush1.bf16.msra.mxu0 %v825
    %891 = vmatprep.subr.bf16.mxu0 %v828
    %892 = vmatpush1.bf16.msra.mxu0 %v827
    %893 = vmatprep.subr.bf16.mxu0 %v830
    %894 = vmatpush1.bf16.msra.mxu0 %v829
    %895 = vmatprep.subr.bf16.mxu0 %v832
    %896 = vmatpush1.bf16.msra.mxu0 %v831
    %897 = vmatprep.subr.bf16.mxu0 %v834
    %898 = vmatpush1.bf16.msra.mxu0 %v833
    %899 = vmatprep.subr.bf16.mxu0 %v836
    %900 = vmatpush1.bf16.msra.mxu0 %v835
    %901 = vmatprep.subr.bf16.mxu0 %v838
    %902 = vmatpush1.bf16.msra.mxu0 %v837
    %903 = vmatprep.subr.bf16.mxu0 %v840
    %904 = vmatpush1.bf16.msra.mxu0 %v839
    %905 = vmatprep.subr.bf16.mxu0 %v842
    %906 = vmatpush1.bf16.msra.mxu0 %v841
    %907 = vmatprep.subr.bf16.mxu0 %v844
    %908 = vmatpush1.bf16.msra.mxu0 %v843
    %909 = vmatprep.subr.bf16.mxu0 %v846
    %910 = vmatpush1.bf16.msra.mxu0 %v845
    %911 = vmatprep.subr.bf16.mxu0 %v848
    %912 = vmatpush1.bf16.msra.mxu0 %v847
    %913 = vmatprep.subr.bf16.mxu0 %v850
    %914 = vmatpush1.bf16.msra.mxu0 %v849
    %915 = vmatprep.subr.bf16.mxu0 %v852
    %916 = vmatpush1.bf16.msra.mxu0 %v851
    %917 = vmatprep.subr.bf16.mxu0 %v854
    %918 = vmatpush1.bf16.msra.mxu0 %v853
    %919 = vmatprep.subr.bf16.mxu0 %v856
    %920 = vmatpush1.bf16.msra.mxu0 %v855
    %921 = vmatprep.mubr.bf16.mxu0 %v696
    %922 = vmatmul.mubr.bf16.gmra.mrb[0].mxu0 %v695
    %v923 = vpop.f32.mrb[0].mxu0
    %v924 = vadd.f32 0.0, %v923
    %v925 = vpop.f32.mrb[0].mxu0
    %v926 = vadd.f32 0.0, %v925
    %v927 = vpop.f32.mrb[0].mxu0
    %v928 = vpop.f32.mrb[0].mxu0
    %929 = vdwg.mxu0
    %v930 = vld [vmem:[#allocation2] sm:$0xff]
    %v931 = vld [vmem:[#allocation2 + $0x8] sm:$0xff]
    %v932 = vadd.f32 %v930, %v924
    %v933 = vadd.f32 %v931, %v926
    %934 = vst [vmem:[#allocation2] sm:$0xff] %v932
    %935 = vst [vmem:[#allocation2 + $0x8] sm:$0xff] %v933
    %v936 = vld [vmem:[#allocation6 + $0x6] sm:$0x3]
    %v937 = vld [vmem:[#allocation8 + $0x6] sm:$0x3]
    %938 = vset.pattern.permute.xlu0 3
    %939 = vperm.xlu0 %938, %v113
    %v940 = vpop.permute.xlu0 %939
    %v943 = vlaneseq
    %v944 = vshrl.u32 %v943, 7
    %v945 = vsub.s32 0, %v944
    %v946 = vrot.slane %v936, %v945
    %v947 = vlaneseq
    %v948 = vshrl.u32 %v947, 7
    %v949 = vsub.s32 1, %v948
    %v950 = vrot.slane %v936, %v949
    %v953 = vmul.f32 %v940, %v946
    %v954 = vmul.f32 %v940, %v950
    %v956 = vlaneseq
    %v957 = vshrl.u32 %v956, 7
    %v958 = vsub.s32 0, %v957
    %v959 = vrot.slane %v937, %v958
    %v960 = vlaneseq
    %v961 = vshrl.u32 %v960, 7
    %v962 = vsub.s32 1, %v961
    %v963 = vrot.slane %v937, %v962
    %v966 = vadd.f32 %v953, %v959
    %v967 = vadd.f32 %v954, %v963
    %v968 = vmax.f32 %v966, 0.0
    %v969 = vmax.f32 %v967, 0.0
    %v970 = vpack.c.bf16 %v968, %v968
    %v971 = vpack.c.bf16 %v969, %v969
    %v972 = vld [vmem:[#allocation9 + $0x300] sm:$0xff]
    %v973 = vld [vmem:[#allocation9 + $0x308] sm:$0xff]
    %v974 = vld [vmem:[#allocation9 + $0x310] sm:$0xff]
    %v975 = vld [vmem:[#allocation9 + $0x318] sm:$0xff]
    %v976 = vld [vmem:[#allocation9 + $0x320] sm:$0xff]
    %v977 = vld [vmem:[#allocation9 + $0x328] sm:$0xff]
    %v978 = vld [vmem:[#allocation9 + $0x330] sm:$0xff]
    %v979 = vld [vmem:[#allocation9 + $0x338] sm:$0xff]
    %v980 = vld [vmem:[#allocation9 + $0x340] sm:$0xff]
    %v981 = vld [vmem:[#allocation9 + $0x348] sm:$0xff]
    %v982 = vld [vmem:[#allocation9 + $0x350] sm:$0xff]
    %v983 = vld [vmem:[#allocation9 + $0x358] sm:$0xff]
    %v984 = vld [vmem:[#allocation9 + $0x360] sm:$0xff]
    %v985 = vld [vmem:[#allocation9 + $0x368] sm:$0xff]
    %v986 = vld [vmem:[#allocation9 + $0x370] sm:$0xff]
    %v987 = vld [vmem:[#allocation9 + $0x378] sm:$0xff]
    %v988 = vld [vmem:[#allocation9 + $0x380] sm:$0xff]
    %v989 = vld [vmem:[#allocation9 + $0x388] sm:$0xff]
    %v990 = vld [vmem:[#allocation9 + $0x390] sm:$0xff]
    %v991 = vld [vmem:[#allocation9 + $0x398] sm:$0xff]
    %v992 = vld [vmem:[#allocation9 + $0x3a0] sm:$0xff]
    %v993 = vld [vmem:[#allocation9 + $0x3a8] sm:$0xff]
    %v994 = vld [vmem:[#allocation9 + $0x3b0] sm:$0xff]
    %v995 = vld [vmem:[#allocation9 + $0x3b8] sm:$0xff]
    %v996 = vld [vmem:[#allocation9 + $0x3c0] sm:$0xff]
    %v997 = vld [vmem:[#allocation9 + $0x3c8] sm:$0xff]
    %v998 = vld [vmem:[#allocation9 + $0x3d0] sm:$0xff]
    %v999 = vld [vmem:[#allocation9 + $0x3d8] sm:$0xff]
    %v1000 = vld [vmem:[#allocation9 + $0x3e0] sm:$0xff]
    %v1001 = vld [vmem:[#allocation9 + $0x3e8] sm:$0xff]
    %v1002 = vld [vmem:[#allocation9 + $0x3f0] sm:$0xff]
    %v1003 = vld [vmem:[#allocation9 + $0x3f8] sm:$0xff]
    %v1036 = vunpack.c.l.b16 %v972
    %v1037 = vunpack.c.h.b16 %v972
    %v1038 = vunpack.c.l.b16 %v973
    %v1039 = vunpack.c.h.b16 %v973
    %v1040 = vunpack.c.l.b16 %v974
    %v1041 = vunpack.c.h.b16 %v974
    %v1042 = vunpack.c.l.b16 %v975
    %v1043 = vunpack.c.h.b16 %v975
    %v1044 = vunpack.c.l.b16 %v976
    %v1045 = vunpack.c.h.b16 %v976
    %v1046 = vunpack.c.l.b16 %v977
    %v1047 = vunpack.c.h.b16 %v977
    %v1048 = vunpack.c.l.b16 %v978
    %v1049 = vunpack.c.h.b16 %v978
    %v1050 = vunpack.c.l.b16 %v979
    %v1051 = vunpack.c.h.b16 %v979
    %v1052 = vunpack.c.l.b16 %v980
    %v1053 = vunpack.c.h.b16 %v980
    %v1054 = vunpack.c.l.b16 %v981
    %v1055 = vunpack.c.h.b16 %v981
    %v1056 = vunpack.c.l.b16 %v982
    %v1057 = vunpack.c.h.b16 %v982
    %v1058 = vunpack.c.l.b16 %v983
    %v1059 = vunpack.c.h.b16 %v983
    %v1060 = vunpack.c.l.b16 %v984
    %v1061 = vunpack.c.h.b16 %v984
    %v1062 = vunpack.c.l.b16 %v985
    %v1063 = vunpack.c.h.b16 %v985
    %v1064 = vunpack.c.l.b16 %v986
    %v1065 = vunpack.c.h.b16 %v986
    %v1066 = vunpack.c.l.b16 %v987
    %v1067 = vunpack.c.h.b16 %v987
    %v1068 = vunpack.c.l.b16 %v988
    %v1069 = vunpack.c.h.b16 %v988
    %v1070 = vunpack.c.l.b16 %v989
    %v1071 = vunpack.c.h.b16 %v989
    %v1072 = vunpack.c.l.b16 %v990
    %v1073 = vunpack.c.h.b16 %v990
    %v1074 = vunpack.c.l.b16 %v991
    %v1075 = vunpack.c.h.b16 %v991
    %v1076 = vunpack.c.l.b16 %v992
    %v1077 = vunpack.c.h.b16 %v992
    %v1078 = vunpack.c.l.b16 %v993
    %v1079 = vunpack.c.h.b16 %v993
    %v1080 = vunpack.c.l.b16 %v994
    %v1081 = vunpack.c.h.b16 %v994
    %v1082 = vunpack.c.l.b16 %v995
    %v1083 = vunpack.c.h.b16 %v995
    %v1084 = vunpack.c.l.b16 %v996
    %v1085 = vunpack.c.h.b16 %v996
    %v1086 = vunpack.c.l.b16 %v997
    %v1087 = vunpack.c.h.b16 %v997
    %v1088 = vunpack.c.l.b16 %v998
    %v1089 = vunpack.c.h.b16 %v998
    %v1090 = vunpack.c.l.b16 %v999
    %v1091 = vunpack.c.h.b16 %v999
    %v1092 = vunpack.c.l.b16 %v1000
    %v1093 = vunpack.c.h.b16 %v1000
    %v1094 = vunpack.c.l.b16 %v1001
    %v1095 = vunpack.c.h.b16 %v1001
    %v1096 = vunpack.c.l.b16 %v1002
    %v1097 = vunpack.c.h.b16 %v1002
    %v1098 = vunpack.c.l.b16 %v1003
    %v1099 = vunpack.c.h.b16 %v1003
    %v1100 = vpack.c.b16 %v1038, %v1036
    %v1101 = vpack.c.b16 %v1039, %v1037
    %v1102 = vpack.c.b16 %v1042, %v1040
    %v1103 = vpack.c.b16 %v1043, %v1041
    %v1104 = vpack.c.b16 %v1046, %v1044
    %v1105 = vpack.c.b16 %v1047, %v1045
    %v1106 = vpack.c.b16 %v1050, %v1048
    %v1107 = vpack.c.b16 %v1051, %v1049
    %v1108 = vpack.c.b16 %v1054, %v1052
    %v1109 = vpack.c.b16 %v1055, %v1053
    %v1110 = vpack.c.b16 %v1058, %v1056
    %v1111 = vpack.c.b16 %v1059, %v1057
    %v1112 = vpack.c.b16 %v1062, %v1060
    %v1113 = vpack.c.b16 %v1063, %v1061
    %v1114 = vpack.c.b16 %v1066, %v1064
    %v1115 = vpack.c.b16 %v1067, %v1065
    %v1116 = vpack.c.b16 %v1070, %v1068
    %v1117 = vpack.c.b16 %v1071, %v1069
    %v1118 = vpack.c.b16 %v1074, %v1072
    %v1119 = vpack.c.b16 %v1075, %v1073
    %v1120 = vpack.c.b16 %v1078, %v1076
    %v1121 = vpack.c.b16 %v1079, %v1077
    %v1122 = vpack.c.b16 %v1082, %v1080
    %v1123 = vpack.c.b16 %v1083, %v1081
    %v1124 = vpack.c.b16 %v1086, %v1084
    %v1125 = vpack.c.b16 %v1087, %v1085
    %v1126 = vpack.c.b16 %v1090, %v1088
    %v1127 = vpack.c.b16 %v1091, %v1089
    %v1128 = vpack.c.b16 %v1094, %v1092
    %v1129 = vpack.c.b16 %v1095, %v1093
    %v1130 = vpack.c.b16 %v1098, %v1096
    %v1131 = vpack.c.b16 %v1099, %v1097
    %1164 = vmatprep.subr.bf16.mxu0 %v1101
    %1165 = vmatpush1.bf16.msra.mxu0 %v1100
    %1166 = vmatprep.subr.bf16.mxu0 %v1103
    %1167 = vmatpush1.bf16.msra.mxu0 %v1102
    %1168 = vmatprep.subr.bf16.mxu0 %v1105
    %1169 = vmatpush1.bf16.msra.mxu0 %v1104
    %1170 = vmatprep.subr.bf16.mxu0 %v1107
    %1171 = vmatpush1.bf16.msra.mxu0 %v1106
    %1172 = vmatprep.subr.bf16.mxu0 %v1109
    %1173 = vmatpush1.bf16.msra.mxu0 %v1108
    %1174 = vmatprep.subr.bf16.mxu0 %v1111
    %1175 = vmatpush1.bf16.msra.mxu0 %v1110
    %1176 = vmatprep.subr.bf16.mxu0 %v1113
    %1177 = vmatpush1.bf16.msra.mxu0 %v1112
    %1178 = vmatprep.subr.bf16.mxu0 %v1115
    %1179 = vmatpush1.bf16.msra.mxu0 %v1114
    %1180 = vmatprep.subr.bf16.mxu0 %v1117
    %1181 = vmatpush1.bf16.msra.mxu0 %v1116
    %1182 = vmatprep.subr.bf16.mxu0 %v1119
    %1183 = vmatpush1.bf16.msra.mxu0 %v1118
    %1184 = vmatprep.subr.bf16.mxu0 %v1121
    %1185 = vmatpush1.bf16.msra.mxu0 %v1120
    %1186 = vmatprep.subr.bf16.mxu0 %v1123
    %1187 = vmatpush1.bf16.msra.mxu0 %v1122
    %1188 = vmatprep.subr.bf16.mxu0 %v1125
    %1189 = vmatpush1.bf16.msra.mxu0 %v1124
    %1190 = vmatprep.subr.bf16.mxu0 %v1127
    %1191 = vmatpush1.bf16.msra.mxu0 %v1126
    %1192 = vmatprep.subr.bf16.mxu0 %v1129
    %1193 = vmatpush1.bf16.msra.mxu0 %v1128
    %1194 = vmatprep.subr.bf16.mxu0 %v1131
    %1195 = vmatpush1.bf16.msra.mxu0 %v1130
    %1196 = vmatprep.mubr.bf16.mxu0 %v971
    %1197 = vmatmul.mubr.bf16.gmra.mrb[0].mxu0 %v970
    %v1198 = vpop.f32.mrb[0].mxu0
    %v1199 = vadd.f32 0.0, %v1198
    %v1200 = vpop.f32.mrb[0].mxu0
    %v1201 = vadd.f32 0.0, %v1200
    %v1202 = vpop.f32.mrb[0].mxu0
    %v1203 = vpop.f32.mrb[0].mxu0
    %1204 = vdwg.mxu0
    %v1205 = vld [vmem:[#allocation2] sm:$0xff]
    %v1206 = vld [vmem:[#allocation2 + $0x8] sm:$0xff]
    %v1207 = vadd.f32 %v1205, %v1199
    %v1208 = vadd.f32 %v1206, %v1201
    %1209 = vst [vmem:[#allocation2] sm:$0xff] %v1207
    %1210 = vst [vmem:[#allocation2 + $0x8] sm:$0xff] %v1208
    %v1211 = vld [vmem:[#allocation6 + $0x8] sm:$0x3]
    %v1212 = vld [vmem:[#allocation8 + $0x8] sm:$0x3]
    %1213 = vset.pattern.permute.xlu0 4
    %1214 = vperm.xlu0 %1213, %v113
    %v1215 = vpop.permute.xlu0 %1214
    %v1218 = vlaneseq
    %v1219 = vshrl.u32 %v1218, 7
    %v1220 = vsub.s32 0, %v1219
    %v1221 = vrot.slane %v1211, %v1220
    %v1222 = vlaneseq
    %v1223 = vshrl.u32 %v1222, 7
    %v1224 = vsub.s32 1, %v1223
    %v1225 = vrot.slane %v1211, %v1224
    %v1228 = vmul.f32 %v1215, %v1221
    %v1229 = vmul.f32 %v1215, %v1225
    %v1231 = vlaneseq
    %v1232 = vshrl.u32 %v1231, 7
    %v1233 = vsub.s32 0, %v1232
    %v1234 = vrot.slane %v1212, %v1233
    %v1235 = vlaneseq
    %v1236 = vshrl.u32 %v1235, 7
    %v1237 = vsub.s32 1, %v1236
    %v1238 = vrot.slane %v1212, %v1237
    %v1241 = vadd.f32 %v1228, %v1234
    %v1242 = vadd.f32 %v1229, %v1238
    %v1243 = vmax.f32 %v1241, 0.0
    %v1244 = vmax.f32 %v1242, 0.0
    %v1245 = vpack.c.bf16 %v1243, %v1243
    %v1246 = vpack.c.bf16 %v1244, %v1244
    %v1247 = vld [vmem:[#allocation9 + $0x400] sm:$0xff]
    %v1248 = vld [vmem:[#allocation9 + $0x408] sm:$0xff]
    %v1249 = vld [vmem:[#allocation9 + $0x410] sm:$0xff]
    %v1250 = vld [vmem:[#allocation9 + $0x418] sm:$0xff]
    %v1251 = vld [vmem:[#allocation9 + $0x420] sm:$0xff]
    %v1252 = vld [vmem:[#allocation9 + $0x428] sm:$0xff]
    %v1253 = vld [vmem:[#allocation9 + $0x430] sm:$0xff]
    %v1254 = vld [vmem:[#allocation9 + $0x438] sm:$0xff]
    %v1255 = vld [vmem:[#allocation9 + $0x440] sm:$0xff]
    %v1256 = vld [vmem:[#allocation9 + $0x448] sm:$0xff]
    %v1257 = vld [vmem:[#allocation9 + $0x450] sm:$0xff]
    %v1258 = vld [vmem:[#allocation9 + $0x458] sm:$0xff]
    %v1259 = vld [vmem:[#allocation9 + $0x460] sm:$0xff]
    %v1260 = vld [vmem:[#allocation9 + $0x468] sm:$0xff]
    %v1261 = vld [vmem:[#allocation9 + $0x470] sm:$0xff]
    %v1262 = vld [vmem:[#allocation9 + $0x478] sm:$0xff]
    %v1263 = vld [vmem:[#allocation9 + $0x480] sm:$0xff]
    %v1264 = vld [vmem:[#allocation9 + $0x488] sm:$0xff]
    %v1265 = vld [vmem:[#allocation9 + $0x490] sm:$0xff]
    %v1266 = vld [vmem:[#allocation9 + $0x498] sm:$0xff]
    %v1267 = vld [vmem:[#allocation9 + $0x4a0] sm:$0xff]
    %v1268 = vld [vmem:[#allocation9 + $0x4a8] sm:$0xff]
    %v1269 = vld [vmem:[#allocation9 + $0x4b0] sm:$0xff]
    %v1270 = vld [vmem:[#allocation9 + $0x4b8] sm:$0xff]
    %v1271 = vld [vmem:[#allocation9 + $0x4c0] sm:$0xff]
    %v1272 = vld [vmem:[#allocation9 + $0x4c8] sm:$0xff]
    %v1273 = vld [vmem:[#allocation9 + $0x4d0] sm:$0xff]
    %v1274 = vld [vmem:[#allocation9 + $0x4d8] sm:$0xff]
    %v1275 = vld [vmem:[#allocation9 + $0x4e0] sm:$0xff]
    %v1276 = vld [vmem:[#allocation9 + $0x4e8] sm:$0xff]
    %v1277 = vld [vmem:[#allocation9 + $0x4f0] sm:$0xff]
    %v1278 = vld [vmem:[#allocation9 + $0x4f8] sm:$0xff]
    %v1311 = vunpack.c.l.b16 %v1247
    %v1312 = vunpack.c.h.b16 %v1247
    %v1313 = vunpack.c.l.b16 %v1248
    %v1314 = vunpack.c.h.b16 %v1248
    %v1315 = vunpack.c.l.b16 %v1249
    %v1316 = vunpack.c.h.b16 %v1249
    %v1317 = vunpack.c.l.b16 %v1250
    %v1318 = vunpack.c.h.b16 %v1250
    %v1319 = vunpack.c.l.b16 %v1251
    %v1320 = vunpack.c.h.b16 %v1251
    %v1321 = vunpack.c.l.b16 %v1252
    %v1322 = vunpack.c.h.b16 %v1252
    %v1323 = vunpack.c.l.b16 %v1253
    %v1324 = vunpack.c.h.b16 %v1253
    %v1325 = vunpack.c.l.b16 %v1254
    %v1326 = vunpack.c.h.b16 %v1254
    %v1327 = vunpack.c.l.b16 %v1255
    %v1328 = vunpack.c.h.b16 %v1255
    %v1329 = vunpack.c.l.b16 %v1256
    %v1330 = vunpack.c.h.b16 %v1256
    %v1331 = vunpack.c.l.b16 %v1257
    %v1332 = vunpack.c.h.b16 %v1257
    %v1333 = vunpack.c.l.b16 %v1258
    %v1334 = vunpack.c.h.b16 %v1258
    %v1335 = vunpack.c.l.b16 %v1259
    %v1336 = vunpack.c.h.b16 %v1259
    %v1337 = vunpack.c.l.b16 %v1260
    %v1338 = vunpack.c.h.b16 %v1260
    %v1339 = vunpack.c.l.b16 %v1261
    %v1340 = vunpack.c.h.b16 %v1261
    %v1341 = vunpack.c.l.b16 %v1262
    %v1342 = vunpack.c.h.b16 %v1262
    %v1343 = vunpack.c.l.b16 %v1263
    %v1344 = vunpack.c.h.b16 %v1263
    %v1345 = vunpack.c.l.b16 %v1264
    %v1346 = vunpack.c.h.b16 %v1264
    %v1347 = vunpack.c.l.b16 %v1265
    %v1348 = vunpack.c.h.b16 %v1265
    %v1349 = vunpack.c.l.b16 %v1266
    %v1350 = vunpack.c.h.b16 %v1266
    %v1351 = vunpack.c.l.b16 %v1267
    %v1352 = vunpack.c.h.b16 %v1267
    %v1353 = vunpack.c.l.b16 %v1268
    %v1354 = vunpack.c.h.b16 %v1268
    %v1355 = vunpack.c.l.b16 %v1269
    %v1356 = vunpack.c.h.b16 %v1269
    %v1357 = vunpack.c.l.b16 %v1270
    %v1358 = vunpack.c.h.b16 %v1270
    %v1359 = vunpack.c.l.b16 %v1271
    %v1360 = vunpack.c.h.b16 %v1271
    %v1361 = vunpack.c.l.b16 %v1272
    %v1362 = vunpack.c.h.b16 %v1272
    %v1363 = vunpack.c.l.b16 %v1273
    %v1364 = vunpack.c.h.b16 %v1273
    %v1365 = vunpack.c.l.b16 %v1274
    %v1366 = vunpack.c.h.b16 %v1274
    %v1367 = vunpack.c.l.b16 %v1275
    %v1368 = vunpack.c.h.b16 %v1275
    %v1369 = vunpack.c.l.b16 %v1276
    %v1370 = vunpack.c.h.b16 %v1276
    %v1371 = vunpack.c.l.b16 %v1277
    %v1372 = vunpack.c.h.b16 %v1277
    %v1373 = vunpack.c.l.b16 %v1278
    %v1374 = vunpack.c.h.b16 %v1278
    %v1375 = vpack.c.b16 %v1313, %v1311
    %v1376 = vpack.c.b16 %v1314, %v1312
    %v1377 = vpack.c.b16 %v1317, %v1315
    %v1378 = vpack.c.b16 %v1318, %v1316
    %v1379 = vpack.c.b16 %v1321, %v1319
    %v1380 = vpack.c.b16 %v1322, %v1320
    %v1381 = vpack.c.b16 %v1325, %v1323
    %v1382 = vpack.c.b16 %v1326, %v1324
    %v1383 = vpack.c.b16 %v1329, %v1327
    %v1384 = vpack.c.b16 %v1330, %v1328
    %v1385 = vpack.c.b16 %v1333, %v1331
    %v1386 = vpack.c.b16 %v1334, %v1332
    %v1387 = vpack.c.b16 %v1337, %v1335
    %v1388 = vpack.c.b16 %v1338, %v1336
    %v1389 = vpack.c.b16 %v1341, %v1339
    %v1390 = vpack.c.b16 %v1342, %v1340
    %v1391 = vpack.c.b16 %v1345, %v1343
    %v1392 = vpack.c.b16 %v1346, %v1344
    %v1393 = vpack.c.b16 %v1349, %v1347
    %v1394 = vpack.c.b16 %v1350, %v1348
    %v1395 = vpack.c.b16 %v1353, %v1351
    %v1396 = vpack.c.b16 %v1354, %v1352
    %v1397 = vpack.c.b16 %v1357, %v1355
    %v1398 = vpack.c.b16 %v1358, %v1356
    %v1399 = vpack.c.b16 %v1361, %v1359
    %v1400 = vpack.c.b16 %v1362, %v1360
    %v1401 = vpack.c.b16 %v1365, %v1363
    %v1402 = vpack.c.b16 %v1366, %v1364
    %v1403 = vpack.c.b16 %v1369, %v1367
    %v1404 = vpack.c.b16 %v1370, %v1368
    %v1405 = vpack.c.b16 %v1373, %v1371
    %v1406 = vpack.c.b16 %v1374, %v1372
    %1439 = vmatprep.subr.bf16.mxu0 %v1376
    %1440 = vmatpush1.bf16.msra.mxu0 %v1375
    %1441 = vmatprep.subr.bf16.mxu0 %v1378
    %1442 = vmatpush1.bf16.msra.mxu0 %v1377
    %1443 = vmatprep.subr.bf16.mxu0 %v1380
    %1444 = vmatpush1.bf16.msra.mxu0 %v1379
    %1445 = vmatprep.subr.bf16.mxu0 %v1382
    %1446 = vmatpush1.bf16.msra.mxu0 %v1381
    %1447 = vmatprep.subr.bf16.mxu0 %v1384
    %1448 = vmatpush1.bf16.msra.mxu0 %v1383
    %1449 = vmatprep.subr.bf16.mxu0 %v1386
    %1450 = vmatpush1.bf16.msra.mxu0 %v1385
    %1451 = vmatprep.subr.bf16.mxu0 %v1388
    %1452 = vmatpush1.bf16.msra.mxu0 %v1387
    %1453 = vmatprep.subr.bf16.mxu0 %v1390
    %1454 = vmatpush1.bf16.msra.mxu0 %v1389
    %1455 = vmatprep.subr.bf16.mxu0 %v1392
    %1456 = vmatpush1.bf16.msra.mxu0 %v1391
    %1457 = vmatprep.subr.bf16.mxu0 %v1394
    %1458 = vmatpush1.bf16.msra.mxu0 %v1393
    %1459 = vmatprep.subr.bf16.mxu0 %v1396
    %1460 = vmatpush1.bf16.msra.mxu0 %v1395
    %1461 = vmatprep.subr.bf16.mxu0 %v1398
    %1462 = vmatpush1.bf16.msra.mxu0 %v1397
    %1463 = vmatprep.subr.bf16.mxu0 %v1400
    %1464 = vmatpush1.bf16.msra.mxu0 %v1399
    %1465 = vmatprep.subr.bf16.mxu0 %v1402
    %1466 = vmatpush1.bf16.msra.mxu0 %v1401
    %1467 = vmatprep.subr.bf16.mxu0 %v1404
    %1468 = vmatpush1.bf16.msra.mxu0 %v1403
    %1469 = vmatprep.subr.bf16.mxu0 %v1406
    %1470 = vmatpush1.bf16.msra.mxu0 %v1405
    %1471 = vmatprep.mubr.bf16.mxu0 %v1246
    %1472 = vmatmul.mubr.bf16.gmra.mrb[0].mxu0 %v1245
    %v1473 = vpop.f32.mrb[0].mxu0
    %v1474 = vadd.f32 0.0, %v1473
    %v1475 = vpop.f32.mrb[0].mxu0
    %v1476 = vadd.f32 0.0, %v1475
    %v1477 = vpop.f32.mrb[0].mxu0
    %v1478 = vpop.f32.mrb[0].mxu0
    %1479 = vdwg.mxu0
    %v1480 = vld [vmem:[#allocation2] sm:$0xff]
    %v1481 = vld [vmem:[#allocation2 + $0x8] sm:$0xff]
    %v1482 = vadd.f32 %v1480, %v1474
    %v1483 = vadd.f32 %v1481, %v1476
    %1484 = vst [vmem:[#allocation2] sm:$0xff] %v1482
    %1485 = vst [vmem:[#allocation2 + $0x8] sm:$0xff] %v1483
    %v1486 = vld [vmem:[#allocation6 + $0xa] sm:$0x3]
    %v1487 = vld [vmem:[#allocation8 + $0xa] sm:$0x3]
    %1488 = vset.pattern.permute.xlu0 5
    %1489 = vperm.xlu0 %1488, %v113
    %v1490 = vpop.permute.xlu0 %1489
    %v1493 = vlaneseq
    %v1494 = vshrl.u32 %v1493, 7
    %v1495 = vsub.s32 0, %v1494
    %v1496 = vrot.slane %v1486, %v1495
    %v1497 = vlaneseq
    %v1498 = vshrl.u32 %v1497, 7
    %v1499 = vsub.s32 1, %v1498
    %v1500 = vrot.slane %v1486, %v1499
    %v1503 = vmul.f32 %v1490, %v1496
    %v1504 = vmul.f32 %v1490, %v1500
    %v1506 = vlaneseq
    %v1507 = vshrl.u32 %v1506, 7
    %v1508 = vsub.s32 0, %v1507
    %v1509 = vrot.slane %v1487, %v1508
    %v1510 = vlaneseq
    %v1511 = vshrl.u32 %v1510, 7
    %v1512 = vsub.s32 1, %v1511
    %v1513 = vrot.slane %v1487, %v1512
    %v1516 = vadd.f32 %v1503, %v1509
    %v1517 = vadd.f32 %v1504, %v1513
    %v1518 = vmax.f32 %v1516, 0.0
    %v1519 = vmax.f32 %v1517, 0.0
    %v1520 = vpack.c.bf16 %v1518, %v1518
    %v1521 = vpack.c.bf16 %v1519, %v1519
    %v1522 = vld [vmem:[#allocation9 + $0x500] sm:$0xff]
    %v1523 = vld [vmem:[#allocation9 + $0x508] sm:$0xff]
    %v1524 = vld [vmem:[#allocation9 + $0x510] sm:$0xff]
    %v1525 = vld [vmem:[#allocation9 + $0x518] sm:$0xff]
    %v1526 = vld [vmem:[#allocation9 + $0x520] sm:$0xff]
    %v1527 = vld [vmem:[#allocation9 + $0x528] sm:$0xff]
    %v1528 = vld [vmem:[#allocation9 + $0x530] sm:$0xff]
    %v1529 = vld [vmem:[#allocation9 + $0x538] sm:$0xff]
    %v1530 = vld [vmem:[#allocation9 + $0x540] sm:$0xff]
    %v1531 = vld [vmem:[#allocation9 + $0x548] sm:$0xff]
    %v1532 = vld [vmem:[#allocation9 + $0x550] sm:$0xff]
    %v1533 = vld [vmem:[#allocation9 + $0x558] sm:$0xff]
    %v1534 = vld [vmem:[#allocation9 + $0x560] sm:$0xff]
    %v1535 = vld [vmem:[#allocation9 + $0x568] sm:$0xff]
    %v1536 = vld [vmem:[#allocation9 + $0x570] sm:$0xff]
    %v1537 = vld [vmem:[#allocation9 + $0x578] sm:$0xff]
    %v1538 = vld [vmem:[#allocation9 + $0x580] sm:$0xff]
    %v1539 = vld [vmem:[#allocation9 + $0x588] sm:$0xff]
    %v1540 = vld [vmem:[#allocation9 + $0x590] sm:$0xff]
    %v1541 = vld [vmem:[#allocation9 + $0x598] sm:$0xff]
    %v1542 = vld [vmem:[#allocation9 + $0x5a0] sm:$0xff]
    %v1543 = vld [vmem:[#allocation9 + $0x5a8] sm:$0xff]
    %v1544 = vld [vmem:[#allocation9 + $0x5b0] sm:$0xff]
    %v1545 = vld [vmem:[#allocation9 + $0x5b8] sm:$0xff]
    %v1546 = vld [vmem:[#allocation9 + $0x5c0] sm:$0xff]
    %v1547 = vld [vmem:[#allocation9 + $0x5c8] sm:$0xff]
    %v1548 = vld [vmem:[#allocation9 + $0x5d0] sm:$0xff]
    %v1549 = vld [vmem:[#allocation9 + $0x5d8] sm:$0xff]
    %v1550 = vld [vmem:[#allocation9 + $0x5e0] sm:$0xff]
    %v1551 = vld [vmem:[#allocation9 + $0x5e8] sm:$0xff]
    %v1552 = vld [vmem:[#allocation9 + $0x5f0] sm:$0xff]
    %v1553 = vld [vmem:[#allocation9 + $0x5f8] sm:$0xff]
    %v1586 = vunpack.c.l.b16 %v1522
    %v1587 = vunpack.c.h.b16 %v1522
    %v1588 = vunpack.c.l.b16 %v1523
    %v1589 = vunpack.c.h.b16 %v1523
    %v1590 = vunpack.c.l.b16 %v1524
    %v1591 = vunpack.c.h.b16 %v1524
    %v1592 = vunpack.c.l.b16 %v1525
    %v1593 = vunpack.c.h.b16 %v1525
    %v1594 = vunpack.c.l.b16 %v1526
    %v1595 = vunpack.c.h.b16 %v1526
    %v1596 = vunpack.c.l.b16 %v1527
    %v1597 = vunpack.c.h.b16 %v1527
    %v1598 = vunpack.c.l.b16 %v1528
    %v1599 = vunpack.c.h.b16 %v1528
    %v1600 = vunpack.c.l.b16 %v1529
    %v1601 = vunpack.c.h.b16 %v1529
    %v1602 = vunpack.c.l.b16 %v1530
    %v1603 = vunpack.c.h.b16 %v1530
    %v1604 = vunpack.c.l.b16 %v1531
    %v1605 = vunpack.c.h.b16 %v1531
    %v1606 = vunpack.c.l.b16 %v1532
    %v1607 = vunpack.c.h.b16 %v1532
    %v1608 = vunpack.c.l.b16 %v1533
    %v1609 = vunpack.c.h.b16 %v1533
    %v1610 = vunpack.c.l.b16 %v1534
    %v1611 = vunpack.c.h.b16 %v1534
    %v1612 = vunpack.c.l.b16 %v1535
    %v1613 = vunpack.c.h.b16 %v1535
    %v1614 = vunpack.c.l.b16 %v1536
    %v1615 = vunpack.c.h.b16 %v1536
    %v1616 = vunpack.c.l.b16 %v1537
    %v1617 = vunpack.c.h.b16 %v1537
    %v1618 = vunpack.c.l.b16 %v1538
    %v1619 = vunpack.c.h.b16 %v1538
    %v1620 = vunpack.c.l.b16 %v1539
    %v1621 = vunpack.c.h.b16 %v1539
    %v1622 = vunpack.c.l.b16 %v1540
    %v1623 = vunpack.c.h.b16 %v1540
    %v1624 = vunpack.c.l.b16 %v1541
    %v1625 = vunpack.c.h.b16 %v1541
    %v1626 = vunpack.c.l.b16 %v1542
    %v1627 = vunpack.c.h.b16 %v1542
    %v1628 = vunpack.c.l.b16 %v1543
    %v1629 = vunpack.c.h.b16 %v1543
    %v1630 = vunpack.c.l.b16 %v1544
    %v1631 = vunpack.c.h.b16 %v1544
    %v1632 = vunpack.c.l.b16 %v1545
    %v1633 = vunpack.c.h.b16 %v1545
    %v1634 = vunpack.c.l.b16 %v1546
    %v1635 = vunpack.c.h.b16 %v1546
    %v1636 = vunpack.c.l.b16 %v1547
    %v1637 = vunpack.c.h.b16 %v1547
    %v1638 = vunpack.c.l.b16 %v1548
    %v1639 = vunpack.c.h.b16 %v1548
    %v1640 = vunpack.c.l.b16 %v1549
    %v1641 = vunpack.c.h.b16 %v1549
    %v1642 = vunpack.c.l.b16 %v1550
    %v1643 = vunpack.c.h.b16 %v1550
    %v1644 = vunpack.c.l.b16 %v1551
    %v1645 = vunpack.c.h.b16 %v1551
    %v1646 = vunpack.c.l.b16 %v1552
    %v1647 = vunpack.c.h.b16 %v1552
    %v1648 = vunpack.c.l.b16 %v1553
    %v1649 = vunpack.c.h.b16 %v1553
    %v1650 = vpack.c.b16 %v1588, %v1586
    %v1651 = vpack.c.b16 %v1589, %v1587
    %v1652 = vpack.c.b16 %v1592, %v1590
    %v1653 = vpack.c.b16 %v1593, %v1591
    %v1654 = vpack.c.b16 %v1596, %v1594
    %v1655 = vpack.c.b16 %v1597, %v1595
    %v1656 = vpack.c.b16 %v1600, %v1598
    %v1657 = vpack.c.b16 %v1601, %v1599
    %v1658 = vpack.c.b16 %v1604, %v1602
    %v1659 = vpack.c.b16 %v1605, %v1603
    %v1660 = vpack.c.b16 %v1608, %v1606
    %v1661 = vpack.c.b16 %v1609, %v1607
    %v1662 = vpack.c.b16 %v1612, %v1610
    %v1663 = vpack.c.b16 %v1613, %v1611
    %v1664 = vpack.c.b16 %v1616, %v1614
    %v1665 = vpack.c.b16 %v1617, %v1615
    %v1666 = vpack.c.b16 %v1620, %v1618
    %v1667 = vpack.c.b16 %v1621, %v1619
    %v1668 = vpack.c.b16 %v1624, %v1622
    %v1669 = vpack.c.b16 %v1625, %v1623
    %v1670 = vpack.c.b16 %v1628, %v1626
    %v1671 = vpack.c.b16 %v1629, %v1627
    %v1672 = vpack.c.b16 %v1632, %v1630
    %v1673 = vpack.c.b16 %v1633, %v1631
    %v1674 = vpack.c.b16 %v1636, %v1634
    %v1675 = vpack.c.b16 %v1637, %v1635
    %v1676 = vpack.c.b16 %v1640, %v1638
    %v1677 = vpack.c.b16 %v1641, %v1639
    %v1678 = vpack.c.b16 %v1644, %v1642
    %v1679 = vpack.c.b16 %v1645, %v1643
    %v1680 = vpack.c.b16 %v1648, %v1646
    %v1681 = vpack.c.b16 %v1649, %v1647
    %1714 = vmatprep.subr.bf16.mxu0 %v1651
    %1715 = vmatpush1.bf16.msra.mxu0 %v1650
    %1716 = vmatprep.subr.bf16.mxu0 %v1653
    %1717 = vmatpush1.bf16.msra.mxu0 %v1652
    %1718 = vmatprep.subr.bf16.mxu0 %v1655
    %1719 = vmatpush1.bf16.msra.mxu0 %v1654
    %1720 = vmatprep.subr.bf16.mxu0 %v1657
    %1721 = vmatpush1.bf16.msra.mxu0 %v1656
    %1722 = vmatprep.subr.bf16.mxu0 %v1659
    %1723 = vmatpush1.bf16.msra.mxu0 %v1658
    %1724 = vmatprep.subr.bf16.mxu0 %v1661
    %1725 = vmatpush1.bf16.msra.mxu0 %v1660
    %1726 = vmatprep.subr.bf16.mxu0 %v1663
    %1727 = vmatpush1.bf16.msra.mxu0 %v1662
    %1728 = vmatprep.subr.bf16.mxu0 %v1665
    %1729 = vmatpush1.bf16.msra.mxu0 %v1664
    %1730 = vmatprep.subr.bf16.mxu0 %v1667
    %1731 = vmatpush1.bf16.msra.mxu0 %v1666
    %1732 = vmatprep.subr.bf16.mxu0 %v1669
    %1733 = vmatpush1.bf16.msra.mxu0 %v1668
    %1734 = vmatprep.subr.bf16.mxu0 %v1671
    %1735 = vmatpush1.bf16.msra.mxu0 %v1670
    %1736 = vmatprep.subr.bf16.mxu0 %v1673
    %1737 = vmatpush1.bf16.msra.mxu0 %v1672
    %1738 = vmatprep.subr.bf16.mxu0 %v1675
    %1739 = vmatpush1.bf16.msra.mxu0 %v1674
    %1740 = vmatprep.subr.bf16.mxu0 %v1677
    %1741 = vmatpush1.bf16.msra.mxu0 %v1676
    %1742 = vmatprep.subr.bf16.mxu0 %v1679
    %1743 = vmatpush1.bf16.msra.mxu0 %v1678
    %1744 = vmatprep.subr.bf16.mxu0 %v1681
    %1745 = vmatpush1.bf16.msra.mxu0 %v1680
    %1746 = vmatprep.mubr.bf16.mxu0 %v1521
    %1747 = vmatmul.mubr.bf16.gmra.mrb[0].mxu0 %v1520
    %v1748 = vpop.f32.mrb[0].mxu0
    %v1749 = vadd.f32 0.0, %v1748
    %v1750 = vpop.f32.mrb[0].mxu0
    %v1751 = vadd.f32 0.0, %v1750
    %v1752 = vpop.f32.mrb[0].mxu0
    %v1753 = vpop.f32.mrb[0].mxu0
    %1754 = vdwg.mxu0
    %v1755 = vld [vmem:[#allocation2] sm:$0xff]
    %v1756 = vld [vmem:[#allocation2 + $0x8] sm:$0xff]
    %v1757 = vadd.f32 %v1755, %v1749
    %v1758 = vadd.f32 %v1756, %v1751
    %1759 = vst [vmem:[#allocation2] sm:$0xff] %v1757
    %1760 = vst [vmem:[#allocation2 + $0x8] sm:$0xff] %v1758
    %v1761 = vld [vmem:[#allocation6 + $0xc] sm:$0x3]
    %v1762 = vld [vmem:[#allocation8 + $0xc] sm:$0x3]
    %1763 = vset.pattern.permute.xlu0 6
    %1764 = vperm.xlu0 %1763, %v113
    %v1765 = vpop.permute.xlu0 %1764
    %v1768 = vlaneseq
    %v1769 = vshrl.u32 %v1768, 7
    %v1770 = vsub.s32 0, %v1769
    %v1771 = vrot.slane %v1761, %v1770
    %v1772 = vlaneseq
    %v1773 = vshrl.u32 %v1772, 7
    %v1774 = vsub.s32 1, %v1773
    %v1775 = vrot.slane %v1761, %v1774
    %v1778 = vmul.f32 %v1765, %v1771
    %v1779 = vmul.f32 %v1765, %v1775
    %v1781 = vlaneseq
    %v1782 = vshrl.u32 %v1781, 7
    %v1783 = vsub.s32 0, %v1782
    %v1784 = vrot.slane %v1762, %v1783
    %v1785 = vlaneseq
    %v1786 = vshrl.u32 %v1785, 7
    %v1787 = vsub.s32 1, %v1786
    %v1788 = vrot.slane %v1762, %v1787
    %v1791 = vadd.f32 %v1778, %v1784
    %v1792 = vadd.f32 %v1779, %v1788
    %v1793 = vmax.f32 %v1791, 0.0
    %v1794 = vmax.f32 %v1792, 0.0
    %v1795 = vpack.c.bf16 %v1793, %v1793
    %v1796 = vpack.c.bf16 %v1794, %v1794
    %v1797 = vld [vmem:[#allocation9 + $0x600] sm:$0xff]
    %v1798 = vld [vmem:[#allocation9 + $0x608] sm:$0xff]
    %v1799 = vld [vmem:[#allocation9 + $0x610] sm:$0xff]
    %v1800 = vld [vmem:[#allocation9 + $0x618] sm:$0xff]
    %v1801 = vld [vmem:[#allocation9 + $0x620] sm:$0xff]
    %v1802 = vld [vmem:[#allocation9 + $0x628] sm:$0xff]
    %v1803 = vld [vmem:[#allocation9 + $0x630] sm:$0xff]
    %v1804 = vld [vmem:[#allocation9 + $0x638] sm:$0xff]
    %v1805 = vld [vmem:[#allocation9 + $0x640] sm:$0xff]
    %v1806 = vld [vmem:[#allocation9 + $0x648] sm:$0xff]
    %v1807 = vld [vmem:[#allocation9 + $0x650] sm:$0xff]
    %v1808 = vld [vmem:[#allocation9 + $0x658] sm:$0xff]
    %v1809 = vld [vmem:[#allocation9 + $0x660] sm:$0xff]
    %v1810 = vld [vmem:[#allocation9 + $0x668] sm:$0xff]
    %v1811 = vld [vmem:[#allocation9 + $0x670] sm:$0xff]
    %v1812 = vld [vmem:[#allocation9 + $0x678] sm:$0xff]
    %v1813 = vld [vmem:[#allocation9 + $0x680] sm:$0xff]
    %v1814 = vld [vmem:[#allocation9 + $0x688] sm:$0xff]
    %v1815 = vld [vmem:[#allocation9 + $0x690] sm:$0xff]
    %v1816 = vld [vmem:[#allocation9 + $0x698] sm:$0xff]
    %v1817 = vld [vmem:[#allocation9 + $0x6a0] sm:$0xff]
    %v1818 = vld [vmem:[#allocation9 + $0x6a8] sm:$0xff]
    %v1819 = vld [vmem:[#allocation9 + $0x6b0] sm:$0xff]
    %v1820 = vld [vmem:[#allocation9 + $0x6b8] sm:$0xff]
    %v1821 = vld [vmem:[#allocation9 + $0x6c0] sm:$0xff]
    %v1822 = vld [vmem:[#allocation9 + $0x6c8] sm:$0xff]
    %v1823 = vld [vmem:[#allocation9 + $0x6d0] sm:$0xff]
    %v1824 = vld [vmem:[#allocation9 + $0x6d8] sm:$0xff]
    %v1825 = vld [vmem:[#allocation9 + $0x6e0] sm:$0xff]
    %v1826 = vld [vmem:[#allocation9 + $0x6e8] sm:$0xff]
    %v1827 = vld [vmem:[#allocation9 + $0x6f0] sm:$0xff]
    %v1828 = vld [vmem:[#allocation9 + $0x6f8] sm:$0xff]
    %v1861 = vunpack.c.l.b16 %v1797
    %v1862 = vunpack.c.h.b16 %v1797
    %v1863 = vunpack.c.l.b16 %v1798
    %v1864 = vunpack.c.h.b16 %v1798
    %v1865 = vunpack.c.l.b16 %v1799
    %v1866 = vunpack.c.h.b16 %v1799
    %v1867 = vunpack.c.l.b16 %v1800
    %v1868 = vunpack.c.h.b16 %v1800
    %v1869 = vunpack.c.l.b16 %v1801
    %v1870 = vunpack.c.h.b16 %v1801
    %v1871 = vunpack.c.l.b16 %v1802
    %v1872 = vunpack.c.h.b16 %v1802
    %v1873 = vunpack.c.l.b16 %v1803
    %v1874 = vunpack.c.h.b16 %v1803
    %v1875 = vunpack.c.l.b16 %v1804
    %v1876 = vunpack.c.h.b16 %v1804
    %v1877 = vunpack.c.l.b16 %v1805
    %v1878 = vunpack.c.h.b16 %v1805
    %v1879 = vunpack.c.l.b16 %v1806
    %v1880 = vunpack.c.h.b16 %v1806
    %v1881 = vunpack.c.l.b16 %v1807
    %v1882 = vunpack.c.h.b16 %v1807
    %v1883 = vunpack.c.l.b16 %v1808
    %v1884 = vunpack.c.h.b16 %v1808
    %v1885 = vunpack.c.l.b16 %v1809
    %v1886 = vunpack.c.h.b16 %v1809
    %v1887 = vunpack.c.l.b16 %v1810
    %v1888 = vunpack.c.h.b16 %v1810
    %v1889 = vunpack.c.l.b16 %v1811
    %v1890 = vunpack.c.h.b16 %v1811
    %v1891 = vunpack.c.l.b16 %v1812
    %v1892 = vunpack.c.h.b16 %v1812
    %v1893 = vunpack.c.l.b16 %v1813
    %v1894 = vunpack.c.h.b16 %v1813
    %v1895 = vunpack.c.l.b16 %v1814
    %v1896 = vunpack.c.h.b16 %v1814
    %v1897 = vunpack.c.l.b16 %v1815
    %v1898 = vunpack.c.h.b16 %v1815
    %v1899 = vunpack.c.l.b16 %v1816
    %v1900 = vunpack.c.h.b16 %v1816
    %v1901 = vunpack.c.l.b16 %v1817
    %v1902 = vunpack.c.h.b16 %v1817
    %v1903 = vunpack.c.l.b16 %v1818
    %v1904 = vunpack.c.h.b16 %v1818
    %v1905 = vunpack.c.l.b16 %v1819
    %v1906 = vunpack.c.h.b16 %v1819
    %v1907 = vunpack.c.l.b16 %v1820
    %v1908 = vunpack.c.h.b16 %v1820
    %v1909 = vunpack.c.l.b16 %v1821
    %v1910 = vunpack.c.h.b16 %v1821
    %v1911 = vunpack.c.l.b16 %v1822
    %v1912 = vunpack.c.h.b16 %v1822
    %v1913 = vunpack.c.l.b16 %v1823
    %v1914 = vunpack.c.h.b16 %v1823
    %v1915 = vunpack.c.l.b16 %v1824
    %v1916 = vunpack.c.h.b16 %v1824
    %v1917 = vunpack.c.l.b16 %v1825
    %v1918 = vunpack.c.h.b16 %v1825
    %v1919 = vunpack.c.l.b16 %v1826
    %v1920 = vunpack.c.h.b16 %v1826
    %v1921 = vunpack.c.l.b16 %v1827
    %v1922 = vunpack.c.h.b16 %v1827
    %v1923 = vunpack.c.l.b16 %v1828
    %v1924 = vunpack.c.h.b16 %v1828
    %v1925 = vpack.c.b16 %v1863, %v1861
    %v1926 = vpack.c.b16 %v1864, %v1862
    %v1927 = vpack.c.b16 %v1867, %v1865
    %v1928 = vpack.c.b16 %v1868, %v1866
    %v1929 = vpack.c.b16 %v1871, %v1869
    %v1930 = vpack.c.b16 %v1872, %v1870
    %v1931 = vpack.c.b16 %v1875, %v1873
    %v1932 = vpack.c.b16 %v1876, %v1874
    %v1933 = vpack.c.b16 %v1879, %v1877
    %v1934 = vpack.c.b16 %v1880, %v1878
    %v1935 = vpack.c.b16 %v1883, %v1881
    %v1936 = vpack.c.b16 %v1884, %v1882
    %v1937 = vpack.c.b16 %v1887, %v1885
    %v1938 = vpack.c.b16 %v1888, %v1886
    %v1939 = vpack.c.b16 %v1891, %v1889
    %v1940 = vpack.c.b16 %v1892, %v1890
    %v1941 = vpack.c.b16 %v1895, %v1893
    %v1942 = vpack.c.b16 %v1896, %v1894
    %v1943 = vpack.c.b16 %v1899, %v1897
    %v1944 = vpack.c.b16 %v1900, %v1898
    %v1945 = vpack.c.b16 %v1903, %v1901
    %v1946 = vpack.c.b16 %v1904, %v1902
    %v1947 = vpack.c.b16 %v1907, %v1905
    %v1948 = vpack.c.b16 %v1908, %v1906
    %v1949 = vpack.c.b16 %v1911, %v1909
    %v1950 = vpack.c.b16 %v1912, %v1910
    %v1951 = vpack.c.b16 %v1915, %v1913
    %v1952 = vpack.c.b16 %v1916, %v1914
    %v1953 = vpack.c.b16 %v1919, %v1917
    %v1954 = vpack.c.b16 %v1920, %v1918
    %v1955 = vpack.c.b16 %v1923, %v1921
    %v1956 = vpack.c.b16 %v1924, %v1922
    %1989 = vmatprep.subr.bf16.mxu0 %v1926
    %1990 = vmatpush1.bf16.msra.mxu0 %v1925
    %1991 = vmatprep.subr.bf16.mxu0 %v1928
    %1992 = vmatpush1.bf16.msra.mxu0 %v1927
    %1993 = vmatprep.subr.bf16.mxu0 %v1930
    %1994 = vmatpush1.bf16.msra.mxu0 %v1929
    %1995 = vmatprep.subr.bf16.mxu0 %v1932
    %1996 = vmatpush1.bf16.msra.mxu0 %v1931
    %1997 = vmatprep.subr.bf16.mxu0 %v1934
    %1998 = vmatpush1.bf16.msra.mxu0 %v1933
    %1999 = vmatprep.subr.bf16.mxu0 %v1936
    %2000 = vmatpush1.bf16.msra.mxu0 %v1935
    %2001 = vmatprep.subr.bf16.mxu0 %v1938
    %2002 = vmatpush1.bf16.msra.mxu0 %v1937
    %2003 = vmatprep.subr.bf16.mxu0 %v1940
    %2004 = vmatpush1.bf16.msra.mxu0 %v1939
    %2005 = vmatprep.subr.bf16.mxu0 %v1942
    %2006 = vmatpush1.bf16.msra.mxu0 %v1941
    %2007 = vmatprep.subr.bf16.mxu0 %v1944
    %2008 = vmatpush1.bf16.msra.mxu0 %v1943
    %2009 = vmatprep.subr.bf16.mxu0 %v1946
    %2010 = vmatpush1.bf16.msra.mxu0 %v1945
    %2011 = vmatprep.subr.bf16.mxu0 %v1948
    %2012 = vmatpush1.bf16.msra.mxu0 %v1947
    %2013 = vmatprep.subr.bf16.mxu0 %v1950
    %2014 = vmatpush1.bf16.msra.mxu0 %v1949
    %2015 = vmatprep.subr.bf16.mxu0 %v1952
    %2016 = vmatpush1.bf16.msra.mxu0 %v1951
    %2017 = vmatprep.subr.bf16.mxu0 %v1954
    %2018 = vmatpush1.bf16.msra.mxu0 %v1953
    %2019 = vmatprep.subr.bf16.mxu0 %v1956
    %2020 = vmatpush1.bf16.msra.mxu0 %v1955
    %2021 = vmatprep.mubr.bf16.mxu0 %v1796
    %2022 = vmatmul.mubr.bf16.gmra.mrb[0].mxu0 %v1795
    %v2023 = vpop.f32.mrb[0].mxu0
    %v2024 = vadd.f32 0.0, %v2023
    %v2025 = vpop.f32.mrb[0].mxu0
    %v2026 = vadd.f32 0.0, %v2025
    %v2027 = vpop.f32.mrb[0].mxu0
    %v2028 = vpop.f32.mrb[0].mxu0
    %2029 = vdwg.mxu0
    %v2030 = vld [vmem:[#allocation2] sm:$0xff]
    %v2031 = vld [vmem:[#allocation2 + $0x8] sm:$0xff]
    %v2032 = vadd.f32 %v2030, %v2024
    %v2033 = vadd.f32 %v2031, %v2026
    %2034 = vst [vmem:[#allocation2] sm:$0xff] %v2032
    %2035 = vst [vmem:[#allocation2 + $0x8] sm:$0xff] %v2033
    %v2036 = vld [vmem:[#allocation6 + $0xe] sm:$0x3]
    %v2037 = vld [vmem:[#allocation8 + $0xe] sm:$0x3]
    %2038 = vset.pattern.permute.xlu0 7
    %2039 = vperm.xlu0 %2038, %v113
    %v2040 = vpop.permute.xlu0 %2039
    %v2043 = vlaneseq
    %v2044 = vshrl.u32 %v2043, 7
    %v2045 = vsub.s32 0, %v2044
    %v2046 = vrot.slane %v2036, %v2045
    %v2047 = vlaneseq
    %v2048 = vshrl.u32 %v2047, 7
    %v2049 = vsub.s32 1, %v2048
    %v2050 = vrot.slane %v2036, %v2049
    %v2053 = vmul.f32 %v2040, %v2046
    %v2054 = vmul.f32 %v2040, %v2050
    %v2056 = vlaneseq
    %v2057 = vshrl.u32 %v2056, 7
    %v2058 = vsub.s32 0, %v2057
    %v2059 = vrot.slane %v2037, %v2058
    %v2060 = vlaneseq
    %v2061 = vshrl.u32 %v2060, 7
    %v2062 = vsub.s32 1, %v2061
    %v2063 = vrot.slane %v2037, %v2062
    %v2066 = vadd.f32 %v2053, %v2059
    %v2067 = vadd.f32 %v2054, %v2063
    %v2068 = vmax.f32 %v2066, 0.0
    %v2069 = vmax.f32 %v2067, 0.0
    %v2070 = vpack.c.bf16 %v2068, %v2068
    %v2071 = vpack.c.bf16 %v2069, %v2069
    %v2072 = vld [vmem:[#allocation9 + $0x700] sm:$0xff]
    %v2073 = vld [vmem:[#allocation9 + $0x708] sm:$0xff]
    %v2074 = vld [vmem:[#allocation9 + $0x710] sm:$0xff]
    %v2075 = vld [vmem:[#allocation9 + $0x718] sm:$0xff]
    %v2076 = vld [vmem:[#allocation9 + $0x720] sm:$0xff]
    %v2077 = vld [vmem:[#allocation9 + $0x728] sm:$0xff]
    %v2078 = vld [vmem:[#allocation9 + $0x730] sm:$0xff]
    %v2079 = vld [vmem:[#allocation9 + $0x738] sm:$0xff]
    %v2080 = vld [vmem:[#allocation9 + $0x740] sm:$0xff]
    %v2081 = vld [vmem:[#allocation9 + $0x748] sm:$0xff]
    %v2082 = vld [vmem:[#allocation9 + $0x750] sm:$0xff]
    %v2083 = vld [vmem:[#allocation9 + $0x758] sm:$0xff]
    %v2084 = vld [vmem:[#allocation9 + $0x760] sm:$0xff]
    %v2085 = vld [vmem:[#allocation9 + $0x768] sm:$0xff]
    %v2086 = vld [vmem:[#allocation9 + $0x770] sm:$0xff]
    %v2087 = vld [vmem:[#allocation9 + $0x778] sm:$0xff]
    %v2088 = vld [vmem:[#allocation9 + $0x780] sm:$0xff]
    %v2089 = vld [vmem:[#allocation9 + $0x788] sm:$0xff]
    %v2090 = vld [vmem:[#allocation9 + $0x790] sm:$0xff]
    %v2091 = vld [vmem:[#allocation9 + $0x798] sm:$0xff]
    %v2092 = vld [vmem:[#allocation9 + $0x7a0] sm:$0xff]
    %v2093 = vld [vmem:[#allocation9 + $0x7a8] sm:$0xff]
    %v2094 = vld [vmem:[#allocation9 + $0x7b0] sm:$0xff]
    %v2095 = vld [vmem:[#allocation9 + $0x7b8] sm:$0xff]
    %v2096 = vld [vmem:[#allocation9 + $0x7c0] sm:$0xff]
    %v2097 = vld [vmem:[#allocation9 + $0x7c8] sm:$0xff]
    %v2098 = vld [vmem:[#allocation9 + $0x7d0] sm:$0xff]
    %v2099 = vld [vmem:[#allocation9 + $0x7d8] sm:$0xff]
    %v2100 = vld [vmem:[#allocation9 + $0x7e0] sm:$0xff]
    %v2101 = vld [vmem:[#allocation9 + $0x7e8] sm:$0xff]
    %v2102 = vld [vmem:[#allocation9 + $0x7f0] sm:$0xff]
    %v2103 = vld [vmem:[#allocation9 + $0x7f8] sm:$0xff]
    %v2136 = vunpack.c.l.b16 %v2072
    %v2137 = vunpack.c.h.b16 %v2072
    %v2138 = vunpack.c.l.b16 %v2073
    %v2139 = vunpack.c.h.b16 %v2073
    %v2140 = vunpack.c.l.b16 %v2074
    %v2141 = vunpack.c.h.b16 %v2074
    %v2142 = vunpack.c.l.b16 %v2075
    %v2143 = vunpack.c.h.b16 %v2075
    %v2144 = vunpack.c.l.b16 %v2076
    %v2145 = vunpack.c.h.b16 %v2076
    %v2146 = vunpack.c.l.b16 %v2077
    %v2147 = vunpack.c.h.b16 %v2077
    %v2148 = vunpack.c.l.b16 %v2078
    %v2149 = vunpack.c.h.b16 %v2078
    %v2150 = vunpack.c.l.b16 %v2079
    %v2151 = vunpack.c.h.b16 %v2079
    %v2152 = vunpack.c.l.b16 %v2080
    %v2153 = vunpack.c.h.b16 %v2080
    %v2154 = vunpack.c.l.b16 %v2081
    %v2155 = vunpack.c.h.b16 %v2081
    %v2156 = vunpack.c.l.b16 %v2082
    %v2157 = vunpack.c.h.b16 %v2082
    %v2158 = vunpack.c.l.b16 %v2083
    %v2159 = vunpack.c.h.b16 %v2083
    %v2160 = vunpack.c.l.b16 %v2084
    %v2161 = vunpack.c.h.b16 %v2084
    %v2162 = vunpack.c.l.b16 %v2085
    %v2163 = vunpack.c.h.b16 %v2085
    %v2164 = vunpack.c.l.b16 %v2086
    %v2165 = vunpack.c.h.b16 %v2086
    %v2166 = vunpack.c.l.b16 %v2087
    %v2167 = vunpack.c.h.b16 %v2087
    %v2168 = vunpack.c.l.b16 %v2088
    %v2169 = vunpack.c.h.b16 %v2088
    %v2170 = vunpack.c.l.b16 %v2089
    %v2171 = vunpack.c.h.b16 %v2089
    %v2172 = vunpack.c.l.b16 %v2090
    %v2173 = vunpack.c.h.b16 %v2090
    %v2174 = vunpack.c.l.b16 %v2091
    %v2175 = vunpack.c.h.b16 %v2091
    %v2176 = vunpack.c.l.b16 %v2092
    %v2177 = vunpack.c.h.b16 %v2092
    %v2178 = vunpack.c.l.b16 %v2093
    %v2179 = vunpack.c.h.b16 %v2093
    %v2180 = vunpack.c.l.b16 %v2094
    %v2181 = vunpack.c.h.b16 %v2094
    %v2182 = vunpack.c.l.b16 %v2095
    %v2183 = vunpack.c.h.b16 %v2095
    %v2184 = vunpack.c.l.b16 %v2096
    %v2185 = vunpack.c.h.b16 %v2096
    %v2186 = vunpack.c.l.b16 %v2097
    %v2187 = vunpack.c.h.b16 %v2097
    %v2188 = vunpack.c.l.b16 %v2098
    %v2189 = vunpack.c.h.b16 %v2098
    %v2190 = vunpack.c.l.b16 %v2099
    %v2191 = vunpack.c.h.b16 %v2099
    %v2192 = vunpack.c.l.b16 %v2100
    %v2193 = vunpack.c.h.b16 %v2100
    %v2194 = vunpack.c.l.b16 %v2101
    %v2195 = vunpack.c.h.b16 %v2101
    %v2196 = vunpack.c.l.b16 %v2102
    %v2197 = vunpack.c.h.b16 %v2102
    %v2198 = vunpack.c.l.b16 %v2103
    %v2199 = vunpack.c.h.b16 %v2103
    %v2200 = vpack.c.b16 %v2138, %v2136
    %v2201 = vpack.c.b16 %v2139, %v2137
    %v2202 = vpack.c.b16 %v2142, %v2140
    %v2203 = vpack.c.b16 %v2143, %v2141
    %v2204 = vpack.c.b16 %v2146, %v2144
    %v2205 = vpack.c.b16 %v2147, %v2145
    %v2206 = vpack.c.b16 %v2150, %v2148
    %v2207 = vpack.c.b16 %v2151, %v2149
    %v2208 = vpack.c.b16 %v2154, %v2152
    %v2209 = vpack.c.b16 %v2155, %v2153
    %v2210 = vpack.c.b16 %v2158, %v2156
    %v2211 = vpack.c.b16 %v2159, %v2157
    %v2212 = vpack.c.b16 %v2162, %v2160
    %v2213 = vpack.c.b16 %v2163, %v2161
    %v2214 = vpack.c.b16 %v2166, %v2164
    %v2215 = vpack.c.b16 %v2167, %v2165
    %v2216 = vpack.c.b16 %v2170, %v2168
    %v2217 = vpack.c.b16 %v2171, %v2169
    %v2218 = vpack.c.b16 %v2174, %v2172
    %v2219 = vpack.c.b16 %v2175, %v2173
    %v2220 = vpack.c.b16 %v2178, %v2176
    %v2221 = vpack.c.b16 %v2179, %v2177
    %v2222 = vpack.c.b16 %v2182, %v2180
    %v2223 = vpack.c.b16 %v2183, %v2181
    %v2224 = vpack.c.b16 %v2186, %v2184
    %v2225 = vpack.c.b16 %v2187, %v2185
    %v2226 = vpack.c.b16 %v2190, %v2188
    %v2227 = vpack.c.b16 %v2191, %v2189
    %v2228 = vpack.c.b16 %v2194, %v2192
    %v2229 = vpack.c.b16 %v2195, %v2193
    %v2230 = vpack.c.b16 %v2198, %v2196
    %v2231 = vpack.c.b16 %v2199, %v2197
    %2264 = vmatprep.subr.bf16.mxu0 %v2201
    %2265 = vmatpush1.bf16.msra.mxu0 %v2200
    %2266 = vmatprep.subr.bf16.mxu0 %v2203
    %2267 = vmatpush1.bf16.msra.mxu0 %v2202
    %2268 = vmatprep.subr.bf16.mxu0 %v2205
    %2269 = vmatpush1.bf16.msra.mxu0 %v2204
    %2270 = vmatprep.subr.bf16.mxu0 %v2207
    %2271 = vmatpush1.bf16.msra.mxu0 %v2206
    %2272 = vmatprep.subr.bf16.mxu0 %v2209
    %2273 = vmatpush1.bf16.msra.mxu0 %v2208
    %2274 = vmatprep.subr.bf16.mxu0 %v2211
    %2275 = vmatpush1.bf16.msra.mxu0 %v2210
    %2276 = vmatprep.subr.bf16.mxu0 %v2213
    %2277 = vmatpush1.bf16.msra.mxu0 %v2212
    %2278 = vmatprep.subr.bf16.mxu0 %v2215
    %2279 = vmatpush1.bf16.msra.mxu0 %v2214
    %2280 = vmatprep.subr.bf16.mxu0 %v2217
    %2281 = vmatpush1.bf16.msra.mxu0 %v2216
    %2282 = vmatprep.subr.bf16.mxu0 %v2219
    %2283 = vmatpush1.bf16.msra.mxu0 %v2218
    %2284 = vmatprep.subr.bf16.mxu0 %v2221
    %2285 = vmatpush1.bf16.msra.mxu0 %v2220
    %2286 = vmatprep.subr.bf16.mxu0 %v2223
    %2287 = vmatpush1.bf16.msra.mxu0 %v2222
    %2288 = vmatprep.subr.bf16.mxu0 %v2225
    %2289 = vmatpush1.bf16.msra.mxu0 %v2224
    %2290 = vmatprep.subr.bf16.mxu0 %v2227
    %2291 = vmatpush1.bf16.msra.mxu0 %v2226
    %2292 = vmatprep.subr.bf16.mxu0 %v2229
    %2293 = vmatpush1.bf16.msra.mxu0 %v2228
    %2294 = vmatprep.subr.bf16.mxu0 %v2231
    %2295 = vmatpush1.bf16.msra.mxu0 %v2230
    %2296 = vmatprep.mubr.bf16.mxu0 %v2071
    %2297 = vmatmul.mubr.bf16.gmra.mrb[0].mxu0 %v2070
    %v2298 = vpop.f32.mrb[0].mxu0
    %v2299 = vadd.f32 0.0, %v2298
    %v2300 = vpop.f32.mrb[0].mxu0
    %v2301 = vadd.f32 0.0, %v2300
    %v2302 = vpop.f32.mrb[0].mxu0
    %v2303 = vpop.f32.mrb[0].mxu0
    %2304 = vdwg.mxu0
    %v2305 = vld [vmem:[#allocation2] sm:$0xff]
    %v2306 = vld [vmem:[#allocation2 + $0x8] sm:$0xff]
    %v2307 = vadd.f32 %v2305, %v2299
    %v2308 = vadd.f32 %v2306, %v2301
    %2309 = vst [vmem:[#allocation2] sm:$0xff] %v2307
    %2310 = vst [vmem:[#allocation2 + $0x8] sm:$0xff] %v2308
    %v2311 = vld [vmem:[#allocation6 + $0x10] sm:$0x3]
    %v2312 = vld [vmem:[#allocation8 + $0x10] sm:$0x3]
    %2313 = vset.pattern.permute.xlu0 8
    %2314 = vperm.xlu0 %2313, %v113
    %v2315 = vpop.permute.xlu0 %2314
    %v2318 = vlaneseq
    %v2319 = vshrl.u32 %v2318, 7
    %v2320 = vsub.s32 0, %v2319
    %v2321 = vrot.slane %v2311, %v2320
    %v2322 = vlaneseq
    %v2323 = vshrl.u32 %v2322, 7
    %v2324 = vsub.s32 1, %v2323
    %v2325 = vrot.slane %v2311, %v2324
    %v2328 = vmul.f32 %v2315, %v2321
    %v2329 = vmul.f32 %v2315, %v2325
    %v2331 = vlaneseq
    %v2332 = vshrl.u32 %v2331, 7
    %v2333 = vsub.s32 0, %v2332
    %v2334 = vrot.slane %v2312, %v2333
    %v2335 = vlaneseq
    %v2336 = vshrl.u32 %v2335, 7
    %v2337 = vsub.s32 1, %v2336
    %v2338 = vrot.slane %v2312, %v2337
    %v2341 = vadd.f32 %v2328, %v2334
    %v2342 = vadd.f32 %v2329, %v2338
    %v2343 = vmax.f32 %v2341, 0.0
    %v2344 = vmax.f32 %v2342, 0.0
    %v2345 = vpack.c.bf16 %v2343, %v2343
    %v2346 = vpack.c.bf16 %v2344, %v2344
    %v2347 = vld [vmem:[#allocation9 + $0x800] sm:$0xff]
    %v2348 = vld [vmem:[#allocation9 + $0x808] sm:$0xff]
    %v2349 = vld [vmem:[#allocation9 + $0x810] sm:$0xff]
    %v2350 = vld [vmem:[#allocation9 + $0x818] sm:$0xff]
    %v2351 = vld [vmem:[#allocation9 + $0x820] sm:$0xff]
    %v2352 = vld [vmem:[#allocation9 + $0x828] sm:$0xff]
    %v2353 = vld [vmem:[#allocation9 + $0x830] sm:$0xff]
    %v2354 = vld [vmem:[#allocation9 + $0x838] sm:$0xff]
    %v2355 = vld [vmem:[#allocation9 + $0x840] sm:$0xff]
    %v2356 = vld [vmem:[#allocation9 + $0x848] sm:$0xff]
    %v2357 = vld [vmem:[#allocation9 + $0x850] sm:$0xff]
    %v2358 = vld [vmem:[#allocation9 + $0x858] sm:$0xff]
    %v2359 = vld [vmem:[#allocation9 + $0x860] sm:$0xff]
    %v2360 = vld [vmem:[#allocation9 + $0x868] sm:$0xff]
    %v2361 = vld [vmem:[#allocation9 + $0x870] sm:$0xff]
    %v2362 = vld [vmem:[#allocation9 + $0x878] sm:$0xff]
    %v2363 = vld [vmem:[#allocation9 + $0x880] sm:$0xff]
    %v2364 = vld [vmem:[#allocation9 + $0x888] sm:$0xff]
    %v2365 = vld [vmem:[#allocation9 + $0x890] sm:$0xff]
    %v2366 = vld [vmem:[#allocation9 + $0x898] sm:$0xff]
    %v2367 = vld [vmem:[#allocation9 + $0x8a0] sm:$0xff]
    %v2368 = vld [vmem:[#allocation9 + $0x8a8] sm:$0xff]
    %v2369 = vld [vmem:[#allocation9 + $0x8b0] sm:$0xff]
    %v2370 = vld [vmem:[#allocation9 + $0x8b8] sm:$0xff]
    %v2371 = vld [vmem:[#allocation9 + $0x8c0] sm:$0xff]
    %v2372 = vld [vmem:[#allocation9 + $0x8c8] sm:$0xff]
    %v2373 = vld [vmem:[#allocation9 + $0x8d0] sm:$0xff]
    %v2374 = vld [vmem:[#allocation9 + $0x8d8] sm:$0xff]
    %v2375 = vld [vmem:[#allocation9 + $0x8e0] sm:$0xff]
    %v2376 = vld [vmem:[#allocation9 + $0x8e8] sm:$0xff]
    %v2377 = vld [vmem:[#allocation9 + $0x8f0] sm:$0xff]
    %v2378 = vld [vmem:[#allocation9 + $0x8f8] sm:$0xff]
    %v2411 = vunpack.c.l.b16 %v2347
    %v2412 = vunpack.c.h.b16 %v2347
    %v2413 = vunpack.c.l.b16 %v2348
    %v2414 = vunpack.c.h.b16 %v2348
    %v2415 = vunpack.c.l.b16 %v2349
    %v2416 = vunpack.c.h.b16 %v2349
    %v2417 = vunpack.c.l.b16 %v2350
    %v2418 = vunpack.c.h.b16 %v2350
    %v2419 = vunpack.c.l.b16 %v2351
    %v2420 = vunpack.c.h.b16 %v2351
    %v2421 = vunpack.c.l.b16 %v2352
    %v2422 = vunpack.c.h.b16 %v2352
    %v2423 = vunpack.c.l.b16 %v2353
    %v2424 = vunpack.c.h.b16 %v2353
    %v2425 = vunpack.c.l.b16 %v2354
    %v2426 = vunpack.c.h.b16 %v2354
    %v2427 = vunpack.c.l.b16 %v2355
    %v2428 = vunpack.c.h.b16 %v2355
    %v2429 = vunpack.c.l.b16 %v2356
    %v2430 = vunpack.c.h.b16 %v2356
    %v2431 = vunpack.c.l.b16 %v2357
    %v2432 = vunpack.c.h.b16 %v2357
    %v2433 = vunpack.c.l.b16 %v2358
    %v2434 = vunpack.c.h.b16 %v2358
    %v2435 = vunpack.c.l.b16 %v2359
    %v2436 = vunpack.c.h.b16 %v2359
    %v2437 = vunpack.c.l.b16 %v2360
    %v2438 = vunpack.c.h.b16 %v2360
    %v2439 = vunpack.c.l.b16 %v2361
    %v2440 = vunpack.c.h.b16 %v2361
    %v2441 = vunpack.c.l.b16 %v2362
    %v2442 = vunpack.c.h.b16 %v2362
    %v2443 = vunpack.c.l.b16 %v2363
    %v2444 = vunpack.c.h.b16 %v2363
    %v2445 = vunpack.c.l.b16 %v2364
    %v2446 = vunpack.c.h.b16 %v2364
    %v2447 = vunpack.c.l.b16 %v2365
    %v2448 = vunpack.c.h.b16 %v2365
    %v2449 = vunpack.c.l.b16 %v2366
    %v2450 = vunpack.c.h.b16 %v2366
    %v2451 = vunpack.c.l.b16 %v2367
    %v2452 = vunpack.c.h.b16 %v2367
    %v2453 = vunpack.c.l.b16 %v2368
    %v2454 = vunpack.c.h.b16 %v2368
    %v2455 = vunpack.c.l.b16 %v2369
    %v2456 = vunpack.c.h.b16 %v2369
    %v2457 = vunpack.c.l.b16 %v2370
    %v2458 = vunpack.c.h.b16 %v2370
    %v2459 = vunpack.c.l.b16 %v2371
    %v2460 = vunpack.c.h.b16 %v2371
    %v2461 = vunpack.c.l.b16 %v2372
    %v2462 = vunpack.c.h.b16 %v2372
    %v2463 = vunpack.c.l.b16 %v2373
    %v2464 = vunpack.c.h.b16 %v2373
    %v2465 = vunpack.c.l.b16 %v2374
    %v2466 = vunpack.c.h.b16 %v2374
    %v2467 = vunpack.c.l.b16 %v2375
    %v2468 = vunpack.c.h.b16 %v2375
    %v2469 = vunpack.c.l.b16 %v2376
    %v2470 = vunpack.c.h.b16 %v2376
    %v2471 = vunpack.c.l.b16 %v2377
    %v2472 = vunpack.c.h.b16 %v2377
    %v2473 = vunpack.c.l.b16 %v2378
    %v2474 = vunpack.c.h.b16 %v2378
    %v2475 = vpack.c.b16 %v2413, %v2411
    %v2476 = vpack.c.b16 %v2414, %v2412
    %v2477 = vpack.c.b16 %v2417, %v2415
    %v2478 = vpack.c.b16 %v2418, %v2416
    %v2479 = vpack.c.b16 %v2421, %v2419
    %v2480 = vpack.c.b16 %v2422, %v2420
    %v2481 = vpack.c.b16 %v2425, %v2423
    %v2482 = vpack.c.b16 %v2426, %v2424
    %v2483 = vpack.c.b16 %v2429, %v2427
    %v2484 = vpack.c.b16 %v2430, %v2428
    %v2485 = vpack.c.b16 %v2433, %v2431
    %v2486 = vpack.c.b16 %v2434, %v2432
    %v2487 = vpack.c.b16 %v2437, %v2435
    %v2488 = vpack.c.b16 %v2438, %v2436
    %v2489 = vpack.c.b16 %v2441, %v2439
    %v2490 = vpack.c.b16 %v2442, %v2440
    %v2491 = vpack.c.b16 %v2445, %v2443
    %v2492 = vpack.c.b16 %v2446, %v2444
    %v2493 = vpack.c.b16 %v2449, %v2447
    %v2494 = vpack.c.b16 %v2450, %v2448
    %v2495 = vpack.c.b16 %v2453, %v2451
    %v2496 = vpack.c.b16 %v2454, %v2452
    %v2497 = vpack.c.b16 %v2457, %v2455
    %v2498 = vpack.c.b16 %v2458, %v2456
    %v2499 = vpack.c.b16 %v2461, %v2459
    %v2500 = vpack.c.b16 %v2462, %v2460
    %v2501 = vpack.c.b16 %v2465, %v2463
    %v2502 = vpack.c.b16 %v2466, %v2464
    %v2503 = vpack.c.b16 %v2469, %v2467
    %v2504 = vpack.c.b16 %v2470, %v2468
    %v2505 = vpack.c.b16 %v2473, %v2471
    %v2506 = vpack.c.b16 %v2474, %v2472
    %2539 = vmatprep.subr.bf16.mxu0 %v2476
    %2540 = vmatpush1.bf16.msra.mxu0 %v2475
    %2541 = vmatprep.subr.bf16.mxu0 %v2478
    %2542 = vmatpush1.bf16.msra.mxu0 %v2477
    %2543 = vmatprep.subr.bf16.mxu0 %v2480
    %2544 = vmatpush1.bf16.msra.mxu0 %v2479
    %2545 = vmatprep.subr.bf16.mxu0 %v2482
    %2546 = vmatpush1.bf16.msra.mxu0 %v2481
    %2547 = vmatprep.subr.bf16.mxu0 %v2484
    %2548 = vmatpush1.bf16.msra.mxu0 %v2483
    %2549 = vmatprep.subr.bf16.mxu0 %v2486
    %2550 = vmatpush1.bf16.msra.mxu0 %v2485
    %2551 = vmatprep.subr.bf16.mxu0 %v2488
    %2552 = vmatpush1.bf16.msra.mxu0 %v2487
    %2553 = vmatprep.subr.bf16.mxu0 %v2490
    %2554 = vmatpush1.bf16.msra.mxu0 %v2489
    %2555 = vmatprep.subr.bf16.mxu0 %v2492
    %2556 = vmatpush1.bf16.msra.mxu0 %v2491
    %2557 = vmatprep.subr.bf16.mxu0 %v2494
    %2558 = vmatpush1.bf16.msra.mxu0 %v2493
    %2559 = vmatprep.subr.bf16.mxu0 %v2496
    %2560 = vmatpush1.bf16.msra.mxu0 %v2495
    %2561 = vmatprep.subr.bf16.mxu0 %v2498
    %2562 = vmatpush1.bf16.msra.mxu0 %v2497
    %2563 = vmatprep.subr.bf16.mxu0 %v2500
    %2564 = vmatpush1.bf16.msra.mxu0 %v2499
    %2565 = vmatprep.subr.bf16.mxu0 %v2502
    %2566 = vmatpush1.bf16.msra.mxu0 %v2501
    %2567 = vmatprep.subr.bf16.mxu0 %v2504
    %2568 = vmatpush1.bf16.msra.mxu0 %v2503
    %2569 = vmatprep.subr.bf16.mxu0 %v2506
    %2570 = vmatpush1.bf16.msra.mxu0 %v2505
    %2571 = vmatprep.mubr.bf16.mxu0 %v2346
    %2572 = vmatmul.mubr.bf16.gmra.mrb[0].mxu0 %v2345
    %v2573 = vpop.f32.mrb[0].mxu0
    %v2574 = vadd.f32 0.0, %v2573
    %v2575 = vpop.f32.mrb[0].mxu0
    %v2576 = vadd.f32 0.0, %v2575
    %v2577 = vpop.f32.mrb[0].mxu0
    %v2578 = vpop.f32.mrb[0].mxu0
    %2579 = vdwg.mxu0
    %v2580 = vld [vmem:[#allocation2] sm:$0xff]
    %v2581 = vld [vmem:[#allocation2 + $0x8] sm:$0xff]
    %v2582 = vadd.f32 %v2580, %v2574
    %v2583 = vadd.f32 %v2581, %v2576
    %2584 = vst [vmem:[#allocation2] sm:$0xff] %v2582
    %2585 = vst [vmem:[#allocation2 + $0x8] sm:$0xff] %v2583
    %v2586 = vld [vmem:[#allocation6 + $0x12] sm:$0x3]
    %v2587 = vld [vmem:[#allocation8 + $0x12] sm:$0x3]
    %2588 = vset.pattern.permute.xlu0 9
    %2589 = vperm.xlu0 %2588, %v113
    %v2590 = vpop.permute.xlu0 %2589
    %v2593 = vlaneseq
    %v2594 = vshrl.u32 %v2593, 7
    %v2595 = vsub.s32 0, %v2594
    %v2596 = vrot.slane %v2586, %v2595
    %v2597 = vlaneseq
    %v2598 = vshrl.u32 %v2597, 7
    %v2599 = vsub.s32 1, %v2598
    %v2600 = vrot.slane %v2586, %v2599
    %v2603 = vmul.f32 %v2590, %v2596
    %v2604 = vmul.f32 %v2590, %v2600
    %v2606 = vlaneseq
    %v2607 = vshrl.u32 %v2606, 7
    %v2608 = vsub.s32 0, %v2607
    %v2609 = vrot.slane %v2587, %v2608
    %v2610 = vlaneseq
    %v2611 = vshrl.u32 %v2610, 7
    %v2612 = vsub.s32 1, %v2611
    %v2613 = vrot.slane %v2587, %v2612
    %v2616 = vadd.f32 %v2603, %v2609
    %v2617 = vadd.f32 %v2604, %v2613
    %v2618 = vmax.f32 %v2616, 0.0
    %v2619 = vmax.f32 %v2617, 0.0
    %v2620 = vpack.c.bf16 %v2618, %v2618
    %v2621 = vpack.c.bf16 %v2619, %v2619
    %v2622 = vld [vmem:[#allocation9 + $0x900] sm:$0xff]
    %v2623 = vld [vmem:[#allocation9 + $0x908] sm:$0xff]
    %v2624 = vld [vmem:[#allocation9 + $0x910] sm:$0xff]
    %v2625 = vld [vmem:[#allocation9 + $0x918] sm:$0xff]
    %v2626 = vld [vmem:[#allocation9 + $0x920] sm:$0xff]
    %v2627 = vld [vmem:[#allocation9 + $0x928] sm:$0xff]
    %v2628 = vld [vmem:[#allocation9 + $0x930] sm:$0xff]
    %v2629 = vld [vmem:[#allocation9 + $0x938] sm:$0xff]
    %v2630 = vld [vmem:[#allocation9 + $0x940] sm:$0xff]
    %v2631 = vld [vmem:[#allocation9 + $0x948] sm:$0xff]
    %v2632 = vld [vmem:[#allocation9 + $0x950] sm:$0xff]
    %v2633 = vld [vmem:[#allocation9 + $0x958] sm:$0xff]
    %v2634 = vld [vmem:[#allocation9 + $0x960] sm:$0xff]
    %v2635 = vld [vmem:[#allocation9 + $0x968] sm:$0xff]
    %v2636 = vld [vmem:[#allocation9 + $0x970] sm:$0xff]
    %v2637 = vld [vmem:[#allocation9 + $0x978] sm:$0xff]
    %v2638 = vld [vmem:[#allocation9 + $0x980] sm:$0xff]
    %v2639 = vld [vmem:[#allocation9 + $0x988] sm:$0xff]
    %v2640 = vld [vmem:[#allocation9 + $0x990] sm:$0xff]
    %v2641 = vld [vmem:[#allocation9 + $0x998] sm:$0xff]
    %v2642 = vld [vmem:[#allocation9 + $0x9a0] sm:$0xff]
    %v2643 = vld [vmem:[#allocation9 + $0x9a8] sm:$0xff]
    %v2644 = vld [vmem:[#allocation9 + $0x9b0] sm:$0xff]
    %v2645 = vld [vmem:[#allocation9 + $0x9b8] sm:$0xff]
    %v2646 = vld [vmem:[#allocation9 + $0x9c0] sm:$0xff]
    %v2647 = vld [vmem:[#allocation9 + $0x9c8] sm:$0xff]
    %v2648 = vld [vmem:[#allocation9 + $0x9d0] sm:$0xff]
    %v2649 = vld [vmem:[#allocation9 + $0x9d8] sm:$0xff]
    %v2650 = vld [vmem:[#allocation9 + $0x9e0] sm:$0xff]
    %v2651 = vld [vmem:[#allocation9 + $0x9e8] sm:$0xff]
    %v2652 = vld [vmem:[#allocation9 + $0x9f0] sm:$0xff]
    %v2653 = vld [vmem:[#allocation9 + $0x9f8] sm:$0xff]
    %v2686 = vunpack.c.l.b16 %v2622
    %v2687 = vunpack.c.h.b16 %v2622
    %v2688 = vunpack.c.l.b16 %v2623
    %v2689 = vunpack.c.h.b16 %v2623
    %v2690 = vunpack.c.l.b16 %v2624
    %v2691 = vunpack.c.h.b16 %v2624
    %v2692 = vunpack.c.l.b16 %v2625
    %v2693 = vunpack.c.h.b16 %v2625
    %v2694 = vunpack.c.l.b16 %v2626
    %v2695 = vunpack.c.h.b16 %v2626
    %v2696 = vunpack.c.l.b16 %v2627
    %v2697 = vunpack.c.h.b16 %v2627
    %v2698 = vunpack.c.l.b16 %v2628
    %v2699 = vunpack.c.h.b16 %v2628
    %v2700 = vunpack.c.l.b16 %v2629
    %v2701 = vunpack.c.h.b16 %v2629
    %v2702 = vunpack.c.l.b16 %v2630
    %v2703 = vunpack.c.h.b16 %v2630
    %v2704 = vunpack.c.l.b16 %v2631
    %v2705 = vunpack.c.h.b16 %v2631
    %v2706 = vunpack.c.l.b16 %v2632
    %v2707 = vunpack.c.h.b16 %v2632
    %v2708 = vunpack.c.l.b16 %v2633
    %v2709 = vunpack.c.h.b16 %v2633
    %v2710 = vunpack.c.l.b16 %v2634
    %v2711 = vunpack.c.h.b16 %v2634
    %v2712 = vunpack.c.l.b16 %v2635
    %v2713 = vunpack.c.h.b16 %v2635
    %v2714 = vunpack.c.l.b16 %v2636
    %v2715 = vunpack.c.h.b16 %v2636
    %v2716 = vunpack.c.l.b16 %v2637
    %v2717 = vunpack.c.h.b16 %v2637
    %v2718 = vunpack.c.l.b16 %v2638
    %v2719 = vunpack.c.h.b16 %v2638
    %v2720 = vunpack.c.l.b16 %v2639
    %v2721 = vunpack.c.h.b16 %v2639
    %v2722 = vunpack.c.l.b16 %v2640
    %v2723 = vunpack.c.h.b16 %v2640
    %v2724 = vunpack.c.l.b16 %v2641
    %v2725 = vunpack.c.h.b16 %v2641
    %v2726 = vunpack.c.l.b16 %v2642
    %v2727 = vunpack.c.h.b16 %v2642
    %v2728 = vunpack.c.l.b16 %v2643
    %v2729 = vunpack.c.h.b16 %v2643
    %v2730 = vunpack.c.l.b16 %v2644
    %v2731 = vunpack.c.h.b16 %v2644
    %v2732 = vunpack.c.l.b16 %v2645
    %v2733 = vunpack.c.h.b16 %v2645
    %v2734 = vunpack.c.l.b16 %v2646
    %v2735 = vunpack.c.h.b16 %v2646
    %v2736 = vunpack.c.l.b16 %v2647
    %v2737 = vunpack.c.h.b16 %v2647
    %v2738 = vunpack.c.l.b16 %v2648
    %v2739 = vunpack.c.h.b16 %v2648
    %v2740 = vunpack.c.l.b16 %v2649
    %v2741 = vunpack.c.h.b16 %v2649
    %v2742 = vunpack.c.l.b16 %v2650
    %v2743 = vunpack.c.h.b16 %v2650
    %v2744 = vunpack.c.l.b16 %v2651
    %v2745 = vunpack.c.h.b16 %v2651
    %v2746 = vunpack.c.l.b16 %v2652
    %v2747 = vunpack.c.h.b16 %v2652
    %v2748 = vunpack.c.l.b16 %v2653
    %v2749 = vunpack.c.h.b16 %v2653
    %v2750 = vpack.c.b16 %v2688, %v2686
    %v2751 = vpack.c.b16 %v2689, %v2687
    %v2752 = vpack.c.b16 %v2692, %v2690
    %v2753 = vpack.c.b16 %v2693, %v2691
    %v2754 = vpack.c.b16 %v2696, %v2694
    %v2755 = vpack.c.b16 %v2697, %v2695
    %v2756 = vpack.c.b16 %v2700, %v2698
    %v2757 = vpack.c.b16 %v2701, %v2699
    %v2758 = vpack.c.b16 %v2704, %v2702
    %v2759 = vpack.c.b16 %v2705, %v2703
    %v2760 = vpack.c.b16 %v2708, %v2706
    %v2761 = vpack.c.b16 %v2709, %v2707
    %v2762 = vpack.c.b16 %v2712, %v2710
    %v2763 = vpack.c.b16 %v2713, %v2711
    %v2764 = vpack.c.b16 %v2716, %v2714
    %v2765 = vpack.c.b16 %v2717, %v2715
    %v2766 = vpack.c.b16 %v2720, %v2718
    %v2767 = vpack.c.b16 %v2721, %v2719
    %v2768 = vpack.c.b16 %v2724, %v2722
    %v2769 = vpack.c.b16 %v2725, %v2723
    %v2770 = vpack.c.b16 %v2728, %v2726
    %v2771 = vpack.c.b16 %v2729, %v2727
    %v2772 = vpack.c.b16 %v2732, %v2730
    %v2773 = vpack.c.b16 %v2733, %v2731
    %v2774 = vpack.c.b16 %v2736, %v2734
    %v2775 = vpack.c.b16 %v2737, %v2735
    %v2776 = vpack.c.b16 %v2740, %v2738
    %v2777 = vpack.c.b16 %v2741, %v2739
    %v2778 = vpack.c.b16 %v2744, %v2742
    %v2779 = vpack.c.b16 %v2745, %v2743
    %v2780 = vpack.c.b16 %v2748, %v2746
    %v2781 = vpack.c.b16 %v2749, %v2747
    %2814 = vmatprep.subr.bf16.mxu0 %v2751
    %2815 = vmatpush1.bf16.msra.mxu0 %v2750
    %2816 = vmatprep.subr.bf16.mxu0 %v2753
    %2817 = vmatpush1.bf16.msra.mxu0 %v2752
    %2818 = vmatprep.subr.bf16.mxu0 %v2755
    %2819 = vmatpush1.bf16.msra.mxu0 %v2754
    %2820 = vmatprep.subr.bf16.mxu0 %v2757
    %2821 = vmatpush1.bf16.msra.mxu0 %v2756
    %2822 = vmatprep.subr.bf16.mxu0 %v2759
    %2823 = vmatpush1.bf16.msra.mxu0 %v2758
    %2824 = vmatprep.subr.bf16.mxu0 %v2761
    %2825 = vmatpush1.bf16.msra.mxu0 %v2760
    %2826 = vmatprep.subr.bf16.mxu0 %v2763
    %2827 = vmatpush1.bf16.msra.mxu0 %v2762
    %2828 = vmatprep.subr.bf16.mxu0 %v2765
    %2829 = vmatpush1.bf16.msra.mxu0 %v2764
    %2830 = vmatprep.subr.bf16.mxu0 %v2767
    %2831 = vmatpush1.bf16.msra.mxu0 %v2766
    %2832 = vmatprep.subr.bf16.mxu0 %v2769
    %2833 = vmatpush1.bf16.msra.mxu0 %v2768
    %2834 = vmatprep.subr.bf16.mxu0 %v2771
    %2835 = vmatpush1.bf16.msra.mxu0 %v2770
    %2836 = vmatprep.subr.bf16.mxu0 %v2773
    %2837 = vmatpush1.bf16.msra.mxu0 %v2772
    %2838 = vmatprep.subr.bf16.mxu0 %v2775
    %2839 = vmatpush1.bf16.msra.mxu0 %v2774
    %2840 = vmatprep.subr.bf16.mxu0 %v2777
    %2841 = vmatpush1.bf16.msra.mxu0 %v2776
    %2842 = vmatprep.subr.bf16.mxu0 %v2779
    %2843 = vmatpush1.bf16.msra.mxu0 %v2778
    %2844 = vmatprep.subr.bf16.mxu0 %v2781
    %2845 = vmatpush1.bf16.msra.mxu0 %v2780
    %2846 = vmatprep.mubr.bf16.mxu0 %v2621
    %2847 = vmatmul.mubr.bf16.gmra.mrb[0].mxu0 %v2620
    %v2848 = vpop.f32.mrb[0].mxu0
    %v2849 = vadd.f32 0.0, %v2848
    %v2850 = vpop.f32.mrb[0].mxu0
    %v2851 = vadd.f32 0.0, %v2850
    %v2852 = vpop.f32.mrb[0].mxu0
    %v2853 = vpop.f32.mrb[0].mxu0
    %2854 = vdwg.mxu0
    %v2855 = vld [vmem:[#allocation2] sm:$0xff]
    %v2856 = vld [vmem:[#allocation2 + $0x8] sm:$0xff]
    %v2857 = vadd.f32 %v2855, %v2849
    %v2858 = vadd.f32 %v2856, %v2851
    %2859 = vst [vmem:[#allocation2] sm:$0xff] %v2857
    %2860 = vst [vmem:[#allocation2 + $0x8] sm:$0xff] %v2858
    %v2861 = vld [vmem:[#allocation6 + $0x14] sm:$0x3]
    %v2862 = vld [vmem:[#allocation8 + $0x14] sm:$0x3]
    %2863 = vset.pattern.permute.xlu0 10
    %2864 = vperm.xlu0 %2863, %v113
    %v2865 = vpop.permute.xlu0 %2864
    %v2868 = vlaneseq
    %v2869 = vshrl.u32 %v2868, 7
    %v2870 = vsub.s32 0, %v2869
    %v2871 = vrot.slane %v2861, %v2870
    %v2872 = vlaneseq
    %v2873 = vshrl.u32 %v2872, 7
    %v2874 = vsub.s32 1, %v2873
    %v2875 = vrot.slane %v2861, %v2874
    %v2878 = vmul.f32 %v2865, %v2871
    %v2879 = vmul.f32 %v2865, %v2875
    %v2881 = vlaneseq
    %v2882 = vshrl.u32 %v2881, 7
    %v2883 = vsub.s32 0, %v2882
    %v2884 = vrot.slane %v2862, %v2883
    %v2885 = vlaneseq
    %v2886 = vshrl.u32 %v2885, 7
    %v2887 = vsub.s32 1, %v2886
    %v2888 = vrot.slane %v2862, %v2887
    %v2891 = vadd.f32 %v2878, %v2884
    %v2892 = vadd.f32 %v2879, %v2888
    %v2893 = vmax.f32 %v2891, 0.0
    %v2894 = vmax.f32 %v2892, 0.0
    %v2895 = vpack.c.bf16 %v2893, %v2893
    %v2896 = vpack.c.bf16 %v2894, %v2894
    %v2897 = vld [vmem:[#allocation9 + $0xa00] sm:$0xff]
    %v2898 = vld [vmem:[#allocation9 + $0xa08] sm:$0xff]
    %v2899 = vld [vmem:[#allocation9 + $0xa10] sm:$0xff]
    %v2900 = vld [vmem:[#allocation9 + $0xa18] sm:$0xff]
    %v2901 = vld [vmem:[#allocation9 + $0xa20] sm:$0xff]
    %v2902 = vld [vmem:[#allocation9 + $0xa28] sm:$0xff]
    %v2903 = vld [vmem:[#allocation9 + $0xa30] sm:$0xff]
    %v2904 = vld [vmem:[#allocation9 + $0xa38] sm:$0xff]
    %v2905 = vld [vmem:[#allocation9 + $0xa40] sm:$0xff]
    %v2906 = vld [vmem:[#allocation9 + $0xa48] sm:$0xff]
    %v2907 = vld [vmem:[#allocation9 + $0xa50] sm:$0xff]
    %v2908 = vld [vmem:[#allocation9 + $0xa58] sm:$0xff]
    %v2909 = vld [vmem:[#allocation9 + $0xa60] sm:$0xff]
    %v2910 = vld [vmem:[#allocation9 + $0xa68] sm:$0xff]
    %v2911 = vld [vmem:[#allocation9 + $0xa70] sm:$0xff]
    %v2912 = vld [vmem:[#allocation9 + $0xa78] sm:$0xff]
    %v2913 = vld [vmem:[#allocation9 + $0xa80] sm:$0xff]
    %v2914 = vld [vmem:[#allocation9 + $0xa88] sm:$0xff]
    %v2915 = vld [vmem:[#allocation9 + $0xa90] sm:$0xff]
    %v2916 = vld [vmem:[#allocation9 + $0xa98] sm:$0xff]
    %v2917 = vld [vmem:[#allocation9 + $0xaa0] sm:$0xff]
    %v2918 = vld [vmem:[#allocation9 + $0xaa8] sm:$0xff]
    %v2919 = vld [vmem:[#allocation9 + $0xab0] sm:$0xff]
    %v2920 = vld [vmem:[#allocation9 + $0xab8] sm:$0xff]
    %v2921 = vld [vmem:[#allocation9 + $0xac0] sm:$0xff]
    %v2922 = vld [vmem:[#allocation9 + $0xac8] sm:$0xff]
    %v2923 = vld [vmem:[#allocation9 + $0xad0] sm:$0xff]
    %v2924 = vld [vmem:[#allocation9 + $0xad8] sm:$0xff]
    %v2925 = vld [vmem:[#allocation9 + $0xae0] sm:$0xff]
    %v2926 = vld [vmem:[#allocation9 + $0xae8] sm:$0xff]
    %v2927 = vld [vmem:[#allocation9 + $0xaf0] sm:$0xff]
    %v2928 = vld [vmem:[#allocation9 + $0xaf8] sm:$0xff]
    %v2961 = vunpack.c.l.b16 %v2897
    %v2962 = vunpack.c.h.b16 %v2897
    %v2963 = vunpack.c.l.b16 %v2898
    %v2964 = vunpack.c.h.b16 %v2898
    %v2965 = vunpack.c.l.b16 %v2899
    %v2966 = vunpack.c.h.b16 %v2899
    %v2967 = vunpack.c.l.b16 %v2900
    %v2968 = vunpack.c.h.b16 %v2900
    %v2969 = vunpack.c.l.b16 %v2901
    %v2970 = vunpack.c.h.b16 %v2901
    %v2971 = vunpack.c.l.b16 %v2902
    %v2972 = vunpack.c.h.b16 %v2902
    %v2973 = vunpack.c.l.b16 %v2903
    %v2974 = vunpack.c.h.b16 %v2903
    %v2975 = vunpack.c.l.b16 %v2904
    %v2976 = vunpack.c.h.b16 %v2904
    %v2977 = vunpack.c.l.b16 %v2905
    %v2978 = vunpack.c.h.b16 %v2905
    %v2979 = vunpack.c.l.b16 %v2906
    %v2980 = vunpack.c.h.b16 %v2906
    %v2981 = vunpack.c.l.b16 %v2907
    %v2982 = vunpack.c.h.b16 %v2907
    %v2983 = vunpack.c.l.b16 %v2908
    %v2984 = vunpack.c.h.b16 %v2908
    %v2985 = vunpack.c.l.b16 %v2909
    %v2986 = vunpack.c.h.b16 %v2909
    %v2987 = vunpack.c.l.b16 %v2910
    %v2988 = vunpack.c.h.b16 %v2910
    %v2989 = vunpack.c.l.b16 %v2911
    %v2990 = vunpack.c.h.b16 %v2911
    %v2991 = vunpack.c.l.b16 %v2912
    %v2992 = vunpack.c.h.b16 %v2912
    %v2993 = vunpack.c.l.b16 %v2913
    %v2994 = vunpack.c.h.b16 %v2913
    %v2995 = vunpack.c.l.b16 %v2914
    %v2996 = vunpack.c.h.b16 %v2914
    %v2997 = vunpack.c.l.b16 %v2915
    %v2998 = vunpack.c.h.b16 %v2915
    %v2999 = vunpack.c.l.b16 %v2916
    %v3000 = vunpack.c.h.b16 %v2916
    %v3001 = vunpack.c.l.b16 %v2917
    %v3002 = vunpack.c.h.b16 %v2917
    %v3003 = vunpack.c.l.b16 %v2918
    %v3004 = vunpack.c.h.b16 %v2918
    %v3005 = vunpack.c.l.b16 %v2919
    %v3006 = vunpack.c.h.b16 %v2919
    %v3007 = vunpack.c.l.b16 %v2920
    %v3008 = vunpack.c.h.b16 %v2920
    %v3009 = vunpack.c.l.b16 %v2921
    %v3010 = vunpack.c.h.b16 %v2921
    %v3011 = vunpack.c.l.b16 %v2922
    %v3012 = vunpack.c.h.b16 %v2922
    %v3013 = vunpack.c.l.b16 %v2923
    %v3014 = vunpack.c.h.b16 %v2923
    %v3015 = vunpack.c.l.b16 %v2924
    %v3016 = vunpack.c.h.b16 %v2924
    %v3017 = vunpack.c.l.b16 %v2925
    %v3018 = vunpack.c.h.b16 %v2925
    %v3019 = vunpack.c.l.b16 %v2926
    %v3020 = vunpack.c.h.b16 %v2926
    %v3021 = vunpack.c.l.b16 %v2927
    %v3022 = vunpack.c.h.b16 %v2927
    %v3023 = vunpack.c.l.b16 %v2928
    %v3024 = vunpack.c.h.b16 %v2928
    %v3025 = vpack.c.b16 %v2963, %v2961
    %v3026 = vpack.c.b16 %v2964, %v2962
    %v3027 = vpack.c.b16 %v2967, %v2965
    %v3028 = vpack.c.b16 %v2968, %v2966
    %v3029 = vpack.c.b16 %v2971, %v2969
    %v3030 = vpack.c.b16 %v2972, %v2970
    %v3031 = vpack.c.b16 %v2975, %v2973
    %v3032 = vpack.c.b16 %v2976, %v2974
    %v3033 = vpack.c.b16 %v2979, %v2977
    %v3034 = vpack.c.b16 %v2980, %v2978
    %v3035 = vpack.c.b16 %v2983, %v2981
    %v3036 = vpack.c.b16 %v2984, %v2982
    %v3037 = vpack.c.b16 %v2987, %v2985
    %v3038 = vpack.c.b16 %v2988, %v2986
    %v3039 = vpack.c.b16 %v2991, %v2989
    %v3040 = vpack.c.b16 %v2992, %v2990
    %v3041 = vpack.c.b16 %v2995, %v2993
    %v3042 = vpack.c.b16 %v2996, %v2994
    %v3043 = vpack.c.b16 %v2999, %v2997
    %v3044 = vpack.c.b16 %v3000, %v2998
    %v3045 = vpack.c.b16 %v3003, %v3001
    %v3046 = vpack.c.b16 %v3004, %v3002
    %v3047 = vpack.c.b16 %v3007, %v3005
    %v3048 = vpack.c.b16 %v3008, %v3006
    %v3049 = vpack.c.b16 %v3011, %v3009
    %v3050 = vpack.c.b16 %v3012, %v3010
    %v3051 = vpack.c.b16 %v3015, %v3013
    %v3052 = vpack.c.b16 %v3016, %v3014
    %v3053 = vpack.c.b16 %v3019, %v3017
    %v3054 = vpack.c.b16 %v3020, %v3018
    %v3055 = vpack.c.b16 %v3023, %v3021
    %v3056 = vpack.c.b16 %v3024, %v3022
    %3089 = vmatprep.subr.bf16.mxu0 %v3026
    %3090 = vmatpush1.bf16.msra.mxu0 %v3025
    %3091 = vmatprep.subr.bf16.mxu0 %v3028
    %3092 = vmatpush1.bf16.msra.mxu0 %v3027
    %3093 = vmatprep.subr.bf16.mxu0 %v3030
    %3094 = vmatpush1.bf16.msra.mxu0 %v3029
    %3095 = vmatprep.subr.bf16.mxu0 %v3032
    %3096 = vmatpush1.bf16.msra.mxu0 %v3031
    %3097 = vmatprep.subr.bf16.mxu0 %v3034
    %3098 = vmatpush1.bf16.msra.mxu0 %v3033
    %3099 = vmatprep.subr.bf16.mxu0 %v3036
    %3100 = vmatpush1.bf16.msra.mxu0 %v3035
    %3101 = vmatprep.subr.bf16.mxu0 %v3038
    %3102 = vmatpush1.bf16.msra.mxu0 %v3037
    %3103 = vmatprep.subr.bf16.mxu0 %v3040
    %3104 = vmatpush1.bf16.msra.mxu0 %v3039
    %3105 = vmatprep.subr.bf16.mxu0 %v3042
    %3106 = vmatpush1.bf16.msra.mxu0 %v3041
    %3107 = vmatprep.subr.bf16.mxu0 %v3044
    %3108 = vmatpush1.bf16.msra.mxu0 %v3043
    %3109 = vmatprep.subr.bf16.mxu0 %v3046
    %3110 = vmatpush1.bf16.msra.mxu0 %v3045
    %3111 = vmatprep.subr.bf16.mxu0 %v3048
    %3112 = vmatpush1.bf16.msra.mxu0 %v3047
    %3113 = vmatprep.subr.bf16.mxu0 %v3050
    %3114 = vmatpush1.bf16.msra.mxu0 %v3049
    %3115 = vmatprep.subr.bf16.mxu0 %v3052
    %3116 = vmatpush1.bf16.msra.mxu0 %v3051
    %3117 = vmatprep.subr.bf16.mxu0 %v3054
    %3118 = vmatpush1.bf16.msra.mxu0 %v3053
    %3119 = vmatprep.subr.bf16.mxu0 %v3056
    %3120 = vmatpush1.bf16.msra.mxu0 %v3055
    %3121 = vmatprep.mubr.bf16.mxu0 %v2896
    %3122 = vmatmul.mubr.bf16.gmra.mrb[0].mxu0 %v2895
    %v3123 = vpop.f32.mrb[0].mxu0
    %v3124 = vadd.f32 0.0, %v3123
    %v3125 = vpop.f32.mrb[0].mxu0
    %v3126 = vadd.f32 0.0, %v3125
    %v3127 = vpop.f32.mrb[0].mxu0
    %v3128 = vpop.f32.mrb[0].mxu0
    %3129 = vdwg.mxu0
    %v3130 = vld [vmem:[#allocation2] sm:$0xff]
    %v3131 = vld [vmem:[#allocation2 + $0x8] sm:$0xff]
    %v3132 = vadd.f32 %v3130, %v3124
    %v3133 = vadd.f32 %v3131, %v3126
    %3134 = vst [vmem:[#allocation2] sm:$0xff] %v3132
    %3135 = vst [vmem:[#allocation2 + $0x8] sm:$0xff] %v3133
    %v3136 = vld [vmem:[#allocation6 + $0x16] sm:$0x3]
    %v3137 = vld [vmem:[#allocation8 + $0x16] sm:$0x3]
    %3138 = vset.pattern.permute.xlu0 11
    %3139 = vperm.xlu0 %3138, %v113
    %v3140 = vpop.permute.xlu0 %3139
    %v3143 = vlaneseq
    %v3144 = vshrl.u32 %v3143, 7
    %v3145 = vsub.s32 0, %v3144
    %v3146 = vrot.slane %v3136, %v3145
    %v3147 = vlaneseq
    %v3148 = vshrl.u32 %v3147, 7
    %v3149 = vsub.s32 1, %v3148
    %v3150 = vrot.slane %v3136, %v3149
    %v3153 = vmul.f32 %v3140, %v3146
    %v3154 = vmul.f32 %v3140, %v3150
    %v3156 = vlaneseq
    %v3157 = vshrl.u32 %v3156, 7
    %v3158 = vsub.s32 0, %v3157
    %v3159 = vrot.slane %v3137, %v3158
    %v3160 = vlaneseq
    %v3161 = vshrl.u32 %v3160, 7
    %v3162 = vsub.s32 1, %v3161
    %v3163 = vrot.slane %v3137, %v3162
    %v3166 = vadd.f32 %v3153, %v3159
    %v3167 = vadd.f32 %v3154, %v3163
    %v3168 = vmax.f32 %v3166, 0.0
    %v3169 = vmax.f32 %v3167, 0.0
    %v3170 = vpack.c.bf16 %v3168, %v3168
    %v3171 = vpack.c.bf16 %v3169, %v3169
    %v3172 = vld [vmem:[#allocation9 + $0xb00] sm:$0xff]
    %v3173 = vld [vmem:[#allocation9 + $0xb08] sm:$0xff]
    %v3174 = vld [vmem:[#allocation9 + $0xb10] sm:$0xff]
    %v3175 = vld [vmem:[#allocation9 + $0xb18] sm:$0xff]
    %v3176 = vld [vmem:[#allocation9 + $0xb20] sm:$0xff]
    %v3177 = vld [vmem:[#allocation9 + $0xb28] sm:$0xff]
    %v3178 = vld [vmem:[#allocation9 + $0xb30] sm:$0xff]
    %v3179 = vld [vmem:[#allocation9 + $0xb38] sm:$0xff]
    %v3180 = vld [vmem:[#allocation9 + $0xb40] sm:$0xff]
    %v3181 = vld [vmem:[#allocation9 + $0xb48] sm:$0xff]
    %v3182 = vld [vmem:[#allocation9 + $0xb50] sm:$0xff]
    %v3183 = vld [vmem:[#allocation9 + $0xb58] sm:$0xff]
    %v3184 = vld [vmem:[#allocation9 + $0xb60] sm:$0xff]
    %v3185 = vld [vmem:[#allocation9 + $0xb68] sm:$0xff]
    %v3186 = vld [vmem:[#allocation9 + $0xb70] sm:$0xff]
    %v3187 = vld [vmem:[#allocation9 + $0xb78] sm:$0xff]
    %v3188 = vld [vmem:[#allocation9 + $0xb80] sm:$0xff]
    %v3189 = vld [vmem:[#allocation9 + $0xb88] sm:$0xff]
    %v3190 = vld [vmem:[#allocation9 + $0xb90] sm:$0xff]
    %v3191 = vld [vmem:[#allocation9 + $0xb98] sm:$0xff]
    %v3192 = vld [vmem:[#allocation9 + $0xba0] sm:$0xff]
    %v3193 = vld [vmem:[#allocation9 + $0xba8] sm:$0xff]
    %v3194 = vld [vmem:[#allocation9 + $0xbb0] sm:$0xff]
    %v3195 = vld [vmem:[#allocation9 + $0xbb8] sm:$0xff]
    %v3196 = vld [vmem:[#allocation9 + $0xbc0] sm:$0xff]
    %v3197 = vld [vmem:[#allocation9 + $0xbc8] sm:$0xff]
    %v3198 = vld [vmem:[#allocation9 + $0xbd0] sm:$0xff]
    %v3199 = vld [vmem:[#allocation9 + $0xbd8] sm:$0xff]
    %v3200 = vld [vmem:[#allocation9 + $0xbe0] sm:$0xff]
    %v3201 = vld [vmem:[#allocation9 + $0xbe8] sm:$0xff]
    %v3202 = vld [vmem:[#allocation9 + $0xbf0] sm:$0xff]
    %v3203 = vld [vmem:[#allocation9 + $0xbf8] sm:$0xff]
    %v3236 = vunpack.c.l.b16 %v3172
    %v3237 = vunpack.c.h.b16 %v3172
    %v3238 = vunpack.c.l.b16 %v3173
    %v3239 = vunpack.c.h.b16 %v3173
    %v3240 = vunpack.c.l.b16 %v3174
    %v3241 = vunpack.c.h.b16 %v3174
    %v3242 = vunpack.c.l.b16 %v3175
    %v3243 = vunpack.c.h.b16 %v3175
    %v3244 = vunpack.c.l.b16 %v3176
    %v3245 = vunpack.c.h.b16 %v3176
    %v3246 = vunpack.c.l.b16 %v3177
    %v3247 = vunpack.c.h.b16 %v3177
    %v3248 = vunpack.c.l.b16 %v3178
    %v3249 = vunpack.c.h.b16 %v3178
    %v3250 = vunpack.c.l.b16 %v3179
    %v3251 = vunpack.c.h.b16 %v3179
    %v3252 = vunpack.c.l.b16 %v3180
    %v3253 = vunpack.c.h.b16 %v3180
    %v3254 = vunpack.c.l.b16 %v3181
    %v3255 = vunpack.c.h.b16 %v3181
    %v3256 = vunpack.c.l.b16 %v3182
    %v3257 = vunpack.c.h.b16 %v3182
    %v3258 = vunpack.c.l.b16 %v3183
    %v3259 = vunpack.c.h.b16 %v3183
    %v3260 = vunpack.c.l.b16 %v3184
    %v3261 = vunpack.c.h.b16 %v3184
    %v3262 = vunpack.c.l.b16 %v3185
    %v3263 = vunpack.c.h.b16 %v3185
    %v3264 = vunpack.c.l.b16 %v3186
    %v3265 = vunpack.c.h.b16 %v3186
    %v3266 = vunpack.c.l.b16 %v3187
    %v3267 = vunpack.c.h.b16 %v3187
    %v3268 = vunpack.c.l.b16 %v3188
    %v3269 = vunpack.c.h.b16 %v3188
    %v3270 = vunpack.c.l.b16 %v3189
    %v3271 = vunpack.c.h.b16 %v3189
    %v3272 = vunpack.c.l.b16 %v3190
    %v3273 = vunpack.c.h.b16 %v3190
    %v3274 = vunpack.c.l.b16 %v3191
    %v3275 = vunpack.c.h.b16 %v3191
    %v3276 = vunpack.c.l.b16 %v3192
    %v3277 = vunpack.c.h.b16 %v3192
    %v3278 = vunpack.c.l.b16 %v3193
    %v3279 = vunpack.c.h.b16 %v3193
    %v3280 = vunpack.c.l.b16 %v3194
    %v3281 = vunpack.c.h.b16 %v3194
    %v3282 = vunpack.c.l.b16 %v3195
    %v3283 = vunpack.c.h.b16 %v3195
    %v3284 = vunpack.c.l.b16 %v3196
    %v3285 = vunpack.c.h.b16 %v3196
    %v3286 = vunpack.c.l.b16 %v3197
    %v3287 = vunpack.c.h.b16 %v3197
    %v3288 = vunpack.c.l.b16 %v3198
    %v3289 = vunpack.c.h.b16 %v3198
    %v3290 = vunpack.c.l.b16 %v3199
    %v3291 = vunpack.c.h.b16 %v3199
    %v3292 = vunpack.c.l.b16 %v3200
    %v3293 = vunpack.c.h.b16 %v3200
    %v3294 = vunpack.c.l.b16 %v3201
    %v3295 = vunpack.c.h.b16 %v3201
    %v3296 = vunpack.c.l.b16 %v3202
    %v3297 = vunpack.c.h.b16 %v3202
    %v3298 = vunpack.c.l.b16 %v3203
    %v3299 = vunpack.c.h.b16 %v3203
    %v3300 = vpack.c.b16 %v3238, %v3236
    %v3301 = vpack.c.b16 %v3239, %v3237
    %v3302 = vpack.c.b16 %v3242, %v3240
    %v3303 = vpack.c.b16 %v3243, %v3241
    %v3304 = vpack.c.b16 %v3246, %v3244
    %v3305 = vpack.c.b16 %v3247, %v3245
    %v3306 = vpack.c.b16 %v3250, %v3248
    %v3307 = vpack.c.b16 %v3251, %v3249
    %v3308 = vpack.c.b16 %v3254, %v3252
    %v3309 = vpack.c.b16 %v3255, %v3253
    %v3310 = vpack.c.b16 %v3258, %v3256
    %v3311 = vpack.c.b16 %v3259, %v3257
    %v3312 = vpack.c.b16 %v3262, %v3260
    %v3313 = vpack.c.b16 %v3263, %v3261
    %v3314 = vpack.c.b16 %v3266, %v3264
    %v3315 = vpack.c.b16 %v3267, %v3265
    %v3316 = vpack.c.b16 %v3270, %v3268
    %v3317 = vpack.c.b16 %v3271, %v3269
    %v3318 = vpack.c.b16 %v3274, %v3272
    %v3319 = vpack.c.b16 %v3275, %v3273
    %v3320 = vpack.c.b16 %v3278, %v3276
    %v3321 = vpack.c.b16 %v3279, %v3277
    %v3322 = vpack.c.b16 %v3282, %v3280
    %v3323 = vpack.c.b16 %v3283, %v3281
    %v3324 = vpack.c.b16 %v3286, %v3284
    %v3325 = vpack.c.b16 %v3287, %v3285
    %v3326 = vpack.c.b16 %v3290, %v3288
    %v3327 = vpack.c.b16 %v3291, %v3289
    %v3328 = vpack.c.b16 %v3294, %v3292
    %v3329 = vpack.c.b16 %v3295, %v3293
    %v3330 = vpack.c.b16 %v3298, %v3296
    %v3331 = vpack.c.b16 %v3299, %v3297
    %3364 = vmatprep.subr.bf16.mxu0 %v3301
    %3365 = vmatpush1.bf16.msra.mxu0 %v3300
    %3366 = vmatprep.subr.bf16.mxu0 %v3303
    %3367 = vmatpush1.bf16.msra.mxu0 %v3302
    %3368 = vmatprep.subr.bf16.mxu0 %v3305
    %3369 = vmatpush1.bf16.msra.mxu0 %v3304
    %3370 = vmatprep.subr.bf16.mxu0 %v3307
    %3371 = vmatpush1.bf16.msra.mxu0 %v3306
    %3372 = vmatprep.subr.bf16.mxu0 %v3309
    %3373 = vmatpush1.bf16.msra.mxu0 %v3308
    %3374 = vmatprep.subr.bf16.mxu0 %v3311
    %3375 = vmatpush1.bf16.msra.mxu0 %v3310
    %3376 = vmatprep.subr.bf16.mxu0 %v3313
    %3377 = vmatpush1.bf16.msra.mxu0 %v3312
    %3378 = vmatprep.subr.bf16.mxu0 %v3315
    %3379 = vmatpush1.bf16.msra.mxu0 %v3314
    %3380 = vmatprep.subr.bf16.mxu0 %v3317
    %3381 = vmatpush1.bf16.msra.mxu0 %v3316
    %3382 = vmatprep.subr.bf16.mxu0 %v3319
    %3383 = vmatpush1.bf16.msra.mxu0 %v3318
    %3384 = vmatprep.subr.bf16.mxu0 %v3321
    %3385 = vmatpush1.bf16.msra.mxu0 %v3320
    %3386 = vmatprep.subr.bf16.mxu0 %v3323
    %3387 = vmatpush1.bf16.msra.mxu0 %v3322
    %3388 = vmatprep.subr.bf16.mxu0 %v3325
    %3389 = vmatpush1.bf16.msra.mxu0 %v3324
    %3390 = vmatprep.subr.bf16.mxu0 %v3327
    %3391 = vmatpush1.bf16.msra.mxu0 %v3326
    %3392 = vmatprep.subr.bf16.mxu0 %v3329
    %3393 = vmatpush1.bf16.msra.mxu0 %v3328
    %3394 = vmatprep.subr.bf16.mxu0 %v3331
    %3395 = vmatpush1.bf16.msra.mxu0 %v3330
    %3396 = vmatprep.mubr.bf16.mxu0 %v3171
    %3397 = vmatmul.mubr.bf16.gmra.mrb[0].mxu0 %v3170
    %v3398 = vpop.f32.mrb[0].mxu0
    %v3399 = vadd.f32 0.0, %v3398
    %v3400 = vpop.f32.mrb[0].mxu0
    %v3401 = vadd.f32 0.0, %v3400
    %v3402 = vpop.f32.mrb[0].mxu0
    %v3403 = vpop.f32.mrb[0].mxu0
    %3404 = vdwg.mxu0
    %v3405 = vld [vmem:[#allocation2] sm:$0xff]
    %v3406 = vld [vmem:[#allocation2 + $0x8] sm:$0xff]
    %v3407 = vadd.f32 %v3405, %v3399
    %v3408 = vadd.f32 %v3406, %v3401
    %3409 = vst [vmem:[#allocation2] sm:$0xff] %v3407
    %3410 = vst [vmem:[#allocation2 + $0x8] sm:$0xff] %v3408
    %v3411 = vld [vmem:[#allocation6 + $0x18] sm:$0x3]
    %v3412 = vld [vmem:[#allocation8 + $0x18] sm:$0x3]
    %3413 = vset.pattern.permute.xlu0 12
    %3414 = vperm.xlu0 %3413, %v113
    %v3415 = vpop.permute.xlu0 %3414
    %v3418 = vlaneseq
    %v3419 = vshrl.u32 %v3418, 7
    %v3420 = vsub.s32 0, %v3419
    %v3421 = vrot.slane %v3411, %v3420
    %v3422 = vlaneseq
    %v3423 = vshrl.u32 %v3422, 7
    %v3424 = vsub.s32 1, %v3423
    %v3425 = vrot.slane %v3411, %v3424
    %v3428 = vmul.f32 %v3415, %v3421
    %v3429 = vmul.f32 %v3415, %v3425
    %v3431 = vlaneseq
    %v3432 = vshrl.u32 %v3431, 7
    %v3433 = vsub.s32 0, %v3432
    %v3434 = vrot.slane %v3412, %v3433
    %v3435 = vlaneseq
    %v3436 = vshrl.u32 %v3435, 7
    %v3437 = vsub.s32 1, %v3436
    %v3438 = vrot.slane %v3412, %v3437
    %v3441 = vadd.f32 %v3428, %v3434
    %v3442 = vadd.f32 %v3429, %v3438
    %v3443 = vmax.f32 %v3441, 0.0
    %v3444 = vmax.f32 %v3442, 0.0
    %v3445 = vpack.c.bf16 %v3443, %v3443
    %v3446 = vpack.c.bf16 %v3444, %v3444
    %v3447 = vld [vmem:[#allocation9 + $0xc00] sm:$0xff]
    %v3448 = vld [vmem:[#allocation9 + $0xc08] sm:$0xff]
    %v3449 = vld [vmem:[#allocation9 + $0xc10] sm:$0xff]
    %v3450 = vld [vmem:[#allocation9 + $0xc18] sm:$0xff]
    %v3451 = vld [vmem:[#allocation9 + $0xc20] sm:$0xff]
    %v3452 = vld [vmem:[#allocation9 + $0xc28] sm:$0xff]
    %v3453 = vld [vmem:[#allocation9 + $0xc30] sm:$0xff]
    %v3454 = vld [vmem:[#allocation9 + $0xc38] sm:$0xff]
    %v3455 = vld [vmem:[#allocation9 + $0xc40] sm:$0xff]
    %v3456 = vld [vmem:[#allocation9 + $0xc48] sm:$0xff]
    %v3457 = vld [vmem:[#allocation9 + $0xc50] sm:$0xff]
    %v3458 = vld [vmem:[#allocation9 + $0xc58] sm:$0xff]
    %v3459 = vld [vmem:[#allocation9 + $0xc60] sm:$0xff]
    %v3460 = vld [vmem:[#allocation9 + $0xc68] sm:$0xff]
    %v3461 = vld [vmem:[#allocation9 + $0xc70] sm:$0xff]
    %v3462 = vld [vmem:[#allocation9 + $0xc78] sm:$0xff]
    %v3463 = vld [vmem:[#allocation9 + $0xc80] sm:$0xff]
    %v3464 = vld [vmem:[#allocation9 + $0xc88] sm:$0xff]
    %v3465 = vld [vmem:[#allocation9 + $0xc90] sm:$0xff]
    %v3466 = vld [vmem:[#allocation9 + $0xc98] sm:$0xff]
    %v3467 = vld [vmem:[#allocation9 + $0xca0] sm:$0xff]
    %v3468 = vld [vmem:[#allocation9 + $0xca8] sm:$0xff]
    %v3469 = vld [vmem:[#allocation9 + $0xcb0] sm:$0xff]
    %v3470 = vld [vmem:[#allocation9 + $0xcb8] sm:$0xff]
    %v3471 = vld [vmem:[#allocation9 + $0xcc0] sm:$0xff]
    %v3472 = vld [vmem:[#allocation9 + $0xcc8] sm:$0xff]
    %v3473 = vld [vmem:[#allocation9 + $0xcd0] sm:$0xff]
    %v3474 = vld [vmem:[#allocation9 + $0xcd8] sm:$0xff]
    %v3475 = vld [vmem:[#allocation9 + $0xce0] sm:$0xff]
    %v3476 = vld [vmem:[#allocation9 + $0xce8] sm:$0xff]
    %v3477 = vld [vmem:[#allocation9 + $0xcf0] sm:$0xff]
    %v3478 = vld [vmem:[#allocation9 + $0xcf8] sm:$0xff]
    %v3511 = vunpack.c.l.b16 %v3447
    %v3512 = vunpack.c.h.b16 %v3447
    %v3513 = vunpack.c.l.b16 %v3448
    %v3514 = vunpack.c.h.b16 %v3448
    %v3515 = vunpack.c.l.b16 %v3449
    %v3516 = vunpack.c.h.b16 %v3449
    %v3517 = vunpack.c.l.b16 %v3450
    %v3518 = vunpack.c.h.b16 %v3450
    %v3519 = vunpack.c.l.b16 %v3451
    %v3520 = vunpack.c.h.b16 %v3451
    %v3521 = vunpack.c.l.b16 %v3452
    %v3522 = vunpack.c.h.b16 %v3452
    %v3523 = vunpack.c.l.b16 %v3453
    %v3524 = vunpack.c.h.b16 %v3453
    %v3525 = vunpack.c.l.b16 %v3454
    %v3526 = vunpack.c.h.b16 %v3454
    %v3527 = vunpack.c.l.b16 %v3455
    %v3528 = vunpack.c.h.b16 %v3455
    %v3529 = vunpack.c.l.b16 %v3456
    %v3530 = vunpack.c.h.b16 %v3456
    %v3531 = vunpack.c.l.b16 %v3457
    %v3532 = vunpack.c.h.b16 %v3457
    %v3533 = vunpack.c.l.b16 %v3458
    %v3534 = vunpack.c.h.b16 %v3458
    %v3535 = vunpack.c.l.b16 %v3459
    %v3536 = vunpack.c.h.b16 %v3459
    %v3537 = vunpack.c.l.b16 %v3460
    %v3538 = vunpack.c.h.b16 %v3460
    %v3539 = vunpack.c.l.b16 %v3461
    %v3540 = vunpack.c.h.b16 %v3461
    %v3541 = vunpack.c.l.b16 %v3462
    %v3542 = vunpack.c.h.b16 %v3462
    %v3543 = vunpack.c.l.b16 %v3463
    %v3544 = vunpack.c.h.b16 %v3463
    %v3545 = vunpack.c.l.b16 %v3464
    %v3546 = vunpack.c.h.b16 %v3464
    %v3547 = vunpack.c.l.b16 %v3465
    %v3548 = vunpack.c.h.b16 %v3465
    %v3549 = vunpack.c.l.b16 %v3466
    %v3550 = vunpack.c.h.b16 %v3466
    %v3551 = vunpack.c.l.b16 %v3467
    %v3552 = vunpack.c.h.b16 %v3467
    %v3553 = vunpack.c.l.b16 %v3468
    %v3554 = vunpack.c.h.b16 %v3468
    %v3555 = vunpack.c.l.b16 %v3469
    %v3556 = vunpack.c.h.b16 %v3469
    %v3557 = vunpack.c.l.b16 %v3470
    %v3558 = vunpack.c.h.b16 %v3470
    %v3559 = vunpack.c.l.b16 %v3471
    %v3560 = vunpack.c.h.b16 %v3471
    %v3561 = vunpack.c.l.b16 %v3472
    %v3562 = vunpack.c.h.b16 %v3472
    %v3563 = vunpack.c.l.b16 %v3473
    %v3564 = vunpack.c.h.b16 %v3473
    %v3565 = vunpack.c.l.b16 %v3474
    %v3566 = vunpack.c.h.b16 %v3474
    %v3567 = vunpack.c.l.b16 %v3475
    %v3568 = vunpack.c.h.b16 %v3475
    %v3569 = vunpack.c.l.b16 %v3476
    %v3570 = vunpack.c.h.b16 %v3476
    %v3571 = vunpack.c.l.b16 %v3477
    %v3572 = vunpack.c.h.b16 %v3477
    %v3573 = vunpack.c.l.b16 %v3478
    %v3574 = vunpack.c.h.b16 %v3478
    %v3575 = vpack.c.b16 %v3513, %v3511
    %v3576 = vpack.c.b16 %v3514, %v3512
    %v3577 = vpack.c.b16 %v3517, %v3515
    %v3578 = vpack.c.b16 %v3518, %v3516
    %v3579 = vpack.c.b16 %v3521, %v3519
    %v3580 = vpack.c.b16 %v3522, %v3520
    %v3581 = vpack.c.b16 %v3525, %v3523
    %v3582 = vpack.c.b16 %v3526, %v3524
    %v3583 = vpack.c.b16 %v3529, %v3527
    %v3584 = vpack.c.b16 %v3530, %v3528
    %v3585 = vpack.c.b16 %v3533, %v3531
    %v3586 = vpack.c.b16 %v3534, %v3532
    %v3587 = vpack.c.b16 %v3537, %v3535
    %v3588 = vpack.c.b16 %v3538, %v3536
    %v3589 = vpack.c.b16 %v3541, %v3539
    %v3590 = vpack.c.b16 %v3542, %v3540
    %v3591 = vpack.c.b16 %v3545, %v3543
    %v3592 = vpack.c.b16 %v3546, %v3544
    %v3593 = vpack.c.b16 %v3549, %v3547
    %v3594 = vpack.c.b16 %v3550, %v3548
    %v3595 = vpack.c.b16 %v3553, %v3551
    %v3596 = vpack.c.b16 %v3554, %v3552
    %v3597 = vpack.c.b16 %v3557, %v3555
    %v3598 = vpack.c.b16 %v3558, %v3556
    %v3599 = vpack.c.b16 %v3561, %v3559
    %v3600 = vpack.c.b16 %v3562, %v3560
    %v3601 = vpack.c.b16 %v3565, %v3563
    %v3602 = vpack.c.b16 %v3566, %v3564
    %v3603 = vpack.c.b16 %v3569, %v3567
    %v3604 = vpack.c.b16 %v3570, %v3568
    %v3605 = vpack.c.b16 %v3573, %v3571
    %v3606 = vpack.c.b16 %v3574, %v3572
    %3639 = vmatprep.subr.bf16.mxu0 %v3576
    %3640 = vmatpush1.bf16.msra.mxu0 %v3575
    %3641 = vmatprep.subr.bf16.mxu0 %v3578
    %3642 = vmatpush1.bf16.msra.mxu0 %v3577
    %3643 = vmatprep.subr.bf16.mxu0 %v3580
    %3644 = vmatpush1.bf16.msra.mxu0 %v3579
    %3645 = vmatprep.subr.bf16.mxu0 %v3582
    %3646 = vmatpush1.bf16.msra.mxu0 %v3581
    %3647 = vmatprep.subr.bf16.mxu0 %v3584
    %3648 = vmatpush1.bf16.msra.mxu0 %v3583
    %3649 = vmatprep.subr.bf16.mxu0 %v3586
    %3650 = vmatpush1.bf16.msra.mxu0 %v3585
    %3651 = vmatprep.subr.bf16.mxu0 %v3588
    %3652 = vmatpush1.bf16.msra.mxu0 %v3587
    %3653 = vmatprep.subr.bf16.mxu0 %v3590
    %3654 = vmatpush1.bf16.msra.mxu0 %v3589
    %3655 = vmatprep.subr.bf16.mxu0 %v3592
    %3656 = vmatpush1.bf16.msra.mxu0 %v3591
    %3657 = vmatprep.subr.bf16.mxu0 %v3594
    %3658 = vmatpush1.bf16.msra.mxu0 %v3593
    %3659 = vmatprep.subr.bf16.mxu0 %v3596
    %3660 = vmatpush1.bf16.msra.mxu0 %v3595
    %3661 = vmatprep.subr.bf16.mxu0 %v3598
    %3662 = vmatpush1.bf16.msra.mxu0 %v3597
    %3663 = vmatprep.subr.bf16.mxu0 %v3600
    %3664 = vmatpush1.bf16.msra.mxu0 %v3599
    %3665 = vmatprep.subr.bf16.mxu0 %v3602
    %3666 = vmatpush1.bf16.msra.mxu0 %v3601
    %3667 = vmatprep.subr.bf16.mxu0 %v3604
    %3668 = vmatpush1.bf16.msra.mxu0 %v3603
    %3669 = vmatprep.subr.bf16.mxu0 %v3606
    %3670 = vmatpush1.bf16.msra.mxu0 %v3605
    %3671 = vmatprep.mubr.bf16.mxu0 %v3446
    %3672 = vmatmul.mubr.bf16.gmra.mrb[0].mxu0 %v3445
    %v3673 = vpop.f32.mrb[0].mxu0
    %v3674 = vadd.f32 0.0, %v3673
    %v3675 = vpop.f32.mrb[0].mxu0
    %v3676 = vadd.f32 0.0, %v3675
    %v3677 = vpop.f32.mrb[0].mxu0
    %v3678 = vpop.f32.mrb[0].mxu0
    %3679 = vdwg.mxu0
    %v3680 = vld [vmem:[#allocation2] sm:$0xff]
    %v3681 = vld [vmem:[#allocation2 + $0x8] sm:$0xff]
    %v3682 = vadd.f32 %v3680, %v3674
    %v3683 = vadd.f32 %v3681, %v3676
    %3684 = vst [vmem:[#allocation2] sm:$0xff] %v3682
    %3685 = vst [vmem:[#allocation2 + $0x8] sm:$0xff] %v3683
    %v3686 = vld [vmem:[#allocation6 + $0x1a] sm:$0x3]
    %v3687 = vld [vmem:[#allocation8 + $0x1a] sm:$0x3]
    %3688 = vset.pattern.permute.xlu0 13
    %3689 = vperm.xlu0 %3688, %v113
    %v3690 = vpop.permute.xlu0 %3689
    %v3693 = vlaneseq
    %v3694 = vshrl.u32 %v3693, 7
    %v3695 = vsub.s32 0, %v3694
    %v3696 = vrot.slane %v3686, %v3695
    %v3697 = vlaneseq
    %v3698 = vshrl.u32 %v3697, 7
    %v3699 = vsub.s32 1, %v3698
    %v3700 = vrot.slane %v3686, %v3699
    %v3703 = vmul.f32 %v3690, %v3696
    %v3704 = vmul.f32 %v3690, %v3700
    %v3706 = vlaneseq
    %v3707 = vshrl.u32 %v3706, 7
    %v3708 = vsub.s32 0, %v3707
    %v3709 = vrot.slane %v3687, %v3708
    %v3710 = vlaneseq
    %v3711 = vshrl.u32 %v3710, 7
    %v3712 = vsub.s32 1, %v3711
    %v3713 = vrot.slane %v3687, %v3712
    %v3716 = vadd.f32 %v3703, %v3709
    %v3717 = vadd.f32 %v3704, %v3713
    %v3718 = vmax.f32 %v3716, 0.0
    %v3719 = vmax.f32 %v3717, 0.0
    %v3720 = vpack.c.bf16 %v3718, %v3718
    %v3721 = vpack.c.bf16 %v3719, %v3719
    %v3722 = vld [vmem:[#allocation9 + $0xd00] sm:$0xff]
    %v3723 = vld [vmem:[#allocation9 + $0xd08] sm:$0xff]
    %v3724 = vld [vmem:[#allocation9 + $0xd10] sm:$0xff]
    %v3725 = vld [vmem:[#allocation9 + $0xd18] sm:$0xff]
    %v3726 = vld [vmem:[#allocation9 + $0xd20] sm:$0xff]
    %v3727 = vld [vmem:[#allocation9 + $0xd28] sm:$0xff]
    %v3728 = vld [vmem:[#allocation9 + $0xd30] sm:$0xff]
    %v3729 = vld [vmem:[#allocation9 + $0xd38] sm:$0xff]
    %v3730 = vld [vmem:[#allocation9 + $0xd40] sm:$0xff]
    %v3731 = vld [vmem:[#allocation9 + $0xd48] sm:$0xff]
    %v3732 = vld [vmem:[#allocation9 + $0xd50] sm:$0xff]
    %v3733 = vld [vmem:[#allocation9 + $0xd58] sm:$0xff]
    %v3734 = vld [vmem:[#allocation9 + $0xd60] sm:$0xff]
    %v3735 = vld [vmem:[#allocation9 + $0xd68] sm:$0xff]
    %v3736 = vld [vmem:[#allocation9 + $0xd70] sm:$0xff]
    %v3737 = vld [vmem:[#allocation9 + $0xd78] sm:$0xff]
    %v3738 = vld [vmem:[#allocation9 + $0xd80] sm:$0xff]
    %v3739 = vld [vmem:[#allocation9 + $0xd88] sm:$0xff]
    %v3740 = vld [vmem:[#allocation9 + $0xd90] sm:$0xff]
    %v3741 = vld [vmem:[#allocation9 + $0xd98] sm:$0xff]
    %v3742 = vld [vmem:[#allocation9 + $0xda0] sm:$0xff]
    %v3743 = vld [vmem:[#allocation9 + $0xda8] sm:$0xff]
    %v3744 = vld [vmem:[#allocation9 + $0xdb0] sm:$0xff]
    %v3745 = vld [vmem:[#allocation9 + $0xdb8] sm:$0xff]
    %v3746 = vld [vmem:[#allocation9 + $0xdc0] sm:$0xff]
    %v3747 = vld [vmem:[#allocation9 + $0xdc8] sm:$0xff]
    %v3748 = vld [vmem:[#allocation9 + $0xdd0] sm:$0xff]
    %v3749 = vld [vmem:[#allocation9 + $0xdd8] sm:$0xff]
    %v3750 = vld [vmem:[#allocation9 + $0xde0] sm:$0xff]
    %v3751 = vld [vmem:[#allocation9 + $0xde8] sm:$0xff]
    %v3752 = vld [vmem:[#allocation9 + $0xdf0] sm:$0xff]
    %v3753 = vld [vmem:[#allocation9 + $0xdf8] sm:$0xff]
    %v3786 = vunpack.c.l.b16 %v3722
    %v3787 = vunpack.c.h.b16 %v3722
    %v3788 = vunpack.c.l.b16 %v3723
    %v3789 = vunpack.c.h.b16 %v3723
    %v3790 = vunpack.c.l.b16 %v3724
    %v3791 = vunpack.c.h.b16 %v3724
    %v3792 = vunpack.c.l.b16 %v3725
    %v3793 = vunpack.c.h.b16 %v3725
    %v3794 = vunpack.c.l.b16 %v3726
    %v3795 = vunpack.c.h.b16 %v3726
    %v3796 = vunpack.c.l.b16 %v3727
    %v3797 = vunpack.c.h.b16 %v3727
    %v3798 = vunpack.c.l.b16 %v3728
    %v3799 = vunpack.c.h.b16 %v3728
    %v3800 = vunpack.c.l.b16 %v3729
    %v3801 = vunpack.c.h.b16 %v3729
    %v3802 = vunpack.c.l.b16 %v3730
    %v3803 = vunpack.c.h.b16 %v3730
    %v3804 = vunpack.c.l.b16 %v3731
    %v3805 = vunpack.c.h.b16 %v3731
    %v3806 = vunpack.c.l.b16 %v3732
    %v3807 = vunpack.c.h.b16 %v3732
    %v3808 = vunpack.c.l.b16 %v3733
    %v3809 = vunpack.c.h.b16 %v3733
    %v3810 = vunpack.c.l.b16 %v3734
    %v3811 = vunpack.c.h.b16 %v3734
    %v3812 = vunpack.c.l.b16 %v3735
    %v3813 = vunpack.c.h.b16 %v3735
    %v3814 = vunpack.c.l.b16 %v3736
    %v3815 = vunpack.c.h.b16 %v3736
    %v3816 = vunpack.c.l.b16 %v3737
    %v3817 = vunpack.c.h.b16 %v3737
    %v3818 = vunpack.c.l.b16 %v3738
    %v3819 = vunpack.c.h.b16 %v3738
    %v3820 = vunpack.c.l.b16 %v3739
    %v3821 = vunpack.c.h.b16 %v3739
    %v3822 = vunpack.c.l.b16 %v3740
    %v3823 = vunpack.c.h.b16 %v3740
    %v3824 = vunpack.c.l.b16 %v3741
    %v3825 = vunpack.c.h.b16 %v3741
    %v3826 = vunpack.c.l.b16 %v3742
    %v3827 = vunpack.c.h.b16 %v3742
    %v3828 = vunpack.c.l.b16 %v3743
    %v3829 = vunpack.c.h.b16 %v3743
    %v3830 = vunpack.c.l.b16 %v3744
    %v3831 = vunpack.c.h.b16 %v3744
    %v3832 = vunpack.c.l.b16 %v3745
    %v3833 = vunpack.c.h.b16 %v3745
    %v3834 = vunpack.c.l.b16 %v3746
    %v3835 = vunpack.c.h.b16 %v3746
    %v3836 = vunpack.c.l.b16 %v3747
    %v3837 = vunpack.c.h.b16 %v3747
    %v3838 = vunpack.c.l.b16 %v3748
    %v3839 = vunpack.c.h.b16 %v3748
    %v3840 = vunpack.c.l.b16 %v3749
    %v3841 = vunpack.c.h.b16 %v3749
    %v3842 = vunpack.c.l.b16 %v3750
    %v3843 = vunpack.c.h.b16 %v3750
    %v3844 = vunpack.c.l.b16 %v3751
    %v3845 = vunpack.c.h.b16 %v3751
    %v3846 = vunpack.c.l.b16 %v3752
    %v3847 = vunpack.c.h.b16 %v3752
    %v3848 = vunpack.c.l.b16 %v3753
    %v3849 = vunpack.c.h.b16 %v3753
    %v3850 = vpack.c.b16 %v3788, %v3786
    %v3851 = vpack.c.b16 %v3789, %v3787
    %v3852 = vpack.c.b16 %v3792, %v3790
    %v3853 = vpack.c.b16 %v3793, %v3791
    %v3854 = vpack.c.b16 %v3796, %v3794
    %v3855 = vpack.c.b16 %v3797, %v3795
    %v3856 = vpack.c.b16 %v3800, %v3798
    %v3857 = vpack.c.b16 %v3801, %v3799
    %v3858 = vpack.c.b16 %v3804, %v3802
    %v3859 = vpack.c.b16 %v3805, %v3803
    %v3860 = vpack.c.b16 %v3808, %v3806
    %v3861 = vpack.c.b16 %v3809, %v3807
    %v3862 = vpack.c.b16 %v3812, %v3810
    %v3863 = vpack.c.b16 %v3813, %v3811
    %v3864 = vpack.c.b16 %v3816, %v3814
    %v3865 = vpack.c.b16 %v3817, %v3815
    %v3866 = vpack.c.b16 %v3820, %v3818
    %v3867 = vpack.c.b16 %v3821, %v3819
    %v3868 = vpack.c.b16 %v3824, %v3822
    %v3869 = vpack.c.b16 %v3825, %v3823
    %v3870 = vpack.c.b16 %v3828, %v3826
    %v3871 = vpack.c.b16 %v3829, %v3827
    %v3872 = vpack.c.b16 %v3832, %v3830
    %v3873 = vpack.c.b16 %v3833, %v3831
    %v3874 = vpack.c.b16 %v3836, %v3834
    %v3875 = vpack.c.b16 %v3837, %v3835
    %v3876 = vpack.c.b16 %v3840, %v3838
    %v3877 = vpack.c.b16 %v3841, %v3839
    %v3878 = vpack.c.b16 %v3844, %v3842
    %v3879 = vpack.c.b16 %v3845, %v3843
    %v3880 = vpack.c.b16 %v3848, %v3846
    %v3881 = vpack.c.b16 %v3849, %v3847
    %3914 = vmatprep.subr.bf16.mxu0 %v3851
    %3915 = vmatpush1.bf16.msra.mxu0 %v3850
    %3916 = vmatprep.subr.bf16.mxu0 %v3853
    %3917 = vmatpush1.bf16.msra.mxu0 %v3852
    %3918 = vmatprep.subr.bf16.mxu0 %v3855
    %3919 = vmatpush1.bf16.msra.mxu0 %v3854
    %3920 = vmatprep.subr.bf16.mxu0 %v3857
    %3921 = vmatpush1.bf16.msra.mxu0 %v3856
    %3922 = vmatprep.subr.bf16.mxu0 %v3859
    %3923 = vmatpush1.bf16.msra.mxu0 %v3858
    %3924 = vmatprep.subr.bf16.mxu0 %v3861
    %3925 = vmatpush1.bf16.msra.mxu0 %v3860
    %3926 = vmatprep.subr.bf16.mxu0 %v3863
    %3927 = vmatpush1.bf16.msra.mxu0 %v3862
    %3928 = vmatprep.subr.bf16.mxu0 %v3865
    %3929 = vmatpush1.bf16.msra.mxu0 %v3864
    %3930 = vmatprep.subr.bf16.mxu0 %v3867
    %3931 = vmatpush1.bf16.msra.mxu0 %v3866
    %3932 = vmatprep.subr.bf16.mxu0 %v3869
    %3933 = vmatpush1.bf16.msra.mxu0 %v3868
    %3934 = vmatprep.subr.bf16.mxu0 %v3871
    %3935 = vmatpush1.bf16.msra.mxu0 %v3870
    %3936 = vmatprep.subr.bf16.mxu0 %v3873
    %3937 = vmatpush1.bf16.msra.mxu0 %v3872
    %3938 = vmatprep.subr.bf16.mxu0 %v3875
    %3939 = vmatpush1.bf16.msra.mxu0 %v3874
    %3940 = vmatprep.subr.bf16.mxu0 %v3877
    %3941 = vmatpush1.bf16.msra.mxu0 %v3876
    %3942 = vmatprep.subr.bf16.mxu0 %v3879
    %3943 = vmatpush1.bf16.msra.mxu0 %v3878
    %3944 = vmatprep.subr.bf16.mxu0 %v3881
    %3945 = vmatpush1.bf16.msra.mxu0 %v3880
    %3946 = vmatprep.mubr.bf16.mxu0 %v3721
    %3947 = vmatmul.mubr.bf16.gmra.mrb[0].mxu0 %v3720
    %v3948 = vpop.f32.mrb[0].mxu0
    %v3949 = vadd.f32 0.0, %v3948
    %v3950 = vpop.f32.mrb[0].mxu0
    %v3951 = vadd.f32 0.0, %v3950
    %v3952 = vpop.f32.mrb[0].mxu0
    %v3953 = vpop.f32.mrb[0].mxu0
    %3954 = vdwg.mxu0
    %v3955 = vld [vmem:[#allocation2] sm:$0xff]
    %v3956 = vld [vmem:[#allocation2 + $0x8] sm:$0xff]
    %v3957 = vadd.f32 %v3955, %v3949
    %v3958 = vadd.f32 %v3956, %v3951
    %3959 = vst [vmem:[#allocation2] sm:$0xff] %v3957
    %3960 = vst [vmem:[#allocation2 + $0x8] sm:$0xff] %v3958
    %v3961 = vld [vmem:[#allocation6 + $0x1c] sm:$0x3]
    %v3962 = vld [vmem:[#allocation8 + $0x1c] sm:$0x3]
    %3963 = vset.pattern.permute.xlu0 14
    %3964 = vperm.xlu0 %3963, %v113
    %v3965 = vpop.permute.xlu0 %3964
    %v3968 = vlaneseq
    %v3969 = vshrl.u32 %v3968, 7
    %v3970 = vsub.s32 0, %v3969
    %v3971 = vrot.slane %v3961, %v3970
    %v3972 = vlaneseq
    %v3973 = vshrl.u32 %v3972, 7
    %v3974 = vsub.s32 1, %v3973
    %v3975 = vrot.slane %v3961, %v3974
    %v3978 = vmul.f32 %v3965, %v3971
    %v3979 = vmul.f32 %v3965, %v3975
    %v3981 = vlaneseq
    %v3982 = vshrl.u32 %v3981, 7
    %v3983 = vsub.s32 0, %v3982
    %v3984 = vrot.slane %v3962, %v3983
    %v3985 = vlaneseq
    %v3986 = vshrl.u32 %v3985, 7
    %v3987 = vsub.s32 1, %v3986
    %v3988 = vrot.slane %v3962, %v3987
    %v3991 = vadd.f32 %v3978, %v3984
    %v3992 = vadd.f32 %v3979, %v3988
    %v3993 = vmax.f32 %v3991, 0.0
    %v3994 = vmax.f32 %v3992, 0.0
    %v3995 = vpack.c.bf16 %v3993, %v3993
    %v3996 = vpack.c.bf16 %v3994, %v3994
    %v3997 = vld [vmem:[#allocation9 + $0xe00] sm:$0xff]
    %v3998 = vld [vmem:[#allocation9 + $0xe08] sm:$0xff]
    %v3999 = vld [vmem:[#allocation9 + $0xe10] sm:$0xff]
    %v4000 = vld [vmem:[#allocation9 + $0xe18] sm:$0xff]
    %v4001 = vld [vmem:[#allocation9 + $0xe20] sm:$0xff]
    %v4002 = vld [vmem:[#allocation9 + $0xe28] sm:$0xff]
    %v4003 = vld [vmem:[#allocation9 + $0xe30] sm:$0xff]
    %v4004 = vld [vmem:[#allocation9 + $0xe38] sm:$0xff]
    %v4005 = vld [vmem:[#allocation9 + $0xe40] sm:$0xff]
    %v4006 = vld [vmem:[#allocation9 + $0xe48] sm:$0xff]
    %v4007 = vld [vmem:[#allocation9 + $0xe50] sm:$0xff]
    %v4008 = vld [vmem:[#allocation9 + $0xe58] sm:$0xff]
    %v4009 = vld [vmem:[#allocation9 + $0xe60] sm:$0xff]
    %v4010 = vld [vmem:[#allocation9 + $0xe68] sm:$0xff]
    %v4011 = vld [vmem:[#allocation9 + $0xe70] sm:$0xff]
    %v4012 = vld [vmem:[#allocation9 + $0xe78] sm:$0xff]
    %v4013 = vld [vmem:[#allocation9 + $0xe80] sm:$0xff]
    %v4014 = vld [vmem:[#allocation9 + $0xe88] sm:$0xff]
    %v4015 = vld [vmem:[#allocation9 + $0xe90] sm:$0xff]
    %v4016 = vld [vmem:[#allocation9 + $0xe98] sm:$0xff]
    %v4017 = vld [vmem:[#allocation9 + $0xea0] sm:$0xff]
    %v4018 = vld [vmem:[#allocation9 + $0xea8] sm:$0xff]
    %v4019 = vld [vmem:[#allocation9 + $0xeb0] sm:$0xff]
    %v4020 = vld [vmem:[#allocation9 + $0xeb8] sm:$0xff]
    %v4021 = vld [vmem:[#allocation9 + $0xec0] sm:$0xff]
    %v4022 = vld [vmem:[#allocation9 + $0xec8] sm:$0xff]
    %v4023 = vld [vmem:[#allocation9 + $0xed0] sm:$0xff]
    %v4024 = vld [vmem:[#allocation9 + $0xed8] sm:$0xff]
    %v4025 = vld [vmem:[#allocation9 + $0xee0] sm:$0xff]
    %v4026 = vld [vmem:[#allocation9 + $0xee8] sm:$0xff]
    %v4027 = vld [vmem:[#allocation9 + $0xef0] sm:$0xff]
    %v4028 = vld [vmem:[#allocation9 + $0xef8] sm:$0xff]
    %v4061 = vunpack.c.l.b16 %v3997
    %v4062 = vunpack.c.h.b16 %v3997
    %v4063 = vunpack.c.l.b16 %v3998
    %v4064 = vunpack.c.h.b16 %v3998
    %v4065 = vunpack.c.l.b16 %v3999
    %v4066 = vunpack.c.h.b16 %v3999
    %v4067 = vunpack.c.l.b16 %v4000
    %v4068 = vunpack.c.h.b16 %v4000
    %v4069 = vunpack.c.l.b16 %v4001
    %v4070 = vunpack.c.h.b16 %v4001
    %v4071 = vunpack.c.l.b16 %v4002
    %v4072 = vunpack.c.h.b16 %v4002
    %v4073 = vunpack.c.l.b16 %v4003
    %v4074 = vunpack.c.h.b16 %v4003
    %v4075 = vunpack.c.l.b16 %v4004
    %v4076 = vunpack.c.h.b16 %v4004
    %v4077 = vunpack.c.l.b16 %v4005
    %v4078 = vunpack.c.h.b16 %v4005
    %v4079 = vunpack.c.l.b16 %v4006
    %v4080 = vunpack.c.h.b16 %v4006
    %v4081 = vunpack.c.l.b16 %v4007
    %v4082 = vunpack.c.h.b16 %v4007
    %v4083 = vunpack.c.l.b16 %v4008
    %v4084 = vunpack.c.h.b16 %v4008
    %v4085 = vunpack.c.l.b16 %v4009
    %v4086 = vunpack.c.h.b16 %v4009
    %v4087 = vunpack.c.l.b16 %v4010
    %v4088 = vunpack.c.h.b16 %v4010
    %v4089 = vunpack.c.l.b16 %v4011
    %v4090 = vunpack.c.h.b16 %v4011
    %v4091 = vunpack.c.l.b16 %v4012
    %v4092 = vunpack.c.h.b16 %v4012
    %v4093 = vunpack.c.l.b16 %v4013
    %v4094 = vunpack.c.h.b16 %v4013
    %v4095 = vunpack.c.l.b16 %v4014
    %v4096 = vunpack.c.h.b16 %v4014
    %v4097 = vunpack.c.l.b16 %v4015
    %v4098 = vunpack.c.h.b16 %v4015
    %v4099 = vunpack.c.l.b16 %v4016
    %v4100 = vunpack.c.h.b16 %v4016
    %v4101 = vunpack.c.l.b16 %v4017
    %v4102 = vunpack.c.h.b16 %v4017
    %v4103 = vunpack.c.l.b16 %v4018
    %v4104 = vunpack.c.h.b16 %v4018
    %v4105 = vunpack.c.l.b16 %v4019
    %v4106 = vunpack.c.h.b16 %v4019
    %v4107 = vunpack.c.l.b16 %v4020
    %v4108 = vunpack.c.h.b16 %v4020
    %v4109 = vunpack.c.l.b16 %v4021
    %v4110 = vunpack.c.h.b16 %v4021
    %v4111 = vunpack.c.l.b16 %v4022
    %v4112 = vunpack.c.h.b16 %v4022
    %v4113 = vunpack.c.l.b16 %v4023
    %v4114 = vunpack.c.h.b16 %v4023
    %v4115 = vunpack.c.l.b16 %v4024
    %v4116 = vunpack.c.h.b16 %v4024
    %v4117 = vunpack.c.l.b16 %v4025
    %v4118 = vunpack.c.h.b16 %v4025
    %v4119 = vunpack.c.l.b16 %v4026
    %v4120 = vunpack.c.h.b16 %v4026
    %v4121 = vunpack.c.l.b16 %v4027
    %v4122 = vunpack.c.h.b16 %v4027
    %v4123 = vunpack.c.l.b16 %v4028
    %v4124 = vunpack.c.h.b16 %v4028
    %v4125 = vpack.c.b16 %v4063, %v4061
    %v4126 = vpack.c.b16 %v4064, %v4062
    %v4127 = vpack.c.b16 %v4067, %v4065
    %v4128 = vpack.c.b16 %v4068, %v4066
    %v4129 = vpack.c.b16 %v4071, %v4069
    %v4130 = vpack.c.b16 %v4072, %v4070
    %v4131 = vpack.c.b16 %v4075, %v4073
    %v4132 = vpack.c.b16 %v4076, %v4074
    %v4133 = vpack.c.b16 %v4079, %v4077
    %v4134 = vpack.c.b16 %v4080, %v4078
    %v4135 = vpack.c.b16 %v4083, %v4081
    %v4136 = vpack.c.b16 %v4084, %v4082
    %v4137 = vpack.c.b16 %v4087, %v4085
    %v4138 = vpack.c.b16 %v4088, %v4086
    %v4139 = vpack.c.b16 %v4091, %v4089
    %v4140 = vpack.c.b16 %v4092, %v4090
    %v4141 = vpack.c.b16 %v4095, %v4093
    %v4142 = vpack.c.b16 %v4096, %v4094
    %v4143 = vpack.c.b16 %v4099, %v4097
    %v4144 = vpack.c.b16 %v4100, %v4098
    %v4145 = vpack.c.b16 %v4103, %v4101
    %v4146 = vpack.c.b16 %v4104, %v4102
    %v4147 = vpack.c.b16 %v4107, %v4105
    %v4148 = vpack.c.b16 %v4108, %v4106
    %v4149 = vpack.c.b16 %v4111, %v4109
    %v4150 = vpack.c.b16 %v4112, %v4110
    %v4151 = vpack.c.b16 %v4115, %v4113
    %v4152 = vpack.c.b16 %v4116, %v4114
    %v4153 = vpack.c.b16 %v4119, %v4117
    %v4154 = vpack.c.b16 %v4120, %v4118
    %v4155 = vpack.c.b16 %v4123, %v4121
    %v4156 = vpack.c.b16 %v4124, %v4122
    %4189 = vmatprep.subr.bf16.mxu0 %v4126
    %4190 = vmatpush1.bf16.msra.mxu0 %v4125
    %4191 = vmatprep.subr.bf16.mxu0 %v4128
    %4192 = vmatpush1.bf16.msra.mxu0 %v4127
    %4193 = vmatprep.subr.bf16.mxu0 %v4130
    %4194 = vmatpush1.bf16.msra.mxu0 %v4129
    %4195 = vmatprep.subr.bf16.mxu0 %v4132
    %4196 = vmatpush1.bf16.msra.mxu0 %v4131
    %4197 = vmatprep.subr.bf16.mxu0 %v4134
    %4198 = vmatpush1.bf16.msra.mxu0 %v4133
    %4199 = vmatprep.subr.bf16.mxu0 %v4136
    %4200 = vmatpush1.bf16.msra.mxu0 %v4135
    %4201 = vmatprep.subr.bf16.mxu0 %v4138
    %4202 = vmatpush1.bf16.msra.mxu0 %v4137
    %4203 = vmatprep.subr.bf16.mxu0 %v4140
    %4204 = vmatpush1.bf16.msra.mxu0 %v4139
    %4205 = vmatprep.subr.bf16.mxu0 %v4142
    %4206 = vmatpush1.bf16.msra.mxu0 %v4141
    %4207 = vmatprep.subr.bf16.mxu0 %v4144
    %4208 = vmatpush1.bf16.msra.mxu0 %v4143
    %4209 = vmatprep.subr.bf16.mxu0 %v4146
    %4210 = vmatpush1.bf16.msra.mxu0 %v4145
    %4211 = vmatprep.subr.bf16.mxu0 %v4148
    %4212 = vmatpush1.bf16.msra.mxu0 %v4147
    %4213 = vmatprep.subr.bf16.mxu0 %v4150
    %4214 = vmatpush1.bf16.msra.mxu0 %v4149
    %4215 = vmatprep.subr.bf16.mxu0 %v4152
    %4216 = vmatpush1.bf16.msra.mxu0 %v4151
    %4217 = vmatprep.subr.bf16.mxu0 %v4154
    %4218 = vmatpush1.bf16.msra.mxu0 %v4153
    %4219 = vmatprep.subr.bf16.mxu0 %v4156
    %4220 = vmatpush1.bf16.msra.mxu0 %v4155
    %4221 = vmatprep.mubr.bf16.mxu0 %v3996
    %4222 = vmatmul.mubr.bf16.gmra.mrb[0].mxu0 %v3995
    %v4223 = vpop.f32.mrb[0].mxu0
    %v4224 = vadd.f32 0.0, %v4223
    %v4225 = vpop.f32.mrb[0].mxu0
    %v4226 = vadd.f32 0.0, %v4225
    %v4227 = vpop.f32.mrb[0].mxu0
    %v4228 = vpop.f32.mrb[0].mxu0
    %4229 = vdwg.mxu0
    %v4230 = vld [vmem:[#allocation2] sm:$0xff]
    %v4231 = vld [vmem:[#allocation2 + $0x8] sm:$0xff]
    %v4232 = vadd.f32 %v4230, %v4224
    %v4233 = vadd.f32 %v4231, %v4226
    %4234 = vst [vmem:[#allocation2] sm:$0xff] %v4232
    %4235 = vst [vmem:[#allocation2 + $0x8] sm:$0xff] %v4233
    %v4236 = vld [vmem:[#allocation6 + $0x1e] sm:$0x3]
    %v4237 = vld [vmem:[#allocation8 + $0x1e] sm:$0x3]
    %4238 = vset.pattern.permute.xlu0 15
    %4239 = vperm.xlu0 %4238, %v113
    %v4240 = vpop.permute.xlu0 %4239
    %v4243 = vlaneseq
    %v4244 = vshrl.u32 %v4243, 7
    %v4245 = vsub.s32 0, %v4244
    %v4246 = vrot.slane %v4236, %v4245
    %v4247 = vlaneseq
    %v4248 = vshrl.u32 %v4247, 7
    %v4249 = vsub.s32 1, %v4248
    %v4250 = vrot.slane %v4236, %v4249
    %v4253 = vmul.f32 %v4240, %v4246
    %v4254 = vmul.f32 %v4240, %v4250
    %v4256 = vlaneseq
    %v4257 = vshrl.u32 %v4256, 7
    %v4258 = vsub.s32 0, %v4257
    %v4259 = vrot.slane %v4237, %v4258
    %v4260 = vlaneseq
    %v4261 = vshrl.u32 %v4260, 7
    %v4262 = vsub.s32 1, %v4261
    %v4263 = vrot.slane %v4237, %v4262
    %v4266 = vadd.f32 %v4253, %v4259
    %v4267 = vadd.f32 %v4254, %v4263
    %v4268 = vmax.f32 %v4266, 0.0
    %v4269 = vmax.f32 %v4267, 0.0
    %v4270 = vpack.c.bf16 %v4268, %v4268
    %v4271 = vpack.c.bf16 %v4269, %v4269
    %v4272 = vld [vmem:[#allocation9 + $0xf00] sm:$0xff]
    %v4273 = vld [vmem:[#allocation9 + $0xf08] sm:$0xff]
    %v4274 = vld [vmem:[#allocation9 + $0xf10] sm:$0xff]
    %v4275 = vld [vmem:[#allocation9 + $0xf18] sm:$0xff]
    %v4276 = vld [vmem:[#allocation9 + $0xf20] sm:$0xff]
    %v4277 = vld [vmem:[#allocation9 + $0xf28] sm:$0xff]
    %v4278 = vld [vmem:[#allocation9 + $0xf30] sm:$0xff]
    %v4279 = vld [vmem:[#allocation9 + $0xf38] sm:$0xff]
    %v4280 = vld [vmem:[#allocation9 + $0xf40] sm:$0xff]
    %v4281 = vld [vmem:[#allocation9 + $0xf48] sm:$0xff]
    %v4282 = vld [vmem:[#allocation9 + $0xf50] sm:$0xff]
    %v4283 = vld [vmem:[#allocation9 + $0xf58] sm:$0xff]
    %v4284 = vld [vmem:[#allocation9 + $0xf60] sm:$0xff]
    %v4285 = vld [vmem:[#allocation9 + $0xf68] sm:$0xff]
    %v4286 = vld [vmem:[#allocation9 + $0xf70] sm:$0xff]
    %v4287 = vld [vmem:[#allocation9 + $0xf78] sm:$0xff]
    %v4288 = vld [vmem:[#allocation9 + $0xf80] sm:$0xff]
    %v4289 = vld [vmem:[#allocation9 + $0xf88] sm:$0xff]
    %v4290 = vld [vmem:[#allocation9 + $0xf90] sm:$0xff]
    %v4291 = vld [vmem:[#allocation9 + $0xf98] sm:$0xff]
    %v4292 = vld [vmem:[#allocation9 + $0xfa0] sm:$0xff]
    %v4293 = vld [vmem:[#allocation9 + $0xfa8] sm:$0xff]
    %v4294 = vld [vmem:[#allocation9 + $0xfb0] sm:$0xff]
    %v4295 = vld [vmem:[#allocation9 + $0xfb8] sm:$0xff]
    %v4296 = vld [vmem:[#allocation9 + $0xfc0] sm:$0xff]
    %v4297 = vld [vmem:[#allocation9 + $0xfc8] sm:$0xff]
    %v4298 = vld [vmem:[#allocation9 + $0xfd0] sm:$0xff]
    %v4299 = vld [vmem:[#allocation9 + $0xfd8] sm:$0xff]
    %v4300 = vld [vmem:[#allocation9 + $0xfe0] sm:$0xff]
    %v4301 = vld [vmem:[#allocation9 + $0xfe8] sm:$0xff]
    %v4302 = vld [vmem:[#allocation9 + $0xff0] sm:$0xff]
    %v4303 = vld [vmem:[#allocation9 + $0xff8] sm:$0xff]
    %v4336 = vunpack.c.l.b16 %v4272
    %v4337 = vunpack.c.h.b16 %v4272
    %v4338 = vunpack.c.l.b16 %v4273
    %v4339 = vunpack.c.h.b16 %v4273
    %v4340 = vunpack.c.l.b16 %v4274
    %v4341 = vunpack.c.h.b16 %v4274
    %v4342 = vunpack.c.l.b16 %v4275
    %v4343 = vunpack.c.h.b16 %v4275
    %v4344 = vunpack.c.l.b16 %v4276
    %v4345 = vunpack.c.h.b16 %v4276
    %v4346 = vunpack.c.l.b16 %v4277
    %v4347 = vunpack.c.h.b16 %v4277
    %v4348 = vunpack.c.l.b16 %v4278
    %v4349 = vunpack.c.h.b16 %v4278
    %v4350 = vunpack.c.l.b16 %v4279
    %v4351 = vunpack.c.h.b16 %v4279
    %v4352 = vunpack.c.l.b16 %v4280
    %v4353 = vunpack.c.h.b16 %v4280
    %v4354 = vunpack.c.l.b16 %v4281
    %v4355 = vunpack.c.h.b16 %v4281
    %v4356 = vunpack.c.l.b16 %v4282
    %v4357 = vunpack.c.h.b16 %v4282
    %v4358 = vunpack.c.l.b16 %v4283
    %v4359 = vunpack.c.h.b16 %v4283
    %v4360 = vunpack.c.l.b16 %v4284
    %v4361 = vunpack.c.h.b16 %v4284
    %v4362 = vunpack.c.l.b16 %v4285
    %v4363 = vunpack.c.h.b16 %v4285
    %v4364 = vunpack.c.l.b16 %v4286
    %v4365 = vunpack.c.h.b16 %v4286
    %v4366 = vunpack.c.l.b16 %v4287
    %v4367 = vunpack.c.h.b16 %v4287
    %v4368 = vunpack.c.l.b16 %v4288
    %v4369 = vunpack.c.h.b16 %v4288
    %v4370 = vunpack.c.l.b16 %v4289
    %v4371 = vunpack.c.h.b16 %v4289
    %v4372 = vunpack.c.l.b16 %v4290
    %v4373 = vunpack.c.h.b16 %v4290
    %v4374 = vunpack.c.l.b16 %v4291
    %v4375 = vunpack.c.h.b16 %v4291
    %v4376 = vunpack.c.l.b16 %v4292
    %v4377 = vunpack.c.h.b16 %v4292
    %v4378 = vunpack.c.l.b16 %v4293
    %v4379 = vunpack.c.h.b16 %v4293
    %v4380 = vunpack.c.l.b16 %v4294
    %v4381 = vunpack.c.h.b16 %v4294
    %v4382 = vunpack.c.l.b16 %v4295
    %v4383 = vunpack.c.h.b16 %v4295
    %v4384 = vunpack.c.l.b16 %v4296
    %v4385 = vunpack.c.h.b16 %v4296
    %v4386 = vunpack.c.l.b16 %v4297
    %v4387 = vunpack.c.h.b16 %v4297
    %v4388 = vunpack.c.l.b16 %v4298
    %v4389 = vunpack.c.h.b16 %v4298
    %v4390 = vunpack.c.l.b16 %v4299
    %v4391 = vunpack.c.h.b16 %v4299
    %v4392 = vunpack.c.l.b16 %v4300
    %v4393 = vunpack.c.h.b16 %v4300
    %v4394 = vunpack.c.l.b16 %v4301
    %v4395 = vunpack.c.h.b16 %v4301
    %v4396 = vunpack.c.l.b16 %v4302
    %v4397 = vunpack.c.h.b16 %v4302
    %v4398 = vunpack.c.l.b16 %v4303
    %v4399 = vunpack.c.h.b16 %v4303
    %v4400 = vpack.c.b16 %v4338, %v4336
    %v4401 = vpack.c.b16 %v4339, %v4337
    %v4402 = vpack.c.b16 %v4342, %v4340
    %v4403 = vpack.c.b16 %v4343, %v4341
    %v4404 = vpack.c.b16 %v4346, %v4344
    %v4405 = vpack.c.b16 %v4347, %v4345
    %v4406 = vpack.c.b16 %v4350, %v4348
    %v4407 = vpack.c.b16 %v4351, %v4349
    %v4408 = vpack.c.b16 %v4354, %v4352
    %v4409 = vpack.c.b16 %v4355, %v4353
    %v4410 = vpack.c.b16 %v4358, %v4356
    %v4411 = vpack.c.b16 %v4359, %v4357
    %v4412 = vpack.c.b16 %v4362, %v4360
    %v4413 = vpack.c.b16 %v4363, %v4361
    %v4414 = vpack.c.b16 %v4366, %v4364
    %v4415 = vpack.c.b16 %v4367, %v4365
    %v4416 = vpack.c.b16 %v4370, %v4368
    %v4417 = vpack.c.b16 %v4371, %v4369
    %v4418 = vpack.c.b16 %v4374, %v4372
    %v4419 = vpack.c.b16 %v4375, %v4373
    %v4420 = vpack.c.b16 %v4378, %v4376
    %v4421 = vpack.c.b16 %v4379, %v4377
    %v4422 = vpack.c.b16 %v4382, %v4380
    %v4423 = vpack.c.b16 %v4383, %v4381
    %v4424 = vpack.c.b16 %v4386, %v4384
    %v4425 = vpack.c.b16 %v4387, %v4385
    %v4426 = vpack.c.b16 %v4390, %v4388
    %v4427 = vpack.c.b16 %v4391, %v4389
    %v4428 = vpack.c.b16 %v4394, %v4392
    %v4429 = vpack.c.b16 %v4395, %v4393
    %v4430 = vpack.c.b16 %v4398, %v4396
    %v4431 = vpack.c.b16 %v4399, %v4397
    %4464 = vmatprep.subr.bf16.mxu0 %v4401
    %4465 = vmatpush1.bf16.msra.mxu0 %v4400
    %4466 = vmatprep.subr.bf16.mxu0 %v4403
    %4467 = vmatpush1.bf16.msra.mxu0 %v4402
    %4468 = vmatprep.subr.bf16.mxu0 %v4405
    %4469 = vmatpush1.bf16.msra.mxu0 %v4404
    %4470 = vmatprep.subr.bf16.mxu0 %v4407
    %4471 = vmatpush1.bf16.msra.mxu0 %v4406
    %4472 = vmatprep.subr.bf16.mxu0 %v4409
    %4473 = vmatpush1.bf16.msra.mxu0 %v4408
    %4474 = vmatprep.subr.bf16.mxu0 %v4411
    %4475 = vmatpush1.bf16.msra.mxu0 %v4410
    %4476 = vmatprep.subr.bf16.mxu0 %v4413
    %4477 = vmatpush1.bf16.msra.mxu0 %v4412
    %4478 = vmatprep.subr.bf16.mxu0 %v4415
    %4479 = vmatpush1.bf16.msra.mxu0 %v4414
    %4480 = vmatprep.subr.bf16.mxu0 %v4417
    %4481 = vmatpush1.bf16.msra.mxu0 %v4416
    %4482 = vmatprep.subr.bf16.mxu0 %v4419
    %4483 = vmatpush1.bf16.msra.mxu0 %v4418
    %4484 = vmatprep.subr.bf16.mxu0 %v4421
    %4485 = vmatpush1.bf16.msra.mxu0 %v4420
    %4486 = vmatprep.subr.bf16.mxu0 %v4423
    %4487 = vmatpush1.bf16.msra.mxu0 %v4422
    %4488 = vmatprep.subr.bf16.mxu0 %v4425
    %4489 = vmatpush1.bf16.msra.mxu0 %v4424
    %4490 = vmatprep.subr.bf16.mxu0 %v4427
    %4491 = vmatpush1.bf16.msra.mxu0 %v4426
    %4492 = vmatprep.subr.bf16.mxu0 %v4429
    %4493 = vmatpush1.bf16.msra.mxu0 %v4428
    %4494 = vmatprep.subr.bf16.mxu0 %v4431
    %4495 = vmatpush1.bf16.msra.mxu0 %v4430
    %4496 = vmatprep.mubr.bf16.mxu0 %v4271
    %4497 = vmatmul.mubr.bf16.gmra.mrb[0].mxu0 %v4270
    %v4498 = vpop.f32.mrb[0].mxu0
    %v4499 = vadd.f32 0.0, %v4498
    %v4500 = vpop.f32.mrb[0].mxu0
    %v4501 = vadd.f32 0.0, %v4500
    %v4502 = vpop.f32.mrb[0].mxu0
    %v4503 = vpop.f32.mrb[0].mxu0
    %4504 = vdwg.mxu0
    %v4505 = vld [vmem:[#allocation2] sm:$0xff]
    %v4506 = vld [vmem:[#allocation2 + $0x8] sm:$0xff]
    %v4507 = vadd.f32 %v4505, %v4499
    %v4508 = vadd.f32 %v4506, %v4501
    %4509 = vst [vmem:[#allocation2] sm:$0xff] %v4507
    %4510 = vst [vmem:[#allocation2 + $0x8] sm:$0xff] %v4508
    %v4511 = vld [vmem:[#allocation6 + $0x20] sm:$0x3]
    %v4512 = vld [vmem:[#allocation8 + $0x20] sm:$0x3]
    %4513 = vset.pattern.permute.xlu0 16
    %4514 = vperm.xlu0 %4513, %v113
    %v4515 = vpop.permute.xlu0 %4514
    %v4518 = vlaneseq
    %v4519 = vshrl.u32 %v4518, 7
    %v4520 = vsub.s32 0, %v4519
    %v4521 = vrot.slane %v4511, %v4520
    %v4522 = vlaneseq
    %v4523 = vshrl.u32 %v4522, 7
    %v4524 = vsub.s32 1, %v4523
    %v4525 = vrot.slane %v4511, %v4524
    %v4528 = vmul.f32 %v4515, %v4521
    %v4529 = vmul.f32 %v4515, %v4525
    %v4531 = vlaneseq
    %v4532 = vshrl.u32 %v4531, 7
    %v4533 = vsub.s32 0, %v4532
    %v4534 = vrot.slane %v4512, %v4533
    %v4535 = vlaneseq
    %v4536 = vshrl.u32 %v4535, 7
    %v4537 = vsub.s32 1, %v4536
    %v4538 = vrot.slane %v4512, %v4537
    %v4541 = vadd.f32 %v4528, %v4534
    %v4542 = vadd.f32 %v4529, %v4538
    %v4543 = vmax.f32 %v4541, 0.0
    %v4544 = vmax.f32 %v4542, 0.0
    %v4545 = vpack.c.bf16 %v4543, %v4543
    %v4546 = vpack.c.bf16 %v4544, %v4544
    %v4547 = vld [vmem:[#allocation9 + $0x1000] sm:$0xff]
    %v4548 = vld [vmem:[#allocation9 + $0x1008] sm:$0xff]
    %v4549 = vld [vmem:[#allocation9 + $0x1010] sm:$0xff]
    %v4550 = vld [vmem:[#allocation9 + $0x1018] sm:$0xff]
    %v4551 = vld [vmem:[#allocation9 + $0x1020] sm:$0xff]
    %v4552 = vld [vmem:[#allocation9 + $0x1028] sm:$0xff]
    %v4553 = vld [vmem:[#allocation9 + $0x1030] sm:$0xff]
    %v4554 = vld [vmem:[#allocation9 + $0x1038] sm:$0xff]
    %v4555 = vld [vmem:[#allocation9 + $0x1040] sm:$0xff]
    %v4556 = vld [vmem:[#allocation9 + $0x1048] sm:$0xff]
    %v4557 = vld [vmem:[#allocation9 + $0x1050] sm:$0xff]
    %v4558 = vld [vmem:[#allocation9 + $0x1058] sm:$0xff]
    %v4559 = vld [vmem:[#allocation9 + $0x1060] sm:$0xff]
    %v4560 = vld [vmem:[#allocation9 + $0x1068] sm:$0xff]
    %v4561 = vld [vmem:[#allocation9 + $0x1070] sm:$0xff]
    %v4562 = vld [vmem:[#allocation9 + $0x1078] sm:$0xff]
    %v4563 = vld [vmem:[#allocation9 + $0x1080] sm:$0xff]
    %v4564 = vld [vmem:[#allocation9 + $0x1088] sm:$0xff]
    %v4565 = vld [vmem:[#allocation9 + $0x1090] sm:$0xff]
    %v4566 = vld [vmem:[#allocation9 + $0x1098] sm:$0xff]
    %v4567 = vld [vmem:[#allocation9 + $0x10a0] sm:$0xff]
    %v4568 = vld [vmem:[#allocation9 + $0x10a8] sm:$0xff]
    %v4569 = vld [vmem:[#allocation9 + $0x10b0] sm:$0xff]
    %v4570 = vld [vmem:[#allocation9 + $0x10b8] sm:$0xff]
    %v4571 = vld [vmem:[#allocation9 + $0x10c0] sm:$0xff]
    %v4572 = vld [vmem:[#allocation9 + $0x10c8] sm:$0xff]
    %v4573 = vld [vmem:[#allocation9 + $0x10d0] sm:$0xff]
    %v4574 = vld [vmem:[#allocation9 + $0x10d8] sm:$0xff]
    %v4575 = vld [vmem:[#allocation9 + $0x10e0] sm:$0xff]
    %v4576 = vld [vmem:[#allocation9 + $0x10e8] sm:$0xff]
    %v4577 = vld [vmem:[#allocation9 + $0x10f0] sm:$0xff]
    %v4578 = vld [vmem:[#allocation9 + $0x10f8] sm:$0xff]
    %v4611 = vunpack.c.l.b16 %v4547
    %v4612 = vunpack.c.h.b16 %v4547
    %v4613 = vunpack.c.l.b16 %v4548
    %v4614 = vunpack.c.h.b16 %v4548
    %v4615 = vunpack.c.l.b16 %v4549
    %v4616 = vunpack.c.h.b16 %v4549
    %v4617 = vunpack.c.l.b16 %v4550
    %v4618 = vunpack.c.h.b16 %v4550
    %v4619 = vunpack.c.l.b16 %v4551
    %v4620 = vunpack.c.h.b16 %v4551
    %v4621 = vunpack.c.l.b16 %v4552
    %v4622 = vunpack.c.h.b16 %v4552
    %v4623 = vunpack.c.l.b16 %v4553
    %v4624 = vunpack.c.h.b16 %v4553
    %v4625 = vunpack.c.l.b16 %v4554
    %v4626 = vunpack.c.h.b16 %v4554
    %v4627 = vunpack.c.l.b16 %v4555
    %v4628 = vunpack.c.h.b16 %v4555
    %v4629 = vunpack.c.l.b16 %v4556
    %v4630 = vunpack.c.h.b16 %v4556
    %v4631 = vunpack.c.l.b16 %v4557
    %v4632 = vunpack.c.h.b16 %v4557
    %v4633 = vunpack.c.l.b16 %v4558
    %v4634 = vunpack.c.h.b16 %v4558
    %v4635 = vunpack.c.l.b16 %v4559
    %v4636 = vunpack.c.h.b16 %v4559
    %v4637 = vunpack.c.l.b16 %v4560
    %v4638 = vunpack.c.h.b16 %v4560
    %v4639 = vunpack.c.l.b16 %v4561
    %v4640 = vunpack.c.h.b16 %v4561
    %v4641 = vunpack.c.l.b16 %v4562
    %v4642 = vunpack.c.h.b16 %v4562
    %v4643 = vunpack.c.l.b16 %v4563
    %v4644 = vunpack.c.h.b16 %v4563
    %v4645 = vunpack.c.l.b16 %v4564
    %v4646 = vunpack.c.h.b16 %v4564
    %v4647 = vunpack.c.l.b16 %v4565
    %v4648 = vunpack.c.h.b16 %v4565
    %v4649 = vunpack.c.l.b16 %v4566
    %v4650 = vunpack.c.h.b16 %v4566
    %v4651 = vunpack.c.l.b16 %v4567
    %v4652 = vunpack.c.h.b16 %v4567
    %v4653 = vunpack.c.l.b16 %v4568
    %v4654 = vunpack.c.h.b16 %v4568
    %v4655 = vunpack.c.l.b16 %v4569
    %v4656 = vunpack.c.h.b16 %v4569
    %v4657 = vunpack.c.l.b16 %v4570
    %v4658 = vunpack.c.h.b16 %v4570
    %v4659 = vunpack.c.l.b16 %v4571
    %v4660 = vunpack.c.h.b16 %v4571
    %v4661 = vunpack.c.l.b16 %v4572
    %v4662 = vunpack.c.h.b16 %v4572
    %v4663 = vunpack.c.l.b16 %v4573
    %v4664 = vunpack.c.h.b16 %v4573
    %v4665 = vunpack.c.l.b16 %v4574
    %v4666 = vunpack.c.h.b16 %v4574
    %v4667 = vunpack.c.l.b16 %v4575
    %v4668 = vunpack.c.h.b16 %v4575
    %v4669 = vunpack.c.l.b16 %v4576
    %v4670 = vunpack.c.h.b16 %v4576
    %v4671 = vunpack.c.l.b16 %v4577
    %v4672 = vunpack.c.h.b16 %v4577
    %v4673 = vunpack.c.l.b16 %v4578
    %v4674 = vunpack.c.h.b16 %v4578
    %v4675 = vpack.c.b16 %v4613, %v4611
    %v4676 = vpack.c.b16 %v4614, %v4612
    %v4677 = vpack.c.b16 %v4617, %v4615
    %v4678 = vpack.c.b16 %v4618, %v4616
    %v4679 = vpack.c.b16 %v4621, %v4619
    %v4680 = vpack.c.b16 %v4622, %v4620
    %v4681 = vpack.c.b16 %v4625, %v4623
    %v4682 = vpack.c.b16 %v4626, %v4624
    %v4683 = vpack.c.b16 %v4629, %v4627
    %v4684 = vpack.c.b16 %v4630, %v4628
    %v4685 = vpack.c.b16 %v4633, %v4631
    %v4686 = vpack.c.b16 %v4634, %v4632
    %v4687 = vpack.c.b16 %v4637, %v4635
    %v4688 = vpack.c.b16 %v4638, %v4636
    %v4689 = vpack.c.b16 %v4641, %v4639
    %v4690 = vpack.c.b16 %v4642, %v4640
    %v4691 = vpack.c.b16 %v4645, %v4643
    %v4692 = vpack.c.b16 %v4646, %v4644
    %v4693 = vpack.c.b16 %v4649, %v4647
    %v4694 = vpack.c.b16 %v4650, %v4648
    %v4695 = vpack.c.b16 %v4653, %v4651
    %v4696 = vpack.c.b16 %v4654, %v4652
    %v4697 = vpack.c.b16 %v4657, %v4655
    %v4698 = vpack.c.b16 %v4658, %v4656
    %v4699 = vpack.c.b16 %v4661, %v4659
    %v4700 = vpack.c.b16 %v4662, %v4660
    %v4701 = vpack.c.b16 %v4665, %v4663
    %v4702 = vpack.c.b16 %v4666, %v4664
    %v4703 = vpack.c.b16 %v4669, %v4667
    %v4704 = vpack.c.b16 %v4670, %v4668
    %v4705 = vpack.c.b16 %v4673, %v4671
    %v4706 = vpack.c.b16 %v4674, %v4672
    %4739 = vmatprep.subr.bf16.mxu0 %v4676
    %4740 = vmatpush1.bf16.msra.mxu0 %v4675
    %4741 = vmatprep.subr.bf16.mxu0 %v4678
    %4742 = vmatpush1.bf16.msra.mxu0 %v4677
    %4743 = vmatprep.subr.bf16.mxu0 %v4680
    %4744 = vmatpush1.bf16.msra.mxu0 %v4679
    %4745 = vmatprep.subr.bf16.mxu0 %v4682
    %4746 = vmatpush1.bf16.msra.mxu0 %v4681
    %4747 = vmatprep.subr.bf16.mxu0 %v4684
    %4748 = vmatpush1.bf16.msra.mxu0 %v4683
    %4749 = vmatprep.subr.bf16.mxu0 %v4686
    %4750 = vmatpush1.bf16.msra.mxu0 %v4685
    %4751 = vmatprep.subr.bf16.mxu0 %v4688
    %4752 = vmatpush1.bf16.msra.mxu0 %v4687
    %4753 = vmatprep.subr.bf16.mxu0 %v4690
    %4754 = vmatpush1.bf16.msra.mxu0 %v4689
    %4755 = vmatprep.subr.bf16.mxu0 %v4692
    %4756 = vmatpush1.bf16.msra.mxu0 %v4691
    %4757 = vmatprep.subr.bf16.mxu0 %v4694
    %4758 = vmatpush1.bf16.msra.mxu0 %v4693
    %4759 = vmatprep.subr.bf16.mxu0 %v4696
    %4760 = vmatpush1.bf16.msra.mxu0 %v4695
    %4761 = vmatprep.subr.bf16.mxu0 %v4698
    %4762 = vmatpush1.bf16.msra.mxu0 %v4697
    %4763 = vmatprep.subr.bf16.mxu0 %v4700
    %4764 = vmatpush1.bf16.msra.mxu0 %v4699
    %4765 = vmatprep.subr.bf16.mxu0 %v4702
    %4766 = vmatpush1.bf16.msra.mxu0 %v4701
    %4767 = vmatprep.subr.bf16.mxu0 %v4704
    %4768 = vmatpush1.bf16.msra.mxu0 %v4703
    %4769 = vmatprep.subr.bf16.mxu0 %v4706
    %4770 = vmatpush1.bf16.msra.mxu0 %v4705
    %4771 = vmatprep.mubr.bf16.mxu0 %v4546
    %4772 = vmatmul.mubr.bf16.gmra.mrb[0].mxu0 %v4545
    %v4773 = vpop.f32.mrb[0].mxu0
    %v4774 = vadd.f32 0.0, %v4773
    %v4775 = vpop.f32.mrb[0].mxu0
    %v4776 = vadd.f32 0.0, %v4775
    %v4777 = vpop.f32.mrb[0].mxu0
    %v4778 = vpop.f32.mrb[0].mxu0
    %4779 = vdwg.mxu0
    %v4780 = vld [vmem:[#allocation2] sm:$0xff]
    %v4781 = vld [vmem:[#allocation2 + $0x8] sm:$0xff]
    %v4782 = vadd.f32 %v4780, %v4774
    %v4783 = vadd.f32 %v4781, %v4776
    %4784 = vst [vmem:[#allocation2] sm:$0xff] %v4782
    %4785 = vst [vmem:[#allocation2 + $0x8] sm:$0xff] %v4783
    %v4786 = vld [vmem:[#allocation6 + $0x22] sm:$0x3]
    %v4787 = vld [vmem:[#allocation8 + $0x22] sm:$0x3]
    %4788 = vset.pattern.permute.xlu0 17
    %4789 = vperm.xlu0 %4788, %v113
    %v4790 = vpop.permute.xlu0 %4789
    %v4793 = vlaneseq
    %v4794 = vshrl.u32 %v4793, 7
    %v4795 = vsub.s32 0, %v4794
    %v4796 = vrot.slane %v4786, %v4795
    %v4797 = vlaneseq
    %v4798 = vshrl.u32 %v4797, 7
    %v4799 = vsub.s32 1, %v4798
    %v4800 = vrot.slane %v4786, %v4799
    %v4803 = vmul.f32 %v4790, %v4796
    %v4804 = vmul.f32 %v4790, %v4800
    %v4806 = vlaneseq
    %v4807 = vshrl.u32 %v4806, 7
    %v4808 = vsub.s32 0, %v4807
    %v4809 = vrot.slane %v4787, %v4808
    %v4810 = vlaneseq
    %v4811 = vshrl.u32 %v4810, 7
    %v4812 = vsub.s32 1, %v4811
    %v4813 = vrot.slane %v4787, %v4812
    %v4816 = vadd.f32 %v4803, %v4809
    %v4817 = vadd.f32 %v4804, %v4813
    %v4818 = vmax.f32 %v4816, 0.0
    %v4819 = vmax.f32 %v4817, 0.0
    %v4820 = vpack.c.bf16 %v4818, %v4818
    %v4821 = vpack.c.bf16 %v4819, %v4819
    %v4822 = vld [vmem:[#allocation9 + $0x1100] sm:$0xff]
    %v4823 = vld [vmem:[#allocation9 + $0x1108] sm:$0xff]
    %v4824 = vld [vmem:[#allocation9 + $0x1110] sm:$0xff]
    %v4825 = vld [vmem:[#allocation9 + $0x1118] sm:$0xff]
    %v4826 = vld [vmem:[#allocation9 + $0x1120] sm:$0xff]
    %v4827 = vld [vmem:[#allocation9 + $0x1128] sm:$0xff]
    %v4828 = vld [vmem:[#allocation9 + $0x1130] sm:$0xff]
    %v4829 = vld [vmem:[#allocation9 + $0x1138] sm:$0xff]
    %v4830 = vld [vmem:[#allocation9 + $0x1140] sm:$0xff]
    %v4831 = vld [vmem:[#allocation9 + $0x1148] sm:$0xff]
    %v4832 = vld [vmem:[#allocation9 + $0x1150] sm:$0xff]
    %v4833 = vld [vmem:[#allocation9 + $0x1158] sm:$0xff]
    %v4834 = vld [vmem:[#allocation9 + $0x1160] sm:$0xff]
    %v4835 = vld [vmem:[#allocation9 + $0x1168] sm:$0xff]
    %v4836 = vld [vmem:[#allocation9 + $0x1170] sm:$0xff]
    %v4837 = vld [vmem:[#allocation9 + $0x1178] sm:$0xff]
    %v4838 = vld [vmem:[#allocation9 + $0x1180] sm:$0xff]
    %v4839 = vld [vmem:[#allocation9 + $0x1188] sm:$0xff]
    %v4840 = vld [vmem:[#allocation9 + $0x1190] sm:$0xff]
    %v4841 = vld [vmem:[#allocation9 + $0x1198] sm:$0xff]
    %v4842 = vld [vmem:[#allocation9 + $0x11a0] sm:$0xff]
    %v4843 = vld [vmem:[#allocation9 + $0x11a8] sm:$0xff]
    %v4844 = vld [vmem:[#allocation9 + $0x11b0] sm:$0xff]
    %v4845 = vld [vmem:[#allocation9 + $0x11b8] sm:$0xff]
    %v4846 = vld [vmem:[#allocation9 + $0x11c0] sm:$0xff]
    %v4847 = vld [vmem:[#allocation9 + $0x11c8] sm:$0xff]
    %v4848 = vld [vmem:[#allocation9 + $0x11d0] sm:$0xff]
    %v4849 = vld [vmem:[#allocation9 + $0x11d8] sm:$0xff]
    %v4850 = vld [vmem:[#allocation9 + $0x11e0] sm:$0xff]
    %v4851 = vld [vmem:[#allocation9 + $0x11e8] sm:$0xff]
    %v4852 = vld [vmem:[#allocation9 + $0x11f0] sm:$0xff]
    %v4853 = vld [vmem:[#allocation9 + $0x11f8] sm:$0xff]
    %v4886 = vunpack.c.l.b16 %v4822
    %v4887 = vunpack.c.h.b16 %v4822
    %v4888 = vunpack.c.l.b16 %v4823
    %v4889 = vunpack.c.h.b16 %v4823
    %v4890 = vunpack.c.l.b16 %v4824
    %v4891 = vunpack.c.h.b16 %v4824
    %v4892 = vunpack.c.l.b16 %v4825
    %v4893 = vunpack.c.h.b16 %v4825
    %v4894 = vunpack.c.l.b16 %v4826
    %v4895 = vunpack.c.h.b16 %v4826
    %v4896 = vunpack.c.l.b16 %v4827
    %v4897 = vunpack.c.h.b16 %v4827
    %v4898 = vunpack.c.l.b16 %v4828
    %v4899 = vunpack.c.h.b16 %v4828
    %v4900 = vunpack.c.l.b16 %v4829
    %v4901 = vunpack.c.h.b16 %v4829
    %v4902 = vunpack.c.l.b16 %v4830
    %v4903 = vunpack.c.h.b16 %v4830
    %v4904 = vunpack.c.l.b16 %v4831
    %v4905 = vunpack.c.h.b16 %v4831
    %v4906 = vunpack.c.l.b16 %v4832
    %v4907 = vunpack.c.h.b16 %v4832
    %v4908 = vunpack.c.l.b16 %v4833
    %v4909 = vunpack.c.h.b16 %v4833
    %v4910 = vunpack.c.l.b16 %v4834
    %v4911 = vunpack.c.h.b16 %v4834
    %v4912 = vunpack.c.l.b16 %v4835
    %v4913 = vunpack.c.h.b16 %v4835
    %v4914 = vunpack.c.l.b16 %v4836
    %v4915 = vunpack.c.h.b16 %v4836
    %v4916 = vunpack.c.l.b16 %v4837
    %v4917 = vunpack.c.h.b16 %v4837
    %v4918 = vunpack.c.l.b16 %v4838
    %v4919 = vunpack.c.h.b16 %v4838
    %v4920 = vunpack.c.l.b16 %v4839
    %v4921 = vunpack.c.h.b16 %v4839
    %v4922 = vunpack.c.l.b16 %v4840
    %v4923 = vunpack.c.h.b16 %v4840
    %v4924 = vunpack.c.l.b16 %v4841
    %v4925 = vunpack.c.h.b16 %v4841
    %v4926 = vunpack.c.l.b16 %v4842
    %v4927 = vunpack.c.h.b16 %v4842
    %v4928 = vunpack.c.l.b16 %v4843
    %v4929 = vunpack.c.h.b16 %v4843
    %v4930 = vunpack.c.l.b16 %v4844
    %v4931 = vunpack.c.h.b16 %v4844
    %v4932 = vunpack.c.l.b16 %v4845
    %v4933 = vunpack.c.h.b16 %v4845
    %v4934 = vunpack.c.l.b16 %v4846
    %v4935 = vunpack.c.h.b16 %v4846
    %v4936 = vunpack.c.l.b16 %v4847
    %v4937 = vunpack.c.h.b16 %v4847
    %v4938 = vunpack.c.l.b16 %v4848
    %v4939 = vunpack.c.h.b16 %v4848
    %v4940 = vunpack.c.l.b16 %v4849
    %v4941 = vunpack.c.h.b16 %v4849
    %v4942 = vunpack.c.l.b16 %v4850
    %v4943 = vunpack.c.h.b16 %v4850
    %v4944 = vunpack.c.l.b16 %v4851
    %v4945 = vunpack.c.h.b16 %v4851
    %v4946 = vunpack.c.l.b16 %v4852
    %v4947 = vunpack.c.h.b16 %v4852
    %v4948 = vunpack.c.l.b16 %v4853
    %v4949 = vunpack.c.h.b16 %v4853
    %v4950 = vpack.c.b16 %v4888, %v4886
    %v4951 = vpack.c.b16 %v4889, %v4887
    %v4952 = vpack.c.b16 %v4892, %v4890
    %v4953 = vpack.c.b16 %v4893, %v4891
    %v4954 = vpack.c.b16 %v4896, %v4894
    %v4955 = vpack.c.b16 %v4897, %v4895
    %v4956 = vpack.c.b16 %v4900, %v4898
    %v4957 = vpack.c.b16 %v4901, %v4899
    %v4958 = vpack.c.b16 %v4904, %v4902
    %v4959 = vpack.c.b16 %v4905, %v4903
    %v4960 = vpack.c.b16 %v4908, %v4906
    %v4961 = vpack.c.b16 %v4909, %v4907
    %v4962 = vpack.c.b16 %v4912, %v4910
    %v4963 = vpack.c.b16 %v4913, %v4911
    %v4964 = vpack.c.b16 %v4916, %v4914
    %v4965 = vpack.c.b16 %v4917, %v4915
    %v4966 = vpack.c.b16 %v4920, %v4918
    %v4967 = vpack.c.b16 %v4921, %v4919
    %v4968 = vpack.c.b16 %v4924, %v4922
    %v4969 = vpack.c.b16 %v4925, %v4923
    %v4970 = vpack.c.b16 %v4928, %v4926
    %v4971 = vpack.c.b16 %v4929, %v4927
    %v4972 = vpack.c.b16 %v4932, %v4930
    %v4973 = vpack.c.b16 %v4933, %v4931
    %v4974 = vpack.c.b16 %v4936, %v4934
    %v4975 = vpack.c.b16 %v4937, %v4935
    %v4976 = vpack.c.b16 %v4940, %v4938
    %v4977 = vpack.c.b16 %v4941, %v4939
    %v4978 = vpack.c.b16 %v4944, %v4942
    %v4979 = vpack.c.b16 %v4945, %v4943
    %v4980 = vpack.c.b16 %v4948, %v4946
    %v4981 = vpack.c.b16 %v4949, %v4947
    %5014 = vmatprep.subr.bf16.mxu0 %v4951
    %5015 = vmatpush1.bf16.msra.mxu0 %v4950
    %5016 = vmatprep.subr.bf16.mxu0 %v4953
    %5017 = vmatpush1.bf16.msra.mxu0 %v4952
    %5018 = vmatprep.subr.bf16.mxu0 %v4955
    %5019 = vmatpush1.bf16.msra.mxu0 %v4954
    %5020 = vmatprep.subr.bf16.mxu0 %v4957
    %5021 = vmatpush1.bf16.msra.mxu0 %v4956
    %5022 = vmatprep.subr.bf16.mxu0 %v4959
    %5023 = vmatpush1.bf16.msra.mxu0 %v4958
    %5024 = vmatprep.subr.bf16.mxu0 %v4961
    %5025 = vmatpush1.bf16.msra.mxu0 %v4960
    %5026 = vmatprep.subr.bf16.mxu0 %v4963
    %5027 = vmatpush1.bf16.msra.mxu0 %v4962
    %5028 = vmatprep.subr.bf16.mxu0 %v4965
    %5029 = vmatpush1.bf16.msra.mxu0 %v4964
    %5030 = vmatprep.subr.bf16.mxu0 %v4967
    %5031 = vmatpush1.bf16.msra.mxu0 %v4966
    %5032 = vmatprep.subr.bf16.mxu0 %v4969
    %5033 = vmatpush1.bf16.msra.mxu0 %v4968
    %5034 = vmatprep.subr.bf16.mxu0 %v4971
    %5035 = vmatpush1.bf16.msra.mxu0 %v4970
    %5036 = vmatprep.subr.bf16.mxu0 %v4973
    %5037 = vmatpush1.bf16.msra.mxu0 %v4972
    %5038 = vmatprep.subr.bf16.mxu0 %v4975
    %5039 = vmatpush1.bf16.msra.mxu0 %v4974
    %5040 = vmatprep.subr.bf16.mxu0 %v4977
    %5041 = vmatpush1.bf16.msra.mxu0 %v4976
    %5042 = vmatprep.subr.bf16.mxu0 %v4979
    %5043 = vmatpush1.bf16.msra.mxu0 %v4978
    %5044 = vmatprep.subr.bf16.mxu0 %v4981
    %5045 = vmatpush1.bf16.msra.mxu0 %v4980
    %5046 = vmatprep.mubr.bf16.mxu0 %v4821
    %5047 = vmatmul.mubr.bf16.gmra.mrb[0].mxu0 %v4820
    %v5048 = vpop.f32.mrb[0].mxu0
    %v5049 = vadd.f32 0.0, %v5048
    %v5050 = vpop.f32.mrb[0].mxu0
    %v5051 = vadd.f32 0.0, %v5050
    %v5052 = vpop.f32.mrb[0].mxu0
    %v5053 = vpop.f32.mrb[0].mxu0
    %5054 = vdwg.mxu0
    %v5055 = vld [vmem:[#allocation2] sm:$0xff]
    %v5056 = vld [vmem:[#allocation2 + $0x8] sm:$0xff]
    %v5057 = vadd.f32 %v5055, %v5049
    %v5058 = vadd.f32 %v5056, %v5051
    %5059 = vst [vmem:[#allocation2] sm:$0xff] %v5057
    %5060 = vst [vmem:[#allocation2 + $0x8] sm:$0xff] %v5058
    %v5061 = vld [vmem:[#allocation6 + $0x24] sm:$0x3]
    %v5062 = vld [vmem:[#allocation8 + $0x24] sm:$0x3]
    %5063 = vset.pattern.permute.xlu0 18
    %5064 = vperm.xlu0 %5063, %v113
    %v5065 = vpop.permute.xlu0 %5064
    %v5068 = vlaneseq
    %v5069 = vshrl.u32 %v5068, 7
    %v5070 = vsub.s32 0, %v5069
    %v5071 = vrot.slane %v5061, %v5070
    %v5072 = vlaneseq
    %v5073 = vshrl.u32 %v5072, 7
    %v5074 = vsub.s32 1, %v5073
    %v5075 = vrot.slane %v5061, %v5074
    %v5078 = vmul.f32 %v5065, %v5071
    %v5079 = vmul.f32 %v5065, %v5075
    %v5081 = vlaneseq
    %v5082 = vshrl.u32 %v5081, 7
    %v5083 = vsub.s32 0, %v5082
    %v5084 = vrot.slane %v5062, %v5083
    %v5085 = vlaneseq
    %v5086 = vshrl.u32 %v5085, 7
    %v5087 = vsub.s32 1, %v5086
    %v5088 = vrot.slane %v5062, %v5087
    %v5091 = vadd.f32 %v5078, %v5084
    %v5092 = vadd.f32 %v5079, %v5088
    %v5093 = vmax.f32 %v5091, 0.0
    %v5094 = vmax.f32 %v5092, 0.0
    %v5095 = vpack.c.bf16 %v5093, %v5093
    %v5096 = vpack.c.bf16 %v5094, %v5094
    %v5097 = vld [vmem:[#allocation9 + $0x1200] sm:$0xff]
    %v5098 = vld [vmem:[#allocation9 + $0x1208] sm:$0xff]
    %v5099 = vld [vmem:[#allocation9 + $0x1210] sm:$0xff]
    %v5100 = vld [vmem:[#allocation9 + $0x1218] sm:$0xff]
    %v5101 = vld [vmem:[#allocation9 + $0x1220] sm:$0xff]
    %v5102 = vld [vmem:[#allocation9 + $0x1228] sm:$0xff]
    %v5103 = vld [vmem:[#allocation9 + $0x1230] sm:$0xff]
    %v5104 = vld [vmem:[#allocation9 + $0x1238] sm:$0xff]
    %v5105 = vld [vmem:[#allocation9 + $0x1240] sm:$0xff]
    %v5106 = vld [vmem:[#allocation9 + $0x1248] sm:$0xff]
    %v5107 = vld [vmem:[#allocation9 + $0x1250] sm:$0xff]
    %v5108 = vld [vmem:[#allocation9 + $0x1258] sm:$0xff]
    %v5109 = vld [vmem:[#allocation9 + $0x1260] sm:$0xff]
    %v5110 = vld [vmem:[#allocation9 + $0x1268] sm:$0xff]
    %v5111 = vld [vmem:[#allocation9 + $0x1270] sm:$0xff]
    %v5112 = vld [vmem:[#allocation9 + $0x1278] sm:$0xff]
    %v5113 = vld [vmem:[#allocation9 + $0x1280] sm:$0xff]
    %v5114 = vld [vmem:[#allocation9 + $0x1288] sm:$0xff]
    %v5115 = vld [vmem:[#allocation9 + $0x1290] sm:$0xff]
    %v5116 = vld [vmem:[#allocation9 + $0x1298] sm:$0xff]
    %v5117 = vld [vmem:[#allocation9 + $0x12a0] sm:$0xff]
    %v5118 = vld [vmem:[#allocation9 + $0x12a8] sm:$0xff]
    %v5119 = vld [vmem:[#allocation9 + $0x12b0] sm:$0xff]
    %v5120 = vld [vmem:[#allocation9 + $0x12b8] sm:$0xff]
    %v5121 = vld [vmem:[#allocation9 + $0x12c0] sm:$0xff]
    %v5122 = vld [vmem:[#allocation9 + $0x12c8] sm:$0xff]
    %v5123 = vld [vmem:[#allocation9 + $0x12d0] sm:$0xff]
    %v5124 = vld [vmem:[#allocation9 + $0x12d8] sm:$0xff]
    %v5125 = vld [vmem:[#allocation9 + $0x12e0] sm:$0xff]
    %v5126 = vld [vmem:[#allocation9 + $0x12e8] sm:$0xff]
    %v5127 = vld [vmem:[#allocation9 + $0x12f0] sm:$0xff]
    %v5128 = vld [vmem:[#allocation9 + $0x12f8] sm:$0xff]
    %v5161 = vunpack.c.l.b16 %v5097
    %v5162 = vunpack.c.h.b16 %v5097
    %v5163 = vunpack.c.l.b16 %v5098
    %v5164 = vunpack.c.h.b16 %v5098
    %v5165 = vunpack.c.l.b16 %v5099
    %v5166 = vunpack.c.h.b16 %v5099
    %v5167 = vunpack.c.l.b16 %v5100
    %v5168 = vunpack.c.h.b16 %v5100
    %v5169 = vunpack.c.l.b16 %v5101
    %v5170 = vunpack.c.h.b16 %v5101
    %v5171 = vunpack.c.l.b16 %v5102
    %v5172 = vunpack.c.h.b16 %v5102
    %v5173 = vunpack.c.l.b16 %v5103
    %v5174 = vunpack.c.h.b16 %v5103
    %v5175 = vunpack.c.l.b16 %v5104
    %v5176 = vunpack.c.h.b16 %v5104
    %v5177 = vunpack.c.l.b16 %v5105
    %v5178 = vunpack.c.h.b16 %v5105
    %v5179 = vunpack.c.l.b16 %v5106
    %v5180 = vunpack.c.h.b16 %v5106
    %v5181 = vunpack.c.l.b16 %v5107
    %v5182 = vunpack.c.h.b16 %v5107
    %v5183 = vunpack.c.l.b16 %v5108
    %v5184 = vunpack.c.h.b16 %v5108
    %v5185 = vunpack.c.l.b16 %v5109
    %v5186 = vunpack.c.h.b16 %v5109
    %v5187 = vunpack.c.l.b16 %v5110
    %v5188 = vunpack.c.h.b16 %v5110
    %v5189 = vunpack.c.l.b16 %v5111
    %v5190 = vunpack.c.h.b16 %v5111
    %v5191 = vunpack.c.l.b16 %v5112
    %v5192 = vunpack.c.h.b16 %v5112
    %v5193 = vunpack.c.l.b16 %v5113
    %v5194 = vunpack.c.h.b16 %v5113
    %v5195 = vunpack.c.l.b16 %v5114
    %v5196 = vunpack.c.h.b16 %v5114
    %v5197 = vunpack.c.l.b16 %v5115
    %v5198 = vunpack.c.h.b16 %v5115
    %v5199 = vunpack.c.l.b16 %v5116
    %v5200 = vunpack.c.h.b16 %v5116
    %v5201 = vunpack.c.l.b16 %v5117
    %v5202 = vunpack.c.h.b16 %v5117
    %v5203 = vunpack.c.l.b16 %v5118
    %v5204 = vunpack.c.h.b16 %v5118
    %v5205 = vunpack.c.l.b16 %v5119
    %v5206 = vunpack.c.h.b16 %v5119
    %v5207 = vunpack.c.l.b16 %v5120
    %v5208 = vunpack.c.h.b16 %v5120
    %v5209 = vunpack.c.l.b16 %v5121
    %v5210 = vunpack.c.h.b16 %v5121
    %v5211 = vunpack.c.l.b16 %v5122
    %v5212 = vunpack.c.h.b16 %v5122
    %v5213 = vunpack.c.l.b16 %v5123
    %v5214 = vunpack.c.h.b16 %v5123
    %v5215 = vunpack.c.l.b16 %v5124
    %v5216 = vunpack.c.h.b16 %v5124
    %v5217 = vunpack.c.l.b16 %v5125
    %v5218 = vunpack.c.h.b16 %v5125
    %v5219 = vunpack.c.l.b16 %v5126
    %v5220 = vunpack.c.h.b16 %v5126
    %v5221 = vunpack.c.l.b16 %v5127
    %v5222 = vunpack.c.h.b16 %v5127
    %v5223 = vunpack.c.l.b16 %v5128
    %v5224 = vunpack.c.h.b16 %v5128
    %v5225 = vpack.c.b16 %v5163, %v5161
    %v5226 = vpack.c.b16 %v5164, %v5162
    %v5227 = vpack.c.b16 %v5167, %v5165
    %v5228 = vpack.c.b16 %v5168, %v5166
    %v5229 = vpack.c.b16 %v5171, %v5169
    %v5230 = vpack.c.b16 %v5172, %v5170
    %v5231 = vpack.c.b16 %v5175, %v5173
    %v5232 = vpack.c.b16 %v5176, %v5174
    %v5233 = vpack.c.b16 %v5179, %v5177
    %v5234 = vpack.c.b16 %v5180, %v5178
    %v5235 = vpack.c.b16 %v5183, %v5181
    %v5236 = vpack.c.b16 %v5184, %v5182
    %v5237 = vpack.c.b16 %v5187, %v5185
    %v5238 = vpack.c.b16 %v5188, %v5186
    %v5239 = vpack.c.b16 %v5191, %v5189
    %v5240 = vpack.c.b16 %v5192, %v5190
    %v5241 = vpack.c.b16 %v5195, %v5193
    %v5242 = vpack.c.b16 %v5196, %v5194
    %v5243 = vpack.c.b16 %v5199, %v5197
    %v5244 = vpack.c.b16 %v5200, %v5198
    %v5245 = vpack.c.b16 %v5203, %v5201
    %v5246 = vpack.c.b16 %v5204, %v5202
    %v5247 = vpack.c.b16 %v5207, %v5205
    %v5248 = vpack.c.b16 %v5208, %v5206
    %v5249 = vpack.c.b16 %v5211, %v5209
    %v5250 = vpack.c.b16 %v5212, %v5210
    %v5251 = vpack.c.b16 %v5215, %v5213
    %v5252 = vpack.c.b16 %v5216, %v5214
    %v5253 = vpack.c.b16 %v5219, %v5217
    %v5254 = vpack.c.b16 %v5220, %v5218
    %v5255 = vpack.c.b16 %v5223, %v5221
    %v5256 = vpack.c.b16 %v5224, %v5222
    %5289 = vmatprep.subr.bf16.mxu0 %v5226
    %5290 = vmatpush1.bf16.msra.mxu0 %v5225
    %5291 = vmatprep.subr.bf16.mxu0 %v5228
    %5292 = vmatpush1.bf16.msra.mxu0 %v5227
    %5293 = vmatprep.subr.bf16.mxu0 %v5230
    %5294 = vmatpush1.bf16.msra.mxu0 %v5229
    %5295 = vmatprep.subr.bf16.mxu0 %v5232
    %5296 = vmatpush1.bf16.msra.mxu0 %v5231
    %5297 = vmatprep.subr.bf16.mxu0 %v5234
    %5298 = vmatpush1.bf16.msra.mxu0 %v5233
    %5299 = vmatprep.subr.bf16.mxu0 %v5236
    %5300 = vmatpush1.bf16.msra.mxu0 %v5235
    %5301 = vmatprep.subr.bf16.mxu0 %v5238
    %5302 = vmatpush1.bf16.msra.mxu0 %v5237
    %5303 = vmatprep.subr.bf16.mxu0 %v5240
    %5304 = vmatpush1.bf16.msra.mxu0 %v5239
    %5305 = vmatprep.subr.bf16.mxu0 %v5242
    %5306 = vmatpush1.bf16.msra.mxu0 %v5241
    %5307 = vmatprep.subr.bf16.mxu0 %v5244
    %5308 = vmatpush1.bf16.msra.mxu0 %v5243
    %5309 = vmatprep.subr.bf16.mxu0 %v5246
    %5310 = vmatpush1.bf16.msra.mxu0 %v5245
    %5311 = vmatprep.subr.bf16.mxu0 %v5248
    %5312 = vmatpush1.bf16.msra.mxu0 %v5247
    %5313 = vmatprep.subr.bf16.mxu0 %v5250
    %5314 = vmatpush1.bf16.msra.mxu0 %v5249
    %5315 = vmatprep.subr.bf16.mxu0 %v5252
    %5316 = vmatpush1.bf16.msra.mxu0 %v5251
    %5317 = vmatprep.subr.bf16.mxu0 %v5254
    %5318 = vmatpush1.bf16.msra.mxu0 %v5253
    %5319 = vmatprep.subr.bf16.mxu0 %v5256
    %5320 = vmatpush1.bf16.msra.mxu0 %v5255
    %5321 = vmatprep.mubr.bf16.mxu0 %v5096
    %5322 = vmatmul.mubr.bf16.gmra.mrb[0].mxu0 %v5095
    %v5323 = vpop.f32.mrb[0].mxu0
    %v5324 = vadd.f32 0.0, %v5323
    %v5325 = vpop.f32.mrb[0].mxu0
    %v5326 = vadd.f32 0.0, %v5325
    %v5327 = vpop.f32.mrb[0].mxu0
    %v5328 = vpop.f32.mrb[0].mxu0
    %5329 = vdwg.mxu0
    %v5330 = vld [vmem:[#allocation2] sm:$0xff]
    %v5331 = vld [vmem:[#allocation2 + $0x8] sm:$0xff]
    %v5332 = vadd.f32 %v5330, %v5324
    %v5333 = vadd.f32 %v5331, %v5326
    %5334 = vst [vmem:[#allocation2] sm:$0xff] %v5332
    %5335 = vst [vmem:[#allocation2 + $0x8] sm:$0xff] %v5333
    %v5336 = vld [vmem:[#allocation6 + $0x26] sm:$0x3]
    %v5337 = vld [vmem:[#allocation8 + $0x26] sm:$0x3]
    %5338 = vset.pattern.permute.xlu0 19
    %5339 = vperm.xlu0 %5338, %v113
    %v5340 = vpop.permute.xlu0 %5339
    %v5343 = vlaneseq
    %v5344 = vshrl.u32 %v5343, 7
    %v5345 = vsub.s32 0, %v5344
    %v5346 = vrot.slane %v5336, %v5345
    %v5347 = vlaneseq
    %v5348 = vshrl.u32 %v5347, 7
    %v5349 = vsub.s32 1, %v5348
    %v5350 = vrot.slane %v5336, %v5349
    %v5353 = vmul.f32 %v5340, %v5346
    %v5354 = vmul.f32 %v5340, %v5350
    %v5356 = vlaneseq
    %v5357 = vshrl.u32 %v5356, 7
    %v5358 = vsub.s32 0, %v5357
    %v5359 = vrot.slane %v5337, %v5358
    %v5360 = vlaneseq
    %v5361 = vshrl.u32 %v5360, 7
    %v5362 = vsub.s32 1, %v5361
    %v5363 = vrot.slane %v5337, %v5362
    %v5366 = vadd.f32 %v5353, %v5359
    %v5367 = vadd.f32 %v5354, %v5363
    %v5368 = vmax.f32 %v5366, 0.0
    %v5369 = vmax.f32 %v5367, 0.0
    %v5370 = vpack.c.bf16 %v5368, %v5368
    %v5371 = vpack.c.bf16 %v5369, %v5369
    %v5372 = vld [vmem:[#allocation9 + $0x1300] sm:$0xff]
    %v5373 = vld [vmem:[#allocation9 + $0x1308] sm:$0xff]
    %v5374 = vld [vmem:[#allocation9 + $0x1310] sm:$0xff]
    %v5375 = vld [vmem:[#allocation9 + $0x1318] sm:$0xff]
    %v5376 = vld [vmem:[#allocation9 + $0x1320] sm:$0xff]
    %v5377 = vld [vmem:[#allocation9 + $0x1328] sm:$0xff]
    %v5378 = vld [vmem:[#allocation9 + $0x1330] sm:$0xff]
    %v5379 = vld [vmem:[#allocation9 + $0x1338] sm:$0xff]
    %v5380 = vld [vmem:[#allocation9 + $0x1340] sm:$0xff]
    %v5381 = vld [vmem:[#allocation9 + $0x1348] sm:$0xff]
    %v5382 = vld [vmem:[#allocation9 + $0x1350] sm:$0xff]
    %v5383 = vld [vmem:[#allocation9 + $0x1358] sm:$0xff]
    %v5384 = vld [vmem:[#allocation9 + $0x1360] sm:$0xff]
    %v5385 = vld [vmem:[#allocation9 + $0x1368] sm:$0xff]
    %v5386 = vld [vmem:[#allocation9 + $0x1370] sm:$0xff]
    %v5387 = vld [vmem:[#allocation9 + $0x1378] sm:$0xff]
    %v5388 = vld [vmem:[#allocation9 + $0x1380] sm:$0xff]
    %v5389 = vld [vmem:[#allocation9 + $0x1388] sm:$0xff]
    %v5390 = vld [vmem:[#allocation9 + $0x1390] sm:$0xff]
    %v5391 = vld [vmem:[#allocation9 + $0x1398] sm:$0xff]
    %v5392 = vld [vmem:[#allocation9 + $0x13a0] sm:$0xff]
    %v5393 = vld [vmem:[#allocation9 + $0x13a8] sm:$0xff]
    %v5394 = vld [vmem:[#allocation9 + $0x13b0] sm:$0xff]
    %v5395 = vld [vmem:[#allocation9 + $0x13b8] sm:$0xff]
    %v5396 = vld [vmem:[#allocation9 + $0x13c0] sm:$0xff]
    %v5397 = vld [vmem:[#allocation9 + $0x13c8] sm:$0xff]
    %v5398 = vld [vmem:[#allocation9 + $0x13d0] sm:$0xff]
    %v5399 = vld [vmem:[#allocation9 + $0x13d8] sm:$0xff]
    %v5400 = vld [vmem:[#allocation9 + $0x13e0] sm:$0xff]
    %v5401 = vld [vmem:[#allocation9 + $0x13e8] sm:$0xff]
    %v5402 = vld [vmem:[#allocation9 + $0x13f0] sm:$0xff]
    %v5403 = vld [vmem:[#allocation9 + $0x13f8] sm:$0xff]
    %v5436 = vunpack.c.l.b16 %v5372
    %v5437 = vunpack.c.h.b16 %v5372
    %v5438 = vunpack.c.l.b16 %v5373
    %v5439 = vunpack.c.h.b16 %v5373
    %v5440 = vunpack.c.l.b16 %v5374
    %v5441 = vunpack.c.h.b16 %v5374
    %v5442 = vunpack.c.l.b16 %v5375
    %v5443 = vunpack.c.h.b16 %v5375
    %v5444 = vunpack.c.l.b16 %v5376
    %v5445 = vunpack.c.h.b16 %v5376
    %v5446 = vunpack.c.l.b16 %v5377
    %v5447 = vunpack.c.h.b16 %v5377
    %v5448 = vunpack.c.l.b16 %v5378
    %v5449 = vunpack.c.h.b16 %v5378
    %v5450 = vunpack.c.l.b16 %v5379
    %v5451 = vunpack.c.h.b16 %v5379
    %v5452 = vunpack.c.l.b16 %v5380
    %v5453 = vunpack.c.h.b16 %v5380
    %v5454 = vunpack.c.l.b16 %v5381
    %v5455 = vunpack.c.h.b16 %v5381
    %v5456 = vunpack.c.l.b16 %v5382
    %v5457 = vunpack.c.h.b16 %v5382
    %v5458 = vunpack.c.l.b16 %v5383
    %v5459 = vunpack.c.h.b16 %v5383
    %v5460 = vunpack.c.l.b16 %v5384
    %v5461 = vunpack.c.h.b16 %v5384
    %v5462 = vunpack.c.l.b16 %v5385
    %v5463 = vunpack.c.h.b16 %v5385
    %v5464 = vunpack.c.l.b16 %v5386
    %v5465 = vunpack.c.h.b16 %v5386
    %v5466 = vunpack.c.l.b16 %v5387
    %v5467 = vunpack.c.h.b16 %v5387
    %v5468 = vunpack.c.l.b16 %v5388
    %v5469 = vunpack.c.h.b16 %v5388
    %v5470 = vunpack.c.l.b16 %v5389
    %v5471 = vunpack.c.h.b16 %v5389
    %v5472 = vunpack.c.l.b16 %v5390
    %v5473 = vunpack.c.h.b16 %v5390
    %v5474 = vunpack.c.l.b16 %v5391
    %v5475 = vunpack.c.h.b16 %v5391
    %v5476 = vunpack.c.l.b16 %v5392
    %v5477 = vunpack.c.h.b16 %v5392
    %v5478 = vunpack.c.l.b16 %v5393
    %v5479 = vunpack.c.h.b16 %v5393
    %v5480 = vunpack.c.l.b16 %v5394
    %v5481 = vunpack.c.h.b16 %v5394
    %v5482 = vunpack.c.l.b16 %v5395
    %v5483 = vunpack.c.h.b16 %v5395
    %v5484 = vunpack.c.l.b16 %v5396
    %v5485 = vunpack.c.h.b16 %v5396
    %v5486 = vunpack.c.l.b16 %v5397
    %v5487 = vunpack.c.h.b16 %v5397
    %v5488 = vunpack.c.l.b16 %v5398
    %v5489 = vunpack.c.h.b16 %v5398
    %v5490 = vunpack.c.l.b16 %v5399
    %v5491 = vunpack.c.h.b16 %v5399
    %v5492 = vunpack.c.l.b16 %v5400
    %v5493 = vunpack.c.h.b16 %v5400
    %v5494 = vunpack.c.l.b16 %v5401
    %v5495 = vunpack.c.h.b16 %v5401
    %v5496 = vunpack.c.l.b16 %v5402
    %v5497 = vunpack.c.h.b16 %v5402
    %v5498 = vunpack.c.l.b16 %v5403
    %v5499 = vunpack.c.h.b16 %v5403
    %v5500 = vpack.c.b16 %v5438, %v5436
    %v5501 = vpack.c.b16 %v5439, %v5437
    %v5502 = vpack.c.b16 %v5442, %v5440
    %v5503 = vpack.c.b16 %v5443, %v5441
    %v5504 = vpack.c.b16 %v5446, %v5444
    %v5505 = vpack.c.b16 %v5447, %v5445
    %v5506 = vpack.c.b16 %v5450, %v5448
    %v5507 = vpack.c.b16 %v5451, %v5449
    %v5508 = vpack.c.b16 %v5454, %v5452
    %v5509 = vpack.c.b16 %v5455, %v5453
    %v5510 = vpack.c.b16 %v5458, %v5456
    %v5511 = vpack.c.b16 %v5459, %v5457
    %v5512 = vpack.c.b16 %v5462, %v5460
    %v5513 = vpack.c.b16 %v5463, %v5461
    %v5514 = vpack.c.b16 %v5466, %v5464
    %v5515 = vpack.c.b16 %v5467, %v5465
    %v5516 = vpack.c.b16 %v5470, %v5468
    %v5517 = vpack.c.b16 %v5471, %v5469
    %v5518 = vpack.c.b16 %v5474, %v5472
    %v5519 = vpack.c.b16 %v5475, %v5473
    %v5520 = vpack.c.b16 %v5478, %v5476
    %v5521 = vpack.c.b16 %v5479, %v5477
    %v5522 = vpack.c.b16 %v5482, %v5480
    %v5523 = vpack.c.b16 %v5483, %v5481
    %v5524 = vpack.c.b16 %v5486, %v5484
    %v5525 = vpack.c.b16 %v5487, %v5485
    %v5526 = vpack.c.b16 %v5490, %v5488
    %v5527 = vpack.c.b16 %v5491, %v5489
    %v5528 = vpack.c.b16 %v5494, %v5492
    %v5529 = vpack.c.b16 %v5495, %v5493
    %v5530 = vpack.c.b16 %v5498, %v5496
    %v5531 = vpack.c.b16 %v5499, %v5497
    %5564 = vmatprep.subr.bf16.mxu0 %v5501
    %5565 = vmatpush1.bf16.msra.mxu0 %v5500
    %5566 = vmatprep.subr.bf16.mxu0 %v5503
    %5567 = vmatpush1.bf16.msra.mxu0 %v5502
    %5568 = vmatprep.subr.bf16.mxu0 %v5505
    %5569 = vmatpush1.bf16.msra.mxu0 %v5504
    %5570 = vmatprep.subr.bf16.mxu0 %v5507
    %5571 = vmatpush1.bf16.msra.mxu0 %v5506
    %5572 = vmatprep.subr.bf16.mxu0 %v5509
    %5573 = vmatpush1.bf16.msra.mxu0 %v5508
    %5574 = vmatprep.subr.bf16.mxu0 %v5511
    %5575 = vmatpush1.bf16.msra.mxu0 %v5510
    %5576 = vmatprep.subr.bf16.mxu0 %v5513
    %5577 = vmatpush1.bf16.msra.mxu0 %v5512
    %5578 = vmatprep.subr.bf16.mxu0 %v5515
    %5579 = vmatpush1.bf16.msra.mxu0 %v5514
    %5580 = vmatprep.subr.bf16.mxu0 %v5517
    %5581 = vmatpush1.bf16.msra.mxu0 %v5516
    %5582 = vmatprep.subr.bf16.mxu0 %v5519
    %5583 = vmatpush1.bf16.msra.mxu0 %v5518
    %5584 = vmatprep.subr.bf16.mxu0 %v5521
    %5585 = vmatpush1.bf16.msra.mxu0 %v5520
    %5586 = vmatprep.subr.bf16.mxu0 %v5523
    %5587 = vmatpush1.bf16.msra.mxu0 %v5522
    %5588 = vmatprep.subr.bf16.mxu0 %v5525
    %5589 = vmatpush1.bf16.msra.mxu0 %v5524
    %5590 = vmatprep.subr.bf16.mxu0 %v5527
    %5591 = vmatpush1.bf16.msra.mxu0 %v5526
    %5592 = vmatprep.subr.bf16.mxu0 %v5529
    %5593 = vmatpush1.bf16.msra.mxu0 %v5528
    %5594 = vmatprep.subr.bf16.mxu0 %v5531
    %5595 = vmatpush1.bf16.msra.mxu0 %v5530
    %5596 = vmatprep.mubr.bf16.mxu0 %v5371
    %5597 = vmatmul.mubr.bf16.gmra.mrb[0].mxu0 %v5370
    %v5598 = vpop.f32.mrb[0].mxu0
    %v5599 = vadd.f32 0.0, %v5598
    %v5600 = vpop.f32.mrb[0].mxu0
    %v5601 = vadd.f32 0.0, %v5600
    %v5602 = vpop.f32.mrb[0].mxu0
    %v5603 = vpop.f32.mrb[0].mxu0
    %5604 = vdwg.mxu0
    %v5605 = vld [vmem:[#allocation2] sm:$0xff]
    %v5606 = vld [vmem:[#allocation2 + $0x8] sm:$0xff]
    %v5607 = vadd.f32 %v5605, %v5599
    %v5608 = vadd.f32 %v5606, %v5601
    %5609 = vst [vmem:[#allocation2] sm:$0xff] %v5607
    %5610 = vst [vmem:[#allocation2 + $0x8] sm:$0xff] %v5608
    %v5611 = vld [vmem:[#allocation6 + $0x28] sm:$0x3]
    %v5612 = vld [vmem:[#allocation8 + $0x28] sm:$0x3]
    %5613 = vset.pattern.permute.xlu0 20
    %5614 = vperm.xlu0 %5613, %v113
    %v5615 = vpop.permute.xlu0 %5614
    %v5618 = vlaneseq
    %v5619 = vshrl.u32 %v5618, 7
    %v5620 = vsub.s32 0, %v5619
    %v5621 = vrot.slane %v5611, %v5620
    %v5622 = vlaneseq
    %v5623 = vshrl.u32 %v5622, 7
    %v5624 = vsub.s32 1, %v5623
    %v5625 = vrot.slane %v5611, %v5624
    %v5628 = vmul.f32 %v5615, %v5621
    %v5629 = vmul.f32 %v5615, %v5625
    %v5631 = vlaneseq
    %v5632 = vshrl.u32 %v5631, 7
    %v5633 = vsub.s32 0, %v5632
    %v5634 = vrot.slane %v5612, %v5633
    %v5635 = vlaneseq
    %v5636 = vshrl.u32 %v5635, 7
    %v5637 = vsub.s32 1, %v5636
    %v5638 = vrot.slane %v5612, %v5637
    %v5641 = vadd.f32 %v5628, %v5634
    %v5642 = vadd.f32 %v5629, %v5638
    %v5643 = vmax.f32 %v5641, 0.0
    %v5644 = vmax.f32 %v5642, 0.0
    %v5645 = vpack.c.bf16 %v5643, %v5643
    %v5646 = vpack.c.bf16 %v5644, %v5644
    %v5647 = vld [vmem:[#allocation9 + $0x1400] sm:$0xff]
    %v5648 = vld [vmem:[#allocation9 + $0x1408] sm:$0xff]
    %v5649 = vld [vmem:[#allocation9 + $0x1410] sm:$0xff]
    %v5650 = vld [vmem:[#allocation9 + $0x1418] sm:$0xff]
    %v5651 = vld [vmem:[#allocation9 + $0x1420] sm:$0xff]
    %v5652 = vld [vmem:[#allocation9 + $0x1428] sm:$0xff]
    %v5653 = vld [vmem:[#allocation9 + $0x1430] sm:$0xff]
    %v5654 = vld [vmem:[#allocation9 + $0x1438] sm:$0xff]
    %v5655 = vld [vmem:[#allocation9 + $0x1440] sm:$0xff]
    %v5656 = vld [vmem:[#allocation9 + $0x1448] sm:$0xff]
    %v5657 = vld [vmem:[#allocation9 + $0x1450] sm:$0xff]
    %v5658 = vld [vmem:[#allocation9 + $0x1458] sm:$0xff]
    %v5659 = vld [vmem:[#allocation9 + $0x1460] sm:$0xff]
    %v5660 = vld [vmem:[#allocation9 + $0x1468] sm:$0xff]
    %v5661 = vld [vmem:[#allocation9 + $0x1470] sm:$0xff]
    %v5662 = vld [vmem:[#allocation9 + $0x1478] sm:$0xff]
    %v5663 = vld [vmem:[#allocation9 + $0x1480] sm:$0xff]
    %v5664 = vld [vmem:[#allocation9 + $0x1488] sm:$0xff]
    %v5665 = vld [vmem:[#allocation9 + $0x1490] sm:$0xff]
    %v5666 = vld [vmem:[#allocation9 + $0x1498] sm:$0xff]
    %v5667 = vld [vmem:[#allocation9 + $0x14a0] sm:$0xff]
    %v5668 = vld [vmem:[#allocation9 + $0x14a8] sm:$0xff]
    %v5669 = vld [vmem:[#allocation9 + $0x14b0] sm:$0xff]
    %v5670 = vld [vmem:[#allocation9 + $0x14b8] sm:$0xff]
    %v5671 = vld [vmem:[#allocation9 + $0x14c0] sm:$0xff]
    %v5672 = vld [vmem:[#allocation9 + $0x14c8] sm:$0xff]
    %v5673 = vld [vmem:[#allocation9 + $0x14d0] sm:$0xff]
    %v5674 = vld [vmem:[#allocation9 + $0x14d8] sm:$0xff]
    %v5675 = vld [vmem:[#allocation9 + $0x14e0] sm:$0xff]
    %v5676 = vld [vmem:[#allocation9 + $0x14e8] sm:$0xff]
    %v5677 = vld [vmem:[#allocation9 + $0x14f0] sm:$0xff]
    %v5678 = vld [vmem:[#allocation9 + $0x14f8] sm:$0xff]
    %v5711 = vunpack.c.l.b16 %v5647
    %v5712 = vunpack.c.h.b16 %v5647
    %v5713 = vunpack.c.l.b16 %v5648
    %v5714 = vunpack.c.h.b16 %v5648
    %v5715 = vunpack.c.l.b16 %v5649
    %v5716 = vunpack.c.h.b16 %v5649
    %v5717 = vunpack.c.l.b16 %v5650
    %v5718 = vunpack.c.h.b16 %v5650
    %v5719 = vunpack.c.l.b16 %v5651
    %v5720 = vunpack.c.h.b16 %v5651
    %v5721 = vunpack.c.l.b16 %v5652
    %v5722 = vunpack.c.h.b16 %v5652
    %v5723 = vunpack.c.l.b16 %v5653
    %v5724 = vunpack.c.h.b16 %v5653
    %v5725 = vunpack.c.l.b16 %v5654
    %v5726 = vunpack.c.h.b16 %v5654
    %v5727 = vunpack.c.l.b16 %v5655
    %v5728 = vunpack.c.h.b16 %v5655
    %v5729 = vunpack.c.l.b16 %v5656
    %v5730 = vunpack.c.h.b16 %v5656
    %v5731 = vunpack.c.l.b16 %v5657
    %v5732 = vunpack.c.h.b16 %v5657
    %v5733 = vunpack.c.l.b16 %v5658
    %v5734 = vunpack.c.h.b16 %v5658
    %v5735 = vunpack.c.l.b16 %v5659
    %v5736 = vunpack.c.h.b16 %v5659
    %v5737 = vunpack.c.l.b16 %v5660
    %v5738 = vunpack.c.h.b16 %v5660
    %v5739 = vunpack.c.l.b16 %v5661
    %v5740 = vunpack.c.h.b16 %v5661
    %v5741 = vunpack.c.l.b16 %v5662
    %v5742 = vunpack.c.h.b16 %v5662
    %v5743 = vunpack.c.l.b16 %v5663
    %v5744 = vunpack.c.h.b16 %v5663
    %v5745 = vunpack.c.l.b16 %v5664
    %v5746 = vunpack.c.h.b16 %v5664
    %v5747 = vunpack.c.l.b16 %v5665
    %v5748 = vunpack.c.h.b16 %v5665
    %v5749 = vunpack.c.l.b16 %v5666
    %v5750 = vunpack.c.h.b16 %v5666
    %v5751 = vunpack.c.l.b16 %v5667
    %v5752 = vunpack.c.h.b16 %v5667
    %v5753 = vunpack.c.l.b16 %v5668
    %v5754 = vunpack.c.h.b16 %v5668
    %v5755 = vunpack.c.l.b16 %v5669
    %v5756 = vunpack.c.h.b16 %v5669
    %v5757 = vunpack.c.l.b16 %v5670
    %v5758 = vunpack.c.h.b16 %v5670
    %v5759 = vunpack.c.l.b16 %v5671
    %v5760 = vunpack.c.h.b16 %v5671
    %v5761 = vunpack.c.l.b16 %v5672
    %v5762 = vunpack.c.h.b16 %v5672
    %v5763 = vunpack.c.l.b16 %v5673
    %v5764 = vunpack.c.h.b16 %v5673
    %v5765 = vunpack.c.l.b16 %v5674
    %v5766 = vunpack.c.h.b16 %v5674
    %v5767 = vunpack.c.l.b16 %v5675
    %v5768 = vunpack.c.h.b16 %v5675
    %v5769 = vunpack.c.l.b16 %v5676
    %v5770 = vunpack.c.h.b16 %v5676
    %v5771 = vunpack.c.l.b16 %v5677
    %v5772 = vunpack.c.h.b16 %v5677
    %v5773 = vunpack.c.l.b16 %v5678
    %v5774 = vunpack.c.h.b16 %v5678
    %v5775 = vpack.c.b16 %v5713, %v5711
    %v5776 = vpack.c.b16 %v5714, %v5712
    %v5777 = vpack.c.b16 %v5717, %v5715
    %v5778 = vpack.c.b16 %v5718, %v5716
    %v5779 = vpack.c.b16 %v5721, %v5719
    %v5780 = vpack.c.b16 %v5722, %v5720
    %v5781 = vpack.c.b16 %v5725, %v5723
    %v5782 = vpack.c.b16 %v5726, %v5724
    %v5783 = vpack.c.b16 %v5729, %v5727
    %v5784 = vpack.c.b16 %v5730, %v5728
    %v5785 = vpack.c.b16 %v5733, %v5731
    %v5786 = vpack.c.b16 %v5734, %v5732
    %v5787 = vpack.c.b16 %v5737, %v5735
    %v5788 = vpack.c.b16 %v5738, %v5736
    %v5789 = vpack.c.b16 %v5741, %v5739
    %v5790 = vpack.c.b16 %v5742, %v5740
    %v5791 = vpack.c.b16 %v5745, %v5743
    %v5792 = vpack.c.b16 %v5746, %v5744
    %v5793 = vpack.c.b16 %v5749, %v5747
    %v5794 = vpack.c.b16 %v5750, %v5748
    %v5795 = vpack.c.b16 %v5753, %v5751
    %v5796 = vpack.c.b16 %v5754, %v5752
    %v5797 = vpack.c.b16 %v5757, %v5755
    %v5798 = vpack.c.b16 %v5758, %v5756
    %v5799 = vpack.c.b16 %v5761, %v5759
    %v5800 = vpack.c.b16 %v5762, %v5760
    %v5801 = vpack.c.b16 %v5765, %v5763
    %v5802 = vpack.c.b16 %v5766, %v5764
    %v5803 = vpack.c.b16 %v5769, %v5767
    %v5804 = vpack.c.b16 %v5770, %v5768
    %v5805 = vpack.c.b16 %v5773, %v5771
    %v5806 = vpack.c.b16 %v5774, %v5772
    %5839 = vmatprep.subr.bf16.mxu0 %v5776
    %5840 = vmatpush1.bf16.msra.mxu0 %v5775
    %5841 = vmatprep.subr.bf16.mxu0 %v5778
    %5842 = vmatpush1.bf16.msra.mxu0 %v5777
    %5843 = vmatprep.subr.bf16.mxu0 %v5780
    %5844 = vmatpush1.bf16.msra.mxu0 %v5779
    %5845 = vmatprep.subr.bf16.mxu0 %v5782
    %5846 = vmatpush1.bf16.msra.mxu0 %v5781
    %5847 = vmatprep.subr.bf16.mxu0 %v5784
    %5848 = vmatpush1.bf16.msra.mxu0 %v5783
    %5849 = vmatprep.subr.bf16.mxu0 %v5786
    %5850 = vmatpush1.bf16.msra.mxu0 %v5785
    %5851 = vmatprep.subr.bf16.mxu0 %v5788
    %5852 = vmatpush1.bf16.msra.mxu0 %v5787
    %5853 = vmatprep.subr.bf16.mxu0 %v5790
    %5854 = vmatpush1.bf16.msra.mxu0 %v5789
    %5855 = vmatprep.subr.bf16.mxu0 %v5792
    %5856 = vmatpush1.bf16.msra.mxu0 %v5791
    %5857 = vmatprep.subr.bf16.mxu0 %v5794
    %5858 = vmatpush1.bf16.msra.mxu0 %v5793
    %5859 = vmatprep.subr.bf16.mxu0 %v5796
    %5860 = vmatpush1.bf16.msra.mxu0 %v5795
    %5861 = vmatprep.subr.bf16.mxu0 %v5798
    %5862 = vmatpush1.bf16.msra.mxu0 %v5797
    %5863 = vmatprep.subr.bf16.mxu0 %v5800
    %5864 = vmatpush1.bf16.msra.mxu0 %v5799
    %5865 = vmatprep.subr.bf16.mxu0 %v5802
    %5866 = vmatpush1.bf16.msra.mxu0 %v5801
    %5867 = vmatprep.subr.bf16.mxu0 %v5804
    %5868 = vmatpush1.bf16.msra.mxu0 %v5803
    %5869 = vmatprep.subr.bf16.mxu0 %v5806
    %5870 = vmatpush1.bf16.msra.mxu0 %v5805
    %5871 = vmatprep.mubr.bf16.mxu0 %v5646
    %5872 = vmatmul.mubr.bf16.gmra.mrb[0].mxu0 %v5645
    %v5873 = vpop.f32.mrb[0].mxu0
    %v5874 = vadd.f32 0.0, %v5873
    %v5875 = vpop.f32.mrb[0].mxu0
    %v5876 = vadd.f32 0.0, %v5875
    %v5877 = vpop.f32.mrb[0].mxu0
    %v5878 = vpop.f32.mrb[0].mxu0
    %5879 = vdwg.mxu0
    %v5880 = vld [vmem:[#allocation2] sm:$0xff]
    %v5881 = vld [vmem:[#allocation2 + $0x8] sm:$0xff]
    %v5882 = vadd.f32 %v5880, %v5874
    %v5883 = vadd.f32 %v5881, %v5876
    %5884 = vst [vmem:[#allocation2] sm:$0xff] %v5882
    %5885 = vst [vmem:[#allocation2 + $0x8] sm:$0xff] %v5883
    %v5886 = vld [vmem:[#allocation6 + $0x2a] sm:$0x3]
    %v5887 = vld [vmem:[#allocation8 + $0x2a] sm:$0x3]
    %5888 = vset.pattern.permute.xlu0 21
    %5889 = vperm.xlu0 %5888, %v113
    %v5890 = vpop.permute.xlu0 %5889
    %v5893 = vlaneseq
    %v5894 = vshrl.u32 %v5893, 7
    %v5895 = vsub.s32 0, %v5894
    %v5896 = vrot.slane %v5886, %v5895
    %v5897 = vlaneseq
    %v5898 = vshrl.u32 %v5897, 7
    %v5899 = vsub.s32 1, %v5898
    %v5900 = vrot.slane %v5886, %v5899
    %v5903 = vmul.f32 %v5890, %v5896
    %v5904 = vmul.f32 %v5890, %v5900
    %v5906 = vlaneseq
    %v5907 = vshrl.u32 %v5906, 7
    %v5908 = vsub.s32 0, %v5907
    %v5909 = vrot.slane %v5887, %v5908
    %v5910 = vlaneseq
    %v5911 = vshrl.u32 %v5910, 7
    %v5912 = vsub.s32 1, %v5911
    %v5913 = vrot.slane %v5887, %v5912
    %v5916 = vadd.f32 %v5903, %v5909
    %v5917 = vadd.f32 %v5904, %v5913
    %v5918 = vmax.f32 %v5916, 0.0
    %v5919 = vmax.f32 %v5917, 0.0
    %v5920 = vpack.c.bf16 %v5918, %v5918
    %v5921 = vpack.c.bf16 %v5919, %v5919
    %v5922 = vld [vmem:[#allocation9 + $0x1500] sm:$0xff]
    %v5923 = vld [vmem:[#allocation9 + $0x1508] sm:$0xff]
    %v5924 = vld [vmem:[#allocation9 + $0x1510] sm:$0xff]
    %v5925 = vld [vmem:[#allocation9 + $0x1518] sm:$0xff]
    %v5926 = vld [vmem:[#allocation9 + $0x1520] sm:$0xff]
    %v5927 = vld [vmem:[#allocation9 + $0x1528] sm:$0xff]
    %v5928 = vld [vmem:[#allocation9 + $0x1530] sm:$0xff]
    %v5929 = vld [vmem:[#allocation9 + $0x1538] sm:$0xff]
    %v5930 = vld [vmem:[#allocation9 + $0x1540] sm:$0xff]
    %v5931 = vld [vmem:[#allocation9 + $0x1548] sm:$0xff]
    %v5932 = vld [vmem:[#allocation9 + $0x1550] sm:$0xff]
    %v5933 = vld [vmem:[#allocation9 + $0x1558] sm:$0xff]
    %v5934 = vld [vmem:[#allocation9 + $0x1560] sm:$0xff]
    %v5935 = vld [vmem:[#allocation9 + $0x1568] sm:$0xff]
    %v5936 = vld [vmem:[#allocation9 + $0x1570] sm:$0xff]
    %v5937 = vld [vmem:[#allocation9 + $0x1578] sm:$0xff]
    %v5938 = vld [vmem:[#allocation9 + $0x1580] sm:$0xff]
    %v5939 = vld [vmem:[#allocation9 + $0x1588] sm:$0xff]
    %v5940 = vld [vmem:[#allocation9 + $0x1590] sm:$0xff]
    %v5941 = vld [vmem:[#allocation9 + $0x1598] sm:$0xff]
    %v5942 = vld [vmem:[#allocation9 + $0x15a0] sm:$0xff]
    %v5943 = vld [vmem:[#allocation9 + $0x15a8] sm:$0xff]
    %v5944 = vld [vmem:[#allocation9 + $0x15b0] sm:$0xff]
    %v5945 = vld [vmem:[#allocation9 + $0x15b8] sm:$0xff]
    %v5946 = vld [vmem:[#allocation9 + $0x15c0] sm:$0xff]
    %v5947 = vld [vmem:[#allocation9 + $0x15c8] sm:$0xff]
    %v5948 = vld [vmem:[#allocation9 + $0x15d0] sm:$0xff]
    %v5949 = vld [vmem:[#allocation9 + $0x15d8] sm:$0xff]
    %v5950 = vld [vmem:[#allocation9 + $0x15e0] sm:$0xff]
    %v5951 = vld [vmem:[#allocation9 + $0x15e8] sm:$0xff]
    %v5952 = vld [vmem:[#allocation9 + $0x15f0] sm:$0xff]
    %v5953 = vld [vmem:[#allocation9 + $0x15f8] sm:$0xff]
    %v5986 = vunpack.c.l.b16 %v5922
    %v5987 = vunpack.c.h.b16 %v5922
    %v5988 = vunpack.c.l.b16 %v5923
    %v5989 = vunpack.c.h.b16 %v5923
    %v5990 = vunpack.c.l.b16 %v5924
    %v5991 = vunpack.c.h.b16 %v5924
    %v5992 = vunpack.c.l.b16 %v5925
    %v5993 = vunpack.c.h.b16 %v5925
    %v5994 = vunpack.c.l.b16 %v5926
    %v5995 = vunpack.c.h.b16 %v5926
    %v5996 = vunpack.c.l.b16 %v5927
    %v5997 = vunpack.c.h.b16 %v5927
    %v5998 = vunpack.c.l.b16 %v5928
    %v5999 = vunpack.c.h.b16 %v5928
    %v6000 = vunpack.c.l.b16 %v5929
    %v6001 = vunpack.c.h.b16 %v5929
    %v6002 = vunpack.c.l.b16 %v5930
    %v6003 = vunpack.c.h.b16 %v5930
    %v6004 = vunpack.c.l.b16 %v5931
    %v6005 = vunpack.c.h.b16 %v5931
    %v6006 = vunpack.c.l.b16 %v5932
    %v6007 = vunpack.c.h.b16 %v5932
    %v6008 = vunpack.c.l.b16 %v5933
    %v6009 = vunpack.c.h.b16 %v5933
    %v6010 = vunpack.c.l.b16 %v5934
    %v6011 = vunpack.c.h.b16 %v5934
    %v6012 = vunpack.c.l.b16 %v5935
    %v6013 = vunpack.c.h.b16 %v5935
    %v6014 = vunpack.c.l.b16 %v5936
    %v6015 = vunpack.c.h.b16 %v5936
    %v6016 = vunpack.c.l.b16 %v5937
    %v6017 = vunpack.c.h.b16 %v5937
    %v6018 = vunpack.c.l.b16 %v5938
    %v6019 = vunpack.c.h.b16 %v5938
    %v6020 = vunpack.c.l.b16 %v5939
    %v6021 = vunpack.c.h.b16 %v5939
    %v6022 = vunpack.c.l.b16 %v5940
    %v6023 = vunpack.c.h.b16 %v5940
    %v6024 = vunpack.c.l.b16 %v5941
    %v6025 = vunpack.c.h.b16 %v5941
    %v6026 = vunpack.c.l.b16 %v5942
    %v6027 = vunpack.c.h.b16 %v5942
    %v6028 = vunpack.c.l.b16 %v5943
    %v6029 = vunpack.c.h.b16 %v5943
    %v6030 = vunpack.c.l.b16 %v5944
    %v6031 = vunpack.c.h.b16 %v5944
    %v6032 = vunpack.c.l.b16 %v5945
    %v6033 = vunpack.c.h.b16 %v5945
    %v6034 = vunpack.c.l.b16 %v5946
    %v6035 = vunpack.c.h.b16 %v5946
    %v6036 = vunpack.c.l.b16 %v5947
    %v6037 = vunpack.c.h.b16 %v5947
    %v6038 = vunpack.c.l.b16 %v5948
    %v6039 = vunpack.c.h.b16 %v5948
    %v6040 = vunpack.c.l.b16 %v5949
    %v6041 = vunpack.c.h.b16 %v5949
    %v6042 = vunpack.c.l.b16 %v5950
    %v6043 = vunpack.c.h.b16 %v5950
    %v6044 = vunpack.c.l.b16 %v5951
    %v6045 = vunpack.c.h.b16 %v5951
    %v6046 = vunpack.c.l.b16 %v5952
    %v6047 = vunpack.c.h.b16 %v5952
    %v6048 = vunpack.c.l.b16 %v5953
    %v6049 = vunpack.c.h.b16 %v5953
    %v6050 = vpack.c.b16 %v5988, %v5986
    %v6051 = vpack.c.b16 %v5989, %v5987
    %v6052 = vpack.c.b16 %v5992, %v5990
    %v6053 = vpack.c.b16 %v5993, %v5991
    %v6054 = vpack.c.b16 %v5996, %v5994
    %v6055 = vpack.c.b16 %v5997, %v5995
    %v6056 = vpack.c.b16 %v6000, %v5998
    %v6057 = vpack.c.b16 %v6001, %v5999
    %v6058 = vpack.c.b16 %v6004, %v6002
    %v6059 = vpack.c.b16 %v6005, %v6003
    %v6060 = vpack.c.b16 %v6008, %v6006
    %v6061 = vpack.c.b16 %v6009, %v6007
    %v6062 = vpack.c.b16 %v6012, %v6010
    %v6063 = vpack.c.b16 %v6013, %v6011
    %v6064 = vpack.c.b16 %v6016, %v6014
    %v6065 = vpack.c.b16 %v6017, %v6015
    %v6066 = vpack.c.b16 %v6020, %v6018
    %v6067 = vpack.c.b16 %v6021, %v6019
    %v6068 = vpack.c.b16 %v6024, %v6022
    %v6069 = vpack.c.b16 %v6025, %v6023
    %v6070 = vpack.c.b16 %v6028, %v6026
    %v6071 = vpack.c.b16 %v6029, %v6027
    %v6072 = vpack.c.b16 %v6032, %v6030
    %v6073 = vpack.c.b16 %v6033, %v6031
    %v6074 = vpack.c.b16 %v6036, %v6034
    %v6075 = vpack.c.b16 %v6037, %v6035
    %v6076 = vpack.c.b16 %v6040, %v6038
    %v6077 = vpack.c.b16 %v6041, %v6039
    %v6078 = vpack.c.b16 %v6044, %v6042
    %v6079 = vpack.c.b16 %v6045, %v6043
    %v6080 = vpack.c.b16 %v6048, %v6046
    %v6081 = vpack.c.b16 %v6049, %v6047
    %6114 = vmatprep.subr.bf16.mxu0 %v6051
    %6115 = vmatpush1.bf16.msra.mxu0 %v6050
    %6116 = vmatprep.subr.bf16.mxu0 %v6053
    %6117 = vmatpush1.bf16.msra.mxu0 %v6052
    %6118 = vmatprep.subr.bf16.mxu0 %v6055
    %6119 = vmatpush1.bf16.msra.mxu0 %v6054
    %6120 = vmatprep.subr.bf16.mxu0 %v6057
    %6121 = vmatpush1.bf16.msra.mxu0 %v6056
    %6122 = vmatprep.subr.bf16.mxu0 %v6059
    %6123 = vmatpush1.bf16.msra.mxu0 %v6058
    %6124 = vmatprep.subr.bf16.mxu0 %v6061
    %6125 = vmatpush1.bf16.msra.mxu0 %v6060
    %6126 = vmatprep.subr.bf16.mxu0 %v6063
    %6127 = vmatpush1.bf16.msra.mxu0 %v6062
    %6128 = vmatprep.subr.bf16.mxu0 %v6065
    %6129 = vmatpush1.bf16.msra.mxu0 %v6064
    %6130 = vmatprep.subr.bf16.mxu0 %v6067
    %6131 = vmatpush1.bf16.msra.mxu0 %v6066
    %6132 = vmatprep.subr.bf16.mxu0 %v6069
    %6133 = vmatpush1.bf16.msra.mxu0 %v6068
    %6134 = vmatprep.subr.bf16.mxu0 %v6071
    %6135 = vmatpush1.bf16.msra.mxu0 %v6070
    %6136 = vmatprep.subr.bf16.mxu0 %v6073
    %6137 = vmatpush1.bf16.msra.mxu0 %v6072
    %6138 = vmatprep.subr.bf16.mxu0 %v6075
    %6139 = vmatpush1.bf16.msra.mxu0 %v6074
    %6140 = vmatprep.subr.bf16.mxu0 %v6077
    %6141 = vmatpush1.bf16.msra.mxu0 %v6076
    %6142 = vmatprep.subr.bf16.mxu0 %v6079
    %6143 = vmatpush1.bf16.msra.mxu0 %v6078
    %6144 = vmatprep.subr.bf16.mxu0 %v6081
    %6145 = vmatpush1.bf16.msra.mxu0 %v6080
    %6146 = vmatprep.mubr.bf16.mxu0 %v5921
    %6147 = vmatmul.mubr.bf16.gmra.mrb[0].mxu0 %v5920
    %v6148 = vpop.f32.mrb[0].mxu0
    %v6149 = vadd.f32 0.0, %v6148
    %v6150 = vpop.f32.mrb[0].mxu0
    %v6151 = vadd.f32 0.0, %v6150
    %v6152 = vpop.f32.mrb[0].mxu0
    %v6153 = vpop.f32.mrb[0].mxu0
    %6154 = vdwg.mxu0
    %v6155 = vld [vmem:[#allocation2] sm:$0xff]
    %v6156 = vld [vmem:[#allocation2 + $0x8] sm:$0xff]
    %v6157 = vadd.f32 %v6155, %v6149
    %v6158 = vadd.f32 %v6156, %v6151
    %6159 = vst [vmem:[#allocation2] sm:$0xff] %v6157
    %6160 = vst [vmem:[#allocation2 + $0x8] sm:$0xff] %v6158
    %v6161 = vld [vmem:[#allocation6 + $0x2c] sm:$0x3]
    %v6162 = vld [vmem:[#allocation8 + $0x2c] sm:$0x3]
    %6163 = vset.pattern.permute.xlu0 22
    %6164 = vperm.xlu0 %6163, %v113
    %v6165 = vpop.permute.xlu0 %6164
    %v6168 = vlaneseq
    %v6169 = vshrl.u32 %v6168, 7
    %v6170 = vsub.s32 0, %v6169
    %v6171 = vrot.slane %v6161, %v6170
    %v6172 = vlaneseq
    %v6173 = vshrl.u32 %v6172, 7
    %v6174 = vsub.s32 1, %v6173
    %v6175 = vrot.slane %v6161, %v6174
    %v6178 = vmul.f32 %v6165, %v6171
    %v6179 = vmul.f32 %v6165, %v6175
    %v6181 = vlaneseq
    %v6182 = vshrl.u32 %v6181, 7
    %v6183 = vsub.s32 0, %v6182
    %v6184 = vrot.slane %v6162, %v6183
    %v6185 = vlaneseq
    %v6186 = vshrl.u32 %v6185, 7
    %v6187 = vsub.s32 1, %v6186
    %v6188 = vrot.slane %v6162, %v6187
    %v6191 = vadd.f32 %v6178, %v6184
    %v6192 = vadd.f32 %v6179, %v6188
    %v6193 = vmax.f32 %v6191, 0.0
    %v6194 = vmax.f32 %v6192, 0.0
    %v6195 = vpack.c.bf16 %v6193, %v6193
    %v6196 = vpack.c.bf16 %v6194, %v6194
    %v6197 = vld [vmem:[#allocation9 + $0x1600] sm:$0xff]
    %v6198 = vld [vmem:[#allocation9 + $0x1608] sm:$0xff]
    %v6199 = vld [vmem:[#allocation9 + $0x1610] sm:$0xff]
    %v6200 = vld [vmem:[#allocation9 + $0x1618] sm:$0xff]
    %v6201 = vld [vmem:[#allocation9 + $0x1620] sm:$0xff]
    %v6202 = vld [vmem:[#allocation9 + $0x1628] sm:$0xff]
    %v6203 = vld [vmem:[#allocation9 + $0x1630] sm:$0xff]
    %v6204 = vld [vmem:[#allocation9 + $0x1638] sm:$0xff]
    %v6205 = vld [vmem:[#allocation9 + $0x1640] sm:$0xff]
    %v6206 = vld [vmem:[#allocation9 + $0x1648] sm:$0xff]
    %v6207 = vld [vmem:[#allocation9 + $0x1650] sm:$0xff]
    %v6208 = vld [vmem:[#allocation9 + $0x1658] sm:$0xff]
    %v6209 = vld [vmem:[#allocation9 + $0x1660] sm:$0xff]
    %v6210 = vld [vmem:[#allocation9 + $0x1668] sm:$0xff]
    %v6211 = vld [vmem:[#allocation9 + $0x1670] sm:$0xff]
    %v6212 = vld [vmem:[#allocation9 + $0x1678] sm:$0xff]
    %v6213 = vld [vmem:[#allocation9 + $0x1680] sm:$0xff]
    %v6214 = vld [vmem:[#allocation9 + $0x1688] sm:$0xff]
    %v6215 = vld [vmem:[#allocation9 + $0x1690] sm:$0xff]
    %v6216 = vld [vmem:[#allocation9 + $0x1698] sm:$0xff]
    %v6217 = vld [vmem:[#allocation9 + $0x16a0] sm:$0xff]
    %v6218 = vld [vmem:[#allocation9 + $0x16a8] sm:$0xff]
    %v6219 = vld [vmem:[#allocation9 + $0x16b0] sm:$0xff]
    %v6220 = vld [vmem:[#allocation9 + $0x16b8] sm:$0xff]
    %v6221 = vld [vmem:[#allocation9 + $0x16c0] sm:$0xff]
    %v6222 = vld [vmem:[#allocation9 + $0x16c8] sm:$0xff]
    %v6223 = vld [vmem:[#allocation9 + $0x16d0] sm:$0xff]
    %v6224 = vld [vmem:[#allocation9 + $0x16d8] sm:$0xff]
    %v6225 = vld [vmem:[#allocation9 + $0x16e0] sm:$0xff]
    %v6226 = vld [vmem:[#allocation9 + $0x16e8] sm:$0xff]
    %v6227 = vld [vmem:[#allocation9 + $0x16f0] sm:$0xff]
    %v6228 = vld [vmem:[#allocation9 + $0x16f8] sm:$0xff]
    %v6261 = vunpack.c.l.b16 %v6197
    %v6262 = vunpack.c.h.b16 %v6197
    %v6263 = vunpack.c.l.b16 %v6198
    %v6264 = vunpack.c.h.b16 %v6198
    %v6265 = vunpack.c.l.b16 %v6199
    %v6266 = vunpack.c.h.b16 %v6199
    %v6267 = vunpack.c.l.b16 %v6200
    %v6268 = vunpack.c.h.b16 %v6200
    %v6269 = vunpack.c.l.b16 %v6201
    %v6270 = vunpack.c.h.b16 %v6201
    %v6271 = vunpack.c.l.b16 %v6202
    %v6272 = vunpack.c.h.b16 %v6202
    %v6273 = vunpack.c.l.b16 %v6203
    %v6274 = vunpack.c.h.b16 %v6203
    %v6275 = vunpack.c.l.b16 %v6204
    %v6276 = vunpack.c.h.b16 %v6204
    %v6277 = vunpack.c.l.b16 %v6205
    %v6278 = vunpack.c.h.b16 %v6205
    %v6279 = vunpack.c.l.b16 %v6206
    %v6280 = vunpack.c.h.b16 %v6206
    %v6281 = vunpack.c.l.b16 %v6207
    %v6282 = vunpack.c.h.b16 %v6207
    %v6283 = vunpack.c.l.b16 %v6208
    %v6284 = vunpack.c.h.b16 %v6208
    %v6285 = vunpack.c.l.b16 %v6209
    %v6286 = vunpack.c.h.b16 %v6209
    %v6287 = vunpack.c.l.b16 %v6210
    %v6288 = vunpack.c.h.b16 %v6210
    %v6289 = vunpack.c.l.b16 %v6211
    %v6290 = vunpack.c.h.b16 %v6211
    %v6291 = vunpack.c.l.b16 %v6212
    %v6292 = vunpack.c.h.b16 %v6212
    %v6293 = vunpack.c.l.b16 %v6213
    %v6294 = vunpack.c.h.b16 %v6213
    %v6295 = vunpack.c.l.b16 %v6214
    %v6296 = vunpack.c.h.b16 %v6214
    %v6297 = vunpack.c.l.b16 %v6215
    %v6298 = vunpack.c.h.b16 %v6215
    %v6299 = vunpack.c.l.b16 %v6216
    %v6300 = vunpack.c.h.b16 %v6216
    %v6301 = vunpack.c.l.b16 %v6217
    %v6302 = vunpack.c.h.b16 %v6217
    %v6303 = vunpack.c.l.b16 %v6218
    %v6304 = vunpack.c.h.b16 %v6218
    %v6305 = vunpack.c.l.b16 %v6219
    %v6306 = vunpack.c.h.b16 %v6219
    %v6307 = vunpack.c.l.b16 %v6220
    %v6308 = vunpack.c.h.b16 %v6220
    %v6309 = vunpack.c.l.b16 %v6221
    %v6310 = vunpack.c.h.b16 %v6221
    %v6311 = vunpack.c.l.b16 %v6222
    %v6312 = vunpack.c.h.b16 %v6222
    %v6313 = vunpack.c.l.b16 %v6223
    %v6314 = vunpack.c.h.b16 %v6223
    %v6315 = vunpack.c.l.b16 %v6224
    %v6316 = vunpack.c.h.b16 %v6224
    %v6317 = vunpack.c.l.b16 %v6225
    %v6318 = vunpack.c.h.b16 %v6225
    %v6319 = vunpack.c.l.b16 %v6226
    %v6320 = vunpack.c.h.b16 %v6226
    %v6321 = vunpack.c.l.b16 %v6227
    %v6322 = vunpack.c.h.b16 %v6227
    %v6323 = vunpack.c.l.b16 %v6228
    %v6324 = vunpack.c.h.b16 %v6228
    %v6325 = vpack.c.b16 %v6263, %v6261
    %v6326 = vpack.c.b16 %v6264, %v6262
    %v6327 = vpack.c.b16 %v6267, %v6265
    %v6328 = vpack.c.b16 %v6268, %v6266
    %v6329 = vpack.c.b16 %v6271, %v6269
    %v6330 = vpack.c.b16 %v6272, %v6270
    %v6331 = vpack.c.b16 %v6275, %v6273
    %v6332 = vpack.c.b16 %v6276, %v6274
    %v6333 = vpack.c.b16 %v6279, %v6277
    %v6334 = vpack.c.b16 %v6280, %v6278
    %v6335 = vpack.c.b16 %v6283, %v6281
    %v6336 = vpack.c.b16 %v6284, %v6282
    %v6337 = vpack.c.b16 %v6287, %v6285
    %v6338 = vpack.c.b16 %v6288, %v6286
    %v6339 = vpack.c.b16 %v6291, %v6289
    %v6340 = vpack.c.b16 %v6292, %v6290
    %v6341 = vpack.c.b16 %v6295, %v6293
    %v6342 = vpack.c.b16 %v6296, %v6294
    %v6343 = vpack.c.b16 %v6299, %v6297
    %v6344 = vpack.c.b16 %v6300, %v6298
    %v6345 = vpack.c.b16 %v6303, %v6301
    %v6346 = vpack.c.b16 %v6304, %v6302
    %v6347 = vpack.c.b16 %v6307, %v6305
    %v6348 = vpack.c.b16 %v6308, %v6306
    %v6349 = vpack.c.b16 %v6311, %v6309
    %v6350 = vpack.c.b16 %v6312, %v6310
    %v6351 = vpack.c.b16 %v6315, %v6313
    %v6352 = vpack.c.b16 %v6316, %v6314
    %v6353 = vpack.c.b16 %v6319, %v6317
    %v6354 = vpack.c.b16 %v6320, %v6318
    %v6355 = vpack.c.b16 %v6323, %v6321
    %v6356 = vpack.c.b16 %v6324, %v6322
    %6389 = vmatprep.subr.bf16.mxu0 %v6326
    %6390 = vmatpush1.bf16.msra.mxu0 %v6325
    %6391 = vmatprep.subr.bf16.mxu0 %v6328
    %6392 = vmatpush1.bf16.msra.mxu0 %v6327
    %6393 = vmatprep.subr.bf16.mxu0 %v6330
    %6394 = vmatpush1.bf16.msra.mxu0 %v6329
    %6395 = vmatprep.subr.bf16.mxu0 %v6332
    %6396 = vmatpush1.bf16.msra.mxu0 %v6331
    %6397 = vmatprep.subr.bf16.mxu0 %v6334
    %6398 = vmatpush1.bf16.msra.mxu0 %v6333
    %6399 = vmatprep.subr.bf16.mxu0 %v6336
    %6400 = vmatpush1.bf16.msra.mxu0 %v6335
    %6401 = vmatprep.subr.bf16.mxu0 %v6338
    %6402 = vmatpush1.bf16.msra.mxu0 %v6337
    %6403 = vmatprep.subr.bf16.mxu0 %v6340
    %6404 = vmatpush1.bf16.msra.mxu0 %v6339
    %6405 = vmatprep.subr.bf16.mxu0 %v6342
    %6406 = vmatpush1.bf16.msra.mxu0 %v6341
    %6407 = vmatprep.subr.bf16.mxu0 %v6344
    %6408 = vmatpush1.bf16.msra.mxu0 %v6343
    %6409 = vmatprep.subr.bf16.mxu0 %v6346
    %6410 = vmatpush1.bf16.msra.mxu0 %v6345
    %6411 = vmatprep.subr.bf16.mxu0 %v6348
    %6412 = vmatpush1.bf16.msra.mxu0 %v6347
    %6413 = vmatprep.subr.bf16.mxu0 %v6350
    %6414 = vmatpush1.bf16.msra.mxu0 %v6349
    %6415 = vmatprep.subr.bf16.mxu0 %v6352
    %6416 = vmatpush1.bf16.msra.mxu0 %v6351
    %6417 = vmatprep.subr.bf16.mxu0 %v6354
    %6418 = vmatpush1.bf16.msra.mxu0 %v6353
    %6419 = vmatprep.subr.bf16.mxu0 %v6356
    %6420 = vmatpush1.bf16.msra.mxu0 %v6355
    %6421 = vmatprep.mubr.bf16.mxu0 %v6196
    %6422 = vmatmul.mubr.bf16.gmra.mrb[0].mxu0 %v6195
    %v6423 = vpop.f32.mrb[0].mxu0
    %v6424 = vadd.f32 0.0, %v6423
    %v6425 = vpop.f32.mrb[0].mxu0
    %v6426 = vadd.f32 0.0, %v6425
    %v6427 = vpop.f32.mrb[0].mxu0
    %v6428 = vpop.f32.mrb[0].mxu0
    %6429 = vdwg.mxu0
    %v6430 = vld [vmem:[#allocation2] sm:$0xff]
    %v6431 = vld [vmem:[#allocation2 + $0x8] sm:$0xff]
    %v6432 = vadd.f32 %v6430, %v6424
    %v6433 = vadd.f32 %v6431, %v6426
    %6434 = vst [vmem:[#allocation2] sm:$0xff] %v6432
    %6435 = vst [vmem:[#allocation2 + $0x8] sm:$0xff] %v6433
    %v6436 = vld [vmem:[#allocation6 + $0x2e] sm:$0x3]
    %v6437 = vld [vmem:[#allocation8 + $0x2e] sm:$0x3]
    %6438 = vset.pattern.permute.xlu0 23
    %6439 = vperm.xlu0 %6438, %v113
    %v6440 = vpop.permute.xlu0 %6439
    %v6443 = vlaneseq
    %v6444 = vshrl.u32 %v6443, 7
    %v6445 = vsub.s32 0, %v6444
    %v6446 = vrot.slane %v6436, %v6445
    %v6447 = vlaneseq
    %v6448 = vshrl.u32 %v6447, 7
    %v6449 = vsub.s32 1, %v6448
    %v6450 = vrot.slane %v6436, %v6449
    %v6453 = vmul.f32 %v6440, %v6446
    %v6454 = vmul.f32 %v6440, %v6450
    %v6456 = vlaneseq
    %v6457 = vshrl.u32 %v6456, 7
    %v6458 = vsub.s32 0, %v6457
    %v6459 = vrot.slane %v6437, %v6458
    %v6460 = vlaneseq
    %v6461 = vshrl.u32 %v6460, 7
    %v6462 = vsub.s32 1, %v6461
    %v6463 = vrot.slane %v6437, %v6462
    %v6466 = vadd.f32 %v6453, %v6459
    %v6467 = vadd.f32 %v6454, %v6463
    %v6468 = vmax.f32 %v6466, 0.0
    %v6469 = vmax.f32 %v6467, 0.0
    %v6470 = vpack.c.bf16 %v6468, %v6468
    %v6471 = vpack.c.bf16 %v6469, %v6469
    %v6472 = vld [vmem:[#allocation9 + $0x1700] sm:$0xff]
    %v6473 = vld [vmem:[#allocation9 + $0x1708] sm:$0xff]
    %v6474 = vld [vmem:[#allocation9 + $0x1710] sm:$0xff]
    %v6475 = vld [vmem:[#allocation9 + $0x1718] sm:$0xff]
    %v6476 = vld [vmem:[#allocation9 + $0x1720] sm:$0xff]
    %v6477 = vld [vmem:[#allocation9 + $0x1728] sm:$0xff]
    %v6478 = vld [vmem:[#allocation9 + $0x1730] sm:$0xff]
    %v6479 = vld [vmem:[#allocation9 + $0x1738] sm:$0xff]
    %v6480 = vld [vmem:[#allocation9 + $0x1740] sm:$0xff]
    %v6481 = vld [vmem:[#allocation9 + $0x1748] sm:$0xff]
    %v6482 = vld [vmem:[#allocation9 + $0x1750] sm:$0xff]
    %v6483 = vld [vmem:[#allocation9 + $0x1758] sm:$0xff]
    %v6484 = vld [vmem:[#allocation9 + $0x1760] sm:$0xff]
    %v6485 = vld [vmem:[#allocation9 + $0x1768] sm:$0xff]
    %v6486 = vld [vmem:[#allocation9 + $0x1770] sm:$0xff]
    %v6487 = vld [vmem:[#allocation9 + $0x1778] sm:$0xff]
    %v6488 = vld [vmem:[#allocation9 + $0x1780] sm:$0xff]
    %v6489 = vld [vmem:[#allocation9 + $0x1788] sm:$0xff]
    %v6490 = vld [vmem:[#allocation9 + $0x1790] sm:$0xff]
    %v6491 = vld [vmem:[#allocation9 + $0x1798] sm:$0xff]
    %v6492 = vld [vmem:[#allocation9 + $0x17a0] sm:$0xff]
    %v6493 = vld [vmem:[#allocation9 + $0x17a8] sm:$0xff]
    %v6494 = vld [vmem:[#allocation9 + $0x17b0] sm:$0xff]
    %v6495 = vld [vmem:[#allocation9 + $0x17b8] sm:$0xff]
    %v6496 = vld [vmem:[#allocation9 + $0x17c0] sm:$0xff]
    %v6497 = vld [vmem:[#allocation9 + $0x17c8] sm:$0xff]
    %v6498 = vld [vmem:[#allocation9 + $0x17d0] sm:$0xff]
    %v6499 = vld [vmem:[#allocation9 + $0x17d8] sm:$0xff]
    %v6500 = vld [vmem:[#allocation9 + $0x17e0] sm:$0xff]
    %v6501 = vld [vmem:[#allocation9 + $0x17e8] sm:$0xff]
    %v6502 = vld [vmem:[#allocation9 + $0x17f0] sm:$0xff]
    %v6503 = vld [vmem:[#allocation9 + $0x17f8] sm:$0xff]
    %v6536 = vunpack.c.l.b16 %v6472
    %v6537 = vunpack.c.h.b16 %v6472
    %v6538 = vunpack.c.l.b16 %v6473
    %v6539 = vunpack.c.h.b16 %v6473
    %v6540 = vunpack.c.l.b16 %v6474
    %v6541 = vunpack.c.h.b16 %v6474
    %v6542 = vunpack.c.l.b16 %v6475
    %v6543 = vunpack.c.h.b16 %v6475
    %v6544 = vunpack.c.l.b16 %v6476
    %v6545 = vunpack.c.h.b16 %v6476
    %v6546 = vunpack.c.l.b16 %v6477
    %v6547 = vunpack.c.h.b16 %v6477
    %v6548 = vunpack.c.l.b16 %v6478
    %v6549 = vunpack.c.h.b16 %v6478
    %v6550 = vunpack.c.l.b16 %v6479
    %v6551 = vunpack.c.h.b16 %v6479
    %v6552 = vunpack.c.l.b16 %v6480
    %v6553 = vunpack.c.h.b16 %v6480
    %v6554 = vunpack.c.l.b16 %v6481
    %v6555 = vunpack.c.h.b16 %v6481
    %v6556 = vunpack.c.l.b16 %v6482
    %v6557 = vunpack.c.h.b16 %v6482
    %v6558 = vunpack.c.l.b16 %v6483
    %v6559 = vunpack.c.h.b16 %v6483
    %v6560 = vunpack.c.l.b16 %v6484
    %v6561 = vunpack.c.h.b16 %v6484
    %v6562 = vunpack.c.l.b16 %v6485
    %v6563 = vunpack.c.h.b16 %v6485
    %v6564 = vunpack.c.l.b16 %v6486
    %v6565 = vunpack.c.h.b16 %v6486
    %v6566 = vunpack.c.l.b16 %v6487
    %v6567 = vunpack.c.h.b16 %v6487
    %v6568 = vunpack.c.l.b16 %v6488
    %v6569 = vunpack.c.h.b16 %v6488
    %v6570 = vunpack.c.l.b16 %v6489
    %v6571 = vunpack.c.h.b16 %v6489
    %v6572 = vunpack.c.l.b16 %v6490
    %v6573 = vunpack.c.h.b16 %v6490
    %v6574 = vunpack.c.l.b16 %v6491
    %v6575 = vunpack.c.h.b16 %v6491
    %v6576 = vunpack.c.l.b16 %v6492
    %v6577 = vunpack.c.h.b16 %v6492
    %v6578 = vunpack.c.l.b16 %v6493
    %v6579 = vunpack.c.h.b16 %v6493
    %v6580 = vunpack.c.l.b16 %v6494
    %v6581 = vunpack.c.h.b16 %v6494
    %v6582 = vunpack.c.l.b16 %v6495
    %v6583 = vunpack.c.h.b16 %v6495
    %v6584 = vunpack.c.l.b16 %v6496
    %v6585 = vunpack.c.h.b16 %v6496
    %v6586 = vunpack.c.l.b16 %v6497
    %v6587 = vunpack.c.h.b16 %v6497
    %v6588 = vunpack.c.l.b16 %v6498
    %v6589 = vunpack.c.h.b16 %v6498
    %v6590 = vunpack.c.l.b16 %v6499
    %v6591 = vunpack.c.h.b16 %v6499
    %v6592 = vunpack.c.l.b16 %v6500
    %v6593 = vunpack.c.h.b16 %v6500
    %v6594 = vunpack.c.l.b16 %v6501
    %v6595 = vunpack.c.h.b16 %v6501
    %v6596 = vunpack.c.l.b16 %v6502
    %v6597 = vunpack.c.h.b16 %v6502
    %v6598 = vunpack.c.l.b16 %v6503
    %v6599 = vunpack.c.h.b16 %v6503
    %v6600 = vpack.c.b16 %v6538, %v6536
    %v6601 = vpack.c.b16 %v6539, %v6537
    %v6602 = vpack.c.b16 %v6542, %v6540
    %v6603 = vpack.c.b16 %v6543, %v6541
    %v6604 = vpack.c.b16 %v6546, %v6544
    %v6605 = vpack.c.b16 %v6547, %v6545
    %v6606 = vpack.c.b16 %v6550, %v6548
    %v6607 = vpack.c.b16 %v6551, %v6549
    %v6608 = vpack.c.b16 %v6554, %v6552
    %v6609 = vpack.c.b16 %v6555, %v6553
    %v6610 = vpack.c.b16 %v6558, %v6556
    %v6611 = vpack.c.b16 %v6559, %v6557
    %v6612 = vpack.c.b16 %v6562, %v6560
    %v6613 = vpack.c.b16 %v6563, %v6561
    %v6614 = vpack.c.b16 %v6566, %v6564
    %v6615 = vpack.c.b16 %v6567, %v6565
    %v6616 = vpack.c.b16 %v6570, %v6568
    %v6617 = vpack.c.b16 %v6571, %v6569
    %v6618 = vpack.c.b16 %v6574, %v6572
    %v6619 = vpack.c.b16 %v6575, %v6573
    %v6620 = vpack.c.b16 %v6578, %v6576
    %v6621 = vpack.c.b16 %v6579, %v6577
    %v6622 = vpack.c.b16 %v6582, %v6580
    %v6623 = vpack.c.b16 %v6583, %v6581
    %v6624 = vpack.c.b16 %v6586, %v6584
    %v6625 = vpack.c.b16 %v6587, %v6585
    %v6626 = vpack.c.b16 %v6590, %v6588
    %v6627 = vpack.c.b16 %v6591, %v6589
    %v6628 = vpack.c.b16 %v6594, %v6592
    %v6629 = vpack.c.b16 %v6595, %v6593
    %v6630 = vpack.c.b16 %v6598, %v6596
    %v6631 = vpack.c.b16 %v6599, %v6597
    %6664 = vmatprep.subr.bf16.mxu0 %v6601
    %6665 = vmatpush1.bf16.msra.mxu0 %v6600
    %6666 = vmatprep.subr.bf16.mxu0 %v6603
    %6667 = vmatpush1.bf16.msra.mxu0 %v6602
    %6668 = vmatprep.subr.bf16.mxu0 %v6605
    %6669 = vmatpush1.bf16.msra.mxu0 %v6604
    %6670 = vmatprep.subr.bf16.mxu0 %v6607
    %6671 = vmatpush1.bf16.msra.mxu0 %v6606
    %6672 = vmatprep.subr.bf16.mxu0 %v6609
    %6673 = vmatpush1.bf16.msra.mxu0 %v6608
    %6674 = vmatprep.subr.bf16.mxu0 %v6611
    %6675 = vmatpush1.bf16.msra.mxu0 %v6610
    %6676 = vmatprep.subr.bf16.mxu0 %v6613
    %6677 = vmatpush1.bf16.msra.mxu0 %v6612
    %6678 = vmatprep.subr.bf16.mxu0 %v6615
    %6679 = vmatpush1.bf16.msra.mxu0 %v6614
    %6680 = vmatprep.subr.bf16.mxu0 %v6617
    %6681 = vmatpush1.bf16.msra.mxu0 %v6616
    %6682 = vmatprep.subr.bf16.mxu0 %v6619
    %6683 = vmatpush1.bf16.msra.mxu0 %v6618
    %6684 = vmatprep.subr.bf16.mxu0 %v6621
    %6685 = vmatpush1.bf16.msra.mxu0 %v6620
    %6686 = vmatprep.subr.bf16.mxu0 %v6623
    %6687 = vmatpush1.bf16.msra.mxu0 %v6622
    %6688 = vmatprep.subr.bf16.mxu0 %v6625
    %6689 = vmatpush1.bf16.msra.mxu0 %v6624
    %6690 = vmatprep.subr.bf16.mxu0 %v6627
    %6691 = vmatpush1.bf16.msra.mxu0 %v6626
    %6692 = vmatprep.subr.bf16.mxu0 %v6629
    %6693 = vmatpush1.bf16.msra.mxu0 %v6628
    %6694 = vmatprep.subr.bf16.mxu0 %v6631
    %6695 = vmatpush1.bf16.msra.mxu0 %v6630
    %6696 = vmatprep.mubr.bf16.mxu0 %v6471
    %6697 = vmatmul.mubr.bf16.gmra.mrb[0].mxu0 %v6470
    %v6698 = vpop.f32.mrb[0].mxu0
    %v6699 = vadd.f32 0.0, %v6698
    %v6700 = vpop.f32.mrb[0].mxu0
    %v6701 = vadd.f32 0.0, %v6700
    %v6702 = vpop.f32.mrb[0].mxu0
    %v6703 = vpop.f32.mrb[0].mxu0
    %6704 = vdwg.mxu0
    %v6705 = vld [vmem:[#allocation2] sm:$0xff]
    %v6706 = vld [vmem:[#allocation2 + $0x8] sm:$0xff]
    %v6707 = vadd.f32 %v6705, %v6699
    %v6708 = vadd.f32 %v6706, %v6701
    %6709 = vst [vmem:[#allocation2] sm:$0xff] %v6707
    %6710 = vst [vmem:[#allocation2 + $0x8] sm:$0xff] %v6708
    %v6711 = vld [vmem:[#allocation6 + $0x30] sm:$0x3]
    %v6712 = vld [vmem:[#allocation8 + $0x30] sm:$0x3]
    %6713 = vset.pattern.permute.xlu0 24
    %6714 = vperm.xlu0 %6713, %v113
    %v6715 = vpop.permute.xlu0 %6714
    %v6718 = vlaneseq
    %v6719 = vshrl.u32 %v6718, 7
    %v6720 = vsub.s32 0, %v6719
    %v6721 = vrot.slane %v6711, %v6720
    %v6722 = vlaneseq
    %v6723 = vshrl.u32 %v6722, 7
    %v6724 = vsub.s32 1, %v6723
    %v6725 = vrot.slane %v6711, %v6724
    %v6728 = vmul.f32 %v6715, %v6721
    %v6729 = vmul.f32 %v6715, %v6725
    %v6731 = vlaneseq
    %v6732 = vshrl.u32 %v6731, 7
    %v6733 = vsub.s32 0, %v6732
    %v6734 = vrot.slane %v6712, %v6733
    %v6735 = vlaneseq
    %v6736 = vshrl.u32 %v6735, 7
    %v6737 = vsub.s32 1, %v6736
    %v6738 = vrot.slane %v6712, %v6737
    %v6741 = vadd.f32 %v6728, %v6734
    %v6742 = vadd.f32 %v6729, %v6738
    %v6743 = vmax.f32 %v6741, 0.0
    %v6744 = vmax.f32 %v6742, 0.0
    %v6745 = vpack.c.bf16 %v6743, %v6743
    %v6746 = vpack.c.bf16 %v6744, %v6744
    %v6747 = vld [vmem:[#allocation9 + $0x1800] sm:$0xff]
    %v6748 = vld [vmem:[#allocation9 + $0x1808] sm:$0xff]
    %v6749 = vld [vmem:[#allocation9 + $0x1810] sm:$0xff]
    %v6750 = vld [vmem:[#allocation9 + $0x1818] sm:$0xff]
    %v6751 = vld [vmem:[#allocation9 + $0x1820] sm:$0xff]
    %v6752 = vld [vmem:[#allocation9 + $0x1828] sm:$0xff]
    %v6753 = vld [vmem:[#allocation9 + $0x1830] sm:$0xff]
    %v6754 = vld [vmem:[#allocation9 + $0x1838] sm:$0xff]
    %v6755 = vld [vmem:[#allocation9 + $0x1840] sm:$0xff]
    %v6756 = vld [vmem:[#allocation9 + $0x1848] sm:$0xff]
    %v6757 = vld [vmem:[#allocation9 + $0x1850] sm:$0xff]
    %v6758 = vld [vmem:[#allocation9 + $0x1858] sm:$0xff]
    %v6759 = vld [vmem:[#allocation9 + $0x1860] sm:$0xff]
    %v6760 = vld [vmem:[#allocation9 + $0x1868] sm:$0xff]
    %v6761 = vld [vmem:[#allocation9 + $0x1870] sm:$0xff]
    %v6762 = vld [vmem:[#allocation9 + $0x1878] sm:$0xff]
    %v6763 = vld [vmem:[#allocation9 + $0x1880] sm:$0xff]
    %v6764 = vld [vmem:[#allocation9 + $0x1888] sm:$0xff]
    %v6765 = vld [vmem:[#allocation9 + $0x1890] sm:$0xff]
    %v6766 = vld [vmem:[#allocation9 + $0x1898] sm:$0xff]
    %v6767 = vld [vmem:[#allocation9 + $0x18a0] sm:$0xff]
    %v6768 = vld [vmem:[#allocation9 + $0x18a8] sm:$0xff]
    %v6769 = vld [vmem:[#allocation9 + $0x18b0] sm:$0xff]
    %v6770 = vld [vmem:[#allocation9 + $0x18b8] sm:$0xff]
    %v6771 = vld [vmem:[#allocation9 + $0x18c0] sm:$0xff]
    %v6772 = vld [vmem:[#allocation9 + $0x18c8] sm:$0xff]
    %v6773 = vld [vmem:[#allocation9 + $0x18d0] sm:$0xff]
    %v6774 = vld [vmem:[#allocation9 + $0x18d8] sm:$0xff]
    %v6775 = vld [vmem:[#allocation9 + $0x18e0] sm:$0xff]
    %v6776 = vld [vmem:[#allocation9 + $0x18e8] sm:$0xff]
    %v6777 = vld [vmem:[#allocation9 + $0x18f0] sm:$0xff]
    %v6778 = vld [vmem:[#allocation9 + $0x18f8] sm:$0xff]
    %v6811 = vunpack.c.l.b16 %v6747
    %v6812 = vunpack.c.h.b16 %v6747
    %v6813 = vunpack.c.l.b16 %v6748
    %v6814 = vunpack.c.h.b16 %v6748
    %v6815 = vunpack.c.l.b16 %v6749
    %v6816 = vunpack.c.h.b16 %v6749
    %v6817 = vunpack.c.l.b16 %v6750
    %v6818 = vunpack.c.h.b16 %v6750
    %v6819 = vunpack.c.l.b16 %v6751
    %v6820 = vunpack.c.h.b16 %v6751
    %v6821 = vunpack.c.l.b16 %v6752
    %v6822 = vunpack.c.h.b16 %v6752
    %v6823 = vunpack.c.l.b16 %v6753
    %v6824 = vunpack.c.h.b16 %v6753
    %v6825 = vunpack.c.l.b16 %v6754
    %v6826 = vunpack.c.h.b16 %v6754
    %v6827 = vunpack.c.l.b16 %v6755
    %v6828 = vunpack.c.h.b16 %v6755
    %v6829 = vunpack.c.l.b16 %v6756
    %v6830 = vunpack.c.h.b16 %v6756
    %v6831 = vunpack.c.l.b16 %v6757
    %v6832 = vunpack.c.h.b16 %v6757
    %v6833 = vunpack.c.l.b16 %v6758
    %v6834 = vunpack.c.h.b16 %v6758
    %v6835 = vunpack.c.l.b16 %v6759
    %v6836 = vunpack.c.h.b16 %v6759
    %v6837 = vunpack.c.l.b16 %v6760
    %v6838 = vunpack.c.h.b16 %v6760
    %v6839 = vunpack.c.l.b16 %v6761
    %v6840 = vunpack.c.h.b16 %v6761
    %v6841 = vunpack.c.l.b16 %v6762
    %v6842 = vunpack.c.h.b16 %v6762
    %v6843 = vunpack.c.l.b16 %v6763
    %v6844 = vunpack.c.h.b16 %v6763
    %v6845 = vunpack.c.l.b16 %v6764
    %v6846 = vunpack.c.h.b16 %v6764
    %v6847 = vunpack.c.l.b16 %v6765
    %v6848 = vunpack.c.h.b16 %v6765
    %v6849 = vunpack.c.l.b16 %v6766
    %v6850 = vunpack.c.h.b16 %v6766
    %v6851 = vunpack.c.l.b16 %v6767
    %v6852 = vunpack.c.h.b16 %v6767
    %v6853 = vunpack.c.l.b16 %v6768
    %v6854 = vunpack.c.h.b16 %v6768
    %v6855 = vunpack.c.l.b16 %v6769
    %v6856 = vunpack.c.h.b16 %v6769
    %v6857 = vunpack.c.l.b16 %v6770
    %v6858 = vunpack.c.h.b16 %v6770
    %v6859 = vunpack.c.l.b16 %v6771
    %v6860 = vunpack.c.h.b16 %v6771
    %v6861 = vunpack.c.l.b16 %v6772
    %v6862 = vunpack.c.h.b16 %v6772
    %v6863 = vunpack.c.l.b16 %v6773
    %v6864 = vunpack.c.h.b16 %v6773
    %v6865 = vunpack.c.l.b16 %v6774
    %v6866 = vunpack.c.h.b16 %v6774
    %v6867 = vunpack.c.l.b16 %v6775
    %v6868 = vunpack.c.h.b16 %v6775
    %v6869 = vunpack.c.l.b16 %v6776
    %v6870 = vunpack.c.h.b16 %v6776
    %v6871 = vunpack.c.l.b16 %v6777
    %v6872 = vunpack.c.h.b16 %v6777
    %v6873 = vunpack.c.l.b16 %v6778
    %v6874 = vunpack.c.h.b16 %v6778
    %v6875 = vpack.c.b16 %v6813, %v6811
    %v6876 = vpack.c.b16 %v6814, %v6812
    %v6877 = vpack.c.b16 %v6817, %v6815
    %v6878 = vpack.c.b16 %v6818, %v6816
    %v6879 = vpack.c.b16 %v6821, %v6819
    %v6880 = vpack.c.b16 %v6822, %v6820
    %v6881 = vpack.c.b16 %v6825, %v6823
    %v6882 = vpack.c.b16 %v6826, %v6824
    %v6883 = vpack.c.b16 %v6829, %v6827
    %v6884 = vpack.c.b16 %v6830, %v6828
    %v6885 = vpack.c.b16 %v6833, %v6831
    %v6886 = vpack.c.b16 %v6834, %v6832
    %v6887 = vpack.c.b16 %v6837, %v6835
    %v6888 = vpack.c.b16 %v6838, %v6836
    %v6889 = vpack.c.b16 %v6841, %v6839
    %v6890 = vpack.c.b16 %v6842, %v6840
    %v6891 = vpack.c.b16 %v6845, %v6843
    %v6892 = vpack.c.b16 %v6846, %v6844
    %v6893 = vpack.c.b16 %v6849, %v6847
    %v6894 = vpack.c.b16 %v6850, %v6848
    %v6895 = vpack.c.b16 %v6853, %v6851
    %v6896 = vpack.c.b16 %v6854, %v6852
    %v6897 = vpack.c.b16 %v6857, %v6855
    %v6898 = vpack.c.b16 %v6858, %v6856
    %v6899 = vpack.c.b16 %v6861, %v6859
    %v6900 = vpack.c.b16 %v6862, %v6860
    %v6901 = vpack.c.b16 %v6865, %v6863
    %v6902 = vpack.c.b16 %v6866, %v6864
    %v6903 = vpack.c.b16 %v6869, %v6867
    %v6904 = vpack.c.b16 %v6870, %v6868
    %v6905 = vpack.c.b16 %v6873, %v6871
    %v6906 = vpack.c.b16 %v6874, %v6872
    %6939 = vmatprep.subr.bf16.mxu0 %v6876
    %6940 = vmatpush1.bf16.msra.mxu0 %v6875
    %6941 = vmatprep.subr.bf16.mxu0 %v6878
    %6942 = vmatpush1.bf16.msra.mxu0 %v6877
    %6943 = vmatprep.subr.bf16.mxu0 %v6880
    %6944 = vmatpush1.bf16.msra.mxu0 %v6879
    %6945 = vmatprep.subr.bf16.mxu0 %v6882
    %6946 = vmatpush1.bf16.msra.mxu0 %v6881
    %6947 = vmatprep.subr.bf16.mxu0 %v6884
    %6948 = vmatpush1.bf16.msra.mxu0 %v6883
    %6949 = vmatprep.subr.bf16.mxu0 %v6886
    %6950 = vmatpush1.bf16.msra.mxu0 %v6885
    %6951 = vmatprep.subr.bf16.mxu0 %v6888
    %6952 = vmatpush1.bf16.msra.mxu0 %v6887
    %6953 = vmatprep.subr.bf16.mxu0 %v6890
    %6954 = vmatpush1.bf16.msra.mxu0 %v6889
    %6955 = vmatprep.subr.bf16.mxu0 %v6892
    %6956 = vmatpush1.bf16.msra.mxu0 %v6891
    %6957 = vmatprep.subr.bf16.mxu0 %v6894
    %6958 = vmatpush1.bf16.msra.mxu0 %v6893
    %6959 = vmatprep.subr.bf16.mxu0 %v6896
    %6960 = vmatpush1.bf16.msra.mxu0 %v6895
    %6961 = vmatprep.subr.bf16.mxu0 %v6898
    %6962 = vmatpush1.bf16.msra.mxu0 %v6897
    %6963 = vmatprep.subr.bf16.mxu0 %v6900
    %6964 = vmatpush1.bf16.msra.mxu0 %v6899
    %6965 = vmatprep.subr.bf16.mxu0 %v6902
    %6966 = vmatpush1.bf16.msra.mxu0 %v6901
    %6967 = vmatprep.subr.bf16.mxu0 %v6904
    %6968 = vmatpush1.bf16.msra.mxu0 %v6903
    %6969 = vmatprep.subr.bf16.mxu0 %v6906
    %6970 = vmatpush1.bf16.msra.mxu0 %v6905
    %6971 = vmatprep.mubr.bf16.mxu0 %v6746
    %6972 = vmatmul.mubr.bf16.gmra.mrb[0].mxu0 %v6745
    %v6973 = vpop.f32.mrb[0].mxu0
    %v6974 = vadd.f32 0.0, %v6973
    %v6975 = vpop.f32.mrb[0].mxu0
    %v6976 = vadd.f32 0.0, %v6975
    %v6977 = vpop.f32.mrb[0].mxu0
    %v6978 = vpop.f32.mrb[0].mxu0
    %6979 = vdwg.mxu0
    %v6980 = vld [vmem:[#allocation2] sm:$0xff]
    %v6981 = vld [vmem:[#allocation2 + $0x8] sm:$0xff]
    %v6982 = vadd.f32 %v6980, %v6974
    %v6983 = vadd.f32 %v6981, %v6976
    %6984 = vst [vmem:[#allocation2] sm:$0xff] %v6982
    %6985 = vst [vmem:[#allocation2 + $0x8] sm:$0xff] %v6983
    %v6986 = vld [vmem:[#allocation6 + $0x32] sm:$0x3]
    %v6987 = vld [vmem:[#allocation8 + $0x32] sm:$0x3]
    %6988 = vset.pattern.permute.xlu0 25
    %6989 = vperm.xlu0 %6988, %v113
    %v6990 = vpop.permute.xlu0 %6989
    %v6993 = vlaneseq
    %v6994 = vshrl.u32 %v6993, 7
    %v6995 = vsub.s32 0, %v6994
    %v6996 = vrot.slane %v6986, %v6995
    %v6997 = vlaneseq
    %v6998 = vshrl.u32 %v6997, 7
    %v6999 = vsub.s32 1, %v6998
    %v7000 = vrot.slane %v6986, %v6999
    %v7003 = vmul.f32 %v6990, %v6996
    %v7004 = vmul.f32 %v6990, %v7000
    %v7006 = vlaneseq
    %v7007 = vshrl.u32 %v7006, 7
    %v7008 = vsub.s32 0, %v7007
    %v7009 = vrot.slane %v6987, %v7008
    %v7010 = vlaneseq
    %v7011 = vshrl.u32 %v7010, 7
    %v7012 = vsub.s32 1, %v7011
    %v7013 = vrot.slane %v6987, %v7012
    %v7016 = vadd.f32 %v7003, %v7009
    %v7017 = vadd.f32 %v7004, %v7013
    %v7018 = vmax.f32 %v7016, 0.0
    %v7019 = vmax.f32 %v7017, 0.0
    %v7020 = vpack.c.bf16 %v7018, %v7018
    %v7021 = vpack.c.bf16 %v7019, %v7019
    %v7022 = vld [vmem:[#allocation9 + $0x1900] sm:$0xff]
    %v7023 = vld [vmem:[#allocation9 + $0x1908] sm:$0xff]
    %v7024 = vld [vmem:[#allocation9 + $0x1910] sm:$0xff]
    %v7025 = vld [vmem:[#allocation9 + $0x1918] sm:$0xff]
    %v7026 = vld [vmem:[#allocation9 + $0x1920] sm:$0xff]
    %v7027 = vld [vmem:[#allocation9 + $0x1928] sm:$0xff]
    %v7028 = vld [vmem:[#allocation9 + $0x1930] sm:$0xff]
    %v7029 = vld [vmem:[#allocation9 + $0x1938] sm:$0xff]
    %v7030 = vld [vmem:[#allocation9 + $0x1940] sm:$0xff]
    %v7031 = vld [vmem:[#allocation9 + $0x1948] sm:$0xff]
    %v7032 = vld [vmem:[#allocation9 + $0x1950] sm:$0xff]
    %v7033 = vld [vmem:[#allocation9 + $0x1958] sm:$0xff]
    %v7034 = vld [vmem:[#allocation9 + $0x1960] sm:$0xff]
    %v7035 = vld [vmem:[#allocation9 + $0x1968] sm:$0xff]
    %v7036 = vld [vmem:[#allocation9 + $0x1970] sm:$0xff]
    %v7037 = vld [vmem:[#allocation9 + $0x1978] sm:$0xff]
    %v7038 = vld [vmem:[#allocation9 + $0x1980] sm:$0xff]
    %v7039 = vld [vmem:[#allocation9 + $0x1988] sm:$0xff]
    %v7040 = vld [vmem:[#allocation9 + $0x1990] sm:$0xff]
    %v7041 = vld [vmem:[#allocation9 + $0x1998] sm:$0xff]
    %v7042 = vld [vmem:[#allocation9 + $0x19a0] sm:$0xff]
    %v7043 = vld [vmem:[#allocation9 + $0x19a8] sm:$0xff]
    %v7044 = vld [vmem:[#allocation9 + $0x19b0] sm:$0xff]
    %v7045 = vld [vmem:[#allocation9 + $0x19b8] sm:$0xff]
    %v7046 = vld [vmem:[#allocation9 + $0x19c0] sm:$0xff]
    %v7047 = vld [vmem:[#allocation9 + $0x19c8] sm:$0xff]
    %v7048 = vld [vmem:[#allocation9 + $0x19d0] sm:$0xff]
    %v7049 = vld [vmem:[#allocation9 + $0x19d8] sm:$0xff]
    %v7050 = vld [vmem:[#allocation9 + $0x19e0] sm:$0xff]
    %v7051 = vld [vmem:[#allocation9 + $0x19e8] sm:$0xff]
    %v7052 = vld [vmem:[#allocation9 + $0x19f0] sm:$0xff]
    %v7053 = vld [vmem:[#allocation9 + $0x19f8] sm:$0xff]
    %v7086 = vunpack.c.l.b16 %v7022
    %v7087 = vunpack.c.h.b16 %v7022
    %v7088 = vunpack.c.l.b16 %v7023
    %v7089 = vunpack.c.h.b16 %v7023
    %v7090 = vunpack.c.l.b16 %v7024
    %v7091 = vunpack.c.h.b16 %v7024
    %v7092 = vunpack.c.l.b16 %v7025
    %v7093 = vunpack.c.h.b16 %v7025
    %v7094 = vunpack.c.l.b16 %v7026
    %v7095 = vunpack.c.h.b16 %v7026
    %v7096 = vunpack.c.l.b16 %v7027
    %v7097 = vunpack.c.h.b16 %v7027
    %v7098 = vunpack.c.l.b16 %v7028
    %v7099 = vunpack.c.h.b16 %v7028
    %v7100 = vunpack.c.l.b16 %v7029
    %v7101 = vunpack.c.h.b16 %v7029
    %v7102 = vunpack.c.l.b16 %v7030
    %v7103 = vunpack.c.h.b16 %v7030
    %v7104 = vunpack.c.l.b16 %v7031
    %v7105 = vunpack.c.h.b16 %v7031
    %v7106 = vunpack.c.l.b16 %v7032
    %v7107 = vunpack.c.h.b16 %v7032
    %v7108 = vunpack.c.l.b16 %v7033
    %v7109 = vunpack.c.h.b16 %v7033
    %v7110 = vunpack.c.l.b16 %v7034
    %v7111 = vunpack.c.h.b16 %v7034
    %v7112 = vunpack.c.l.b16 %v7035
    %v7113 = vunpack.c.h.b16 %v7035
    %v7114 = vunpack.c.l.b16 %v7036
    %v7115 = vunpack.c.h.b16 %v7036
    %v7116 = vunpack.c.l.b16 %v7037
    %v7117 = vunpack.c.h.b16 %v7037
    %v7118 = vunpack.c.l.b16 %v7038
    %v7119 = vunpack.c.h.b16 %v7038
    %v7120 = vunpack.c.l.b16 %v7039
    %v7121 = vunpack.c.h.b16 %v7039
    %v7122 = vunpack.c.l.b16 %v7040
    %v7123 = vunpack.c.h.b16 %v7040
    %v7124 = vunpack.c.l.b16 %v7041
    %v7125 = vunpack.c.h.b16 %v7041
    %v7126 = vunpack.c.l.b16 %v7042
    %v7127 = vunpack.c.h.b16 %v7042
    %v7128 = vunpack.c.l.b16 %v7043
    %v7129 = vunpack.c.h.b16 %v7043
    %v7130 = vunpack.c.l.b16 %v7044
    %v7131 = vunpack.c.h.b16 %v7044
    %v7132 = vunpack.c.l.b16 %v7045
    %v7133 = vunpack.c.h.b16 %v7045
    %v7134 = vunpack.c.l.b16 %v7046
    %v7135 = vunpack.c.h.b16 %v7046
    %v7136 = vunpack.c.l.b16 %v7047
    %v7137 = vunpack.c.h.b16 %v7047
    %v7138 = vunpack.c.l.b16 %v7048
    %v7139 = vunpack.c.h.b16 %v7048
    %v7140 = vunpack.c.l.b16 %v7049
    %v7141 = vunpack.c.h.b16 %v7049
    %v7142 = vunpack.c.l.b16 %v7050
    %v7143 = vunpack.c.h.b16 %v7050
    %v7144 = vunpack.c.l.b16 %v7051
    %v7145 = vunpack.c.h.b16 %v7051
    %v7146 = vunpack.c.l.b16 %v7052
    %v7147 = vunpack.c.h.b16 %v7052
    %v7148 = vunpack.c.l.b16 %v7053
    %v7149 = vunpack.c.h.b16 %v7053
    %v7150 = vpack.c.b16 %v7088, %v7086
    %v7151 = vpack.c.b16 %v7089, %v7087
    %v7152 = vpack.c.b16 %v7092, %v7090
    %v7153 = vpack.c.b16 %v7093, %v7091
    %v7154 = vpack.c.b16 %v7096, %v7094
    %v7155 = vpack.c.b16 %v7097, %v7095
    %v7156 = vpack.c.b16 %v7100, %v7098
    %v7157 = vpack.c.b16 %v7101, %v7099
    %v7158 = vpack.c.b16 %v7104, %v7102
    %v7159 = vpack.c.b16 %v7105, %v7103
    %v7160 = vpack.c.b16 %v7108, %v7106
    %v7161 = vpack.c.b16 %v7109, %v7107
    %v7162 = vpack.c.b16 %v7112, %v7110
    %v7163 = vpack.c.b16 %v7113, %v7111
    %v7164 = vpack.c.b16 %v7116, %v7114
    %v7165 = vpack.c.b16 %v7117, %v7115
    %v7166 = vpack.c.b16 %v7120, %v7118
    %v7167 = vpack.c.b16 %v7121, %v7119
    %v7168 = vpack.c.b16 %v7124, %v7122
    %v7169 = vpack.c.b16 %v7125, %v7123
    %v7170 = vpack.c.b16 %v7128, %v7126
    %v7171 = vpack.c.b16 %v7129, %v7127
    %v7172 = vpack.c.b16 %v7132, %v7130
    %v7173 = vpack.c.b16 %v7133, %v7131
    %v7174 = vpack.c.b16 %v7136, %v7134
    %v7175 = vpack.c.b16 %v7137, %v7135
    %v7176 = vpack.c.b16 %v7140, %v7138
    %v7177 = vpack.c.b16 %v7141, %v7139
    %v7178 = vpack.c.b16 %v7144, %v7142
    %v7179 = vpack.c.b16 %v7145, %v7143
    %v7180 = vpack.c.b16 %v7148, %v7146
    %v7181 = vpack.c.b16 %v7149, %v7147
    %7214 = vmatprep.subr.bf16.mxu0 %v7151
    %7215 = vmatpush1.bf16.msra.mxu0 %v7150
    %7216 = vmatprep.subr.bf16.mxu0 %v7153
    %7217 = vmatpush1.bf16.msra.mxu0 %v7152
    %7218 = vmatprep.subr.bf16.mxu0 %v7155
    %7219 = vmatpush1.bf16.msra.mxu0 %v7154
    %7220 = vmatprep.subr.bf16.mxu0 %v7157
    %7221 = vmatpush1.bf16.msra.mxu0 %v7156
    %7222 = vmatprep.subr.bf16.mxu0 %v7159
    %7223 = vmatpush1.bf16.msra.mxu0 %v7158
    %7224 = vmatprep.subr.bf16.mxu0 %v7161
    %7225 = vmatpush1.bf16.msra.mxu0 %v7160
    %7226 = vmatprep.subr.bf16.mxu0 %v7163
    %7227 = vmatpush1.bf16.msra.mxu0 %v7162
    %7228 = vmatprep.subr.bf16.mxu0 %v7165
    %7229 = vmatpush1.bf16.msra.mxu0 %v7164
    %7230 = vmatprep.subr.bf16.mxu0 %v7167
    %7231 = vmatpush1.bf16.msra.mxu0 %v7166
    %7232 = vmatprep.subr.bf16.mxu0 %v7169
    %7233 = vmatpush1.bf16.msra.mxu0 %v7168
    %7234 = vmatprep.subr.bf16.mxu0 %v7171
    %7235 = vmatpush1.bf16.msra.mxu0 %v7170
    %7236 = vmatprep.subr.bf16.mxu0 %v7173
    %7237 = vmatpush1.bf16.msra.mxu0 %v7172
    %7238 = vmatprep.subr.bf16.mxu0 %v7175
    %7239 = vmatpush1.bf16.msra.mxu0 %v7174
    %7240 = vmatprep.subr.bf16.mxu0 %v7177
    %7241 = vmatpush1.bf16.msra.mxu0 %v7176
    %7242 = vmatprep.subr.bf16.mxu0 %v7179
    %7243 = vmatpush1.bf16.msra.mxu0 %v7178
    %7244 = vmatprep.subr.bf16.mxu0 %v7181
    %7245 = vmatpush1.bf16.msra.mxu0 %v7180
    %7246 = vmatprep.mubr.bf16.mxu0 %v7021
    %7247 = vmatmul.mubr.bf16.gmra.mrb[0].mxu0 %v7020
    %v7248 = vpop.f32.mrb[0].mxu0
    %v7249 = vadd.f32 0.0, %v7248
    %v7250 = vpop.f32.mrb[0].mxu0
    %v7251 = vadd.f32 0.0, %v7250
    %v7252 = vpop.f32.mrb[0].mxu0
    %v7253 = vpop.f32.mrb[0].mxu0
    %7254 = vdwg.mxu0
    %v7255 = vld [vmem:[#allocation2] sm:$0xff]
    %v7256 = vld [vmem:[#allocation2 + $0x8] sm:$0xff]
    %v7257 = vadd.f32 %v7255, %v7249
    %v7258 = vadd.f32 %v7256, %v7251
    %7259 = vst [vmem:[#allocation2] sm:$0xff] %v7257
    %7260 = vst [vmem:[#allocation2 + $0x8] sm:$0xff] %v7258
    %v7261 = vld [vmem:[#allocation2] sm:$0xff]
    %v7262 = vld [vmem:[#allocation2 + $0x8] sm:$0xff]
    %v7263 = vld [vmem:[#allocation11] sm:$0x3]
    %v7265 = vlaneseq
    %v7266 = vshrl.u32 %v7265, 7
    %v7267 = vsub.s32 0, %v7266
    %v7268 = vrot.slane %v7263, %v7267
    %v7269 = vlaneseq
    %v7270 = vshrl.u32 %v7269, 7
    %v7271 = vsub.s32 1, %v7270
    %v7272 = vrot.slane %v7263, %v7271
    %v7275 = vadd.f32 %v7261, %v7268
    %v7276 = vadd.f32 %v7262, %v7272
    %v7277 = vpack.c.bf16 %v7275, %v7275
    %v7278 = vpack.c.bf16 %v7276, %v7276
    %v7279 = vld [vmem:[#allocation12] sm:$0xf]
    %v7280 = vld [vmem:[#allocation12 + $0x4] sm:$0xf]
    %v7281 = vld [vmem:[#allocation12 + $0x8] sm:$0xf]
    %v7282 = vld [vmem:[#allocation12 + $0xc] sm:$0xf]
    %v7283 = vld [vmem:[#allocation12 + $0x10] sm:$0xf]
    %v7284 = vld [vmem:[#allocation12 + $0x14] sm:$0xf]
    %v7285 = vld [vmem:[#allocation12 + $0x18] sm:$0xf]
    %v7286 = vld [vmem:[#allocation12 + $0x1c] sm:$0xf]
    %v7287 = vld [vmem:[#allocation12 + $0x20] sm:$0xf]
    %v7288 = vld [vmem:[#allocation12 + $0x24] sm:$0xf]
    %v7289 = vld [vmem:[#allocation12 + $0x28] sm:$0xf]
    %v7290 = vld [vmem:[#allocation12 + $0x2c] sm:$0xf]
    %v7291 = vld [vmem:[#allocation12 + $0x30] sm:$0xf]
    %v7292 = vld [vmem:[#allocation12 + $0x34] sm:$0xf]
    %v7293 = vld [vmem:[#allocation12 + $0x38] sm:$0xf]
    %v7294 = vld [vmem:[#allocation12 + $0x3c] sm:$0xf]
    %v7295 = vld [vmem:[#allocation12 + $0x40] sm:$0xf]
    %v7296 = vld [vmem:[#allocation12 + $0x44] sm:$0xf]
    %v7297 = vld [vmem:[#allocation12 + $0x48] sm:$0xf]
    %v7298 = vld [vmem:[#allocation12 + $0x4c] sm:$0xf]
    %v7299 = vld [vmem:[#allocation12 + $0x50] sm:$0xf]
    %v7300 = vld [vmem:[#allocation12 + $0x54] sm:$0xf]
    %v7301 = vld [vmem:[#allocation12 + $0x58] sm:$0xf]
    %v7302 = vld [vmem:[#allocation12 + $0x5c] sm:$0xf]
    %v7303 = vld [vmem:[#allocation12 + $0x60] sm:$0xf]
    %v7304 = vld [vmem:[#allocation12 + $0x64] sm:$0xf]
    %v7305 = vld [vmem:[#allocation12 + $0x68] sm:$0xf]
    %v7306 = vld [vmem:[#allocation12 + $0x6c] sm:$0xf]
    %v7307 = vld [vmem:[#allocation12 + $0x70] sm:$0xf]
    %v7308 = vld [vmem:[#allocation12 + $0x74] sm:$0xf]
    %v7309 = vld [vmem:[#allocation12 + $0x78] sm:$0xf]
    %v7310 = vld [vmem:[#allocation12 + $0x7c] sm:$0xf]
    %v7311 = vld [vmem:[#allocation14] sm:$0x1]
    %v7313 = vlaneseq
    %v7314 = vshrl.u32 %v7313, 7
    %v7315 = vsub.s32 0, %v7314
    %v7316 = vrot.slane %v7311, %v7315
    %v7350 = vunpack.c.l.b16 %v7279
    %v7351 = vunpack.c.l.b16 %v7280
    %v7352 = vunpack.c.l.b16 %v7281
    %v7353 = vunpack.c.l.b16 %v7282
    %v7354 = vunpack.c.l.b16 %v7283
    %v7355 = vunpack.c.l.b16 %v7284
    %v7356 = vunpack.c.l.b16 %v7285
    %v7357 = vunpack.c.l.b16 %v7286
    %v7358 = vunpack.c.l.b16 %v7287
    %v7359 = vunpack.c.l.b16 %v7288
    %v7360 = vunpack.c.l.b16 %v7289
    %v7361 = vunpack.c.l.b16 %v7290
    %v7362 = vunpack.c.l.b16 %v7291
    %v7363 = vunpack.c.l.b16 %v7292
    %v7364 = vunpack.c.l.b16 %v7293
    %v7365 = vunpack.c.l.b16 %v7294
    %v7366 = vunpack.c.l.b16 %v7295
    %v7367 = vunpack.c.l.b16 %v7296
    %v7368 = vunpack.c.l.b16 %v7297
    %v7369 = vunpack.c.l.b16 %v7298
    %v7370 = vunpack.c.l.b16 %v7299
    %v7371 = vunpack.c.l.b16 %v7300
    %v7372 = vunpack.c.l.b16 %v7301
    %v7373 = vunpack.c.l.b16 %v7302
    %v7374 = vunpack.c.l.b16 %v7303
    %v7375 = vunpack.c.l.b16 %v7304
    %v7376 = vunpack.c.l.b16 %v7305
    %v7377 = vunpack.c.l.b16 %v7306
    %v7378 = vunpack.c.l.b16 %v7307
    %v7379 = vunpack.c.l.b16 %v7308
    %v7380 = vunpack.c.l.b16 %v7309
    %v7381 = vunpack.c.l.b16 %v7310
    %v7382 = vpack.c.b16 %v7351, %v7350
    %v7383 = vpack.c.b16 %v7353, %v7352
    %v7384 = vpack.c.b16 %v7355, %v7354
    %v7385 = vpack.c.b16 %v7357, %v7356
    %v7386 = vpack.c.b16 %v7359, %v7358
    %v7387 = vpack.c.b16 %v7361, %v7360
    %v7388 = vpack.c.b16 %v7363, %v7362
    %v7389 = vpack.c.b16 %v7365, %v7364
    %v7390 = vpack.c.b16 %v7367, %v7366
    %v7391 = vpack.c.b16 %v7369, %v7368
    %v7392 = vpack.c.b16 %v7371, %v7370
    %v7393 = vpack.c.b16 %v7373, %v7372
    %v7394 = vpack.c.b16 %v7375, %v7374
    %v7395 = vpack.c.b16 %v7377, %v7376
    %v7396 = vpack.c.b16 %v7379, %v7378
    %v7397 = vpack.c.b16 %v7381, %v7380
    %7414 = vmatprep.subr.bf16.mxu0 0
    %7415 = vmatpush1.bf16.msra.mxu0 %v7382
    %7416 = vmatprep.subr.bf16.mxu0 0
    %7417 = vmatpush1.bf16.msra.mxu0 %v7383
    %7418 = vmatprep.subr.bf16.mxu0 0
    %7419 = vmatpush1.bf16.msra.mxu0 %v7384
    %7420 = vmatprep.subr.bf16.mxu0 0
    %7421 = vmatpush1.bf16.msra.mxu0 %v7385
    %7422 = vmatprep.subr.bf16.mxu0 0
    %7423 = vmatpush1.bf16.msra.mxu0 %v7386
    %7424 = vmatprep.subr.bf16.mxu0 0
    %7425 = vmatpush1.bf16.msra.mxu0 %v7387
    %7426 = vmatprep.subr.bf16.mxu0 0
    %7427 = vmatpush1.bf16.msra.mxu0 %v7388
    %7428 = vmatprep.subr.bf16.mxu0 0
    %7429 = vmatpush1.bf16.msra.mxu0 %v7389
    %7430 = vmatprep.subr.bf16.mxu0 0
    %7431 = vmatpush1.bf16.msra.mxu0 %v7390
    %7432 = vmatprep.subr.bf16.mxu0 0
    %7433 = vmatpush1.bf16.msra.mxu0 %v7391
    %7434 = vmatprep.subr.bf16.mxu0 0
    %7435 = vmatpush1.bf16.msra.mxu0 %v7392
    %7436 = vmatprep.subr.bf16.mxu0 0
    %7437 = vmatpush1.bf16.msra.mxu0 %v7393
    %7438 = vmatprep.subr.bf16.mxu0 0
    %7439 = vmatpush1.bf16.msra.mxu0 %v7394
    %7440 = vmatprep.subr.bf16.mxu0 0
    %7441 = vmatpush1.bf16.msra.mxu0 %v7395
    %7442 = vmatprep.subr.bf16.mxu0 0
    %7443 = vmatpush1.bf16.msra.mxu0 %v7396
    %7444 = vmatprep.subr.bf16.mxu0 0
    %7445 = vmatpush1.bf16.msra.mxu0 %v7397
    %7446 = vmatprep.mubr.bf16.mxu0 %v7278
    %7447 = vmatmul.mubr.bf16.gmra.mrb[0].mxu0 %v7277
    %v7448 = vpop.f32.mrb[0].mxu0
    %v7449 = vadd.f32 %v7316, %v7448
    %v7450 = vpop.f32.mrb[0].mxu0
    %v7451 = vpop.f32.mrb[0].mxu0
    %v7452 = vpop.f32.mrb[0].mxu0
    %7453 = vdwg.mxu0
    %7454 = vst [vmem:[#allocation15] sm:$0xff] %v7449
    // Predicated region
    $region58: #{tpu_custom_call.1} parent=1 // pred_check
      _
    $region59: #{tpu_custom_call.1} parent=1 // pred_check_branch
      %7456 = sbr.rel (0) target = $region61
    $region60: #{tpu_custom_call.1} parent=1 // pred_region
      %s7458 = ssub.s32 128, 128
      %7459 = vsyncadd [#allocation5], %s7458
      %s7461 = sshll.u32 [#allocation15], 4
      %s7462 = int_to_ptr.vmem [resolvable:$true] %s7461
      %7464 = dma.vmem_to_hbm [thread:$0]  %s7462, 128, %s7, [#allocation5]
    $region61: #{tpu_custom_call.1} parent=1 // pred_fallthru
      _
    // Predicated region
    $region62: #{tpu_custom_call.1} parent=1 // pred_check
      _
    $region63: #{tpu_custom_call.1} parent=1 // pred_check_branch
      %7466 = sbr.rel (0) target = $region65
    $region64: #{tpu_custom_call.1} parent=1 // pred_region
      %7467 = dma.done [#allocation5], 128
    $region65: #{tpu_custom_call.1} parent=1 // pred_fallthru
      _
    %7468 = vsyncpa [#allocation4], 1
    %7469 = vsyncpa [#allocation7], 1
    %7470 = vsyncpa [#allocation10], 1
    %7471 = vsyncpa [#allocation13], 1
    %7472 = vsyncpa [#allocation5], 1

</llo_original>
